<compile_context>
chip_gen: v6e
topology: v6e:2x2x1
jax: 0.10.0
libtpu: 0.0.40
codegen_flags: <defaults>
</compile_context>

<pallas_src>
import functools
import math

import jax
import jax.numpy as jnp
from jax import lax
from jax.experimental import pallas as pl
from jax.experimental.pallas import tpu as pltpu

_EPS = 1e-5


# ----------------------------- in-kernel helpers -----------------------------
def _mxu_dot_bf16x3(a, b):
    """f32 x f32 matmul on the MXU as 3 bf16 passes (emulates Precision.HIGH).

    ~2x fewer vmatmul pushes than f32 Precision.HIGHEST (6 passes) while
    keeping ~1e-6 relative error; BN/ReLU math elsewhere stays f32 (v5e VPU).
    """
    a_hi = a.astype(jnp.bfloat16)
    a_lo = (a - a_hi.astype(jnp.float32)).astype(jnp.bfloat16)
    b_hi = b.astype(jnp.bfloat16)
    b_lo = (b - b_hi.astype(jnp.float32)).astype(jnp.bfloat16)
    acc = jnp.dot(a_hi, b_hi, preferred_element_type=jnp.float32)
    acc = acc + jnp.dot(a_lo, b_hi, preferred_element_type=jnp.float32)
    acc = acc + jnp.dot(a_hi, b_lo, preferred_element_type=jnp.float32)
    return acc


def _store_stats(st_ref, x2d):
    """Single-pass BN stats: per-channel sum / sum-of-squares of x2d (M, C)."""
    c = x2d.shape[-1]
    st_ref[:, 0:1, :] = jnp.sum(x2d, axis=0, keepdims=True).reshape(1, 1, c)
    st_ref[:, 1:2, :] = jnp.sum(x2d * x2d, axis=0, keepdims=True).reshape(1, 1, c)


def _im2col_matmul(x_pad4, w_ref, col_ref, *, h_out, w_out, cin, stride, dil):
    """x_pad4: (1, Hp, Wp, cin) padded image; w_ref: (9*cin, cout) repacked weights.

    Packs the 9 taps into col_ref (M, 9*cin) and does a single MXU matmul."""
    m = h_out * w_out
    for kh in range(3):
        for kw in range(3):
            tap = lax.slice(
                x_pad4,
                (0, kh * dil, kw * dil, 0),
                (1, kh * dil + (h_out - 1) * stride + 1,
                 kw * dil + (w_out - 1) * stride + 1, cin),
                (1, stride, stride, 1))
            k = kh * 3 + kw
            col_ref[:, k * cin:(k + 1) * cin] = tap.reshape(m, cin)
    return _mxu_dot_bf16x3(col_ref[...], w_ref[...])


# --------------------------------- kernels -----------------------------------
def _conv1_kernel(*refs, h_out, w_out, cin, cout, stride, dil, has_map):
    """conv1 (and skip 1x1 conv) for one image + partial BN statistics."""
    if has_map:
        (xpad_ref, xs_ref, w1_ref, wm_ref,
         raw1_ref, st1_ref, rawm_ref, stm_ref, col_ref) = refs
    else:
        xpad_ref, w1_ref, raw1_ref, st1_ref, col_ref = refs

    raw1 = _im2col_matmul(xpad_ref[...], w1_ref, col_ref,
                          h_out=h_out, w_out=w_out, cin=cin,
                          stride=stride, dil=dil)                 # (M, cout)
    raw1_ref[...] = raw1.reshape(1, h_out, w_out, cout)
    _store_stats(st1_ref, raw1)

    if has_map:
        xs = xs_ref[...].reshape(h_out * w_out, cin)
        rawm = _mxu_dot_bf16x3(xs, wm_ref[...])                   # (M, cout)
        rawm_ref[...] = rawm.reshape(1, h_out, w_out, cout)
        _store_stats(stm_ref, rawm)


def _conv2_kernel(raw1_ref, s1_ref, b1_ref, w2_ref, raw2_ref, st2_ref,
                  pad_ref, col_ref, *, h_out, w_out, cout, dil):
    """BN1 (precomputed scale/bias FMA) + ReLU -> conv2 + partial BN stats."""
    s1 = s1_ref[...].reshape(1, 1, 1, cout)
    b1 = b1_ref[...].reshape(1, 1, 1, cout)
    h1 = jnp.maximum(raw1_ref[...] * s1 + b1, 0.0)                # (1, h, w, cout)

    # Zero-pad by `dil` for conv2: only the halo is zeroed (interior is fully
    # overwritten); redone each grid step so the scratch carries no state
    # across the "parallel" batch iterations.
    hp, wp = h_out + 2 * dil, w_out + 2 * dil
    pad_ref[:, 0:dil, :, :] = jnp.zeros((1, dil, wp, cout), jnp.float32)
    pad_ref[:, dil + h_out:hp, :, :] = jnp.zeros((1, dil, wp, cout), jnp.float32)
    pad_ref[:, :, 0:dil, :] = jnp.zeros((1, hp, dil, cout), jnp.float32)
    pad_ref[:, :, dil + w_out:wp, :] = jnp.zeros((1, hp, dil, cout), jnp.float32)
    pad_ref[:, dil:dil + h_out, dil:dil + w_out, :] = h1

    raw2 = _im2col_matmul(pad_ref[...], w2_ref, col_ref,
                          h_out=h_out, w_out=w_out, cin=cout,
                          stride=1, dil=dil)                      # (M, cout)
    raw2_ref[...] = raw2.reshape(1, h_out, w_out, cout)
    _store_stats(st2_ref, raw2)


def _epilogue_kernel(*refs, wc, has_map):
    """BN2 + skip (+BN) + ReLU, entirely in lane-dense (H, W*Cout) layout."""
    if has_map:
        raw2_ref, s2_ref, b2_ref, skip_ref, sm_ref, bm_ref, out_ref = refs
    else:
        raw2_ref, s2_ref, b2_ref, skip_ref, out_ref = refs
    s2 = s2_ref[...].reshape(1, 1, wc)
    b2 = b2_ref[...].reshape(1, 1, wc)
    y2 = raw2_ref[...] * s2 + b2
    if has_map:
        sm = sm_ref[...].reshape(1, 1, wc)
        bm = bm_ref[...].reshape(1, 1, wc)
        ysk = skip_ref[...] * sm + bm
    else:
        ysk = skip_ref[...]
    out_ref[...] = jnp.maximum(y2 + ysk, 0.0)


# ------------------------------- wrapper glue --------------------------------
def _scale_bias(stats, gamma, beta, count):
    """Finalize training-mode BN from per-image partial sums: stats (N, 2, C)."""
    tot = jnp.sum(stats, axis=0)                       # (2, C)
    mean = tot[0] / count
    var = tot[1] / count - mean * mean                 # biased (training) variance
    scale = gamma * lax.rsqrt(var + _EPS)
    bias = beta - mean * scale
    return scale.reshape(1, -1), bias.reshape(1, -1)


def _mosaic_params(block_shapes, scratch_shapes):
    """Explicit VMEM budget from the actual block/scratch shapes (f32)."""
    blk = sum(4 * math.prod(s) for s in block_shapes)
    scr = sum(4 * math.prod(s) for s in scratch_shapes)
    limit = int(max(16 << 20, 4 * blk + 2 * scr + (4 << 20)))
    return pltpu.CompilerParams(dimension_semantics=("parallel",),
                                vmem_limit_bytes=limit)


@functools.partial(jax.jit, static_argnames=("stride", "dilation"))
def resblock_forward(x_nchw, params, stride=1, dilation=1):
    """Pallas ResBlock forward.  x_nchw: (N, Cin, H, W) f32, PyTorch layout."""
    assert stride in (1, 2)
    w1, g1, b1, w2, g2, b2, wm, gm, bm = params
    n, cin, h, w = x_nchw.shape
    cout = w1.shape[0]
    dil = dilation
    h_out = (h - 1) // stride + 1
    w_out = (w - 1) // stride + 1
    m = h_out * w_out
    has_map = cin != cout
    f32 = jnp.float32

    # ---- wrapper-side layout plumbing (NCHW->NHWC, padding, weight repack) ---
    x_nhwc = jnp.transpose(x_nchw, (0, 2, 3, 1)).astype(f32)
    x_pad = jnp.pad(x_nhwc, ((0, 0), (dil, dil), (dil, dil), (0, 0)))
    x_skip = x_nhwc[:, ::stride, ::stride, :]               # (n, h_out, w_out, cin)

    w1_col = jnp.transpose(w1, (2, 3, 1, 0)).reshape(9 * cin, cout).astype(f32)
    w2_col = jnp.transpose(w2, (2, 3, 1, 0)).reshape(9 * cout, cout).astype(f32)
    wm_col = jnp.transpose(wm, (2, 3, 1, 0)).reshape(cin, cout).astype(f32)

    hp, wp = h + 2 * dil, w + 2 * dil

    # ------------- call A: conv1 (+ skip 1x1 conv) + partial BN stats ---------
    in_a = [x_pad]
    in_specs_a = [pl.BlockSpec((1, hp, wp, cin), lambda i: (i, 0, 0, 0))]
    if has_map:
        in_a.append(x_skip.reshape(n, m, cin))
        in_specs_a.append(pl.BlockSpec((1, m, cin), lambda i: (i, 0, 0)))
    in_a.append(w1_col)
    in_specs_a.append(pl.BlockSpec((9 * cin, cout), lambda i: (0, 0)))
    if has_map:
        in_a.append(wm_col)
        in_specs_a.append(pl.BlockSpec((cin, cout), lambda i: (0, 0)))

    out_shapes_a = [jax.ShapeDtypeStruct((n, h_out, w_out, cout), f32),
                    jax.ShapeDtypeStruct((n, 2, cout), f32)]
    out_specs_a = [pl.BlockSpec((1, h_out, w_out, cout), lambda i: (i, 0, 0, 0)),
                   pl.BlockSpec((1, 2, cout), lambda i: (i, 0, 0))]
    if has_map:
        out_shapes_a += [jax.ShapeDtypeStruct((n, h_out, w_out, cout), f32),
                         jax.ShapeDtypeStruct((n, 2, cout), f32)]
        out_specs_a += [pl.BlockSpec((1, h_out, w_out, cout), lambda i: (i, 0, 0, 0)),
                        pl.BlockSpec((1, 2, cout), lambda i: (i, 0, 0))]

    res_a = pl.pallas_call(
        functools.partial(_conv1_kernel, h_out=h_out, w_out=w_out, cin=cin,
                          cout=cout, stride=stride, dil=dil, has_map=has_map),
        grid=(n,),
        in_specs=in_specs_a,
        out_specs=tuple(out_specs_a),
        out_shape=tuple(out_shapes_a),
        scratch_shapes=[pltpu.VMEM((m, 9 * cin), f32)],
        compiler_params=_mosaic_params(
            [(1, hp, wp, cin), (1, m, cin), (9 * cin, cout), (cin, cout),
             (1, h_out, w_out, cout), (1, 2, cout),
             (1, h_out, w_out, cout), (1, 2, cout)],
            [(m, 9 * cin)]),
    )(*in_a)
    if has_map:
        raw1, st1, rawm, stm = res_a
    else:
        raw1, st1 = res_a

    scale1, bias1 = _scale_bias(st1, g1.astype(f32), b1.astype(f32), n * m)

    # ------------- call B: BN1 + ReLU -> conv2 + partial BN stats -------------
    raw2, st2 = pl.pallas_call(
        functools.partial(_conv2_kernel, h_out=h_out, w_out=w_out, cout=cout,
                          dil=dil),
        grid=(n,),
        in_specs=[pl.BlockSpec((1, h_out, w_out, cout), lambda i: (i, 0, 0, 0)),
                  pl.BlockSpec((1, cout), lambda i: (0, 0)),
                  pl.BlockSpec((1, cout), lambda i: (0, 0)),
                  pl.BlockSpec((9 * cout, cout), lambda i: (0, 0))],
        out_specs=(pl.BlockSpec((1, h_out, w_out, cout), lambda i: (i, 0, 0, 0)),
                   pl.BlockSpec((1, 2, cout), lambda i: (i, 0, 0))),
        out_shape=(jax.ShapeDtypeStruct((n, h_out, w_out, cout), f32),
                   jax.ShapeDtypeStruct((n, 2, cout), f32)),
        scratch_shapes=[pltpu.VMEM((1, h_out + 2 * dil, w_out + 2 * dil, cout), f32),
                        pltpu.VMEM((m, 9 * cout), f32)],
        compiler_params=_mosaic_params(
            [(1, h_out, w_out, cout), (1, cout), (1, cout), (9 * cout, cout),
             (1, h_out, w_out, cout), (1, 2, cout)],
            [(1, h_out + 2 * dil, w_out + 2 * dil, cout), (m, 9 * cout)]),
    )(raw1, scale1, bias1, w2_col)

    scale2, bias2 = _scale_bias(st2, g2.astype(f32), b2.astype(f32), n * m)

    # ------------- call C: BN2 + skip + ReLU in lane-dense layout -------------
    wc = w_out * cout
    # HBM reshapes (n,h,w,c) -> (n,h,w*c) are contiguous (free); channel index
    # cycles fastest along the lane axis, so scale/bias are tiled to match.
    in_c = [raw2.reshape(n, h_out, wc),
            jnp.tile(scale2, (1, w_out)), jnp.tile(bias2, (1, w_out))]
    in_specs_c = [pl.BlockSpec((1, h_out, wc), lambda i: (i, 0, 0)),
                  pl.BlockSpec((1, wc), lambda i: (0, 0)),
                  pl.BlockSpec((1, wc), lambda i: (0, 0))]
    if has_map:
        scale_m, bias_m = _scale_bias(stm, gm.astype(f32), bm.astype(f32), n * m)
        in_c += [rawm.reshape(n, h_out, wc),
                 jnp.tile(scale_m, (1, w_out)), jnp.tile(bias_m, (1, w_out))]
        in_specs_c += [pl.BlockSpec((1, h_out, wc), lambda i: (i, 0, 0)),
                       pl.BlockSpec((1, wc), lambda i: (0, 0)),
                       pl.BlockSpec((1, wc), lambda i: (0, 0))]
    else:
        in_c.append(x_skip.reshape(n, h_out, wc))            # cin == cout here
        in_specs_c.append(pl.BlockSpec((1, h_out, wc), lambda i: (i, 0, 0)))

    out_l = pl.pallas_call(
        functools.partial(_epilogue_kernel, wc=wc, has_map=has_map),
        grid=(n,),
        in_specs=in_specs_c,
        out_specs=pl.BlockSpec((1, h_out, wc), lambda i: (i, 0, 0)),
        out_shape=jax.ShapeDtypeStruct((n, h_out, wc), f32),
        compiler_params=_mosaic_params([(1, h_out, wc)] * 5 + [(1, wc)] * 4, []),
    )(*in_c)

    out_nhwc = out_l.reshape(n, h_out, w_out, cout)
    return jnp.transpose(out_nhwc, (0, 3, 1, 2))              # back to NCHW


# ------------------------------ pure-JAX reference ----------------------------
def _bn_ref(x, gamma, beta, eps=1e-5):
    mean = x.mean(axis=(0, 2, 3), keepdims=True)
    var = ((x - mean) ** 2).mean(axis=(0, 2, 3), keepdims=True)
    return ((x - mean) / jnp.sqrt(var + eps) * gamma.reshape(1, -1, 1, 1)
            + beta.reshape(1, -1, 1, 1))


def resblock_ref(x, params, stride=1, dilation=1):
    w1, g1, b1, w2, g2, b2, wm, gm, bm = params

    def conv(x_, w_, s, d, p):
        return lax.conv_general_dilated(
            x_, w_, (s, s), ((p, p), (p, p)), rhs_dilation=(d, d),
            dimension_numbers=('NCHW', 'OIHW', 'NCHW'),
            precision=lax.Precision.HIGHEST)

    cin, cout = x.shape[1], w1.shape[0]
    y = x
    if cin != cout:
        y = _bn_ref(conv(x, wm, stride, 1, 0), gm, bm)
    out = jax.nn.relu(_bn_ref(conv(x, w1, stride, dilation, dilation), g1, b1))
    out = _bn_ref(conv(out, w2, 1, dilation, dilation), g2, b2)
    return jax.nn.relu(out + y)


if __name__ == "__main__":
    N, CIN, COUT, H, W = 2, 4, 8, 16, 16
    STRIDE, DIL = 1, 1

    key = jax.random.PRNGKey(0)
    keys = jax.random.split(key, 8)
    x = jax.random.normal(keys[0], (N, CIN, H, W), jnp.float32)

    # Deterministic parameter init (shapes mirror the PyTorch module).
    w1 = 0.2 * jax.random.normal(keys[1], (COUT, CIN, 3, 3), jnp.float32)
    w2 = 0.2 * jax.random.normal(keys[2], (COUT, COUT, 3, 3), jnp.float32)
    wm = 0.2 * jax.random.normal(keys[3], (COUT, CIN, 1, 1), jnp.float32)
    g1 = 1.0 + 0.1 * jax.random.normal(keys[4], (COUT,), jnp.float32)
    b1 = 0.1 * jax.random.normal(keys[5], (COUT,), jnp.float32)
    g2 = 1.0 + 0.1 * jax.random.normal(keys[6], (COUT,), jnp.float32)
    b2 = 0.1 * jax.random.normal(keys[7], (COUT,), jnp.float32)
    gm = jnp.ones((COUT,), jnp.float32)
    bm = jnp.zeros((COUT,), jnp.float32)
    params = (w1, g1, b1, w2, g2, b2, wm, gm, bm)

    out = jax.block_until_ready(
        resblock_forward(x, params, stride=STRIDE, dilation=DIL))
    ref = jax.block_until_ready(resblock_ref(x, params, STRIDE, DIL))

    assert out.shape == (N, COUT, H, W), out.shape
    # bf16_3x MXU path: ~1e-6 relative matmul error; 1e-3 keeps a tight check.
    assert jnp.allclose(out, ref, rtol=1e-3, atol=1e-3), \
        f"max abs err = {jnp.max(jnp.abs(out - ref))}"
    print("KERNEL_OK")
</pallas_src>

<mosaic_0001>
module attributes {stable_mosaic.version = 11 : i64} {
  func.func @_conv1_kernel(%arg0: i32, %arg1: memref<1x18x18x4xf32, #tpu.memory_space<vmem>>, %arg2: memref<1x256x4xf32, #tpu.memory_space<vmem>>, %arg3: memref<36x8xf32, #tpu.memory_space<vmem>>, %arg4: memref<4x8xf32, #tpu.memory_space<vmem>>, %arg5: memref<1x16x16x8xf32, #tpu.memory_space<vmem>>, %arg6: memref<1x2x8xf32, #tpu.memory_space<vmem>>, %arg7: memref<1x16x16x8xf32, #tpu.memory_space<vmem>>, %arg8: memref<1x2x8xf32, #tpu.memory_space<vmem>>, %arg9: memref<256x36xf32, #tpu.memory_space<vmem>>) attributes {dimension_semantics = [#tpu.dimension_semantics<parallel>], iteration_bounds = array<i64: 2>, scalar_prefetch = 0 : i64, scratch_operands = 1 : i64, tpu.core_type = #tpu.core_type<tc>, window_params = [{transform_indices = @transform_0, window_bounds = array<i64: 1, 18, 18, 4>}, {transform_indices = @transform_1, window_bounds = array<i64: 1, 256, 4>}, {pipeline_mode = #tpu.pipeline_mode<synchronous>, transform_indices = @transform_2, window_bounds = array<i64: 36, 8>}, {pipeline_mode = #tpu.pipeline_mode<synchronous>, transform_indices = @transform_3, window_bounds = array<i64: 4, 8>}, {transform_indices = @transform_4, window_bounds = array<i64: 1, 16, 16, 8>}, {transform_indices = @transform_5, window_bounds = array<i64: 1, 2, 8>}, {transform_indices = @transform_6, window_bounds = array<i64: 1, 16, 16, 8>}, {transform_indices = @transform_7, window_bounds = array<i64: 1, 2, 8>}]} {
    %c0 = arith.constant 0 : index
    %c0_0 = arith.constant 0 : index
    %c0_1 = arith.constant 0 : index
    %c0_2 = arith.constant 0 : index
    %0 = vector.load %arg1[%c0, %c0_0, %c0_1, %c0_2] : memref<1x18x18x4xf32, #tpu.memory_space<vmem>>, vector<1x18x18x4xf32>
    %1 = vector.extract_strided_slice %0 {offsets = [0, 0, 0, 0], sizes = [1, 16, 16, 4], strides = [1, 1, 1, 1]} : vector<1x18x18x4xf32> to vector<1x16x16x4xf32>
    %2 = vector.shape_cast %1 : vector<1x16x16x4xf32> to vector<256x4xf32>
    %c0_3 = arith.constant 0 : index
    %c0_4 = arith.constant 0 : index
    %3 = vector.load %arg9[%c0_3, %c0_4] : memref<256x36xf32, #tpu.memory_space<vmem>>, vector<256x4xf32>
    tpu.vector_store %arg9[%c0_3, %c0_4], %2 {strides = array<i32>} : memref<256x36xf32, #tpu.memory_space<vmem>>, vector<256x4xf32>,
    %4 = vector.extract_strided_slice %0 {offsets = [0, 0, 1, 0], sizes = [1, 16, 16, 4], strides = [1, 1, 1, 1]} : vector<1x18x18x4xf32> to vector<1x16x16x4xf32>
    %5 = vector.shape_cast %4 : vector<1x16x16x4xf32> to vector<256x4xf32>
    %c0_5 = arith.constant 0 : index
    %c4 = arith.constant 4 : index
    %6 = vector.load %arg9[%c0_5, %c4] : memref<256x36xf32, #tpu.memory_space<vmem>>, vector<256x4xf32>
    tpu.vector_store %arg9[%c0_5, %c4], %5 {strides = array<i32>} : memref<256x36xf32, #tpu.memory_space<vmem>>, vector<256x4xf32>,
    %7 = vector.extract_strided_slice %0 {offsets = [0, 0, 2, 0], sizes = [1, 16, 16, 4], strides = [1, 1, 1, 1]} : vector<1x18x18x4xf32> to vector<1x16x16x4xf32>
    %8 = vector.shape_cast %7 : vector<1x16x16x4xf32> to vector<256x4xf32>
    %c0_6 = arith.constant 0 : index
    %c8 = arith.constant 8 : index
    %9 = vector.load %arg9[%c0_6, %c8] : memref<256x36xf32, #tpu.memory_space<vmem>>, vector<256x4xf32>
    tpu.vector_store %arg9[%c0_6, %c8], %8 {strides = array<i32>} : memref<256x36xf32, #tpu.memory_space<vmem>>, vector<256x4xf32>,
    %10 = vector.extract_strided_slice %0 {offsets = [0, 1, 0, 0], sizes = [1, 16, 16, 4], strides = [1, 1, 1, 1]} : vector<1x18x18x4xf32> to vector<1x16x16x4xf32>
    %11 = vector.shape_cast %10 : vector<1x16x16x4xf32> to vector<256x4xf32>
    %c0_7 = arith.constant 0 : index
    %c12 = arith.constant 12 : index
    %12 = vector.load %arg9[%c0_7, %c12] : memref<256x36xf32, #tpu.memory_space<vmem>>, vector<256x4xf32>
    tpu.vector_store %arg9[%c0_7, %c12], %11 {strides = array<i32>} : memref<256x36xf32, #tpu.memory_space<vmem>>, vector<256x4xf32>,
    %13 = vector.extract_strided_slice %0 {offsets = [0, 1, 1, 0], sizes = [1, 16, 16, 4], strides = [1, 1, 1, 1]} : vector<1x18x18x4xf32> to vector<1x16x16x4xf32>
    %14 = vector.shape_cast %13 : vector<1x16x16x4xf32> to vector<256x4xf32>
    %c0_8 = arith.constant 0 : index
    %c16 = arith.constant 16 : index
    %15 = vector.load %arg9[%c0_8, %c16] : memref<256x36xf32, #tpu.memory_space<vmem>>, vector<256x4xf32>
    tpu.vector_store %arg9[%c0_8, %c16], %14 {strides = array<i32>} : memref<256x36xf32, #tpu.memory_space<vmem>>, vector<256x4xf32>,
    %16 = vector.extract_strided_slice %0 {offsets = [0, 1, 2, 0], sizes = [1, 16, 16, 4], strides = [1, 1, 1, 1]} : vector<1x18x18x4xf32> to vector<1x16x16x4xf32>
    %17 = vector.shape_cast %16 : vector<1x16x16x4xf32> to vector<256x4xf32>
    %c0_9 = arith.constant 0 : index
    %c20 = arith.constant 20 : index
    %18 = vector.load %arg9[%c0_9, %c20] : memref<256x36xf32, #tpu.memory_space<vmem>>, vector<256x4xf32>
    tpu.vector_store %arg9[%c0_9, %c20], %17 {strides = array<i32>} : memref<256x36xf32, #tpu.memory_space<vmem>>, vector<256x4xf32>,
    %19 = vector.extract_strided_slice %0 {offsets = [0, 2, 0, 0], sizes = [1, 16, 16, 4], strides = [1, 1, 1, 1]} : vector<1x18x18x4xf32> to vector<1x16x16x4xf32>
    %20 = vector.shape_cast %19 : vector<1x16x16x4xf32> to vector<256x4xf32>
    %c0_10 = arith.constant 0 : index
    %c24 = arith.constant 24 : index
    %21 = vector.load %arg9[%c0_10, %c24] : memref<256x36xf32, #tpu.memory_space<vmem>>, vector<256x4xf32>
    tpu.vector_store %arg9[%c0_10, %c24], %20 {strides = array<i32>} : memref<256x36xf32, #tpu.memory_space<vmem>>, vector<256x4xf32>,
    %22 = vector.extract_strided_slice %0 {offsets = [0, 2, 1, 0], sizes = [1, 16, 16, 4], strides = [1, 1, 1, 1]} : vector<1x18x18x4xf32> to vector<1x16x16x4xf32>
    %23 = vector.shape_cast %22 : vector<1x16x16x4xf32> to vector<256x4xf32>
    %c0_11 = arith.constant 0 : index
    %c28 = arith.constant 28 : index
    %24 = vector.load %arg9[%c0_11, %c28] : memref<256x36xf32, #tpu.memory_space<vmem>>, vector<256x4xf32>
    tpu.vector_store %arg9[%c0_11, %c28], %23 {strides = array<i32>} : memref<256x36xf32, #tpu.memory_space<vmem>>, vector<256x4xf32>,
    %25 = vector.extract_strided_slice %0 {offsets = [0, 2, 2, 0], sizes = [1, 16, 16, 4], strides = [1, 1, 1, 1]} : vector<1x18x18x4xf32> to vector<1x16x16x4xf32>
    %26 = vector.shape_cast %25 : vector<1x16x16x4xf32> to vector<256x4xf32>
    %c0_12 = arith.constant 0 : index
    %c32 = arith.constant 32 : index
    %27 = vector.load %arg9[%c0_12, %c32] : memref<256x36xf32, #tpu.memory_space<vmem>>, vector<256x4xf32>
    tpu.vector_store %arg9[%c0_12, %c32], %26 {strides = array<i32>} : memref<256x36xf32, #tpu.memory_space<vmem>>, vector<256x4xf32>,
    %c0_13 = arith.constant 0 : index
    %c0_14 = arith.constant 0 : index
    %28 = vector.load %arg9[%c0_13, %c0_14] : memref<256x36xf32, #tpu.memory_space<vmem>>, vector<256x36xf32>
    %c0_15 = arith.constant 0 : index
    %c0_16 = arith.constant 0 : index
    %29 = vector.load %arg3[%c0_15, %c0_16] : memref<36x8xf32, #tpu.memory_space<vmem>>, vector<36x8xf32>
    %30 = arith.truncf %28 : vector<256x36xf32> to vector<256x36xbf16>
    %31 = arith.extf %30 : vector<256x36xbf16> to vector<256x36xf32>
    %32 = arith.subf %28, %31 : vector<256x36xf32>
    %33 = arith.truncf %32 : vector<256x36xf32> to vector<256x36xbf16>
    %34 = arith.truncf %29 : vector<36x8xf32> to vector<36x8xbf16>
    %35 = arith.extf %34 : vector<36x8xbf16> to vector<36x8xf32>
    %36 = arith.subf %29, %35 : vector<36x8xf32>
    %37 = arith.truncf %36 : vector<36x8xf32> to vector<36x8xbf16>
    %cst = arith.constant dense<0.000000e+00> : vector<256x8xf32>
    %38 = tpu.matmul %30, %34, %cst {dimension_numbers = #tpu.dot_dimension_numbers<[1], [0], [0], [1], [0, 0, 1, 1], [], []>} : vector<256x36xbf16>, vector<36x8xbf16>, vector<256x8xf32> -> vector<256x8xf32>
    %cst_17 = arith.constant dense<0.000000e+00> : vector<256x8xf32>
    %39 = tpu.matmul %33, %34, %cst_17 {dimension_numbers = #tpu.dot_dimension_numbers<[1], [0], [0], [1], [0, 0, 1, 1], [], []>} : vector<256x36xbf16>, vector<36x8xbf16>, vector<256x8xf32> -> vector<256x8xf32>
    %40 = arith.addf %38, %39 : vector<256x8xf32>
    %cst_18 = arith.constant dense<0.000000e+00> : vector<256x8xf32>
    %41 = tpu.matmul %30, %37, %cst_18 {dimension_numbers = #tpu.dot_dimension_numbers<[1], [0], [0], [1], [0, 0, 1, 1], [], []>} : vector<256x36xbf16>, vector<36x8xbf16>, vector<256x8xf32> -> vector<256x8xf32>
    %42 = arith.addf %40, %41 : vector<256x8xf32>
    %43 = vector.shape_cast %42 : vector<256x8xf32> to vector<1x16x16x8xf32>
    %c0_19 = arith.constant 0 : index
    %c0_20 = arith.constant 0 : index
    %c0_21 = arith.constant 0 : index
    %c0_22 = arith.constant 0 : index
    %44 = vector.load %arg5[%c0_19, %c0_20, %c0_21, %c0_22] : memref<1x16x16x8xf32, #tpu.memory_space<vmem>>, vector<1x16x16x8xf32>
    tpu.vector_store %arg5[%c0_19, %c0_20, %c0_21, %c0_22], %43 {strides = array<i32>} : memref<1x16x16x8xf32, #tpu.memory_space<vmem>>, vector<1x16x16x8xf32>,
    %cst_23 = arith.constant dense<0.000000e+00> : vector<8xf32>
    %45 = vector.multi_reduction <add>, %42, %cst_23 [0] : vector<256x8xf32> to vector<8xf32>
    %46 = vector.shape_cast %45 : vector<8xf32> to vector<1x8xf32>
    %47 = vector.shape_cast %46 : vector<1x8xf32> to vector<1x1x8xf32>
    %c0_24 = arith.constant 0 : index
    %c0_25 = arith.constant 0 : index
    %c0_26 = arith.constant 0 : index
    %48 = vector.load %arg6[%c0_24, %c0_25, %c0_26] : memref<1x2x8xf32, #tpu.memory_space<vmem>>, vector<1x1x8xf32>
    tpu.vector_store %arg6[%c0_24, %c0_25, %c0_26], %47 {strides = array<i32>} : memref<1x2x8xf32, #tpu.memory_space<vmem>>, vector<1x1x8xf32>,
    %49 = arith.mulf %42, %42 : vector<256x8xf32>
    %cst_27 = arith.constant dense<0.000000e+00> : vector<8xf32>
    %50 = vector.multi_reduction <add>, %49, %cst_27 [0] : vector<256x8xf32> to vector<8xf32>
    %51 = vector.shape_cast %50 : vector<8xf32> to vector<1x8xf32>
    %52 = vector.shape_cast %51 : vector<1x8xf32> to vector<1x1x8xf32>
    %c0_28 = arith.constant 0 : index
    %c1 = arith.constant 1 : index
    %c0_29 = arith.constant 0 : index
    %53 = vector.load %arg6[%c0_28, %c1, %c0_29] : memref<1x2x8xf32, #tpu.memory_space<vmem>>, vector<1x1x8xf32>
    tpu.vector_store %arg6[%c0_28, %c1, %c0_29], %52 {strides = array<i32>} : memref<1x2x8xf32, #tpu.memory_space<vmem>>, vector<1x1x8xf32>,
    %c0_30 = arith.constant 0 : index
    %c0_31 = arith.constant 0 : index
    %c0_32 = arith.constant 0 : index
    %54 = vector.load %arg2[%c0_30, %c0_31, %c0_32] : memref<1x256x4xf32, #tpu.memory_space<vmem>>, vector<1x256x4xf32>
    %55 = vector.shape_cast %54 : vector<1x256x4xf32> to vector<256x4xf32>
    %c0_33 = arith.constant 0 : index
    %c0_34 = arith.constant 0 : index
    %56 = vector.load %arg4[%c0_33, %c0_34] : memref<4x8xf32, #tpu.memory_space<vmem>>, vector<4x8xf32>
    %57 = arith.truncf %55 : vector<256x4xf32> to vector<256x4xbf16>
    %58 = arith.extf %57 : vector<256x4xbf16> to vector<256x4xf32>
    %59 = arith.subf %55, %58 : vector<256x4xf32>
    %60 = arith.truncf %59 : vector<256x4xf32> to vector<256x4xbf16>
    %61 = arith.truncf %56 : vector<4x8xf32> to vector<4x8xbf16>
    %62 = arith.extf %61 : vector<4x8xbf16> to vector<4x8xf32>
    %63 = arith.subf %56, %62 : vector<4x8xf32>
    %64 = arith.truncf %63 : vector<4x8xf32> to vector<4x8xbf16>
    %cst_35 = arith.constant dense<0.000000e+00> : vector<256x8xf32>
    %65 = tpu.matmul %57, %61, %cst_35 {dimension_numbers = #tpu.dot_dimension_numbers<[1], [0], [0], [1], [0, 0, 1, 1], [], []>} : vector<256x4xbf16>, vector<4x8xbf16>, vector<256x8xf32> -> vector<256x8xf32>
    %cst_36 = arith.constant dense<0.000000e+00> : vector<256x8xf32>
    %66 = tpu.matmul %60, %61, %cst_36 {dimension_numbers = #tpu.dot_dimension_numbers<[1], [0], [0], [1], [0, 0, 1, 1], [], []>} : vector<256x4xbf16>, vector<4x8xbf16>, vector<256x8xf32> -> vector<256x8xf32>
    %67 = arith.addf %65, %66 : vector<256x8xf32>
    %cst_37 = arith.constant dense<0.000000e+00> : vector<256x8xf32>
    %68 = tpu.matmul %57, %64, %cst_37 {dimension_numbers = #tpu.dot_dimension_numbers<[1], [0], [0], [1], [0, 0, 1, 1], [], []>} : vector<256x4xbf16>, vector<4x8xbf16>, vector<256x8xf32> -> vector<256x8xf32>
    %69 = arith.addf %67, %68 : vector<256x8xf32>
    %70 = vector.shape_cast %69 : vector<256x8xf32> to vector<1x16x16x8xf32>
    %c0_38 = arith.constant 0 : index
    %c0_39 = arith.constant 0 : index
    %c0_40 = arith.constant 0 : index
    %c0_41 = arith.constant 0 : index
    %71 = vector.load %arg7[%c0_38, %c0_39, %c0_40, %c0_41] : memref<1x16x16x8xf32, #tpu.memory_space<vmem>>, vector<1x16x16x8xf32>
    tpu.vector_store %arg7[%c0_38, %c0_39, %c0_40, %c0_41], %70 {strides = array<i32>} : memref<1x16x16x8xf32, #tpu.memory_space<vmem>>, vector<1x16x16x8xf32>,
    %cst_42 = arith.constant dense<0.000000e+00> : vector<8xf32>
    %72 = vector.multi_reduction <add>, %69, %cst_42 [0] : vector<256x8xf32> to vector<8xf32>
    %73 = vector.shape_cast %72 : vector<8xf32> to vector<1x8xf32>
    %74 = vector.shape_cast %73 : vector<1x8xf32> to vector<1x1x8xf32>
    %c0_43 = arith.constant 0 : index
    %c0_44 = arith.constant 0 : index
    %c0_45 = arith.constant 0 : index
    %75 = vector.load %arg8[%c0_43, %c0_44, %c0_45] : memref<1x2x8xf32, #tpu.memory_space<vmem>>, vector<1x1x8xf32>
    tpu.vector_store %arg8[%c0_43, %c0_44, %c0_45], %74 {strides = array<i32>} : memref<1x2x8xf32, #tpu.memory_space<vmem>>, vector<1x1x8xf32>,
    %76 = arith.mulf %69, %69 : vector<256x8xf32>
    %cst_46 = arith.constant dense<0.000000e+00> : vector<8xf32>
    %77 = vector.multi_reduction <add>, %76, %cst_46 [0] : vector<256x8xf32> to vector<8xf32>
    %78 = vector.shape_cast %77 : vector<8xf32> to vector<1x8xf32>
    %79 = vector.shape_cast %78 : vector<1x8xf32> to vector<1x1x8xf32>
    %c0_47 = arith.constant 0 : index
    %c1_48 = arith.constant 1 : index
    %c0_49 = arith.constant 0 : index
    %80 = vector.load %arg8[%c0_47, %c1_48, %c0_49] : memref<1x2x8xf32, #tpu.memory_space<vmem>>, vector<1x1x8xf32>
    tpu.vector_store %arg8[%c0_47, %c1_48, %c0_49], %79 {strides = array<i32>} : memref<1x2x8xf32, #tpu.memory_space<vmem>>, vector<1x1x8xf32>,
    return
  }
  func.func @transform_0(%arg0: i32) -> (i32, i32, i32, i32) {
    %c0_i32 = arith.constant 0 : i32
    %c0_i32_0 = arith.constant 0 : i32
    %c0_i32_1 = arith.constant 0 : i32
    %c0_i32_2 = arith.constant 0 : i32
    return %arg0, %c0_i32, %c0_i32_0, %c0_i32_1 : i32, i32, i32, i32
  }
  func.func @transform_1(%arg0: i32) -> (i32, i32, i32) {
    %c0_i32 = arith.constant 0 : i32
    %c0_i32_0 = arith.constant 0 : i32
    %c0_i32_1 = arith.constant 0 : i32
    return %arg0, %c0_i32, %c0_i32_0 : i32, i32, i32
  }
  func.func @transform_2(%arg0: i32) -> (i32, i32) {
    %c0_i32 = arith.constant 0 : i32
    %c0_i32_0 = arith.constant 0 : i32
    %c0_i32_1 = arith.constant 0 : i32
    return %c0_i32, %c0_i32_0 : i32, i32
  }
  func.func @transform_3(%arg0: i32) -> (i32, i32) {
    %c0_i32 = arith.constant 0 : i32
    %c0_i32_0 = arith.constant 0 : i32
    %c0_i32_1 = arith.constant 0 : i32
    return %c0_i32, %c0_i32_0 : i32, i32
  }
  func.func @transform_4(%arg0: i32) -> (i32, i32, i32, i32) {
    %c0_i32 = arith.constant 0 : i32
    %c0_i32_0 = arith.constant 0 : i32
    %c0_i32_1 = arith.constant 0 : i32
    %c0_i32_2 = arith.constant 0 : i32
    return %arg0, %c0_i32, %c0_i32_0, %c0_i32_1 : i32, i32, i32, i32
  }
  func.func @transform_5(%arg0: i32) -> (i32, i32, i32) {
    %c0_i32 = arith.constant 0 : i32
    %c0_i32_0 = arith.constant 0 : i32
    %c0_i32_1 = arith.constant 0 : i32
    return %arg0, %c0_i32, %c0_i32_0 : i32, i32, i32
  }
  func.func @transform_6(%arg0: i32) -> (i32, i32, i32, i32) {
    %c0_i32 = arith.constant 0 : i32
    %c0_i32_0 = arith.constant 0 : i32
    %c0_i32_1 = arith.constant 0 : i32
    %c0_i32_2 = arith.constant 0 : i32
    return %arg0, %c0_i32, %c0_i32_0, %c0_i32_1 : i32, i32, i32, i32
  }
  func.func @transform_7(%arg0: i32) -> (i32, i32, i32) {
    %c0_i32 = arith.constant 0 : i32
    %c0_i32_0 = arith.constant 0 : i32
    %c0_i32_1 = arith.constant 0 : i32
    return %arg0, %c0_i32, %c0_i32_0 : i32, i32, i32
  }
}

module attributes {stable_mosaic.version = 11 : i64} {
  func.func @_conv2_kernel(%arg0: i32, %arg1: memref<1x16x16x8xf32, #tpu.memory_space<vmem>>, %arg2: memref<1x8xf32, #tpu.memory_space<vmem>>, %arg3: memref<1x8xf32, #tpu.memory_space<vmem>>, %arg4: memref<72x8xf32, #tpu.memory_space<vmem>>, %arg5: memref<1x16x16x8xf32, #tpu.memory_space<vmem>>, %arg6: memref<1x2x8xf32, #tpu.memory_space<vmem>>, %arg7: memref<1x18x18x8xf32, #tpu.memory_space<vmem>>, %arg8: memref<256x72xf32, #tpu.memory_space<vmem>>) attributes {dimension_semantics = [#tpu.dimension_semantics<parallel>], iteration_bounds = array<i64: 2>, scalar_prefetch = 0 : i64, scratch_operands = 2 : i64, tpu.core_type = #tpu.core_type<tc>, window_params = [{transform_indices = @transform_0, window_bounds = array<i64: 1, 16, 16, 8>}, {pipeline_mode = #tpu.pipeline_mode<synchronous>, transform_indices = @transform_1, window_bounds = array<i64: 1, 8>}, {pipeline_mode = #tpu.pipeline_mode<synchronous>, transform_indices = @transform_2, window_bounds = array<i64: 1, 8>}, {pipeline_mode = #tpu.pipeline_mode<synchronous>, transform_indices = @transform_3, window_bounds = array<i64: 72, 8>}, {transform_indices = @transform_4, window_bounds = array<i64: 1, 16, 16, 8>}, {transform_indices = @transform_5, window_bounds = array<i64: 1, 2, 8>}]} {
    %c0 = arith.constant 0 : index
    %c0_0 = arith.constant 0 : index
    %0 = vector.load %arg2[%c0, %c0_0] : memref<1x8xf32, #tpu.memory_space<vmem>>, vector<1x8xf32>
    %1 = vector.shape_cast %0 : vector<1x8xf32> to vector<1x1x1x8xf32>
    %c0_1 = arith.constant 0 : index
    %c0_2 = arith.constant 0 : index
    %2 = vector.load %arg3[%c0_1, %c0_2] : memref<1x8xf32, #tpu.memory_space<vmem>>, vector<1x8xf32>
    %3 = vector.shape_cast %2 : vector<1x8xf32> to vector<1x1x1x8xf32>
    %c0_3 = arith.constant 0 : index
    %c0_4 = arith.constant 0 : index
    %c0_5 = arith.constant 0 : index
    %c0_6 = arith.constant 0 : index
    %4 = vector.load %arg1[%c0_3, %c0_4, %c0_5, %c0_6] : memref<1x16x16x8xf32, #tpu.memory_space<vmem>>, vector<1x16x16x8xf32>
    %5 = vector.broadcast %1 : vector<1x1x1x8xf32> to vector<1x16x16x8xf32>
    %6 = arith.mulf %4, %5 : vector<1x16x16x8xf32>
    %7 = vector.broadcast %3 : vector<1x1x1x8xf32> to vector<1x16x16x8xf32>
    %8 = arith.addf %6, %7 : vector<1x16x16x8xf32>
    %cst = arith.constant 0.000000e+00 : f32
    %9 = vector.broadcast %cst : f32 to vector<1x16x16x8xf32>
    %10 = arith.maximumf %8, %9 : vector<1x16x16x8xf32>
    %cst_7 = arith.constant 0.000000e+00 : f32
    %11 = vector.broadcast %cst_7 : f32 to vector<1x1x18x8xf32>
    %c0_8 = arith.constant 0 : index
    %c0_9 = arith.constant 0 : index
    %c0_10 = arith.constant 0 : index
    %c0_11 = arith.constant 0 : index
    %12 = vector.load %arg7[%c0_8, %c0_9, %c0_10, %c0_11] : memref<1x18x18x8xf32, #tpu.memory_space<vmem>>, vector<1x1x18x8xf32>
    tpu.vector_store %arg7[%c0_8, %c0_9, %c0_10, %c0_11], %11 {strides = array<i32>} : memref<1x18x18x8xf32, #tpu.memory_space<vmem>>, vector<1x1x18x8xf32>,
    %cst_12 = arith.constant 0.000000e+00 : f32
    %13 = vector.broadcast %cst_12 : f32 to vector<1x1x18x8xf32>
    %c0_13 = arith.constant 0 : index
    %c17 = arith.constant 17 : index
    %c0_14 = arith.constant 0 : index
    %c0_15 = arith.constant 0 : index
    %14 = vector.load %arg7[%c0_13, %c17, %c0_14, %c0_15] : memref<1x18x18x8xf32, #tpu.memory_space<vmem>>, vector<1x1x18x8xf32>
    tpu.vector_store %arg7[%c0_13, %c17, %c0_14, %c0_15], %13 {strides = array<i32>} : memref<1x18x18x8xf32, #tpu.memory_space<vmem>>, vector<1x1x18x8xf32>,
    %cst_16 = arith.constant 0.000000e+00 : f32
    %15 = vector.broadcast %cst_16 : f32 to vector<1x18x1x8xf32>
    %c0_17 = arith.constant 0 : index
    %c0_18 = arith.constant 0 : index
    %c0_19 = arith.constant 0 : index
    %c0_20 = arith.constant 0 : index
    %16 = vector.load %arg7[%c0_17, %c0_18, %c0_19, %c0_20] : memref<1x18x18x8xf32, #tpu.memory_space<vmem>>, vector<1x18x1x8xf32>
    tpu.vector_store %arg7[%c0_17, %c0_18, %c0_19, %c0_20], %15 {strides = array<i32>} : memref<1x18x18x8xf32, #tpu.memory_space<vmem>>, vector<1x18x1x8xf32>,
    %cst_21 = arith.constant 0.000000e+00 : f32
    %17 = vector.broadcast %cst_21 : f32 to vector<1x18x1x8xf32>
    %c0_22 = arith.constant 0 : index
    %c0_23 = arith.constant 0 : index
    %c17_24 = arith.constant 17 : index
    %c0_25 = arith.constant 0 : index
    %18 = vector.load %arg7[%c0_22, %c0_23, %c17_24, %c0_25] : memref<1x18x18x8xf32, #tpu.memory_space<vmem>>, vector<1x18x1x8xf32>
    tpu.vector_store %arg7[%c0_22, %c0_23, %c17_24, %c0_25], %17 {strides = array<i32>} : memref<1x18x18x8xf32, #tpu.memory_space<vmem>>, vector<1x18x1x8xf32>,
    %c0_26 = arith.constant 0 : index
    %c1 = arith.constant 1 : index
    %c1_27 = arith.constant 1 : index
    %c0_28 = arith.constant 0 : index
    %19 = vector.load %arg7[%c0_26, %c1, %c1_27, %c0_28] : memref<1x18x18x8xf32, #tpu.memory_space<vmem>>, vector<1x16x16x8xf32>
    tpu.vector_store %arg7[%c0_26, %c1, %c1_27, %c0_28], %10 {strides = array<i32>} : memref<1x18x18x8xf32, #tpu.memory_space<vmem>>, vector<1x16x16x8xf32>,
    %c0_29 = arith.constant 0 : index
    %c0_30 = arith.constant 0 : index
    %c0_31 = arith.constant 0 : index
    %c0_32 = arith.constant 0 : index
    %20 = vector.load %arg7[%c0_29, %c0_30, %c0_31, %c0_32] : memref<1x18x18x8xf32, #tpu.memory_space<vmem>>, vector<1x18x18x8xf32>
    %21 = vector.extract_strided_slice %20 {offsets = [0, 0, 0, 0], sizes = [1, 16, 16, 8], strides = [1, 1, 1, 1]} : vector<1x18x18x8xf32> to vector<1x16x16x8xf32>
    %22 = vector.shape_cast %21 : vector<1x16x16x8xf32> to vector<256x8xf32>
    %c0_33 = arith.constant 0 : index
    %c0_34 = arith.constant 0 : index
    %23 = vector.load %arg8[%c0_33, %c0_34] : memref<256x72xf32, #tpu.memory_space<vmem>>, vector<256x8xf32>
    tpu.vector_store %arg8[%c0_33, %c0_34], %22 {strides = array<i32>} : memref<256x72xf32, #tpu.memory_space<vmem>>, vector<256x8xf32>,
    %24 = vector.extract_strided_slice %20 {offsets = [0, 0, 1, 0], sizes = [1, 16, 16, 8], strides = [1, 1, 1, 1]} : vector<1x18x18x8xf32> to vector<1x16x16x8xf32>
    %25 = vector.shape_cast %24 : vector<1x16x16x8xf32> to vector<256x8xf32>
    %c0_35 = arith.constant 0 : index
    %c8 = arith.constant 8 : index
    %26 = vector.load %arg8[%c0_35, %c8] : memref<256x72xf32, #tpu.memory_space<vmem>>, vector<256x8xf32>
    tpu.vector_store %arg8[%c0_35, %c8], %25 {strides = array<i32>} : memref<256x72xf32, #tpu.memory_space<vmem>>, vector<256x8xf32>,
    %27 = vector.extract_strided_slice %20 {offsets = [0, 0, 2, 0], sizes = [1, 16, 16, 8], strides = [1, 1, 1, 1]} : vector<1x18x18x8xf32> to vector<1x16x16x8xf32>
    %28 = vector.shape_cast %27 : vector<1x16x16x8xf32> to vector<256x8xf32>
    %c0_36 = arith.constant 0 : index
    %c16 = arith.constant 16 : index
    %29 = vector.load %arg8[%c0_36, %c16] : memref<256x72xf32, #tpu.memory_space<vmem>>, vector<256x8xf32>
    tpu.vector_store %arg8[%c0_36, %c16], %28 {strides = array<i32>} : memref<256x72xf32, #tpu.memory_space<vmem>>, vector<256x8xf32>,
    %30 = vector.extract_strided_slice %20 {offsets = [0, 1, 0, 0], sizes = [1, 16, 16, 8], strides = [1, 1, 1, 1]} : vector<1x18x18x8xf32> to vector<1x16x16x8xf32>
    %31 = vector.shape_cast %30 : vector<1x16x16x8xf32> to vector<256x8xf32>
    %c0_37 = arith.constant 0 : index
    %c24 = arith.constant 24 : index
    %32 = vector.load %arg8[%c0_37, %c24] : memref<256x72xf32, #tpu.memory_space<vmem>>, vector<256x8xf32>
    tpu.vector_store %arg8[%c0_37, %c24], %31 {strides = array<i32>} : memref<256x72xf32, #tpu.memory_space<vmem>>, vector<256x8xf32>,
    %33 = vector.extract_strided_slice %20 {offsets = [0, 1, 1, 0], sizes = [1, 16, 16, 8], strides = [1, 1, 1, 1]} : vector<1x18x18x8xf32> to vector<1x16x16x8xf32>
    %34 = vector.shape_cast %33 : vector<1x16x16x8xf32> to vector<256x8xf32>
    %c0_38 = arith.constant 0 : index
    %c32 = arith.constant 32 : index
    %35 = vector.load %arg8[%c0_38, %c32] : memref<256x72xf32, #tpu.memory_space<vmem>>, vector<256x8xf32>
    tpu.vector_store %arg8[%c0_38, %c32], %34 {strides = array<i32>} : memref<256x72xf32, #tpu.memory_space<vmem>>, vector<256x8xf32>,
    %36 = vector.extract_strided_slice %20 {offsets = [0, 1, 2, 0], sizes = [1, 16, 16, 8], strides = [1, 1, 1, 1]} : vector<1x18x18x8xf32> to vector<1x16x16x8xf32>
    %37 = vector.shape_cast %36 : vector<1x16x16x8xf32> to vector<256x8xf32>
    %c0_39 = arith.constant 0 : index
    %c40 = arith.constant 40 : index
    %38 = vector.load %arg8[%c0_39, %c40] : memref<256x72xf32, #tpu.memory_space<vmem>>, vector<256x8xf32>
    tpu.vector_store %arg8[%c0_39, %c40], %37 {strides = array<i32>} : memref<256x72xf32, #tpu.memory_space<vmem>>, vector<256x8xf32>,
    %39 = vector.extract_strided_slice %20 {offsets = [0, 2, 0, 0], sizes = [1, 16, 16, 8], strides = [1, 1, 1, 1]} : vector<1x18x18x8xf32> to vector<1x16x16x8xf32>
    %40 = vector.shape_cast %39 : vector<1x16x16x8xf32> to vector<256x8xf32>
    %c0_40 = arith.constant 0 : index
    %c48 = arith.constant 48 : index
    %41 = vector.load %arg8[%c0_40, %c48] : memref<256x72xf32, #tpu.memory_space<vmem>>, vector<256x8xf32>
    tpu.vector_store %arg8[%c0_40, %c48], %40 {strides = array<i32>} : memref<256x72xf32, #tpu.memory_space<vmem>>, vector<256x8xf32>,
    %42 = vector.extract_strided_slice %20 {offsets = [0, 2, 1, 0], sizes = [1, 16, 16, 8], strides = [1, 1, 1, 1]} : vector<1x18x18x8xf32> to vector<1x16x16x8xf32>
    %43 = vector.shape_cast %42 : vector<1x16x16x8xf32> to vector<256x8xf32>
    %c0_41 = arith.constant 0 : index
    %c56 = arith.constant 56 : index
    %44 = vector.load %arg8[%c0_41, %c56] : memref<256x72xf32, #tpu.memory_space<vmem>>, vector<256x8xf32>
    tpu.vector_store %arg8[%c0_41, %c56], %43 {strides = array<i32>} : memref<256x72xf32, #tpu.memory_space<vmem>>, vector<256x8xf32>,
    %45 = vector.extract_strided_slice %20 {offsets = [0, 2, 2, 0], sizes = [1, 16, 16, 8], strides = [1, 1, 1, 1]} : vector<1x18x18x8xf32> to vector<1x16x16x8xf32>
    %46 = vector.shape_cast %45 : vector<1x16x16x8xf32> to vector<256x8xf32>
    %c0_42 = arith.constant 0 : index
    %c64 = arith.constant 64 : index
    %47 = vector.load %arg8[%c0_42, %c64] : memref<256x72xf32, #tpu.memory_space<vmem>>, vector<256x8xf32>
    tpu.vector_store %arg8[%c0_42, %c64], %46 {strides = array<i32>} : memref<256x72xf32, #tpu.memory_space<vmem>>, vector<256x8xf32>,
    %c0_43 = arith.constant 0 : index
    %c0_44 = arith.constant 0 : index
    %48 = vector.load %arg8[%c0_43, %c0_44] : memref<256x72xf32, #tpu.memory_space<vmem>>, vector<256x72xf32>
    %c0_45 = arith.constant 0 : index
    %c0_46 = arith.constant 0 : index
    %49 = vector.load %arg4[%c0_45, %c0_46] : memref<72x8xf32, #tpu.memory_space<vmem>>, vector<72x8xf32>
    %50 = arith.truncf %48 : vector<256x72xf32> to vector<256x72xbf16>
    %51 = arith.extf %50 : vector<256x72xbf16> to vector<256x72xf32>
    %52 = arith.subf %48, %51 : vector<256x72xf32>
    %53 = arith.truncf %52 : vector<256x72xf32> to vector<256x72xbf16>
    %54 = arith.truncf %49 : vector<72x8xf32> to vector<72x8xbf16>
    %55 = arith.extf %54 : vector<72x8xbf16> to vector<72x8xf32>
    %56 = arith.subf %49, %55 : vector<72x8xf32>
    %57 = arith.truncf %56 : vector<72x8xf32> to vector<72x8xbf16>
    %cst_47 = arith.constant dense<0.000000e+00> : vector<256x8xf32>
    %58 = tpu.matmul %50, %54, %cst_47 {dimension_numbers = #tpu.dot_dimension_numbers<[1], [0], [0], [1], [0, 0, 1, 1], [], []>} : vector<256x72xbf16>, vector<72x8xbf16>, vector<256x8xf32> -> vector<256x8xf32>
    %cst_48 = arith.constant dense<0.000000e+00> : vector<256x8xf32>
    %59 = tpu.matmul %53, %54, %cst_48 {dimension_numbers = #tpu.dot_dimension_numbers<[1], [0], [0], [1], [0, 0, 1, 1], [], []>} : vector<256x72xbf16>, vector<72x8xbf16>, vector<256x8xf32> -> vector<256x8xf32>
    %60 = arith.addf %58, %59 : vector<256x8xf32>
    %cst_49 = arith.constant dense<0.000000e+00> : vector<256x8xf32>
    %61 = tpu.matmul %50, %57, %cst_49 {dimension_numbers = #tpu.dot_dimension_numbers<[1], [0], [0], [1], [0, 0, 1, 1], [], []>} : vector<256x72xbf16>, vector<72x8xbf16>, vector<256x8xf32> -> vector<256x8xf32>
    %62 = arith.addf %60, %61 : vector<256x8xf32>
    %63 = vector.shape_cast %62 : vector<256x8xf32> to vector<1x16x16x8xf32>
    %c0_50 = arith.constant 0 : index
    %c0_51 = arith.constant 0 : index
    %c0_52 = arith.constant 0 : index
    %c0_53 = arith.constant 0 : index
    %64 = vector.load %arg5[%c0_50, %c0_51, %c0_52, %c0_53] : memref<1x16x16x8xf32, #tpu.memory_space<vmem>>, vector<1x16x16x8xf32>
    tpu.vector_store %arg5[%c0_50, %c0_51, %c0_52, %c0_53], %63 {strides = array<i32>} : memref<1x16x16x8xf32, #tpu.memory_space<vmem>>, vector<1x16x16x8xf32>,
    %cst_54 = arith.constant dense<0.000000e+00> : vector<8xf32>
    %65 = vector.multi_reduction <add>, %62, %cst_54 [0] : vector<256x8xf32> to vector<8xf32>
    %66 = vector.shape_cast %65 : vector<8xf32> to vector<1x8xf32>
    %67 = vector.shape_cast %66 : vector<1x8xf32> to vector<1x1x8xf32>
    %c0_55 = arith.constant 0 : index
    %c0_56 = arith.constant 0 : index
    %c0_57 = arith.constant 0 : index
    %68 = vector.load %arg6[%c0_55, %c0_56, %c0_57] : memref<1x2x8xf32, #tpu.memory_space<vmem>>, vector<1x1x8xf32>
    tpu.vector_store %arg6[%c0_55, %c0_56, %c0_57], %67 {strides = array<i32>} : memref<1x2x8xf32, #tpu.memory_space<vmem>>, vector<1x1x8xf32>,
    %69 = arith.mulf %62, %62 : vector<256x8xf32>
    %cst_58 = arith.constant dense<0.000000e+00> : vector<8xf32>
    %70 = vector.multi_reduction <add>, %69, %cst_58 [0] : vector<256x8xf32> to vector<8xf32>
    %71 = vector.shape_cast %70 : vector<8xf32> to vector<1x8xf32>
    %72 = vector.shape_cast %71 : vector<1x8xf32> to vector<1x1x8xf32>
    %c0_59 = arith.constant 0 : index
    %c1_60 = arith.constant 1 : index
    %c0_61 = arith.constant 0 : index
    %73 = vector.load %arg6[%c0_59, %c1_60, %c0_61] : memref<1x2x8xf32, #tpu.memory_space<vmem>>, vector<1x1x8xf32>
    tpu.vector_store %arg6[%c0_59, %c1_60, %c0_61], %72 {strides = array<i32>} : memref<1x2x8xf32, #tpu.memory_space<vmem>>, vector<1x1x8xf32>,
    return
  }
  func.func @transform_0(%arg0: i32) -> (i32, i32, i32, i32) {
    %c0_i32 = arith.constant 0 : i32
    %c0_i32_0 = arith.constant 0 : i32
    %c0_i32_1 = arith.constant 0 : i32
    %c0_i32_2 = arith.constant 0 : i32
    return %arg0, %c0_i32, %c0_i32_0, %c0_i32_1 : i32, i32, i32, i32
  }
  func.func @transform_1(%arg0: i32) -> (i32, i32) {
    %c0_i32 = arith.constant 0 : i32
    %c0_i32_0 = arith.constant 0 : i32
    %c0_i32_1 = arith.constant 0 : i32
    return %c0_i32, %c0_i32_0 : i32, i32
  }
  func.func @transform_2(%arg0: i32) -> (i32, i32) {
    %c0_i32 = arith.constant 0 : i32
    %c0_i32_0 = arith.constant 0 : i32
    %c0_i32_1 = arith.constant 0 : i32
    return %c0_i32, %c0_i32_0 : i32, i32
  }
  func.func @transform_3(%arg0: i32) -> (i32, i32) {
    %c0_i32 = arith.constant 0 : i32
    %c0_i32_0 = arith.constant 0 : i32
    %c0_i32_1 = arith.constant 0 : i32
    return %c0_i32, %c0_i32_0 : i32, i32
  }
  func.func @transform_4(%arg0: i32) -> (i32, i32, i32, i32) {
    %c0_i32 = arith.constant 0 : i32
    %c0_i32_0 = arith.constant 0 : i32
    %c0_i32_1 = arith.constant 0 : i32
    %c0_i32_2 = arith.constant 0 : i32
    return %arg0, %c0_i32, %c0_i32_0, %c0_i32_1 : i32, i32, i32, i32
  }
  func.func @transform_5(%arg0: i32) -> (i32, i32, i32) {
    %c0_i32 = arith.constant 0 : i32
    %c0_i32_0 = arith.constant 0 : i32
    %c0_i32_1 = arith.constant 0 : i32
    return %arg0, %c0_i32, %c0_i32_0 : i32, i32, i32
  }
}

module attributes {stable_mosaic.version = 11 : i64} {
  func.func @_epilogue_kernel(%arg0: i32, %arg1: memref<1x16x128xf32, #tpu.memory_space<vmem>>, %arg2: memref<1x128xf32, #tpu.memory_space<vmem>>, %arg3: memref<1x128xf32, #tpu.memory_space<vmem>>, %arg4: memref<1x16x128xf32, #tpu.memory_space<vmem>>, %arg5: memref<1x128xf32, #tpu.memory_space<vmem>>, %arg6: memref<1x128xf32, #tpu.memory_space<vmem>>, %arg7: memref<1x16x128xf32, #tpu.memory_space<vmem>>) attributes {dimension_semantics = [#tpu.dimension_semantics<parallel>], iteration_bounds = array<i64: 2>, scalar_prefetch = 0 : i64, scratch_operands = 0 : i64, tpu.core_type = #tpu.core_type<tc>, window_params = [{transform_indices = @transform_0, window_bounds = array<i64: 1, 16, 128>}, {pipeline_mode = #tpu.pipeline_mode<synchronous>, transform_indices = @transform_1, window_bounds = array<i64: 1, 128>}, {pipeline_mode = #tpu.pipeline_mode<synchronous>, transform_indices = @transform_2, window_bounds = array<i64: 1, 128>}, {transform_indices = @transform_3, window_bounds = array<i64: 1, 16, 128>}, {pipeline_mode = #tpu.pipeline_mode<synchronous>, transform_indices = @transform_4, window_bounds = array<i64: 1, 128>}, {pipeline_mode = #tpu.pipeline_mode<synchronous>, transform_indices = @transform_5, window_bounds = array<i64: 1, 128>}, {transform_indices = @transform_6, window_bounds = array<i64: 1, 16, 128>}]} {
    %c0 = arith.constant 0 : index
    %c0_0 = arith.constant 0 : index
    %0 = vector.load %arg2[%c0, %c0_0] : memref<1x128xf32, #tpu.memory_space<vmem>>, vector<1x128xf32>
    %1 = vector.shape_cast %0 : vector<1x128xf32> to vector<1x1x128xf32>
    %c0_1 = arith.constant 0 : index
    %c0_2 = arith.constant 0 : index
    %2 = vector.load %arg3[%c0_1, %c0_2] : memref<1x128xf32, #tpu.memory_space<vmem>>, vector<1x128xf32>
    %3 = vector.shape_cast %2 : vector<1x128xf32> to vector<1x1x128xf32>
    %c0_3 = arith.constant 0 : index
    %c0_4 = arith.constant 0 : index
    %c0_5 = arith.constant 0 : index
    %4 = vector.load %arg1[%c0_3, %c0_4, %c0_5] : memref<1x16x128xf32, #tpu.memory_space<vmem>>, vector<1x16x128xf32>
    %5 = vector.broadcast %1 : vector<1x1x128xf32> to vector<1x16x128xf32>
    %6 = arith.mulf %4, %5 : vector<1x16x128xf32>
    %7 = vector.broadcast %3 : vector<1x1x128xf32> to vector<1x16x128xf32>
    %8 = arith.addf %6, %7 : vector<1x16x128xf32>
    %c0_6 = arith.constant 0 : index
    %c0_7 = arith.constant 0 : index
    %9 = vector.load %arg5[%c0_6, %c0_7] : memref<1x128xf32, #tpu.memory_space<vmem>>, vector<1x128xf32>
    %10 = vector.shape_cast %9 : vector<1x128xf32> to vector<1x1x128xf32>
    %c0_8 = arith.constant 0 : index
    %c0_9 = arith.constant 0 : index
    %11 = vector.load %arg6[%c0_8, %c0_9] : memref<1x128xf32, #tpu.memory_space<vmem>>, vector<1x128xf32>
    %12 = vector.shape_cast %11 : vector<1x128xf32> to vector<1x1x128xf32>
    %c0_10 = arith.constant 0 : index
    %c0_11 = arith.constant 0 : index
    %c0_12 = arith.constant 0 : index
    %13 = vector.load %arg4[%c0_10, %c0_11, %c0_12] : memref<1x16x128xf32, #tpu.memory_space<vmem>>, vector<1x16x128xf32>
    %14 = vector.broadcast %10 : vector<1x1x128xf32> to vector<1x16x128xf32>
    %15 = arith.mulf %13, %14 : vector<1x16x128xf32>
    %16 = vector.broadcast %12 : vector<1x1x128xf32> to vector<1x16x128xf32>
    %17 = arith.addf %15, %16 : vector<1x16x128xf32>
    %18 = arith.addf %8, %17 : vector<1x16x128xf32>
    %cst = arith.constant 0.000000e+00 : f32
    %19 = vector.broadcast %cst : f32 to vector<1x16x128xf32>
    %20 = arith.maximumf %18, %19 : vector<1x16x128xf32>
    %c0_13 = arith.constant 0 : index
    %c0_14 = arith.constant 0 : index
    %c0_15 = arith.constant 0 : index
    %21 = vector.load %arg7[%c0_13, %c0_14, %c0_15] : memref<1x16x128xf32, #tpu.memory_space<vmem>>, vector<1x16x128xf32>
    tpu.vector_store %arg7[%c0_13, %c0_14, %c0_15], %20 {strides = array<i32>} : memref<1x16x128xf32, #tpu.memory_space<vmem>>, vector<1x16x128xf32>,
    return
  }
  func.func @transform_0(%arg0: i32) -> (i32, i32, i32) {
    %c0_i32 = arith.constant 0 : i32
    %c0_i32_0 = arith.constant 0 : i32
    %c0_i32_1 = arith.constant 0 : i32
    return %arg0, %c0_i32, %c0_i32_0 : i32, i32, i32
  }
  func.func @transform_1(%arg0: i32) -> (i32, i32) {
    %c0_i32 = arith.constant 0 : i32
    %c0_i32_0 = arith.constant 0 : i32
    %c0_i32_1 = arith.constant 0 : i32
    return %c0_i32, %c0_i32_0 : i32, i32
  }
  func.func @transform_2(%arg0: i32) -> (i32, i32) {
    %c0_i32 = arith.constant 0 : i32
    %c0_i32_0 = arith.constant 0 : i32
    %c0_i32_1 = arith.constant 0 : i32
    return %c0_i32, %c0_i32_0 : i32, i32
  }
  func.func @transform_3(%arg0: i32) -> (i32, i32, i32) {
    %c0_i32 = arith.constant 0 : i32
    %c0_i32_0 = arith.constant 0 : i32
    %c0_i32_1 = arith.constant 0 : i32
    return %arg0, %c0_i32, %c0_i32_0 : i32, i32, i32
  }
  func.func @transform_4(%arg0: i32) -> (i32, i32) {
    %c0_i32 = arith.constant 0 : i32
    %c0_i32_0 = arith.constant 0 : i32
    %c0_i32_1 = arith.constant 0 : i32
    return %c0_i32, %c0_i32_0 : i32, i32
  }
  func.func @transform_5(%arg0: i32) -> (i32, i32) {
    %c0_i32 = arith.constant 0 : i32
    %c0_i32_0 = arith.constant 0 : i32
    %c0_i32_1 = arith.constant 0 : i32
    return %c0_i32, %c0_i32_0 : i32, i32
  }
  func.func @transform_6(%arg0: i32) -> (i32, i32, i32) {
    %c0_i32 = arith.constant 0 : i32
    %c0_i32_0 = arith.constant 0 : i32
    %c0_i32_1 = arith.constant 0 : i32
    return %arg0, %c0_i32, %c0_i32_0 : i32, i32, i32
  }
}

</mosaic_0001>

<llo_original>
// kernel: resblock_forward.5
$region0: #{resblock_forward.5}
  #allocation0 [shape = 'u32[]', space=smem, size = 0x4, offset = 0x4, fixed_abs, tag = 'smem constant byte address 0x4 - core index']
  #allocation1 [shape = 'u32[144,128]{1,0:T(1,128)}', space=vmem, size = 0x12000, scoped, tag = 'internal scratch']
  %s0 = inlined_call_operand.vmem [shape: f32[2,16,128], index: 0, kind: input, shape index: {}]
  %s1 = inlined_call_operand.vmem [shape: f32[1,128], index: 1, kind: input, shape index: {}]
  %s2 = inlined_call_operand.vmem [shape: f32[1,128], index: 2, kind: input, shape index: {}]
  %s3 = inlined_call_operand.vmem [shape: f32[2,16,128], index: 3, kind: input, shape index: {}]
  %s4 = inlined_call_operand.vmem [shape: f32[1,128], index: 4, kind: input, shape index: {}]
  %s5 = inlined_call_operand.vmem [shape: f32[1,128], index: 5, kind: input, shape index: {}]
  %s6 = inlined_call_operand.vmem [shape: f32[2,16,128], index: 6, kind: output, shape index: {}]
  %s7 = sld [smem:[#allocation0]]
  $region57: #{resblock_forward.5} parent=0
    _
  %s9 = ssub.s32 1, %s7
  %s10 = scalar_select 0, %s9, %s7
  loop: start=0, step=1, limit=4
  $region2: #{resblock_forward.5} parent=0 // loop_pre_header
    _
  $region3: #{resblock_forward.5} parent=0 // loop_header
    %s12 = sphi 0, %s16
    %p13 = scmp.ge.s32.totalorder %s12, 4
    %s22 = sphi 0, %s24
    %s25 = sphi 0, %s22
    %s26 = sphi 0, %s25
    %s42 = sphi 0, %s26
    %s46 = sphi 0, %s46
    %s48 = sphi 0, %s46
    %s49 = sphi 0, %s48
    %s63 = sphi 0, %s49
    %s67 = sphi 0, %s67
    %s69 = sphi 0, %s67
    %s70 = sphi 0, %s69
    %s84 = sphi 0, %s70
    %s90 = sphi 0, %s92
    %s93 = sphi 0, %s90
    %s94 = sphi 0, %s93
    %s110 = sphi 0, %s94
    %s114 = sphi 0, %s114
    %s116 = sphi 0, %s114
    %s117 = sphi 0, %s116
    %s131 = sphi 0, %s117
    %s135 = sphi 0, %s135
    %s137 = sphi 0, %s135
    %s138 = sphi 0, %s137
    %s152 = sphi 0, %s138
    %s158 = sphi 0, %s160
    %s161 = sphi 0, %s158
    %s162 = sphi 0, %s161
    %s178 = sphi 0, %s162
  $region4: #{resblock_forward.5} parent=0 // loop_header_branch
    %15 = sbr.rel (%p13) target = $region8
  $region5: #{resblock_forward.5} parent=0 // loop_body
    %s17 = ssub.s32 %s12, 1
    %s18 = ssub.s32 %s12, 2
    %s19 = sadd.s32 %s12, 1
    %s20 = ssub.s32 %s12, %s19
    %p21 = scmp.eq.s32.totalorder %s20, 0
    %s23 = sadd.s32 %s22, 1
    %s24 = scalar_select %p21, %s22, %s23
    %p27 = pneg %p21
    %p28 = scmp.eq.s32.totalorder %s12, 1
    %p29 = por %p27, %p28
    %p30 = scmp.ne.s32.totalorder %s22, %s25
    %p31 = scmp.eq.s32.totalorder %s12, 0
    %p32 = por %p30, %p31
    %p33 = scmp.ne.s32.totalorder %s22, %s25
    %p34 = scmp.eq.s32.totalorder %s17, 1
    %p35 = por %p33, %p34
    %p36 = scmp.ne.s32.totalorder %s25, %s26
    %p37 = scmp.eq.s32.totalorder %s17, 0
    %p38 = por %p36, %p37
    %p39 = scmp.ne.s32.totalorder %s25, %s26
    %p40 = scmp.eq.s32.totalorder %s18, 1
    %p41 = por %p39, %p40
    %p43 = scmp.ne.s32.totalorder %s26, %s42
    %p44 = scmp.eq.s32.totalorder %s18, 0
    %p45 = por %p43, %p44
    %s47 = sadd.s32 %s46, 1
    %p50 = scmp.eq.s32.totalorder %s12, 1
    %p51 = scmp.ne.s32.totalorder %s46, %s48
    %p52 = scmp.eq.s32.totalorder %s12, 0
    %p53 = por %p51, %p52
    %p54 = scmp.ne.s32.totalorder %s46, %s48
    %p55 = scmp.eq.s32.totalorder %s17, 1
    %p56 = por %p54, %p55
    %p57 = scmp.ne.s32.totalorder %s48, %s49
    %p58 = scmp.eq.s32.totalorder %s17, 0
    %p59 = por %p57, %p58
    %p60 = scmp.ne.s32.totalorder %s48, %s49
    %p61 = scmp.eq.s32.totalorder %s18, 1
    %p62 = por %p60, %p61
    %p64 = scmp.ne.s32.totalorder %s49, %s63
    %p65 = scmp.eq.s32.totalorder %s18, 0
    %p66 = por %p64, %p65
    %s68 = sadd.s32 %s67, 1
    %p71 = scmp.eq.s32.totalorder %s12, 1
    %p72 = scmp.ne.s32.totalorder %s67, %s69
    %p73 = scmp.eq.s32.totalorder %s12, 0
    %p74 = por %p72, %p73
    %p75 = scmp.ne.s32.totalorder %s67, %s69
    %p76 = scmp.eq.s32.totalorder %s17, 1
    %p77 = por %p75, %p76
    %p78 = scmp.ne.s32.totalorder %s69, %s70
    %p79 = scmp.eq.s32.totalorder %s17, 0
    %p80 = por %p78, %p79
    %p81 = scmp.ne.s32.totalorder %s69, %s70
    %p82 = scmp.eq.s32.totalorder %s18, 1
    %p83 = por %p81, %p82
    %p85 = scmp.ne.s32.totalorder %s70, %s84
    %p86 = scmp.eq.s32.totalorder %s18, 0
    %p87 = por %p85, %p86
    %s88 = ssub.s32 %s12, %s19
    %p89 = scmp.eq.s32.totalorder %s88, 0
    %s91 = sadd.s32 %s90, 1
    %s92 = scalar_select %p89, %s90, %s91
    %p95 = pneg %p89
    %p96 = scmp.eq.s32.totalorder %s12, 1
    %p97 = por %p95, %p96
    %p98 = scmp.ne.s32.totalorder %s90, %s93
    %p99 = scmp.eq.s32.totalorder %s12, 0
    %p100 = por %p98, %p99
    %p101 = scmp.ne.s32.totalorder %s90, %s93
    %p102 = scmp.eq.s32.totalorder %s17, 1
    %p103 = por %p101, %p102
    %p104 = scmp.ne.s32.totalorder %s93, %s94
    %p105 = scmp.eq.s32.totalorder %s17, 0
    %p106 = por %p104, %p105
    %p107 = scmp.ne.s32.totalorder %s93, %s94
    %p108 = scmp.eq.s32.totalorder %s18, 1
    %p109 = por %p107, %p108
    %p111 = scmp.ne.s32.totalorder %s94, %s110
    %p112 = scmp.eq.s32.totalorder %s18, 0
    %p113 = por %p111, %p112
    %s115 = sadd.s32 %s114, 1
    %p118 = scmp.eq.s32.totalorder %s12, 1
    %p119 = scmp.ne.s32.totalorder %s114, %s116
    %p120 = scmp.eq.s32.totalorder %s12, 0
    %p121 = por %p119, %p120
    %p122 = scmp.ne.s32.totalorder %s114, %s116
    %p123 = scmp.eq.s32.totalorder %s17, 1
    %p124 = por %p122, %p123
    %p125 = scmp.ne.s32.totalorder %s116, %s117
    %p126 = scmp.eq.s32.totalorder %s17, 0
    %p127 = por %p125, %p126
    %p128 = scmp.ne.s32.totalorder %s116, %s117
    %p129 = scmp.eq.s32.totalorder %s18, 1
    %p130 = por %p128, %p129
    %p132 = scmp.ne.s32.totalorder %s117, %s131
    %p133 = scmp.eq.s32.totalorder %s18, 0
    %p134 = por %p132, %p133
    %s136 = sadd.s32 %s135, 1
    %p139 = scmp.eq.s32.totalorder %s12, 1
    %p140 = scmp.ne.s32.totalorder %s135, %s137
    %p141 = scmp.eq.s32.totalorder %s12, 0
    %p142 = por %p140, %p141
    %p143 = scmp.ne.s32.totalorder %s135, %s137
    %p144 = scmp.eq.s32.totalorder %s17, 1
    %p145 = por %p143, %p144
    %p146 = scmp.ne.s32.totalorder %s137, %s138
    %p147 = scmp.eq.s32.totalorder %s17, 0
    %p148 = por %p146, %p147
    %p149 = scmp.ne.s32.totalorder %s137, %s138
    %p150 = scmp.eq.s32.totalorder %s18, 1
    %p151 = por %p149, %p150
    %p153 = scmp.ne.s32.totalorder %s138, %s152
    %p154 = scmp.eq.s32.totalorder %s18, 0
    %p155 = por %p153, %p154
    %s156 = ssub.s32 %s12, %s19
    %p157 = scmp.eq.s32.totalorder %s156, 0
    %s159 = sadd.s32 %s158, 1
    %s160 = scalar_select %p157, %s158, %s159
    %p163 = pneg %p157
    %p164 = scmp.eq.s32.totalorder %s12, 1
    %p165 = por %p163, %p164
    %p166 = scmp.ne.s32.totalorder %s158, %s161
    %p167 = scmp.eq.s32.totalorder %s12, 0
    %p168 = por %p166, %p167
    %p169 = scmp.ne.s32.totalorder %s158, %s161
    %p170 = scmp.eq.s32.totalorder %s17, 1
    %p171 = por %p169, %p170
    %p172 = scmp.ne.s32.totalorder %s161, %s162
    %p173 = scmp.eq.s32.totalorder %s17, 0
    %p174 = por %p172, %p173
    %p175 = scmp.ne.s32.totalorder %s161, %s162
    %p176 = scmp.eq.s32.totalorder %s18, 1
    %p177 = por %p175, %p176
    %p179 = scmp.ne.s32.totalorder %s162, %s178
    %p180 = scmp.eq.s32.totalorder %s18, 0
    %p181 = por %p179, %p180
    %p182 = scmp.le.s32.totalorder 1, %s12
    %p183 = scmp.lt.s32.totalorder %s12, 3
    %p184 = pnand %p182, %p183
    %p185 = pneg %p184
    // Predicated region
    $region9: #{resblock_forward.5} parent=5 // pred_check
      _
    $region10: #{resblock_forward.5} parent=5 // pred_check_branch
      %187 = sbr.rel (%p184) target = $region12
    $region11: #{resblock_forward.5} parent=5 // pred_region
      %s188 = ssub.s32 %s12, 1
      // Predicated region
      $region13: #{resblock_forward.5} parent=11 // pred_check
        %p189 = pneg %p59
      $region14: #{resblock_forward.5} parent=11 // pred_check_branch
        %191 = sbr.rel (%p189) target = $region16
      $region15: #{resblock_forward.5} parent=11 // pred_region
        _
      $region16: #{resblock_forward.5} parent=11 // pred_fallthru
        _
      // Predicated region
      $region17: #{resblock_forward.5} parent=11 // pred_check
        %p192 = pneg %p80
      $region18: #{resblock_forward.5} parent=11 // pred_check_branch
        %194 = sbr.rel (%p192) target = $region20
      $region19: #{resblock_forward.5} parent=11 // pred_region
        _
      $region20: #{resblock_forward.5} parent=11 // pred_fallthru
        _
      // Predicated region
      $region21: #{resblock_forward.5} parent=11 // pred_check
        %p195 = pneg %p127
      $region22: #{resblock_forward.5} parent=11 // pred_check_branch
        %197 = sbr.rel (%p195) target = $region24
      $region23: #{resblock_forward.5} parent=11 // pred_region
        _
      $region24: #{resblock_forward.5} parent=11 // pred_fallthru
        _
      // Predicated region
      $region25: #{resblock_forward.5} parent=11 // pred_check
        %p198 = pneg %p148
      $region26: #{resblock_forward.5} parent=11 // pred_check_branch
        %200 = sbr.rel (%p198) target = $region28
      $region27: #{resblock_forward.5} parent=11 // pred_region
        _
      $region28: #{resblock_forward.5} parent=11 // pred_fallthru
        _
    $region12: #{resblock_forward.5} parent=5 // pred_fallthru
      _
    %p201 = scmp.lt.s32.totalorder %s12, 2
    // Predicated region
    $region29: #{resblock_forward.5} parent=5 // pred_check
      %p202 = pneg %p201
    $region30: #{resblock_forward.5} parent=5 // pred_check_branch
      %204 = sbr.rel (%p202) target = $region32
    $region31: #{resblock_forward.5} parent=5 // pred_region
      // Predicated region
      $region33: #{resblock_forward.5} parent=31 // pred_check
        %p205 = pneg %p32
      $region34: #{resblock_forward.5} parent=31 // pred_check_branch
        %207 = sbr.rel (%p205) target = $region36
      $region35: #{resblock_forward.5} parent=31 // pred_region
        %p208 = scmp.lt.s32.totalorder %s12, 1
        %s209 = scalar_select %p208, %s12, 1
        %s210 = smul.addr %s209, 2
        %s211 = smul.addr %s210, 8
        %s212 = scalar_lea.vmem %s0, %s211
      $region36: #{resblock_forward.5} parent=31 // pred_fallthru
        _
      // Predicated region
      $region37: #{resblock_forward.5} parent=31 // pred_check
        %p213 = pneg %p100
      $region38: #{resblock_forward.5} parent=31 // pred_check_branch
        %215 = sbr.rel (%p213) target = $region40
      $region39: #{resblock_forward.5} parent=31 // pred_region
        %p216 = scmp.lt.s32.totalorder %s12, 1
        %s217 = scalar_select %p216, %s12, 1
        %s218 = smul.addr %s217, 2
        %s219 = smul.addr %s218, 8
        %s220 = scalar_lea.vmem %s3, %s219
      $region40: #{resblock_forward.5} parent=31 // pred_fallthru
        _
    $region32: #{resblock_forward.5} parent=5 // pred_fallthru
      _
    %p221 = scmp.le.s32.totalorder 1, %s12
    %p222 = scmp.lt.s32.totalorder %s12, 3
    %p223 = pnand %p221, %p222
    %p224 = pneg %p223
    // Predicated region
    $region41: #{resblock_forward.5} parent=5 // pred_check
      _
    $region42: #{resblock_forward.5} parent=5 // pred_check_branch
      %226 = sbr.rel (%p223) target = $region44
    $region43: #{resblock_forward.5} parent=5 // pred_region
      %s227 = ssub.s32 %s12, 1
      %p228 = scmp.lt.s32.totalorder %s17, 1
      %s229 = scalar_select %p228, %s17, 1
      %s230 = smul.addr %s229, 2
      %s231 = smul.addr %s230, 8
      %s232 = scalar_lea.vmem %s0, %s231
      %p233 = pneg %p38
      %p234 = pneg %p35
      %p235 = pneg %p59
      %p236 = pneg %p56
      %p237 = pneg %p80
      %p238 = pneg %p77
      %p239 = scmp.lt.s32.totalorder %s17, 1
      %s240 = scalar_select %p239, %s17, 1
      %s241 = smul.addr %s240, 2
      %s242 = smul.addr %s241, 8
      %s243 = scalar_lea.vmem %s3, %s242
      %p244 = pneg %p106
      %p245 = pneg %p103
      %p246 = pneg %p127
      %p247 = pneg %p124
      %p248 = pneg %p148
      %p249 = pneg %p145
      %p250 = pneg %p174
      %p251 = pneg %p171
      %p252 = scmp.lt.s32.totalorder %s17, 1
      %s253 = scalar_select %p252, %s17, 1
      %s254 = smul.addr %s253, 2
      %s255 = smul.addr %s254, 8
      %s256 = scalar_lea.vmem %s6, %s255
      %p257 = scmp.lt.s32.totalorder %s17, 1
      %s258 = scalar_select %p257, %s17, 1
      %s259 = smul.addr %s258, 2
      %s260 = smul.addr %s259, 8
      %s261 = scalar_lea.vmem %s0, %s260
      %p262 = scmp.lt.s32.totalorder %s17, 1
      %s263 = scalar_select %p262, %s17, 1
      %s264 = smul.addr %s263, 2
      %s265 = smul.addr %s264, 8
      %s266 = scalar_lea.vmem %s3, %s265
      %p267 = scmp.lt.s32.totalorder %s17, 1
      %s268 = scalar_select %p267, %s17, 1
      %s269 = smul.addr %s268, 2
      %s270 = smul.addr %s269, 8
      %s271 = scalar_lea.vmem %s6, %s270
      %v272 = vld [vmem:[%s1] sm:$0x1]
      %v273 = vld [vmem:[%s2] sm:$0x1]
      %v274 = vld [vmem:[%s261] sm:$0xff]
      %v275 = vld [vmem:[%s261 + $0x8] sm:$0xff]
      %v277 = vlaneseq
      %v278 = vshrl.u32 %v277, 7
      %v279 = vsub.s32 0, %v278
      %v280 = vrot.slane %v272, %v279
      %v282 = vmul.f32 %v274, %v280
      %v283 = vmul.f32 %v275, %v280
      %v285 = vlaneseq
      %v286 = vshrl.u32 %v285, 7
      %v287 = vsub.s32 0, %v286
      %v288 = vrot.slane %v273, %v287
      %v290 = vadd.f32 %v282, %v288
      %v291 = vadd.f32 %v283, %v288
      %v292 = vld [vmem:[%s4] sm:$0x1]
      %v293 = vld [vmem:[%s5] sm:$0x1]
      %v294 = vld [vmem:[%s266] sm:$0xff]
      %v295 = vld [vmem:[%s266 + $0x8] sm:$0xff]
      %v297 = vlaneseq
      %v298 = vshrl.u32 %v297, 7
      %v299 = vsub.s32 0, %v298
      %v300 = vrot.slane %v292, %v299
      %v302 = vmul.f32 %v294, %v300
      %v303 = vmul.f32 %v295, %v300
      %v305 = vlaneseq
      %v306 = vshrl.u32 %v305, 7
      %v307 = vsub.s32 0, %v306
      %v308 = vrot.slane %v293, %v307
      %v310 = vadd.f32 %v302, %v308
      %v311 = vadd.f32 %v303, %v308
      %v312 = vadd.f32 %v290, %v310
      %v313 = vadd.f32 %v291, %v311
      %v314 = vmax.f32 %v312, 0.0
      %v315 = vmax.f32 %v313, 0.0
      %316 = vst [vmem:[%s271] sm:$0xff] %v314
      %317 = vst [vmem:[%s271 + $0x8] sm:$0xff] %v315
      %p318 = scmp.lt.s32.totalorder %s17, 1
      %s319 = scalar_select %p318, %s17, 1
      %s320 = smul.addr %s319, 2
      %s321 = smul.addr %s320, 8
      %s322 = scalar_lea.vmem %s6, %s321
      // Predicated region
      $region45: #{resblock_forward.5} parent=43 // pred_check
        %p323 = pneg %p171
      $region46: #{resblock_forward.5} parent=43 // pred_check_branch
        %325 = sbr.rel (%p323) target = $region48
      $region47: #{resblock_forward.5} parent=43 // pred_region
        _
      $region48: #{resblock_forward.5} parent=43 // pred_fallthru
        _
    $region44: #{resblock_forward.5} parent=5 // pred_fallthru
      _
    %p326 = scmp.le.s32.totalorder 2, %s12
    // Predicated region
    $region49: #{resblock_forward.5} parent=5 // pred_check
      %p327 = pneg %p326
    $region50: #{resblock_forward.5} parent=5 // pred_check_branch
      %329 = sbr.rel (%p327) target = $region52
    $region51: #{resblock_forward.5} parent=5 // pred_region
      %s330 = ssub.s32 %s12, 2
      // Predicated region
      $region53: #{resblock_forward.5} parent=51 // pred_check
        %p331 = pneg %p177
      $region54: #{resblock_forward.5} parent=51 // pred_check_branch
        %333 = sbr.rel (%p331) target = $region56
      $region55: #{resblock_forward.5} parent=51 // pred_region
        %p334 = scmp.lt.s32.totalorder %s18, 1
        %s335 = scalar_select %p334, %s18, 1
        %s336 = smul.addr %s335, 2
        %s337 = smul.addr %s336, 8
        %s338 = scalar_lea.vmem %s6, %s337
      $region56: #{resblock_forward.5} parent=51 // pred_fallthru
        _
    $region52: #{resblock_forward.5} parent=5 // pred_fallthru
      _
  $region6: #{resblock_forward.5} parent=0 // loop_footer
    %s16 = sadd.s32 1, %s12
  $region7: #{resblock_forward.5} parent=0 // loop_footer_branch
    %11 = sbr.rel target = $region3
  $region8: #{resblock_forward.5} parent=0 // loop_exit
    _

// kernel: resblock_forward.3
$region0: #{resblock_forward.3}
  #allocation0 [shape = 'u32[]', space=smem, size = 0x4, offset = 0x4, fixed_abs, tag = 'smem constant byte address 0x4 - core index']
  #allocation1 [shape = 'u32[144,128]{1,0:T(1,128)}', space=vmem, size = 0x12000, scoped, tag = 'internal scratch']
  #allocation2 [shape = 'f32[256,36]{1,0:T(8,128)}', space=vmem, size = 0x20000, scoped, tag = 'scratch operand']
  %s0 = inlined_call_operand.vmem [shape: f32[2,18,18,4], index: 0, kind: input, shape index: {}]
  %s1 = inlined_call_operand.vmem [shape: f32[2,256,4], index: 1, kind: input, shape index: {}]
  %s2 = inlined_call_operand.vmem [shape: f32[36,8], index: 2, kind: input, shape index: {}]
  %s3 = inlined_call_operand.vmem [shape: f32[4,8], index: 3, kind: input, shape index: {}]
  %s4 = inlined_call_operand.vmem [shape: f32[2,16,16,8], index: 4, kind: output, shape index: {0}]
  %s5 = inlined_call_operand.vmem [shape: f32[2,2,8], index: 5, kind: output, shape index: {1}]
  %s6 = inlined_call_operand.vmem [shape: f32[2,16,16,8], index: 6, kind: output, shape index: {2}]
  %s7 = inlined_call_operand.vmem [shape: f32[2,2,8], index: 7, kind: output, shape index: {3}]
  %8 = xla_tuple %s4, %s5, %s6, %s7
  %s9 = sld [smem:[#allocation0]]
  $region73: #{resblock_forward.3} parent=0
    _
  %s11 = ssub.s32 1, %s9
  %s12 = scalar_select 0, %s11, %s9
  loop: start=0, step=1, limit=4
  $region2: #{resblock_forward.3} parent=0 // loop_pre_header
    _
  $region3: #{resblock_forward.3} parent=0 // loop_header
    %s14 = sphi 0, %s18
    %p15 = scmp.ge.s32.totalorder %s14, 4
    %s24 = sphi 0, %s26
    %s27 = sphi 0, %s24
    %s28 = sphi 0, %s27
    %s44 = sphi 0, %s28
    %s50 = sphi 0, %s52
    %s53 = sphi 0, %s50
    %s54 = sphi 0, %s53
    %s70 = sphi 0, %s54
    %s74 = sphi 0, %s74
    %s76 = sphi 0, %s74
    %s77 = sphi 0, %s76
    %s91 = sphi 0, %s77
    %s95 = sphi 0, %s95
    %s97 = sphi 0, %s95
    %s98 = sphi 0, %s97
    %s112 = sphi 0, %s98
    %s118 = sphi 0, %s120
    %s121 = sphi 0, %s118
    %s122 = sphi 0, %s121
    %s138 = sphi 0, %s122
    %s144 = sphi 0, %s146
    %s147 = sphi 0, %s144
    %s148 = sphi 0, %s147
    %s164 = sphi 0, %s148
    %s170 = sphi 0, %s172
    %s173 = sphi 0, %s170
    %s174 = sphi 0, %s173
    %s190 = sphi 0, %s174
    %s196 = sphi 0, %s198
    %s199 = sphi 0, %s196
    %s200 = sphi 0, %s199
    %s216 = sphi 0, %s200
  $region4: #{resblock_forward.3} parent=0 // loop_header_branch
    %17 = sbr.rel (%p15) target = $region8
  $region5: #{resblock_forward.3} parent=0 // loop_body
    %s19 = ssub.s32 %s14, 1
    %s20 = ssub.s32 %s14, 2
    %s21 = sadd.s32 %s14, 1
    %s22 = ssub.s32 %s14, %s21
    %p23 = scmp.eq.s32.totalorder %s22, 0
    %s25 = sadd.s32 %s24, 1
    %s26 = scalar_select %p23, %s24, %s25
    %p29 = pneg %p23
    %p30 = scmp.eq.s32.totalorder %s14, 1
    %p31 = por %p29, %p30
    %p32 = scmp.ne.s32.totalorder %s24, %s27
    %p33 = scmp.eq.s32.totalorder %s14, 0
    %p34 = por %p32, %p33
    %p35 = scmp.ne.s32.totalorder %s24, %s27
    %p36 = scmp.eq.s32.totalorder %s19, 1
    %p37 = por %p35, %p36
    %p38 = scmp.ne.s32.totalorder %s27, %s28
    %p39 = scmp.eq.s32.totalorder %s19, 0
    %p40 = por %p38, %p39
    %p41 = scmp.ne.s32.totalorder %s27, %s28
    %p42 = scmp.eq.s32.totalorder %s20, 1
    %p43 = por %p41, %p42
    %p45 = scmp.ne.s32.totalorder %s28, %s44
    %p46 = scmp.eq.s32.totalorder %s20, 0
    %p47 = por %p45, %p46
    %s48 = ssub.s32 %s14, %s21
    %p49 = scmp.eq.s32.totalorder %s48, 0
    %s51 = sadd.s32 %s50, 1
    %s52 = scalar_select %p49, %s50, %s51
    %p55 = pneg %p49
    %p56 = scmp.eq.s32.totalorder %s14, 1
    %p57 = por %p55, %p56
    %p58 = scmp.ne.s32.totalorder %s50, %s53
    %p59 = scmp.eq.s32.totalorder %s14, 0
    %p60 = por %p58, %p59
    %p61 = scmp.ne.s32.totalorder %s50, %s53
    %p62 = scmp.eq.s32.totalorder %s19, 1
    %p63 = por %p61, %p62
    %p64 = scmp.ne.s32.totalorder %s53, %s54
    %p65 = scmp.eq.s32.totalorder %s19, 0
    %p66 = por %p64, %p65
    %p67 = scmp.ne.s32.totalorder %s53, %s54
    %p68 = scmp.eq.s32.totalorder %s20, 1
    %p69 = por %p67, %p68
    %p71 = scmp.ne.s32.totalorder %s54, %s70
    %p72 = scmp.eq.s32.totalorder %s20, 0
    %p73 = por %p71, %p72
    %s75 = sadd.s32 %s74, 1
    %p78 = scmp.eq.s32.totalorder %s14, 1
    %p79 = scmp.ne.s32.totalorder %s74, %s76
    %p80 = scmp.eq.s32.totalorder %s14, 0
    %p81 = por %p79, %p80
    %p82 = scmp.ne.s32.totalorder %s74, %s76
    %p83 = scmp.eq.s32.totalorder %s19, 1
    %p84 = por %p82, %p83
    %p85 = scmp.ne.s32.totalorder %s76, %s77
    %p86 = scmp.eq.s32.totalorder %s19, 0
    %p87 = por %p85, %p86
    %p88 = scmp.ne.s32.totalorder %s76, %s77
    %p89 = scmp.eq.s32.totalorder %s20, 1
    %p90 = por %p88, %p89
    %p92 = scmp.ne.s32.totalorder %s77, %s91
    %p93 = scmp.eq.s32.totalorder %s20, 0
    %p94 = por %p92, %p93
    %s96 = sadd.s32 %s95, 1
    %p99 = scmp.eq.s32.totalorder %s14, 1
    %p100 = scmp.ne.s32.totalorder %s95, %s97
    %p101 = scmp.eq.s32.totalorder %s14, 0
    %p102 = por %p100, %p101
    %p103 = scmp.ne.s32.totalorder %s95, %s97
    %p104 = scmp.eq.s32.totalorder %s19, 1
    %p105 = por %p103, %p104
    %p106 = scmp.ne.s32.totalorder %s97, %s98
    %p107 = scmp.eq.s32.totalorder %s19, 0
    %p108 = por %p106, %p107
    %p109 = scmp.ne.s32.totalorder %s97, %s98
    %p110 = scmp.eq.s32.totalorder %s20, 1
    %p111 = por %p109, %p110
    %p113 = scmp.ne.s32.totalorder %s98, %s112
    %p114 = scmp.eq.s32.totalorder %s20, 0
    %p115 = por %p113, %p114
    %s116 = ssub.s32 %s14, %s21
    %p117 = scmp.eq.s32.totalorder %s116, 0
    %s119 = sadd.s32 %s118, 1
    %s120 = scalar_select %p117, %s118, %s119
    %p123 = pneg %p117
    %p124 = scmp.eq.s32.totalorder %s14, 1
    %p125 = por %p123, %p124
    %p126 = scmp.ne.s32.totalorder %s118, %s121
    %p127 = scmp.eq.s32.totalorder %s14, 0
    %p128 = por %p126, %p127
    %p129 = scmp.ne.s32.totalorder %s118, %s121
    %p130 = scmp.eq.s32.totalorder %s19, 1
    %p131 = por %p129, %p130
    %p132 = scmp.ne.s32.totalorder %s121, %s122
    %p133 = scmp.eq.s32.totalorder %s19, 0
    %p134 = por %p132, %p133
    %p135 = scmp.ne.s32.totalorder %s121, %s122
    %p136 = scmp.eq.s32.totalorder %s20, 1
    %p137 = por %p135, %p136
    %p139 = scmp.ne.s32.totalorder %s122, %s138
    %p140 = scmp.eq.s32.totalorder %s20, 0
    %p141 = por %p139, %p140
    %s142 = ssub.s32 %s14, %s21
    %p143 = scmp.eq.s32.totalorder %s142, 0
    %s145 = sadd.s32 %s144, 1
    %s146 = scalar_select %p143, %s144, %s145
    %p149 = pneg %p143
    %p150 = scmp.eq.s32.totalorder %s14, 1
    %p151 = por %p149, %p150
    %p152 = scmp.ne.s32.totalorder %s144, %s147
    %p153 = scmp.eq.s32.totalorder %s14, 0
    %p154 = por %p152, %p153
    %p155 = scmp.ne.s32.totalorder %s144, %s147
    %p156 = scmp.eq.s32.totalorder %s19, 1
    %p157 = por %p155, %p156
    %p158 = scmp.ne.s32.totalorder %s147, %s148
    %p159 = scmp.eq.s32.totalorder %s19, 0
    %p160 = por %p158, %p159
    %p161 = scmp.ne.s32.totalorder %s147, %s148
    %p162 = scmp.eq.s32.totalorder %s20, 1
    %p163 = por %p161, %p162
    %p165 = scmp.ne.s32.totalorder %s148, %s164
    %p166 = scmp.eq.s32.totalorder %s20, 0
    %p167 = por %p165, %p166
    %s168 = ssub.s32 %s14, %s21
    %p169 = scmp.eq.s32.totalorder %s168, 0
    %s171 = sadd.s32 %s170, 1
    %s172 = scalar_select %p169, %s170, %s171
    %p175 = pneg %p169
    %p176 = scmp.eq.s32.totalorder %s14, 1
    %p177 = por %p175, %p176
    %p178 = scmp.ne.s32.totalorder %s170, %s173
    %p179 = scmp.eq.s32.totalorder %s14, 0
    %p180 = por %p178, %p179
    %p181 = scmp.ne.s32.totalorder %s170, %s173
    %p182 = scmp.eq.s32.totalorder %s19, 1
    %p183 = por %p181, %p182
    %p184 = scmp.ne.s32.totalorder %s173, %s174
    %p185 = scmp.eq.s32.totalorder %s19, 0
    %p186 = por %p184, %p185
    %p187 = scmp.ne.s32.totalorder %s173, %s174
    %p188 = scmp.eq.s32.totalorder %s20, 1
    %p189 = por %p187, %p188
    %p191 = scmp.ne.s32.totalorder %s174, %s190
    %p192 = scmp.eq.s32.totalorder %s20, 0
    %p193 = por %p191, %p192
    %s194 = ssub.s32 %s14, %s21
    %p195 = scmp.eq.s32.totalorder %s194, 0
    %s197 = sadd.s32 %s196, 1
    %s198 = scalar_select %p195, %s196, %s197
    %p201 = pneg %p195
    %p202 = scmp.eq.s32.totalorder %s14, 1
    %p203 = por %p201, %p202
    %p204 = scmp.ne.s32.totalorder %s196, %s199
    %p205 = scmp.eq.s32.totalorder %s14, 0
    %p206 = por %p204, %p205
    %p207 = scmp.ne.s32.totalorder %s196, %s199
    %p208 = scmp.eq.s32.totalorder %s19, 1
    %p209 = por %p207, %p208
    %p210 = scmp.ne.s32.totalorder %s199, %s200
    %p211 = scmp.eq.s32.totalorder %s19, 0
    %p212 = por %p210, %p211
    %p213 = scmp.ne.s32.totalorder %s199, %s200
    %p214 = scmp.eq.s32.totalorder %s20, 1
    %p215 = por %p213, %p214
    %p217 = scmp.ne.s32.totalorder %s200, %s216
    %p218 = scmp.eq.s32.totalorder %s20, 0
    %p219 = por %p217, %p218
    %p220 = scmp.le.s32.totalorder 1, %s14
    %p221 = scmp.lt.s32.totalorder %s14, 3
    %p222 = pnand %p220, %p221
    %p223 = pneg %p222
    // Predicated region
    $region9: #{resblock_forward.3} parent=5 // pred_check
      _
    $region10: #{resblock_forward.3} parent=5 // pred_check_branch
      %225 = sbr.rel (%p222) target = $region12
    $region11: #{resblock_forward.3} parent=5 // pred_region
      %s226 = ssub.s32 %s14, 1
      // Predicated region
      $region13: #{resblock_forward.3} parent=11 // pred_check
        %p227 = pneg %p87
      $region14: #{resblock_forward.3} parent=11 // pred_check_branch
        %229 = sbr.rel (%p227) target = $region16
      $region15: #{resblock_forward.3} parent=11 // pred_region
        _
      $region16: #{resblock_forward.3} parent=11 // pred_fallthru
        _
      // Predicated region
      $region17: #{resblock_forward.3} parent=11 // pred_check
        %p230 = pneg %p108
      $region18: #{resblock_forward.3} parent=11 // pred_check_branch
        %232 = sbr.rel (%p230) target = $region20
      $region19: #{resblock_forward.3} parent=11 // pred_region
        _
      $region20: #{resblock_forward.3} parent=11 // pred_fallthru
        _
    $region12: #{resblock_forward.3} parent=5 // pred_fallthru
      _
    %p233 = scmp.lt.s32.totalorder %s14, 2
    // Predicated region
    $region21: #{resblock_forward.3} parent=5 // pred_check
      %p234 = pneg %p233
    $region22: #{resblock_forward.3} parent=5 // pred_check_branch
      %236 = sbr.rel (%p234) target = $region24
    $region23: #{resblock_forward.3} parent=5 // pred_region
      // Predicated region
      $region25: #{resblock_forward.3} parent=23 // pred_check
        %p237 = pneg %p34
      $region26: #{resblock_forward.3} parent=23 // pred_check_branch
        %239 = sbr.rel (%p237) target = $region28
      $region27: #{resblock_forward.3} parent=23 // pred_region
        %p240 = scmp.lt.s32.totalorder %s14, 1
        %s241 = scalar_select %p240, %s14, 1
        %s242 = smul.addr %s241, 54
        %s243 = smul.addr %s242, 8
        %s244 = scalar_lea.vmem %s0, %s243
      $region28: #{resblock_forward.3} parent=23 // pred_fallthru
        _
      // Predicated region
      $region29: #{resblock_forward.3} parent=23 // pred_check
        %p245 = pneg %p60
      $region30: #{resblock_forward.3} parent=23 // pred_check_branch
        %247 = sbr.rel (%p245) target = $region32
      $region31: #{resblock_forward.3} parent=23 // pred_region
        %p248 = scmp.lt.s32.totalorder %s14, 1
        %s249 = scalar_select %p248, %s14, 1
        %s250 = smul.addr %s249, 32
        %s251 = smul.addr %s250, 8
        %s252 = scalar_lea.vmem %s1, %s251
      $region32: #{resblock_forward.3} parent=23 // pred_fallthru
        _
    $region24: #{resblock_forward.3} parent=5 // pred_fallthru
      _
    %p253 = scmp.le.s32.totalorder 1, %s14
    %p254 = scmp.lt.s32.totalorder %s14, 3
    %p255 = pnand %p253, %p254
    %p256 = pneg %p255
    // Predicated region
    $region33: #{resblock_forward.3} parent=5 // pred_check
      _
    $region34: #{resblock_forward.3} parent=5 // pred_check_branch
      %258 = sbr.rel (%p255) target = $region36
    $region35: #{resblock_forward.3} parent=5 // pred_region
      %s259 = ssub.s32 %s14, 1
      %p260 = scmp.lt.s32.totalorder %s19, 1
      %s261 = scalar_select %p260, %s19, 1
      %s262 = smul.addr %s261, 54
      %s263 = smul.addr %s262, 8
      %s264 = scalar_lea.vmem %s0, %s263
      %p265 = pneg %p40
      %p266 = pneg %p37
      %p267 = scmp.lt.s32.totalorder %s19, 1
      %s268 = scalar_select %p267, %s19, 1
      %s269 = smul.addr %s268, 32
      %s270 = smul.addr %s269, 8
      %s271 = scalar_lea.vmem %s1, %s270
      %p272 = pneg %p66
      %p273 = pneg %p63
      %p274 = pneg %p87
      %p275 = pneg %p84
      %p276 = pneg %p108
      %p277 = pneg %p105
      %p278 = pneg %p134
      %p279 = pneg %p131
      %p280 = scmp.lt.s32.totalorder %s19, 1
      %s281 = scalar_select %p280, %s19, 1
      %s282 = smul.addr %s281, 32
      %s283 = smul.addr %s282, 8
      %s284 = scalar_lea.vmem %s4, %s283
      %p285 = pneg %p160
      %p286 = pneg %p157
      %p287 = scmp.lt.s32.totalorder %s19, 1
      %s288 = scalar_select %p287, %s19, 1
      %s289 = smul.addr %s288, 2
      %s290 = scalar_lea.vmem %s5, %s289
      %p291 = pneg %p186
      %p292 = pneg %p183
      %p293 = scmp.lt.s32.totalorder %s19, 1
      %s294 = scalar_select %p293, %s19, 1
      %s295 = smul.addr %s294, 32
      %s296 = smul.addr %s295, 8
      %s297 = scalar_lea.vmem %s6, %s296
      %p298 = pneg %p212
      %p299 = pneg %p209
      %p300 = scmp.lt.s32.totalorder %s19, 1
      %s301 = scalar_select %p300, %s19, 1
      %s302 = smul.addr %s301, 2
      %s303 = scalar_lea.vmem %s7, %s302
      %p304 = scmp.lt.s32.totalorder %s19, 1
      %s305 = scalar_select %p304, %s19, 1
      %s306 = smul.addr %s305, 54
      %s307 = smul.addr %s306, 8
      %s308 = scalar_lea.vmem %s0, %s307
      %p309 = scmp.lt.s32.totalorder %s19, 1
      %s310 = scalar_select %p309, %s19, 1
      %s311 = smul.addr %s310, 32
      %s312 = smul.addr %s311, 8
      %s313 = scalar_lea.vmem %s1, %s312
      %p314 = scmp.lt.s32.totalorder %s19, 1
      %s315 = scalar_select %p314, %s19, 1
      %s316 = smul.addr %s315, 32
      %s317 = smul.addr %s316, 8
      %s318 = scalar_lea.vmem %s4, %s317
      %p319 = scmp.lt.s32.totalorder %s19, 1
      %s320 = scalar_select %p319, %s19, 1
      %s321 = smul.addr %s320, 2
      %s322 = scalar_lea.vmem %s5, %s321
      %p323 = scmp.lt.s32.totalorder %s19, 1
      %s324 = scalar_select %p323, %s19, 1
      %s325 = smul.addr %s324, 32
      %s326 = smul.addr %s325, 8
      %s327 = scalar_lea.vmem %s6, %s326
      %p328 = scmp.lt.s32.totalorder %s19, 1
      %s329 = scalar_select %p328, %s19, 1
      %s330 = smul.addr %s329, 2
      %s331 = scalar_lea.vmem %s7, %s330
      %v333 = vld [vmem:[%s308] sm:$0xff]
      %v334 = vld [vmem:[%s308 + $0x8] sm:$0xff]
      %v335 = vld [vmem:[%s308 + $0x10] sm:$0x3]
      %v336 = vld [vmem:[%s308 + $0x18] sm:$0xff]
      %v337 = vld [vmem:[%s308 + $0x20] sm:$0xff]
      %v338 = vld [vmem:[%s308 + $0x28] sm:$0x3]
      %v339 = vld [vmem:[%s308 + $0x30] sm:$0xff]
      %v340 = vld [vmem:[%s308 + $0x38] sm:$0xff]
      %v341 = vld [vmem:[%s308 + $0x40] sm:$0x3]
      %v342 = vld [vmem:[%s308 + $0x48] sm:$0xff]
      %v343 = vld [vmem:[%s308 + $0x50] sm:$0xff]
      %v344 = vld [vmem:[%s308 + $0x58] sm:$0x3]
      %v345 = vld [vmem:[%s308 + $0x60] sm:$0xff]
      %v346 = vld [vmem:[%s308 + $0x68] sm:$0xff]
      %v347 = vld [vmem:[%s308 + $0x70] sm:$0x3]
      %v348 = vld [vmem:[%s308 + $0x78] sm:$0xff]
      %v349 = vld [vmem:[%s308 + $0x80] sm:$0xff]
      %v350 = vld [vmem:[%s308 + $0x88] sm:$0x3]
      %v351 = vld [vmem:[%s308 + $0x90] sm:$0xff]
      %v352 = vld [vmem:[%s308 + $0x98] sm:$0xff]
      %v353 = vld [vmem:[%s308 + $0xa0] sm:$0x3]
      %v354 = vld [vmem:[%s308 + $0xa8] sm:$0xff]
      %v355 = vld [vmem:[%s308 + $0xb0] sm:$0xff]
      %v356 = vld [vmem:[%s308 + $0xb8] sm:$0x3]
      %v357 = vld [vmem:[%s308 + $0xc0] sm:$0xff]
      %v358 = vld [vmem:[%s308 + $0xc8] sm:$0xff]
      %v359 = vld [vmem:[%s308 + $0xd0] sm:$0x3]
      %v360 = vld [vmem:[%s308 + $0xd8] sm:$0xff]
      %v361 = vld [vmem:[%s308 + $0xe0] sm:$0xff]
      %v362 = vld [vmem:[%s308 + $0xe8] sm:$0x3]
      %v363 = vld [vmem:[%s308 + $0xf0] sm:$0xff]
      %v364 = vld [vmem:[%s308 + $0xf8] sm:$0xff]
      %v365 = vld [vmem:[%s308 + $0x100] sm:$0x3]
      %v366 = vld [vmem:[%s308 + $0x108] sm:$0xff]
      %v367 = vld [vmem:[%s308 + $0x110] sm:$0xff]
      %v368 = vld [vmem:[%s308 + $0x118] sm:$0x3]
      %v369 = vld [vmem:[%s308 + $0x120] sm:$0xff]
      %v370 = vld [vmem:[%s308 + $0x128] sm:$0xff]
      %v371 = vld [vmem:[%s308 + $0x130] sm:$0x3]
      %v372 = vld [vmem:[%s308 + $0x138] sm:$0xff]
      %v373 = vld [vmem:[%s308 + $0x140] sm:$0xff]
      %v374 = vld [vmem:[%s308 + $0x148] sm:$0x3]
      %v375 = vld [vmem:[%s308 + $0x150] sm:$0xff]
      %v376 = vld [vmem:[%s308 + $0x158] sm:$0xff]
      %v377 = vld [vmem:[%s308 + $0x160] sm:$0x3]
      %v378 = vld [vmem:[%s308 + $0x168] sm:$0xff]
      %v379 = vld [vmem:[%s308 + $0x170] sm:$0xff]
      %v380 = vld [vmem:[%s308 + $0x178] sm:$0x3]
      %v381 = vld [vmem:[%s308 + $0x180] sm:$0xff]
      %v382 = vld [vmem:[%s308 + $0x188] sm:$0xff]
      %v383 = vld [vmem:[%s308 + $0x190] sm:$0x3]
      %v384 = vld [vmem:[%s308 + $0x198] sm:$0xff]
      %v385 = vld [vmem:[%s308 + $0x1a0] sm:$0xff]
      %v386 = vld [vmem:[%s308 + $0x1a8] sm:$0x3]
      %vm387 = vcmask 31744
      %388 = vst.msk [vmem:[#allocation2] sm:$0xff] %vm387, %v333
      %389 = vst.msk [vmem:[#allocation2 + $0x8] sm:$0xff] %vm387, %v334
      %390 = vst.msk [vmem:[#allocation2 + $0x10] sm:$0xff] %vm387, %v336
      %391 = vst.msk [vmem:[#allocation2 + $0x18] sm:$0xff] %vm387, %v337
      %392 = vst.msk [vmem:[#allocation2 + $0x20] sm:$0xff] %vm387, %v339
      %393 = vst.msk [vmem:[#allocation2 + $0x28] sm:$0xff] %vm387, %v340
      %394 = vst.msk [vmem:[#allocation2 + $0x30] sm:$0xff] %vm387, %v342
      %395 = vst.msk [vmem:[#allocation2 + $0x38] sm:$0xff] %vm387, %v343
      %396 = vst.msk [vmem:[#allocation2 + $0x40] sm:$0xff] %vm387, %v345
      %397 = vst.msk [vmem:[#allocation2 + $0x48] sm:$0xff] %vm387, %v346
      %398 = vst.msk [vmem:[#allocation2 + $0x50] sm:$0xff] %vm387, %v348
      %399 = vst.msk [vmem:[#allocation2 + $0x58] sm:$0xff] %vm387, %v349
      %400 = vst.msk [vmem:[#allocation2 + $0x60] sm:$0xff] %vm387, %v351
      %401 = vst.msk [vmem:[#allocation2 + $0x68] sm:$0xff] %vm387, %v352
      %402 = vst.msk [vmem:[#allocation2 + $0x70] sm:$0xff] %vm387, %v354
      %403 = vst.msk [vmem:[#allocation2 + $0x78] sm:$0xff] %vm387, %v355
      %404 = vst.msk [vmem:[#allocation2 + $0x80] sm:$0xff] %vm387, %v357
      %405 = vst.msk [vmem:[#allocation2 + $0x88] sm:$0xff] %vm387, %v358
      %406 = vst.msk [vmem:[#allocation2 + $0x90] sm:$0xff] %vm387, %v360
      %407 = vst.msk [vmem:[#allocation2 + $0x98] sm:$0xff] %vm387, %v361
      %408 = vst.msk [vmem:[#allocation2 + $0xa0] sm:$0xff] %vm387, %v363
      %409 = vst.msk [vmem:[#allocation2 + $0xa8] sm:$0xff] %vm387, %v364
      %410 = vst.msk [vmem:[#allocation2 + $0xb0] sm:$0xff] %vm387, %v366
      %411 = vst.msk [vmem:[#allocation2 + $0xb8] sm:$0xff] %vm387, %v367
      %412 = vst.msk [vmem:[#allocation2 + $0xc0] sm:$0xff] %vm387, %v369
      %413 = vst.msk [vmem:[#allocation2 + $0xc8] sm:$0xff] %vm387, %v370
      %414 = vst.msk [vmem:[#allocation2 + $0xd0] sm:$0xff] %vm387, %v372
      %415 = vst.msk [vmem:[#allocation2 + $0xd8] sm:$0xff] %vm387, %v373
      %416 = vst.msk [vmem:[#allocation2 + $0xe0] sm:$0xff] %vm387, %v375
      %417 = vst.msk [vmem:[#allocation2 + $0xe8] sm:$0xff] %vm387, %v376
      %418 = vst.msk [vmem:[#allocation2 + $0xf0] sm:$0xff] %vm387, %v378
      %419 = vst.msk [vmem:[#allocation2 + $0xf8] sm:$0xff] %vm387, %v379
      %vm468 = vcmask 1046528
      %v469 = vrot.slane %v333, 1
      %v470 = vrot.slane %v334, 1
      %v471 = vsel %vm468, %v469, %v470
      %v472 = vrot.slane %v335, 1
      %v473 = vsel %vm468, %v470, %v472
      %v474 = vrot.slane %v336, 1
      %v475 = vrot.slane %v337, 1
      %v476 = vsel %vm468, %v474, %v475
      %v477 = vrot.slane %v338, 1
      %v478 = vsel %vm468, %v475, %v477
      %v479 = vrot.slane %v339, 1
      %v480 = vrot.slane %v340, 1
      %v481 = vsel %vm468, %v479, %v480
      %v482 = vrot.slane %v341, 1
      %v483 = vsel %vm468, %v480, %v482
      %v484 = vrot.slane %v342, 1
      %v485 = vrot.slane %v343, 1
      %v486 = vsel %vm468, %v484, %v485
      %v487 = vrot.slane %v344, 1
      %v488 = vsel %vm468, %v485, %v487
      %v489 = vrot.slane %v345, 1
      %v490 = vrot.slane %v346, 1
      %v491 = vsel %vm468, %v489, %v490
      %v492 = vrot.slane %v347, 1
      %v493 = vsel %vm468, %v490, %v492
      %v494 = vrot.slane %v348, 1
      %v495 = vrot.slane %v349, 1
      %v496 = vsel %vm468, %v494, %v495
      %v497 = vrot.slane %v350, 1
      %v498 = vsel %vm468, %v495, %v497
      %v499 = vrot.slane %v351, 1
      %v500 = vrot.slane %v352, 1
      %v501 = vsel %vm468, %v499, %v500
      %v502 = vrot.slane %v353, 1
      %v503 = vsel %vm468, %v500, %v502
      %v504 = vrot.slane %v354, 1
      %v505 = vrot.slane %v355, 1
      %v506 = vsel %vm468, %v504, %v505
      %v507 = vrot.slane %v356, 1
      %v508 = vsel %vm468, %v505, %v507
      %v509 = vrot.slane %v357, 1
      %v510 = vrot.slane %v358, 1
      %v511 = vsel %vm468, %v509, %v510
      %v512 = vrot.slane %v359, 1
      %v513 = vsel %vm468, %v510, %v512
      %v514 = vrot.slane %v360, 1
      %v515 = vrot.slane %v361, 1
      %v516 = vsel %vm468, %v514, %v515
      %v517 = vrot.slane %v362, 1
      %v518 = vsel %vm468, %v515, %v517
      %v519 = vrot.slane %v363, 1
      %v520 = vrot.slane %v364, 1
      %v521 = vsel %vm468, %v519, %v520
      %v522 = vrot.slane %v365, 1
      %v523 = vsel %vm468, %v520, %v522
      %v524 = vrot.slane %v366, 1
      %v525 = vrot.slane %v367, 1
      %v526 = vsel %vm468, %v524, %v525
      %v527 = vrot.slane %v368, 1
      %v528 = vsel %vm468, %v525, %v527
      %v529 = vrot.slane %v369, 1
      %v530 = vrot.slane %v370, 1
      %v531 = vsel %vm468, %v529, %v530
      %v532 = vrot.slane %v371, 1
      %v533 = vsel %vm468, %v530, %v532
      %v534 = vrot.slane %v372, 1
      %v535 = vrot.slane %v373, 1
      %v536 = vsel %vm468, %v534, %v535
      %v537 = vrot.slane %v374, 1
      %v538 = vsel %vm468, %v535, %v537
      %v539 = vrot.slane %v375, 1
      %v540 = vrot.slane %v376, 1
      %v541 = vsel %vm468, %v539, %v540
      %v542 = vrot.slane %v377, 1
      %v543 = vsel %vm468, %v540, %v542
      %v544 = vrot.slane %v378, 1
      %v545 = vrot.slane %v379, 1
      %v546 = vsel %vm468, %v544, %v545
      %v547 = vrot.slane %v380, 1
      %v548 = vsel %vm468, %v545, %v547
      %549 = vrot.lane.b32.xlu0 %v471, 4
      %v550 = vpop.permute.xlu0 %549
      %551 = vrot.lane.b32.xlu0 %v473, 4
      %v552 = vpop.permute.xlu0 %551
      %553 = vrot.lane.b32.xlu0 %v476, 4
      %v554 = vpop.permute.xlu0 %553
      %555 = vrot.lane.b32.xlu0 %v478, 4
      %v556 = vpop.permute.xlu0 %555
      %557 = vrot.lane.b32.xlu0 %v481, 4
      %v558 = vpop.permute.xlu0 %557
      %559 = vrot.lane.b32.xlu0 %v483, 4
      %v560 = vpop.permute.xlu0 %559
      %561 = vrot.lane.b32.xlu0 %v486, 4
      %v562 = vpop.permute.xlu0 %561
      %563 = vrot.lane.b32.xlu0 %v488, 4
      %v564 = vpop.permute.xlu0 %563
      %565 = vrot.lane.b32.xlu0 %v491, 4
      %v566 = vpop.permute.xlu0 %565
      %567 = vrot.lane.b32.xlu0 %v493, 4
      %v568 = vpop.permute.xlu0 %567
      %569 = vrot.lane.b32.xlu0 %v496, 4
      %v570 = vpop.permute.xlu0 %569
      %571 = vrot.lane.b32.xlu0 %v498, 4
      %v572 = vpop.permute.xlu0 %571
      %573 = vrot.lane.b32.xlu0 %v501, 4
      %v574 = vpop.permute.xlu0 %573
      %575 = vrot.lane.b32.xlu0 %v503, 4
      %v576 = vpop.permute.xlu0 %575
      %577 = vrot.lane.b32.xlu0 %v506, 4
      %v578 = vpop.permute.xlu0 %577
      %579 = vrot.lane.b32.xlu0 %v508, 4
      %v580 = vpop.permute.xlu0 %579
      %581 = vrot.lane.b32.xlu0 %v511, 4
      %v582 = vpop.permute.xlu0 %581
      %583 = vrot.lane.b32.xlu0 %v513, 4
      %v584 = vpop.permute.xlu0 %583
      %585 = vrot.lane.b32.xlu0 %v516, 4
      %v586 = vpop.permute.xlu0 %585
      %587 = vrot.lane.b32.xlu0 %v518, 4
      %v588 = vpop.permute.xlu0 %587
      %589 = vrot.lane.b32.xlu0 %v521, 4
      %v590 = vpop.permute.xlu0 %589
      %591 = vrot.lane.b32.xlu0 %v523, 4
      %v592 = vpop.permute.xlu0 %591
      %593 = vrot.lane.b32.xlu0 %v526, 4
      %v594 = vpop.permute.xlu0 %593
      %595 = vrot.lane.b32.xlu0 %v528, 4
      %v596 = vpop.permute.xlu0 %595
      %597 = vrot.lane.b32.xlu0 %v531, 4
      %v598 = vpop.permute.xlu0 %597
      %599 = vrot.lane.b32.xlu0 %v533, 4
      %v600 = vpop.permute.xlu0 %599
      %601 = vrot.lane.b32.xlu0 %v536, 4
      %v602 = vpop.permute.xlu0 %601
      %603 = vrot.lane.b32.xlu0 %v538, 4
      %v604 = vpop.permute.xlu0 %603
      %605 = vrot.lane.b32.xlu0 %v541, 4
      %v606 = vpop.permute.xlu0 %605
      %607 = vrot.lane.b32.xlu0 %v543, 4
      %v608 = vpop.permute.xlu0 %607
      %609 = vrot.lane.b32.xlu0 %v546, 4
      %v610 = vpop.permute.xlu0 %609
      %611 = vrot.lane.b32.xlu0 %v548, 4
      %v612 = vpop.permute.xlu0 %611
      %vm645 = vcmask 64544
      %646 = vst.msk [vmem:[#allocation2] sm:$0xff] %vm645, %v550
      %647 = vst.msk [vmem:[#allocation2 + $0x8] sm:$0xff] %vm645, %v552
      %648 = vst.msk [vmem:[#allocation2 + $0x10] sm:$0xff] %vm645, %v554
      %649 = vst.msk [vmem:[#allocation2 + $0x18] sm:$0xff] %vm645, %v556
      %650 = vst.msk [vmem:[#allocation2 + $0x20] sm:$0xff] %vm645, %v558
      %651 = vst.msk [vmem:[#allocation2 + $0x28] sm:$0xff] %vm645, %v560
      %652 = vst.msk [vmem:[#allocation2 + $0x30] sm:$0xff] %vm645, %v562
      %653 = vst.msk [vmem:[#allocation2 + $0x38] sm:$0xff] %vm645, %v564
      %654 = vst.msk [vmem:[#allocation2 + $0x40] sm:$0xff] %vm645, %v566
      %655 = vst.msk [vmem:[#allocation2 + $0x48] sm:$0xff] %vm645, %v568
      %656 = vst.msk [vmem:[#allocation2 + $0x50] sm:$0xff] %vm645, %v570
      %657 = vst.msk [vmem:[#allocation2 + $0x58] sm:$0xff] %vm645, %v572
      %658 = vst.msk [vmem:[#allocation2 + $0x60] sm:$0xff] %vm645, %v574
      %659 = vst.msk [vmem:[#allocation2 + $0x68] sm:$0xff] %vm645, %v576
      %660 = vst.msk [vmem:[#allocation2 + $0x70] sm:$0xff] %vm645, %v578
      %661 = vst.msk [vmem:[#allocation2 + $0x78] sm:$0xff] %vm645, %v580
      %662 = vst.msk [vmem:[#allocation2 + $0x80] sm:$0xff] %vm645, %v582
      %663 = vst.msk [vmem:[#allocation2 + $0x88] sm:$0xff] %vm645, %v584
      %664 = vst.msk [vmem:[#allocation2 + $0x90] sm:$0xff] %vm645, %v586
      %665 = vst.msk [vmem:[#allocation2 + $0x98] sm:$0xff] %vm645, %v588
      %666 = vst.msk [vmem:[#allocation2 + $0xa0] sm:$0xff] %vm645, %v590
      %667 = vst.msk [vmem:[#allocation2 + $0xa8] sm:$0xff] %vm645, %v592
      %668 = vst.msk [vmem:[#allocation2 + $0xb0] sm:$0xff] %vm645, %v594
      %669 = vst.msk [vmem:[#allocation2 + $0xb8] sm:$0xff] %vm645, %v596
      %670 = vst.msk [vmem:[#allocation2 + $0xc0] sm:$0xff] %vm645, %v598
      %671 = vst.msk [vmem:[#allocation2 + $0xc8] sm:$0xff] %vm645, %v600
      %672 = vst.msk [vmem:[#allocation2 + $0xd0] sm:$0xff] %vm645, %v602
      %673 = vst.msk [vmem:[#allocation2 + $0xd8] sm:$0xff] %vm645, %v604
      %674 = vst.msk [vmem:[#allocation2 + $0xe0] sm:$0xff] %vm645, %v606
      %675 = vst.msk [vmem:[#allocation2 + $0xe8] sm:$0xff] %vm645, %v608
      %676 = vst.msk [vmem:[#allocation2 + $0xf0] sm:$0xff] %vm645, %v610
      %677 = vst.msk [vmem:[#allocation2 + $0xf8] sm:$0xff] %vm645, %v612
      %vm678 = vcmask 1045504
      %v679 = vrot.slane %v333, 2
      %v680 = vrot.slane %v334, 2
      %v681 = vsel %vm678, %v679, %v680
      %v682 = vrot.slane %v335, 2
      %v683 = vsel %vm678, %v680, %v682
      %v684 = vrot.slane %v336, 2
      %v685 = vrot.slane %v337, 2
      %v686 = vsel %vm678, %v684, %v685
      %v687 = vrot.slane %v338, 2
      %v688 = vsel %vm678, %v685, %v687
      %v689 = vrot.slane %v339, 2
      %v690 = vrot.slane %v340, 2
      %v691 = vsel %vm678, %v689, %v690
      %v692 = vrot.slane %v341, 2
      %v693 = vsel %vm678, %v690, %v692
      %v694 = vrot.slane %v342, 2
      %v695 = vrot.slane %v343, 2
      %v696 = vsel %vm678, %v694, %v695
      %v697 = vrot.slane %v344, 2
      %v698 = vsel %vm678, %v695, %v697
      %v699 = vrot.slane %v345, 2
      %v700 = vrot.slane %v346, 2
      %v701 = vsel %vm678, %v699, %v700
      %v702 = vrot.slane %v347, 2
      %v703 = vsel %vm678, %v700, %v702
      %v704 = vrot.slane %v348, 2
      %v705 = vrot.slane %v349, 2
      %v706 = vsel %vm678, %v704, %v705
      %v707 = vrot.slane %v350, 2
      %v708 = vsel %vm678, %v705, %v707
      %v709 = vrot.slane %v351, 2
      %v710 = vrot.slane %v352, 2
      %v711 = vsel %vm678, %v709, %v710
      %v712 = vrot.slane %v353, 2
      %v713 = vsel %vm678, %v710, %v712
      %v714 = vrot.slane %v354, 2
      %v715 = vrot.slane %v355, 2
      %v716 = vsel %vm678, %v714, %v715
      %v717 = vrot.slane %v356, 2
      %v718 = vsel %vm678, %v715, %v717
      %v719 = vrot.slane %v357, 2
      %v720 = vrot.slane %v358, 2
      %v721 = vsel %vm678, %v719, %v720
      %v722 = vrot.slane %v359, 2
      %v723 = vsel %vm678, %v720, %v722
      %v724 = vrot.slane %v360, 2
      %v725 = vrot.slane %v361, 2
      %v726 = vsel %vm678, %v724, %v725
      %v727 = vrot.slane %v362, 2
      %v728 = vsel %vm678, %v725, %v727
      %v729 = vrot.slane %v363, 2
      %v730 = vrot.slane %v364, 2
      %v731 = vsel %vm678, %v729, %v730
      %v732 = vrot.slane %v365, 2
      %v733 = vsel %vm678, %v730, %v732
      %v734 = vrot.slane %v366, 2
      %v735 = vrot.slane %v367, 2
      %v736 = vsel %vm678, %v734, %v735
      %v737 = vrot.slane %v368, 2
      %v738 = vsel %vm678, %v735, %v737
      %v739 = vrot.slane %v369, 2
      %v740 = vrot.slane %v370, 2
      %v741 = vsel %vm678, %v739, %v740
      %v742 = vrot.slane %v371, 2
      %v743 = vsel %vm678, %v740, %v742
      %v744 = vrot.slane %v372, 2
      %v745 = vrot.slane %v373, 2
      %v746 = vsel %vm678, %v744, %v745
      %v747 = vrot.slane %v374, 2
      %v748 = vsel %vm678, %v745, %v747
      %v749 = vrot.slane %v375, 2
      %v750 = vrot.slane %v376, 2
      %v751 = vsel %vm678, %v749, %v750
      %v752 = vrot.slane %v377, 2
      %v753 = vsel %vm678, %v750, %v752
      %v754 = vrot.slane %v378, 2
      %v755 = vrot.slane %v379, 2
      %v756 = vsel %vm678, %v754, %v755
      %v757 = vrot.slane %v380, 2
      %v758 = vsel %vm678, %v755, %v757
      %759 = vrot.lane.b32.xlu0 %v681, 8
      %v760 = vpop.permute.xlu0 %759
      %761 = vrot.lane.b32.xlu0 %v683, 8
      %v762 = vpop.permute.xlu0 %761
      %763 = vrot.lane.b32.xlu0 %v686, 8
      %v764 = vpop.permute.xlu0 %763
      %765 = vrot.lane.b32.xlu0 %v688, 8
      %v766 = vpop.permute.xlu0 %765
      %767 = vrot.lane.b32.xlu0 %v691, 8
      %v768 = vpop.permute.xlu0 %767
      %769 = vrot.lane.b32.xlu0 %v693, 8
      %v770 = vpop.permute.xlu0 %769
      %771 = vrot.lane.b32.xlu0 %v696, 8
      %v772 = vpop.permute.xlu0 %771
      %773 = vrot.lane.b32.xlu0 %v698, 8
      %v774 = vpop.permute.xlu0 %773
      %775 = vrot.lane.b32.xlu0 %v701, 8
      %v776 = vpop.permute.xlu0 %775
      %777 = vrot.lane.b32.xlu0 %v703, 8
      %v778 = vpop.permute.xlu0 %777
      %779 = vrot.lane.b32.xlu0 %v706, 8
      %v780 = vpop.permute.xlu0 %779
      %781 = vrot.lane.b32.xlu0 %v708, 8
      %v782 = vpop.permute.xlu0 %781
      %783 = vrot.lane.b32.xlu0 %v711, 8
      %v784 = vpop.permute.xlu0 %783
      %785 = vrot.lane.b32.xlu0 %v713, 8
      %v786 = vpop.permute.xlu0 %785
      %787 = vrot.lane.b32.xlu0 %v716, 8
      %v788 = vpop.permute.xlu0 %787
      %789 = vrot.lane.b32.xlu0 %v718, 8
      %v790 = vpop.permute.xlu0 %789
      %791 = vrot.lane.b32.xlu0 %v721, 8
      %v792 = vpop.permute.xlu0 %791
      %793 = vrot.lane.b32.xlu0 %v723, 8
      %v794 = vpop.permute.xlu0 %793
      %795 = vrot.lane.b32.xlu0 %v726, 8
      %v796 = vpop.permute.xlu0 %795
      %797 = vrot.lane.b32.xlu0 %v728, 8
      %v798 = vpop.permute.xlu0 %797
      %799 = vrot.lane.b32.xlu0 %v731, 8
      %v800 = vpop.permute.xlu0 %799
      %801 = vrot.lane.b32.xlu0 %v733, 8
      %v802 = vpop.permute.xlu0 %801
      %803 = vrot.lane.b32.xlu0 %v736, 8
      %v804 = vpop.permute.xlu0 %803
      %805 = vrot.lane.b32.xlu0 %v738, 8
      %v806 = vpop.permute.xlu0 %805
      %807 = vrot.lane.b32.xlu0 %v741, 8
      %v808 = vpop.permute.xlu0 %807
      %809 = vrot.lane.b32.xlu0 %v743, 8
      %v810 = vpop.permute.xlu0 %809
      %811 = vrot.lane.b32.xlu0 %v746, 8
      %v812 = vpop.permute.xlu0 %811
      %813 = vrot.lane.b32.xlu0 %v748, 8
      %v814 = vpop.permute.xlu0 %813
      %815 = vrot.lane.b32.xlu0 %v751, 8
      %v816 = vpop.permute.xlu0 %815
      %817 = vrot.lane.b32.xlu0 %v753, 8
      %v818 = vpop.permute.xlu0 %817
      %819 = vrot.lane.b32.xlu0 %v756, 8
      %v820 = vpop.permute.xlu0 %819
      %821 = vrot.lane.b32.xlu0 %v758, 8
      %v822 = vpop.permute.xlu0 %821
      %vm855 = vcmask 97344
      %856 = vst.msk [vmem:[#allocation2] sm:$0xff] %vm855, %v760
      %857 = vst.msk [vmem:[#allocation2 + $0x8] sm:$0xff] %vm855, %v762
      %858 = vst.msk [vmem:[#allocation2 + $0x10] sm:$0xff] %vm855, %v764
      %859 = vst.msk [vmem:[#allocation2 + $0x18] sm:$0xff] %vm855, %v766
      %860 = vst.msk [vmem:[#allocation2 + $0x20] sm:$0xff] %vm855, %v768
      %861 = vst.msk [vmem:[#allocation2 + $0x28] sm:$0xff] %vm855, %v770
      %862 = vst.msk [vmem:[#allocation2 + $0x30] sm:$0xff] %vm855, %v772
      %863 = vst.msk [vmem:[#allocation2 + $0x38] sm:$0xff] %vm855, %v774
      %864 = vst.msk [vmem:[#allocation2 + $0x40] sm:$0xff] %vm855, %v776
      %865 = vst.msk [vmem:[#allocation2 + $0x48] sm:$0xff] %vm855, %v778
      %866 = vst.msk [vmem:[#allocation2 + $0x50] sm:$0xff] %vm855, %v780
      %867 = vst.msk [vmem:[#allocation2 + $0x58] sm:$0xff] %vm855, %v782
      %868 = vst.msk [vmem:[#allocation2 + $0x60] sm:$0xff] %vm855, %v784
      %869 = vst.msk [vmem:[#allocation2 + $0x68] sm:$0xff] %vm855, %v786
      %870 = vst.msk [vmem:[#allocation2 + $0x70] sm:$0xff] %vm855, %v788
      %871 = vst.msk [vmem:[#allocation2 + $0x78] sm:$0xff] %vm855, %v790
      %872 = vst.msk [vmem:[#allocation2 + $0x80] sm:$0xff] %vm855, %v792
      %873 = vst.msk [vmem:[#allocation2 + $0x88] sm:$0xff] %vm855, %v794
      %874 = vst.msk [vmem:[#allocation2 + $0x90] sm:$0xff] %vm855, %v796
      %875 = vst.msk [vmem:[#allocation2 + $0x98] sm:$0xff] %vm855, %v798
      %876 = vst.msk [vmem:[#allocation2 + $0xa0] sm:$0xff] %vm855, %v800
      %877 = vst.msk [vmem:[#allocation2 + $0xa8] sm:$0xff] %vm855, %v802
      %878 = vst.msk [vmem:[#allocation2 + $0xb0] sm:$0xff] %vm855, %v804
      %879 = vst.msk [vmem:[#allocation2 + $0xb8] sm:$0xff] %vm855, %v806
      %880 = vst.msk [vmem:[#allocation2 + $0xc0] sm:$0xff] %vm855, %v808
      %881 = vst.msk [vmem:[#allocation2 + $0xc8] sm:$0xff] %vm855, %v810
      %882 = vst.msk [vmem:[#allocation2 + $0xd0] sm:$0xff] %vm855, %v812
      %883 = vst.msk [vmem:[#allocation2 + $0xd8] sm:$0xff] %vm855, %v814
      %884 = vst.msk [vmem:[#allocation2 + $0xe0] sm:$0xff] %vm855, %v816
      %885 = vst.msk [vmem:[#allocation2 + $0xe8] sm:$0xff] %vm855, %v818
      %886 = vst.msk [vmem:[#allocation2 + $0xf0] sm:$0xff] %vm855, %v820
      %887 = vst.msk [vmem:[#allocation2 + $0xf8] sm:$0xff] %vm855, %v822
      %890 = vrot.lane.b32.xlu0 %v336, 12
      %v891 = vpop.permute.xlu0 %890
      %892 = vrot.lane.b32.xlu0 %v337, 12
      %v893 = vpop.permute.xlu0 %892
      %894 = vrot.lane.b32.xlu0 %v339, 12
      %v895 = vpop.permute.xlu0 %894
      %896 = vrot.lane.b32.xlu0 %v340, 12
      %v897 = vpop.permute.xlu0 %896
      %898 = vrot.lane.b32.xlu0 %v342, 12
      %v899 = vpop.permute.xlu0 %898
      %900 = vrot.lane.b32.xlu0 %v343, 12
      %v901 = vpop.permute.xlu0 %900
      %902 = vrot.lane.b32.xlu0 %v345, 12
      %v903 = vpop.permute.xlu0 %902
      %904 = vrot.lane.b32.xlu0 %v346, 12
      %v905 = vpop.permute.xlu0 %904
      %906 = vrot.lane.b32.xlu0 %v348, 12
      %v907 = vpop.permute.xlu0 %906
      %908 = vrot.lane.b32.xlu0 %v349, 12
      %v909 = vpop.permute.xlu0 %908
      %910 = vrot.lane.b32.xlu0 %v351, 12
      %v911 = vpop.permute.xlu0 %910
      %912 = vrot.lane.b32.xlu0 %v352, 12
      %v913 = vpop.permute.xlu0 %912
      %914 = vrot.lane.b32.xlu0 %v354, 12
      %v915 = vpop.permute.xlu0 %914
      %916 = vrot.lane.b32.xlu0 %v355, 12
      %v917 = vpop.permute.xlu0 %916
      %918 = vrot.lane.b32.xlu0 %v357, 12
      %v919 = vpop.permute.xlu0 %918
      %920 = vrot.lane.b32.xlu0 %v358, 12
      %v921 = vpop.permute.xlu0 %920
      %922 = vrot.lane.b32.xlu0 %v360, 12
      %v923 = vpop.permute.xlu0 %922
      %924 = vrot.lane.b32.xlu0 %v361, 12
      %v925 = vpop.permute.xlu0 %924
      %926 = vrot.lane.b32.xlu0 %v363, 12
      %v927 = vpop.permute.xlu0 %926
      %928 = vrot.lane.b32.xlu0 %v364, 12
      %v929 = vpop.permute.xlu0 %928
      %930 = vrot.lane.b32.xlu0 %v366, 12
      %v931 = vpop.permute.xlu0 %930
      %932 = vrot.lane.b32.xlu0 %v367, 12
      %v933 = vpop.permute.xlu0 %932
      %934 = vrot.lane.b32.xlu0 %v369, 12
      %v935 = vpop.permute.xlu0 %934
      %936 = vrot.lane.b32.xlu0 %v370, 12
      %v937 = vpop.permute.xlu0 %936
      %938 = vrot.lane.b32.xlu0 %v372, 12
      %v939 = vpop.permute.xlu0 %938
      %940 = vrot.lane.b32.xlu0 %v373, 12
      %v941 = vpop.permute.xlu0 %940
      %942 = vrot.lane.b32.xlu0 %v375, 12
      %v943 = vpop.permute.xlu0 %942
      %944 = vrot.lane.b32.xlu0 %v376, 12
      %v945 = vpop.permute.xlu0 %944
      %946 = vrot.lane.b32.xlu0 %v378, 12
      %v947 = vpop.permute.xlu0 %946
      %948 = vrot.lane.b32.xlu0 %v379, 12
      %v949 = vpop.permute.xlu0 %948
      %950 = vrot.lane.b32.xlu0 %v381, 12
      %v951 = vpop.permute.xlu0 %950
      %952 = vrot.lane.b32.xlu0 %v382, 12
      %v953 = vpop.permute.xlu0 %952
      %vm986 = vcmask 130144
      %987 = vst.msk [vmem:[#allocation2] sm:$0xff] %vm986, %v891
      %988 = vst.msk [vmem:[#allocation2 + $0x8] sm:$0xff] %vm986, %v893
      %989 = vst.msk [vmem:[#allocation2 + $0x10] sm:$0xff] %vm986, %v895
      %990 = vst.msk [vmem:[#allocation2 + $0x18] sm:$0xff] %vm986, %v897
      %991 = vst.msk [vmem:[#allocation2 + $0x20] sm:$0xff] %vm986, %v899
      %992 = vst.msk [vmem:[#allocation2 + $0x28] sm:$0xff] %vm986, %v901
      %993 = vst.msk [vmem:[#allocation2 + $0x30] sm:$0xff] %vm986, %v903
      %994 = vst.msk [vmem:[#allocation2 + $0x38] sm:$0xff] %vm986, %v905
      %995 = vst.msk [vmem:[#allocation2 + $0x40] sm:$0xff] %vm986, %v907
      %996 = vst.msk [vmem:[#allocation2 + $0x48] sm:$0xff] %vm986, %v909
      %997 = vst.msk [vmem:[#allocation2 + $0x50] sm:$0xff] %vm986, %v911
      %998 = vst.msk [vmem:[#allocation2 + $0x58] sm:$0xff] %vm986, %v913
      %999 = vst.msk [vmem:[#allocation2 + $0x60] sm:$0xff] %vm986, %v915
      %1000 = vst.msk [vmem:[#allocation2 + $0x68] sm:$0xff] %vm986, %v917
      %1001 = vst.msk [vmem:[#allocation2 + $0x70] sm:$0xff] %vm986, %v919
      %1002 = vst.msk [vmem:[#allocation2 + $0x78] sm:$0xff] %vm986, %v921
      %1003 = vst.msk [vmem:[#allocation2 + $0x80] sm:$0xff] %vm986, %v923
      %1004 = vst.msk [vmem:[#allocation2 + $0x88] sm:$0xff] %vm986, %v925
      %1005 = vst.msk [vmem:[#allocation2 + $0x90] sm:$0xff] %vm986, %v927
      %1006 = vst.msk [vmem:[#allocation2 + $0x98] sm:$0xff] %vm986, %v929
      %1007 = vst.msk [vmem:[#allocation2 + $0xa0] sm:$0xff] %vm986, %v931
      %1008 = vst.msk [vmem:[#allocation2 + $0xa8] sm:$0xff] %vm986, %v933
      %1009 = vst.msk [vmem:[#allocation2 + $0xb0] sm:$0xff] %vm986, %v935
      %1010 = vst.msk [vmem:[#allocation2 + $0xb8] sm:$0xff] %vm986, %v937
      %1011 = vst.msk [vmem:[#allocation2 + $0xc0] sm:$0xff] %vm986, %v939
      %1012 = vst.msk [vmem:[#allocation2 + $0xc8] sm:$0xff] %vm986, %v941
      %1013 = vst.msk [vmem:[#allocation2 + $0xd0] sm:$0xff] %vm986, %v943
      %1014 = vst.msk [vmem:[#allocation2 + $0xd8] sm:$0xff] %vm986, %v945
      %1015 = vst.msk [vmem:[#allocation2 + $0xe0] sm:$0xff] %vm986, %v947
      %1016 = vst.msk [vmem:[#allocation2 + $0xe8] sm:$0xff] %vm986, %v949
      %1017 = vst.msk [vmem:[#allocation2 + $0xf0] sm:$0xff] %vm986, %v951
      %1018 = vst.msk [vmem:[#allocation2 + $0xf8] sm:$0xff] %vm986, %v953
      %v1020 = vrot.slane %v381, 1
      %v1021 = vrot.slane %v382, 1
      %v1022 = vsel %vm468, %v1020, %v1021
      %v1023 = vrot.slane %v383, 1
      %v1024 = vsel %vm468, %v1021, %v1023
      %1025 = vrot.lane.b32.xlu0 %v476, 16
      %v1026 = vpop.permute.xlu0 %1025
      %1027 = vrot.lane.b32.xlu0 %v478, 16
      %v1028 = vpop.permute.xlu0 %1027
      %1029 = vrot.lane.b32.xlu0 %v481, 16
      %v1030 = vpop.permute.xlu0 %1029
      %1031 = vrot.lane.b32.xlu0 %v483, 16
      %v1032 = vpop.permute.xlu0 %1031
      %1033 = vrot.lane.b32.xlu0 %v486, 16
      %v1034 = vpop.permute.xlu0 %1033
      %1035 = vrot.lane.b32.xlu0 %v488, 16
      %v1036 = vpop.permute.xlu0 %1035
      %1037 = vrot.lane.b32.xlu0 %v491, 16
      %v1038 = vpop.permute.xlu0 %1037
      %1039 = vrot.lane.b32.xlu0 %v493, 16
      %v1040 = vpop.permute.xlu0 %1039
      %1041 = vrot.lane.b32.xlu0 %v496, 16
      %v1042 = vpop.permute.xlu0 %1041
      %1043 = vrot.lane.b32.xlu0 %v498, 16
      %v1044 = vpop.permute.xlu0 %1043
      %1045 = vrot.lane.b32.xlu0 %v501, 16
      %v1046 = vpop.permute.xlu0 %1045
      %1047 = vrot.lane.b32.xlu0 %v503, 16
      %v1048 = vpop.permute.xlu0 %1047
      %1049 = vrot.lane.b32.xlu0 %v506, 16
      %v1050 = vpop.permute.xlu0 %1049
      %1051 = vrot.lane.b32.xlu0 %v508, 16
      %v1052 = vpop.permute.xlu0 %1051
      %1053 = vrot.lane.b32.xlu0 %v511, 16
      %v1054 = vpop.permute.xlu0 %1053
      %1055 = vrot.lane.b32.xlu0 %v513, 16
      %v1056 = vpop.permute.xlu0 %1055
      %1057 = vrot.lane.b32.xlu0 %v516, 16
      %v1058 = vpop.permute.xlu0 %1057
      %1059 = vrot.lane.b32.xlu0 %v518, 16
      %v1060 = vpop.permute.xlu0 %1059
      %1061 = vrot.lane.b32.xlu0 %v521, 16
      %v1062 = vpop.permute.xlu0 %1061
      %1063 = vrot.lane.b32.xlu0 %v523, 16
      %v1064 = vpop.permute.xlu0 %1063
      %1065 = vrot.lane.b32.xlu0 %v526, 16
      %v1066 = vpop.permute.xlu0 %1065
      %1067 = vrot.lane.b32.xlu0 %v528, 16
      %v1068 = vpop.permute.xlu0 %1067
      %1069 = vrot.lane.b32.xlu0 %v531, 16
      %v1070 = vpop.permute.xlu0 %1069
      %1071 = vrot.lane.b32.xlu0 %v533, 16
      %v1072 = vpop.permute.xlu0 %1071
      %1073 = vrot.lane.b32.xlu0 %v536, 16
      %v1074 = vpop.permute.xlu0 %1073
      %1075 = vrot.lane.b32.xlu0 %v538, 16
      %v1076 = vpop.permute.xlu0 %1075
      %1077 = vrot.lane.b32.xlu0 %v541, 16
      %v1078 = vpop.permute.xlu0 %1077
      %1079 = vrot.lane.b32.xlu0 %v543, 16
      %v1080 = vpop.permute.xlu0 %1079
      %1081 = vrot.lane.b32.xlu0 %v546, 16
      %v1082 = vpop.permute.xlu0 %1081
      %1083 = vrot.lane.b32.xlu0 %v548, 16
      %v1084 = vpop.permute.xlu0 %1083
      %1085 = vrot.lane.b32.xlu0 %v1022, 16
      %v1086 = vpop.permute.xlu0 %1085
      %1087 = vrot.lane.b32.xlu0 %v1024, 16
      %v1088 = vpop.permute.xlu0 %1087
      %vm1121 = vcmask 162944
      %1122 = vst.msk [vmem:[#allocation2] sm:$0xff] %vm1121, %v1026
      %1123 = vst.msk [vmem:[#allocation2 + $0x8] sm:$0xff] %vm1121, %v1028
      %1124 = vst.msk [vmem:[#allocation2 + $0x10] sm:$0xff] %vm1121, %v1030
      %1125 = vst.msk [vmem:[#allocation2 + $0x18] sm:$0xff] %vm1121, %v1032
      %1126 = vst.msk [vmem:[#allocation2 + $0x20] sm:$0xff] %vm1121, %v1034
      %1127 = vst.msk [vmem:[#allocation2 + $0x28] sm:$0xff] %vm1121, %v1036
      %1128 = vst.msk [vmem:[#allocation2 + $0x30] sm:$0xff] %vm1121, %v1038
      %1129 = vst.msk [vmem:[#allocation2 + $0x38] sm:$0xff] %vm1121, %v1040
      %1130 = vst.msk [vmem:[#allocation2 + $0x40] sm:$0xff] %vm1121, %v1042
      %1131 = vst.msk [vmem:[#allocation2 + $0x48] sm:$0xff] %vm1121, %v1044
      %1132 = vst.msk [vmem:[#allocation2 + $0x50] sm:$0xff] %vm1121, %v1046
      %1133 = vst.msk [vmem:[#allocation2 + $0x58] sm:$0xff] %vm1121, %v1048
      %1134 = vst.msk [vmem:[#allocation2 + $0x60] sm:$0xff] %vm1121, %v1050
      %1135 = vst.msk [vmem:[#allocation2 + $0x68] sm:$0xff] %vm1121, %v1052
      %1136 = vst.msk [vmem:[#allocation2 + $0x70] sm:$0xff] %vm1121, %v1054
      %1137 = vst.msk [vmem:[#allocation2 + $0x78] sm:$0xff] %vm1121, %v1056
      %1138 = vst.msk [vmem:[#allocation2 + $0x80] sm:$0xff] %vm1121, %v1058
      %1139 = vst.msk [vmem:[#allocation2 + $0x88] sm:$0xff] %vm1121, %v1060
      %1140 = vst.msk [vmem:[#allocation2 + $0x90] sm:$0xff] %vm1121, %v1062
      %1141 = vst.msk [vmem:[#allocation2 + $0x98] sm:$0xff] %vm1121, %v1064
      %1142 = vst.msk [vmem:[#allocation2 + $0xa0] sm:$0xff] %vm1121, %v1066
      %1143 = vst.msk [vmem:[#allocation2 + $0xa8] sm:$0xff] %vm1121, %v1068
      %1144 = vst.msk [vmem:[#allocation2 + $0xb0] sm:$0xff] %vm1121, %v1070
      %1145 = vst.msk [vmem:[#allocation2 + $0xb8] sm:$0xff] %vm1121, %v1072
      %1146 = vst.msk [vmem:[#allocation2 + $0xc0] sm:$0xff] %vm1121, %v1074
      %1147 = vst.msk [vmem:[#allocation2 + $0xc8] sm:$0xff] %vm1121, %v1076
      %1148 = vst.msk [vmem:[#allocation2 + $0xd0] sm:$0xff] %vm1121, %v1078
      %1149 = vst.msk [vmem:[#allocation2 + $0xd8] sm:$0xff] %vm1121, %v1080
      %1150 = vst.msk [vmem:[#allocation2 + $0xe0] sm:$0xff] %vm1121, %v1082
      %1151 = vst.msk [vmem:[#allocation2 + $0xe8] sm:$0xff] %vm1121, %v1084
      %1152 = vst.msk [vmem:[#allocation2 + $0xf0] sm:$0xff] %vm1121, %v1086
      %1153 = vst.msk [vmem:[#allocation2 + $0xf8] sm:$0xff] %vm1121, %v1088
      %v1154 = vrot.slane %v381, 2
      %v1155 = vrot.slane %v382, 2
      %v1156 = vsel %vm678, %v1154, %v1155
      %v1157 = vrot.slane %v383, 2
      %v1158 = vsel %vm678, %v1155, %v1157
      %1159 = vrot.lane.b32.xlu0 %v686, 20
      %v1160 = vpop.permute.xlu0 %1159
      %1161 = vrot.lane.b32.xlu0 %v688, 20
      %v1162 = vpop.permute.xlu0 %1161
      %1163 = vrot.lane.b32.xlu0 %v691, 20
      %v1164 = vpop.permute.xlu0 %1163
      %1165 = vrot.lane.b32.xlu0 %v693, 20
      %v1166 = vpop.permute.xlu0 %1165
      %1167 = vrot.lane.b32.xlu0 %v696, 20
      %v1168 = vpop.permute.xlu0 %1167
      %1169 = vrot.lane.b32.xlu0 %v698, 20
      %v1170 = vpop.permute.xlu0 %1169
      %1171 = vrot.lane.b32.xlu0 %v701, 20
      %v1172 = vpop.permute.xlu0 %1171
      %1173 = vrot.lane.b32.xlu0 %v703, 20
      %v1174 = vpop.permute.xlu0 %1173
      %1175 = vrot.lane.b32.xlu0 %v706, 20
      %v1176 = vpop.permute.xlu0 %1175
      %1177 = vrot.lane.b32.xlu0 %v708, 20
      %v1178 = vpop.permute.xlu0 %1177
      %1179 = vrot.lane.b32.xlu0 %v711, 20
      %v1180 = vpop.permute.xlu0 %1179
      %1181 = vrot.lane.b32.xlu0 %v713, 20
      %v1182 = vpop.permute.xlu0 %1181
      %1183 = vrot.lane.b32.xlu0 %v716, 20
      %v1184 = vpop.permute.xlu0 %1183
      %1185 = vrot.lane.b32.xlu0 %v718, 20
      %v1186 = vpop.permute.xlu0 %1185
      %1187 = vrot.lane.b32.xlu0 %v721, 20
      %v1188 = vpop.permute.xlu0 %1187
      %1189 = vrot.lane.b32.xlu0 %v723, 20
      %v1190 = vpop.permute.xlu0 %1189
      %1191 = vrot.lane.b32.xlu0 %v726, 20
      %v1192 = vpop.permute.xlu0 %1191
      %1193 = vrot.lane.b32.xlu0 %v728, 20
      %v1194 = vpop.permute.xlu0 %1193
      %1195 = vrot.lane.b32.xlu0 %v731, 20
      %v1196 = vpop.permute.xlu0 %1195
      %1197 = vrot.lane.b32.xlu0 %v733, 20
      %v1198 = vpop.permute.xlu0 %1197
      %1199 = vrot.lane.b32.xlu0 %v736, 20
      %v1200 = vpop.permute.xlu0 %1199
      %1201 = vrot.lane.b32.xlu0 %v738, 20
      %v1202 = vpop.permute.xlu0 %1201
      %1203 = vrot.lane.b32.xlu0 %v741, 20
      %v1204 = vpop.permute.xlu0 %1203
      %1205 = vrot.lane.b32.xlu0 %v743, 20
      %v1206 = vpop.permute.xlu0 %1205
      %1207 = vrot.lane.b32.xlu0 %v746, 20
      %v1208 = vpop.permute.xlu0 %1207
      %1209 = vrot.lane.b32.xlu0 %v748, 20
      %v1210 = vpop.permute.xlu0 %1209
      %1211 = vrot.lane.b32.xlu0 %v751, 20
      %v1212 = vpop.permute.xlu0 %1211
      %1213 = vrot.lane.b32.xlu0 %v753, 20
      %v1214 = vpop.permute.xlu0 %1213
      %1215 = vrot.lane.b32.xlu0 %v756, 20
      %v1216 = vpop.permute.xlu0 %1215
      %1217 = vrot.lane.b32.xlu0 %v758, 20
      %v1218 = vpop.permute.xlu0 %1217
      %1219 = vrot.lane.b32.xlu0 %v1156, 20
      %v1220 = vpop.permute.xlu0 %1219
      %1221 = vrot.lane.b32.xlu0 %v1158, 20
      %v1222 = vpop.permute.xlu0 %1221
      %vm1255 = vcmask 195744
      %1256 = vst.msk [vmem:[#allocation2] sm:$0xff] %vm1255, %v1160
      %1257 = vst.msk [vmem:[#allocation2 + $0x8] sm:$0xff] %vm1255, %v1162
      %1258 = vst.msk [vmem:[#allocation2 + $0x10] sm:$0xff] %vm1255, %v1164
      %1259 = vst.msk [vmem:[#allocation2 + $0x18] sm:$0xff] %vm1255, %v1166
      %1260 = vst.msk [vmem:[#allocation2 + $0x20] sm:$0xff] %vm1255, %v1168
      %1261 = vst.msk [vmem:[#allocation2 + $0x28] sm:$0xff] %vm1255, %v1170
      %1262 = vst.msk [vmem:[#allocation2 + $0x30] sm:$0xff] %vm1255, %v1172
      %1263 = vst.msk [vmem:[#allocation2 + $0x38] sm:$0xff] %vm1255, %v1174
      %1264 = vst.msk [vmem:[#allocation2 + $0x40] sm:$0xff] %vm1255, %v1176
      %1265 = vst.msk [vmem:[#allocation2 + $0x48] sm:$0xff] %vm1255, %v1178
      %1266 = vst.msk [vmem:[#allocation2 + $0x50] sm:$0xff] %vm1255, %v1180
      %1267 = vst.msk [vmem:[#allocation2 + $0x58] sm:$0xff] %vm1255, %v1182
      %1268 = vst.msk [vmem:[#allocation2 + $0x60] sm:$0xff] %vm1255, %v1184
      %1269 = vst.msk [vmem:[#allocation2 + $0x68] sm:$0xff] %vm1255, %v1186
      %1270 = vst.msk [vmem:[#allocation2 + $0x70] sm:$0xff] %vm1255, %v1188
      %1271 = vst.msk [vmem:[#allocation2 + $0x78] sm:$0xff] %vm1255, %v1190
      %1272 = vst.msk [vmem:[#allocation2 + $0x80] sm:$0xff] %vm1255, %v1192
      %1273 = vst.msk [vmem:[#allocation2 + $0x88] sm:$0xff] %vm1255, %v1194
      %1274 = vst.msk [vmem:[#allocation2 + $0x90] sm:$0xff] %vm1255, %v1196
      %1275 = vst.msk [vmem:[#allocation2 + $0x98] sm:$0xff] %vm1255, %v1198
      %1276 = vst.msk [vmem:[#allocation2 + $0xa0] sm:$0xff] %vm1255, %v1200
      %1277 = vst.msk [vmem:[#allocation2 + $0xa8] sm:$0xff] %vm1255, %v1202
      %1278 = vst.msk [vmem:[#allocation2 + $0xb0] sm:$0xff] %vm1255, %v1204
      %1279 = vst.msk [vmem:[#allocation2 + $0xb8] sm:$0xff] %vm1255, %v1206
      %1280 = vst.msk [vmem:[#allocation2 + $0xc0] sm:$0xff] %vm1255, %v1208
      %1281 = vst.msk [vmem:[#allocation2 + $0xc8] sm:$0xff] %vm1255, %v1210
      %1282 = vst.msk [vmem:[#allocation2 + $0xd0] sm:$0xff] %vm1255, %v1212
      %1283 = vst.msk [vmem:[#allocation2 + $0xd8] sm:$0xff] %vm1255, %v1214
      %1284 = vst.msk [vmem:[#allocation2 + $0xe0] sm:$0xff] %vm1255, %v1216
      %1285 = vst.msk [vmem:[#allocation2 + $0xe8] sm:$0xff] %vm1255, %v1218
      %1286 = vst.msk [vmem:[#allocation2 + $0xf0] sm:$0xff] %vm1255, %v1220
      %1287 = vst.msk [vmem:[#allocation2 + $0xf8] sm:$0xff] %vm1255, %v1222
      %1290 = vrot.lane.b32.xlu0 %v339, 24
      %v1291 = vpop.permute.xlu0 %1290
      %1292 = vrot.lane.b32.xlu0 %v340, 24
      %v1293 = vpop.permute.xlu0 %1292
      %1294 = vrot.lane.b32.xlu0 %v342, 24
      %v1295 = vpop.permute.xlu0 %1294
      %1296 = vrot.lane.b32.xlu0 %v343, 24
      %v1297 = vpop.permute.xlu0 %1296
      %1298 = vrot.lane.b32.xlu0 %v345, 24
      %v1299 = vpop.permute.xlu0 %1298
      %1300 = vrot.lane.b32.xlu0 %v346, 24
      %v1301 = vpop.permute.xlu0 %1300
      %1302 = vrot.lane.b32.xlu0 %v348, 24
      %v1303 = vpop.permute.xlu0 %1302
      %1304 = vrot.lane.b32.xlu0 %v349, 24
      %v1305 = vpop.permute.xlu0 %1304
      %1306 = vrot.lane.b32.xlu0 %v351, 24
      %v1307 = vpop.permute.xlu0 %1306
      %1308 = vrot.lane.b32.xlu0 %v352, 24
      %v1309 = vpop.permute.xlu0 %1308
      %1310 = vrot.lane.b32.xlu0 %v354, 24
      %v1311 = vpop.permute.xlu0 %1310
      %1312 = vrot.lane.b32.xlu0 %v355, 24
      %v1313 = vpop.permute.xlu0 %1312
      %1314 = vrot.lane.b32.xlu0 %v357, 24
      %v1315 = vpop.permute.xlu0 %1314
      %1316 = vrot.lane.b32.xlu0 %v358, 24
      %v1317 = vpop.permute.xlu0 %1316
      %1318 = vrot.lane.b32.xlu0 %v360, 24
      %v1319 = vpop.permute.xlu0 %1318
      %1320 = vrot.lane.b32.xlu0 %v361, 24
      %v1321 = vpop.permute.xlu0 %1320
      %1322 = vrot.lane.b32.xlu0 %v363, 24
      %v1323 = vpop.permute.xlu0 %1322
      %1324 = vrot.lane.b32.xlu0 %v364, 24
      %v1325 = vpop.permute.xlu0 %1324
      %1326 = vrot.lane.b32.xlu0 %v366, 24
      %v1327 = vpop.permute.xlu0 %1326
      %1328 = vrot.lane.b32.xlu0 %v367, 24
      %v1329 = vpop.permute.xlu0 %1328
      %1330 = vrot.lane.b32.xlu0 %v369, 24
      %v1331 = vpop.permute.xlu0 %1330
      %1332 = vrot.lane.b32.xlu0 %v370, 24
      %v1333 = vpop.permute.xlu0 %1332
      %1334 = vrot.lane.b32.xlu0 %v372, 24
      %v1335 = vpop.permute.xlu0 %1334
      %1336 = vrot.lane.b32.xlu0 %v373, 24
      %v1337 = vpop.permute.xlu0 %1336
      %1338 = vrot.lane.b32.xlu0 %v375, 24
      %v1339 = vpop.permute.xlu0 %1338
      %1340 = vrot.lane.b32.xlu0 %v376, 24
      %v1341 = vpop.permute.xlu0 %1340
      %1342 = vrot.lane.b32.xlu0 %v378, 24
      %v1343 = vpop.permute.xlu0 %1342
      %1344 = vrot.lane.b32.xlu0 %v379, 24
      %v1345 = vpop.permute.xlu0 %1344
      %1346 = vrot.lane.b32.xlu0 %v381, 24
      %v1347 = vpop.permute.xlu0 %1346
      %1348 = vrot.lane.b32.xlu0 %v382, 24
      %v1349 = vpop.permute.xlu0 %1348
      %1350 = vrot.lane.b32.xlu0 %v384, 24
      %v1351 = vpop.permute.xlu0 %1350
      %1352 = vrot.lane.b32.xlu0 %v385, 24
      %v1353 = vpop.permute.xlu0 %1352
      %vm1386 = vcmask 228544
      %1387 = vst.msk [vmem:[#allocation2] sm:$0xff] %vm1386, %v1291
      %1388 = vst.msk [vmem:[#allocation2 + $0x8] sm:$0xff] %vm1386, %v1293
      %1389 = vst.msk [vmem:[#allocation2 + $0x10] sm:$0xff] %vm1386, %v1295
      %1390 = vst.msk [vmem:[#allocation2 + $0x18] sm:$0xff] %vm1386, %v1297
      %1391 = vst.msk [vmem:[#allocation2 + $0x20] sm:$0xff] %vm1386, %v1299
      %1392 = vst.msk [vmem:[#allocation2 + $0x28] sm:$0xff] %vm1386, %v1301
      %1393 = vst.msk [vmem:[#allocation2 + $0x30] sm:$0xff] %vm1386, %v1303
      %1394 = vst.msk [vmem:[#allocation2 + $0x38] sm:$0xff] %vm1386, %v1305
      %1395 = vst.msk [vmem:[#allocation2 + $0x40] sm:$0xff] %vm1386, %v1307
      %1396 = vst.msk [vmem:[#allocation2 + $0x48] sm:$0xff] %vm1386, %v1309
      %1397 = vst.msk [vmem:[#allocation2 + $0x50] sm:$0xff] %vm1386, %v1311
      %1398 = vst.msk [vmem:[#allocation2 + $0x58] sm:$0xff] %vm1386, %v1313
      %1399 = vst.msk [vmem:[#allocation2 + $0x60] sm:$0xff] %vm1386, %v1315
      %1400 = vst.msk [vmem:[#allocation2 + $0x68] sm:$0xff] %vm1386, %v1317
      %1401 = vst.msk [vmem:[#allocation2 + $0x70] sm:$0xff] %vm1386, %v1319
      %1402 = vst.msk [vmem:[#allocation2 + $0x78] sm:$0xff] %vm1386, %v1321
      %1403 = vst.msk [vmem:[#allocation2 + $0x80] sm:$0xff] %vm1386, %v1323
      %1404 = vst.msk [vmem:[#allocation2 + $0x88] sm:$0xff] %vm1386, %v1325
      %1405 = vst.msk [vmem:[#allocation2 + $0x90] sm:$0xff] %vm1386, %v1327
      %1406 = vst.msk [vmem:[#allocation2 + $0x98] sm:$0xff] %vm1386, %v1329
      %1407 = vst.msk [vmem:[#allocation2 + $0xa0] sm:$0xff] %vm1386, %v1331
      %1408 = vst.msk [vmem:[#allocation2 + $0xa8] sm:$0xff] %vm1386, %v1333
      %1409 = vst.msk [vmem:[#allocation2 + $0xb0] sm:$0xff] %vm1386, %v1335
      %1410 = vst.msk [vmem:[#allocation2 + $0xb8] sm:$0xff] %vm1386, %v1337
      %1411 = vst.msk [vmem:[#allocation2 + $0xc0] sm:$0xff] %vm1386, %v1339
      %1412 = vst.msk [vmem:[#allocation2 + $0xc8] sm:$0xff] %vm1386, %v1341
      %1413 = vst.msk [vmem:[#allocation2 + $0xd0] sm:$0xff] %vm1386, %v1343
      %1414 = vst.msk [vmem:[#allocation2 + $0xd8] sm:$0xff] %vm1386, %v1345
      %1415 = vst.msk [vmem:[#allocation2 + $0xe0] sm:$0xff] %vm1386, %v1347
      %1416 = vst.msk [vmem:[#allocation2 + $0xe8] sm:$0xff] %vm1386, %v1349
      %1417 = vst.msk [vmem:[#allocation2 + $0xf0] sm:$0xff] %vm1386, %v1351
      %1418 = vst.msk [vmem:[#allocation2 + $0xf8] sm:$0xff] %vm1386, %v1353
      %v1420 = vrot.slane %v384, 1
      %v1421 = vrot.slane %v385, 1
      %v1422 = vsel %vm468, %v1420, %v1421
      %v1423 = vrot.slane %v386, 1
      %v1424 = vsel %vm468, %v1421, %v1423
      %1425 = vrot.lane.b32.xlu0 %v481, 28
      %v1426 = vpop.permute.xlu0 %1425
      %1427 = vrot.lane.b32.xlu0 %v483, 28
      %v1428 = vpop.permute.xlu0 %1427
      %1429 = vrot.lane.b32.xlu0 %v486, 28
      %v1430 = vpop.permute.xlu0 %1429
      %1431 = vrot.lane.b32.xlu0 %v488, 28
      %v1432 = vpop.permute.xlu0 %1431
      %1433 = vrot.lane.b32.xlu0 %v491, 28
      %v1434 = vpop.permute.xlu0 %1433
      %1435 = vrot.lane.b32.xlu0 %v493, 28
      %v1436 = vpop.permute.xlu0 %1435
      %1437 = vrot.lane.b32.xlu0 %v496, 28
      %v1438 = vpop.permute.xlu0 %1437
      %1439 = vrot.lane.b32.xlu0 %v498, 28
      %v1440 = vpop.permute.xlu0 %1439
      %1441 = vrot.lane.b32.xlu0 %v501, 28
      %v1442 = vpop.permute.xlu0 %1441
      %1443 = vrot.lane.b32.xlu0 %v503, 28
      %v1444 = vpop.permute.xlu0 %1443
      %1445 = vrot.lane.b32.xlu0 %v506, 28
      %v1446 = vpop.permute.xlu0 %1445
      %1447 = vrot.lane.b32.xlu0 %v508, 28
      %v1448 = vpop.permute.xlu0 %1447
      %1449 = vrot.lane.b32.xlu0 %v511, 28
      %v1450 = vpop.permute.xlu0 %1449
      %1451 = vrot.lane.b32.xlu0 %v513, 28
      %v1452 = vpop.permute.xlu0 %1451
      %1453 = vrot.lane.b32.xlu0 %v516, 28
      %v1454 = vpop.permute.xlu0 %1453
      %1455 = vrot.lane.b32.xlu0 %v518, 28
      %v1456 = vpop.permute.xlu0 %1455
      %1457 = vrot.lane.b32.xlu0 %v521, 28
      %v1458 = vpop.permute.xlu0 %1457
      %1459 = vrot.lane.b32.xlu0 %v523, 28
      %v1460 = vpop.permute.xlu0 %1459
      %1461 = vrot.lane.b32.xlu0 %v526, 28
      %v1462 = vpop.permute.xlu0 %1461
      %1463 = vrot.lane.b32.xlu0 %v528, 28
      %v1464 = vpop.permute.xlu0 %1463
      %1465 = vrot.lane.b32.xlu0 %v531, 28
      %v1466 = vpop.permute.xlu0 %1465
      %1467 = vrot.lane.b32.xlu0 %v533, 28
      %v1468 = vpop.permute.xlu0 %1467
      %1469 = vrot.lane.b32.xlu0 %v536, 28
      %v1470 = vpop.permute.xlu0 %1469
      %1471 = vrot.lane.b32.xlu0 %v538, 28
      %v1472 = vpop.permute.xlu0 %1471
      %1473 = vrot.lane.b32.xlu0 %v541, 28
      %v1474 = vpop.permute.xlu0 %1473
      %1475 = vrot.lane.b32.xlu0 %v543, 28
      %v1476 = vpop.permute.xlu0 %1475
      %1477 = vrot.lane.b32.xlu0 %v546, 28
      %v1478 = vpop.permute.xlu0 %1477
      %1479 = vrot.lane.b32.xlu0 %v548, 28
      %v1480 = vpop.permute.xlu0 %1479
      %1481 = vrot.lane.b32.xlu0 %v1022, 28
      %v1482 = vpop.permute.xlu0 %1481
      %1483 = vrot.lane.b32.xlu0 %v1024, 28
      %v1484 = vpop.permute.xlu0 %1483
      %1485 = vrot.lane.b32.xlu0 %v1422, 28
      %v1486 = vpop.permute.xlu0 %1485
      %1487 = vrot.lane.b32.xlu0 %v1424, 28
      %v1488 = vpop.permute.xlu0 %1487
      %vm1521 = vcmask 261344
      %1522 = vst.msk [vmem:[#allocation2] sm:$0xff] %vm1521, %v1426
      %1523 = vst.msk [vmem:[#allocation2 + $0x8] sm:$0xff] %vm1521, %v1428
      %1524 = vst.msk [vmem:[#allocation2 + $0x10] sm:$0xff] %vm1521, %v1430
      %1525 = vst.msk [vmem:[#allocation2 + $0x18] sm:$0xff] %vm1521, %v1432
      %1526 = vst.msk [vmem:[#allocation2 + $0x20] sm:$0xff] %vm1521, %v1434
      %1527 = vst.msk [vmem:[#allocation2 + $0x28] sm:$0xff] %vm1521, %v1436
      %1528 = vst.msk [vmem:[#allocation2 + $0x30] sm:$0xff] %vm1521, %v1438
      %1529 = vst.msk [vmem:[#allocation2 + $0x38] sm:$0xff] %vm1521, %v1440
      %1530 = vst.msk [vmem:[#allocation2 + $0x40] sm:$0xff] %vm1521, %v1442
      %1531 = vst.msk [vmem:[#allocation2 + $0x48] sm:$0xff] %vm1521, %v1444
      %1532 = vst.msk [vmem:[#allocation2 + $0x50] sm:$0xff] %vm1521, %v1446
      %1533 = vst.msk [vmem:[#allocation2 + $0x58] sm:$0xff] %vm1521, %v1448
      %1534 = vst.msk [vmem:[#allocation2 + $0x60] sm:$0xff] %vm1521, %v1450
      %1535 = vst.msk [vmem:[#allocation2 + $0x68] sm:$0xff] %vm1521, %v1452
      %1536 = vst.msk [vmem:[#allocation2 + $0x70] sm:$0xff] %vm1521, %v1454
      %1537 = vst.msk [vmem:[#allocation2 + $0x78] sm:$0xff] %vm1521, %v1456
      %1538 = vst.msk [vmem:[#allocation2 + $0x80] sm:$0xff] %vm1521, %v1458
      %1539 = vst.msk [vmem:[#allocation2 + $0x88] sm:$0xff] %vm1521, %v1460
      %1540 = vst.msk [vmem:[#allocation2 + $0x90] sm:$0xff] %vm1521, %v1462
      %1541 = vst.msk [vmem:[#allocation2 + $0x98] sm:$0xff] %vm1521, %v1464
      %1542 = vst.msk [vmem:[#allocation2 + $0xa0] sm:$0xff] %vm1521, %v1466
      %1543 = vst.msk [vmem:[#allocation2 + $0xa8] sm:$0xff] %vm1521, %v1468
      %1544 = vst.msk [vmem:[#allocation2 + $0xb0] sm:$0xff] %vm1521, %v1470
      %1545 = vst.msk [vmem:[#allocation2 + $0xb8] sm:$0xff] %vm1521, %v1472
      %1546 = vst.msk [vmem:[#allocation2 + $0xc0] sm:$0xff] %vm1521, %v1474
      %1547 = vst.msk [vmem:[#allocation2 + $0xc8] sm:$0xff] %vm1521, %v1476
      %1548 = vst.msk [vmem:[#allocation2 + $0xd0] sm:$0xff] %vm1521, %v1478
      %1549 = vst.msk [vmem:[#allocation2 + $0xd8] sm:$0xff] %vm1521, %v1480
      %1550 = vst.msk [vmem:[#allocation2 + $0xe0] sm:$0xff] %vm1521, %v1482
      %1551 = vst.msk [vmem:[#allocation2 + $0xe8] sm:$0xff] %vm1521, %v1484
      %1552 = vst.msk [vmem:[#allocation2 + $0xf0] sm:$0xff] %vm1521, %v1486
      %1553 = vst.msk [vmem:[#allocation2 + $0xf8] sm:$0xff] %vm1521, %v1488
      %v1554 = vrot.slane %v384, 2
      %v1555 = vrot.slane %v385, 2
      %v1556 = vsel %vm678, %v1554, %v1555
      %v1557 = vrot.slane %v386, 2
      %v1558 = vsel %vm678, %v1555, %v1557
      %1559 = vrot.lane.b32.xlu0 %v691, 32
      %v1560 = vpop.permute.xlu0 %1559
      %1561 = vrot.lane.b32.xlu0 %v693, 32
      %v1562 = vpop.permute.xlu0 %1561
      %1563 = vrot.lane.b32.xlu0 %v696, 32
      %v1564 = vpop.permute.xlu0 %1563
      %1565 = vrot.lane.b32.xlu0 %v698, 32
      %v1566 = vpop.permute.xlu0 %1565
      %1567 = vrot.lane.b32.xlu0 %v701, 32
      %v1568 = vpop.permute.xlu0 %1567
      %1569 = vrot.lane.b32.xlu0 %v703, 32
      %v1570 = vpop.permute.xlu0 %1569
      %1571 = vrot.lane.b32.xlu0 %v706, 32
      %v1572 = vpop.permute.xlu0 %1571
      %1573 = vrot.lane.b32.xlu0 %v708, 32
      %v1574 = vpop.permute.xlu0 %1573
      %1575 = vrot.lane.b32.xlu0 %v711, 32
      %v1576 = vpop.permute.xlu0 %1575
      %1577 = vrot.lane.b32.xlu0 %v713, 32
      %v1578 = vpop.permute.xlu0 %1577
      %1579 = vrot.lane.b32.xlu0 %v716, 32
      %v1580 = vpop.permute.xlu0 %1579
      %1581 = vrot.lane.b32.xlu0 %v718, 32
      %v1582 = vpop.permute.xlu0 %1581
      %1583 = vrot.lane.b32.xlu0 %v721, 32
      %v1584 = vpop.permute.xlu0 %1583
      %1585 = vrot.lane.b32.xlu0 %v723, 32
      %v1586 = vpop.permute.xlu0 %1585
      %1587 = vrot.lane.b32.xlu0 %v726, 32
      %v1588 = vpop.permute.xlu0 %1587
      %1589 = vrot.lane.b32.xlu0 %v728, 32
      %v1590 = vpop.permute.xlu0 %1589
      %1591 = vrot.lane.b32.xlu0 %v731, 32
      %v1592 = vpop.permute.xlu0 %1591
      %1593 = vrot.lane.b32.xlu0 %v733, 32
      %v1594 = vpop.permute.xlu0 %1593
      %1595 = vrot.lane.b32.xlu0 %v736, 32
      %v1596 = vpop.permute.xlu0 %1595
      %1597 = vrot.lane.b32.xlu0 %v738, 32
      %v1598 = vpop.permute.xlu0 %1597
      %1599 = vrot.lane.b32.xlu0 %v741, 32
      %v1600 = vpop.permute.xlu0 %1599
      %1601 = vrot.lane.b32.xlu0 %v743, 32
      %v1602 = vpop.permute.xlu0 %1601
      %1603 = vrot.lane.b32.xlu0 %v746, 32
      %v1604 = vpop.permute.xlu0 %1603
      %1605 = vrot.lane.b32.xlu0 %v748, 32
      %v1606 = vpop.permute.xlu0 %1605
      %1607 = vrot.lane.b32.xlu0 %v751, 32
      %v1608 = vpop.permute.xlu0 %1607
      %1609 = vrot.lane.b32.xlu0 %v753, 32
      %v1610 = vpop.permute.xlu0 %1609
      %1611 = vrot.lane.b32.xlu0 %v756, 32
      %v1612 = vpop.permute.xlu0 %1611
      %1613 = vrot.lane.b32.xlu0 %v758, 32
      %v1614 = vpop.permute.xlu0 %1613
      %1615 = vrot.lane.b32.xlu0 %v1156, 32
      %v1616 = vpop.permute.xlu0 %1615
      %1617 = vrot.lane.b32.xlu0 %v1158, 32
      %v1618 = vpop.permute.xlu0 %1617
      %1619 = vrot.lane.b32.xlu0 %v1556, 32
      %v1620 = vpop.permute.xlu0 %1619
      %1621 = vrot.lane.b32.xlu0 %v1558, 32
      %v1622 = vpop.permute.xlu0 %1621
      %vm1655 = vcmask 294144
      %1656 = vst.msk [vmem:[#allocation2] sm:$0xff] %vm1655, %v1560
      %1657 = vst.msk [vmem:[#allocation2 + $0x8] sm:$0xff] %vm1655, %v1562
      %1658 = vst.msk [vmem:[#allocation2 + $0x10] sm:$0xff] %vm1655, %v1564
      %1659 = vst.msk [vmem:[#allocation2 + $0x18] sm:$0xff] %vm1655, %v1566
      %1660 = vst.msk [vmem:[#allocation2 + $0x20] sm:$0xff] %vm1655, %v1568
      %1661 = vst.msk [vmem:[#allocation2 + $0x28] sm:$0xff] %vm1655, %v1570
      %1662 = vst.msk [vmem:[#allocation2 + $0x30] sm:$0xff] %vm1655, %v1572
      %1663 = vst.msk [vmem:[#allocation2 + $0x38] sm:$0xff] %vm1655, %v1574
      %1664 = vst.msk [vmem:[#allocation2 + $0x40] sm:$0xff] %vm1655, %v1576
      %1665 = vst.msk [vmem:[#allocation2 + $0x48] sm:$0xff] %vm1655, %v1578
      %1666 = vst.msk [vmem:[#allocation2 + $0x50] sm:$0xff] %vm1655, %v1580
      %1667 = vst.msk [vmem:[#allocation2 + $0x58] sm:$0xff] %vm1655, %v1582
      %1668 = vst.msk [vmem:[#allocation2 + $0x60] sm:$0xff] %vm1655, %v1584
      %1669 = vst.msk [vmem:[#allocation2 + $0x68] sm:$0xff] %vm1655, %v1586
      %1670 = vst.msk [vmem:[#allocation2 + $0x70] sm:$0xff] %vm1655, %v1588
      %1671 = vst.msk [vmem:[#allocation2 + $0x78] sm:$0xff] %vm1655, %v1590
      %1672 = vst.msk [vmem:[#allocation2 + $0x80] sm:$0xff] %vm1655, %v1592
      %1673 = vst.msk [vmem:[#allocation2 + $0x88] sm:$0xff] %vm1655, %v1594
      %1674 = vst.msk [vmem:[#allocation2 + $0x90] sm:$0xff] %vm1655, %v1596
      %1675 = vst.msk [vmem:[#allocation2 + $0x98] sm:$0xff] %vm1655, %v1598
      %1676 = vst.msk [vmem:[#allocation2 + $0xa0] sm:$0xff] %vm1655, %v1600
      %1677 = vst.msk [vmem:[#allocation2 + $0xa8] sm:$0xff] %vm1655, %v1602
      %1678 = vst.msk [vmem:[#allocation2 + $0xb0] sm:$0xff] %vm1655, %v1604
      %1679 = vst.msk [vmem:[#allocation2 + $0xb8] sm:$0xff] %vm1655, %v1606
      %1680 = vst.msk [vmem:[#allocation2 + $0xc0] sm:$0xff] %vm1655, %v1608
      %1681 = vst.msk [vmem:[#allocation2 + $0xc8] sm:$0xff] %vm1655, %v1610
      %1682 = vst.msk [vmem:[#allocation2 + $0xd0] sm:$0xff] %vm1655, %v1612
      %1683 = vst.msk [vmem:[#allocation2 + $0xd8] sm:$0xff] %vm1655, %v1614
      %1684 = vst.msk [vmem:[#allocation2 + $0xe0] sm:$0xff] %vm1655, %v1616
      %1685 = vst.msk [vmem:[#allocation2 + $0xe8] sm:$0xff] %vm1655, %v1618
      %1686 = vst.msk [vmem:[#allocation2 + $0xf0] sm:$0xff] %vm1655, %v1620
      %1687 = vst.msk [vmem:[#allocation2 + $0xf8] sm:$0xff] %vm1655, %v1622
      %v1688 = vld [vmem:[#allocation2] sm:$0xff]
      %v1689 = vld [vmem:[#allocation2 + $0x8] sm:$0xff]
      %v1690 = vld [vmem:[#allocation2 + $0x10] sm:$0xff]
      %v1691 = vld [vmem:[#allocation2 + $0x18] sm:$0xff]
      %v1692 = vld [vmem:[#allocation2 + $0x20] sm:$0xff]
      %v1693 = vld [vmem:[#allocation2 + $0x28] sm:$0xff]
      %v1694 = vld [vmem:[#allocation2 + $0x30] sm:$0xff]
      %v1695 = vld [vmem:[#allocation2 + $0x38] sm:$0xff]
      %v1696 = vld [vmem:[#allocation2 + $0x40] sm:$0xff]
      %v1697 = vld [vmem:[#allocation2 + $0x48] sm:$0xff]
      %v1698 = vld [vmem:[#allocation2 + $0x50] sm:$0xff]
      %v1699 = vld [vmem:[#allocation2 + $0x58] sm:$0xff]
      %v1700 = vld [vmem:[#allocation2 + $0x60] sm:$0xff]
      %v1701 = vld [vmem:[#allocation2 + $0x68] sm:$0xff]
      %v1702 = vld [vmem:[#allocation2 + $0x70] sm:$0xff]
      %v1703 = vld [vmem:[#allocation2 + $0x78] sm:$0xff]
      %v1704 = vld [vmem:[#allocation2 + $0x80] sm:$0xff]
      %v1705 = vld [vmem:[#allocation2 + $0x88] sm:$0xff]
      %v1706 = vld [vmem:[#allocation2 + $0x90] sm:$0xff]
      %v1707 = vld [vmem:[#allocation2 + $0x98] sm:$0xff]
      %v1708 = vld [vmem:[#allocation2 + $0xa0] sm:$0xff]
      %v1709 = vld [vmem:[#allocation2 + $0xa8] sm:$0xff]
      %v1710 = vld [vmem:[#allocation2 + $0xb0] sm:$0xff]
      %v1711 = vld [vmem:[#allocation2 + $0xb8] sm:$0xff]
      %v1712 = vld [vmem:[#allocation2 + $0xc0] sm:$0xff]
      %v1713 = vld [vmem:[#allocation2 + $0xc8] sm:$0xff]
      %v1714 = vld [vmem:[#allocation2 + $0xd0] sm:$0xff]
      %v1715 = vld [vmem:[#allocation2 + $0xd8] sm:$0xff]
      %v1716 = vld [vmem:[#allocation2 + $0xe0] sm:$0xff]
      %v1717 = vld [vmem:[#allocation2 + $0xe8] sm:$0xff]
      %v1718 = vld [vmem:[#allocation2 + $0xf0] sm:$0xff]
      %v1719 = vld [vmem:[#allocation2 + $0xf8] sm:$0xff]
      %v1720 = vld [vmem:[%s2] sm:$0xff]
      %v1721 = vld [vmem:[%s2 + $0x8] sm:$0xff]
      %v1722 = vld [vmem:[%s2 + $0x10] sm:$0xff]
      %v1723 = vld [vmem:[%s2 + $0x18] sm:$0xff]
      %v1724 = vld [vmem:[%s2 + $0x20] sm:$0xf]
      %v1725 = vpack.c.bf16 %v1689, %v1688
      %v1726 = vpack.c.bf16 %v1691, %v1690
      %v1727 = vpack.c.bf16 %v1693, %v1692
      %v1728 = vpack.c.bf16 %v1695, %v1694
      %v1729 = vpack.c.bf16 %v1697, %v1696
      %v1730 = vpack.c.bf16 %v1699, %v1698
      %v1731 = vpack.c.bf16 %v1701, %v1700
      %v1732 = vpack.c.bf16 %v1703, %v1702
      %v1733 = vpack.c.bf16 %v1705, %v1704
      %v1734 = vpack.c.bf16 %v1707, %v1706
      %v1735 = vpack.c.bf16 %v1709, %v1708
      %v1736 = vpack.c.bf16 %v1711, %v1710
      %v1737 = vpack.c.bf16 %v1713, %v1712
      %v1738 = vpack.c.bf16 %v1715, %v1714
      %v1739 = vpack.c.bf16 %v1717, %v1716
      %v1740 = vpack.c.bf16 %v1719, %v1718
      %v1741 = vunpack.c.l.bf16 %v1725
      %v1742 = vunpack.c.h.bf16 %v1725
      %v1743 = vunpack.c.l.bf16 %v1726
      %v1744 = vunpack.c.h.bf16 %v1726
      %v1745 = vunpack.c.l.bf16 %v1727
      %v1746 = vunpack.c.h.bf16 %v1727
      %v1747 = vunpack.c.l.bf16 %v1728
      %v1748 = vunpack.c.h.bf16 %v1728
      %v1749 = vunpack.c.l.bf16 %v1729
      %v1750 = vunpack.c.h.bf16 %v1729
      %v1751 = vunpack.c.l.bf16 %v1730
      %v1752 = vunpack.c.h.bf16 %v1730
      %v1753 = vunpack.c.l.bf16 %v1731
      %v1754 = vunpack.c.h.bf16 %v1731
      %v1755 = vunpack.c.l.bf16 %v1732
      %v1756 = vunpack.c.h.bf16 %v1732
      %v1757 = vunpack.c.l.bf16 %v1733
      %v1758 = vunpack.c.h.bf16 %v1733
      %v1759 = vunpack.c.l.bf16 %v1734
      %v1760 = vunpack.c.h.bf16 %v1734
      %v1761 = vunpack.c.l.bf16 %v1735
      %v1762 = vunpack.c.h.bf16 %v1735
      %v1763 = vunpack.c.l.bf16 %v1736
      %v1764 = vunpack.c.h.bf16 %v1736
      %v1765 = vunpack.c.l.bf16 %v1737
      %v1766 = vunpack.c.h.bf16 %v1737
      %v1767 = vunpack.c.l.bf16 %v1738
      %v1768 = vunpack.c.h.bf16 %v1738
      %v1769 = vunpack.c.l.bf16 %v1739
      %v1770 = vunpack.c.h.bf16 %v1739
      %v1771 = vunpack.c.l.bf16 %v1740
      %v1772 = vunpack.c.h.bf16 %v1740
      %v1773 = vsub.f32 %v1688, %v1741
      %v1774 = vsub.f32 %v1689, %v1742
      %v1775 = vsub.f32 %v1690, %v1743
      %v1776 = vsub.f32 %v1691, %v1744
      %v1777 = vsub.f32 %v1692, %v1745
      %v1778 = vsub.f32 %v1693, %v1746
      %v1779 = vsub.f32 %v1694, %v1747
      %v1780 = vsub.f32 %v1695, %v1748
      %v1781 = vsub.f32 %v1696, %v1749
      %v1782 = vsub.f32 %v1697, %v1750
      %v1783 = vsub.f32 %v1698, %v1751
      %v1784 = vsub.f32 %v1699, %v1752
      %v1785 = vsub.f32 %v1700, %v1753
      %v1786 = vsub.f32 %v1701, %v1754
      %v1787 = vsub.f32 %v1702, %v1755
      %v1788 = vsub.f32 %v1703, %v1756
      %v1789 = vsub.f32 %v1704, %v1757
      %v1790 = vsub.f32 %v1705, %v1758
      %v1791 = vsub.f32 %v1706, %v1759
      %v1792 = vsub.f32 %v1707, %v1760
      %v1793 = vsub.f32 %v1708, %v1761
      %v1794 = vsub.f32 %v1709, %v1762
      %v1795 = vsub.f32 %v1710, %v1763
      %v1796 = vsub.f32 %v1711, %v1764
      %v1797 = vsub.f32 %v1712, %v1765
      %v1798 = vsub.f32 %v1713, %v1766
      %v1799 = vsub.f32 %v1714, %v1767
      %v1800 = vsub.f32 %v1715, %v1768
      %v1801 = vsub.f32 %v1716, %v1769
      %v1802 = vsub.f32 %v1717, %v1770
      %v1803 = vsub.f32 %v1718, %v1771
      %v1804 = vsub.f32 %v1719, %v1772
      %v1805 = vpack.c.bf16 %v1774, %v1773
      %v1806 = vpack.c.bf16 %v1776, %v1775
      %v1807 = vpack.c.bf16 %v1778, %v1777
      %v1808 = vpack.c.bf16 %v1780, %v1779
      %v1809 = vpack.c.bf16 %v1782, %v1781
      %v1810 = vpack.c.bf16 %v1784, %v1783
      %v1811 = vpack.c.bf16 %v1786, %v1785
      %v1812 = vpack.c.bf16 %v1788, %v1787
      %v1813 = vpack.c.bf16 %v1790, %v1789
      %v1814 = vpack.c.bf16 %v1792, %v1791
      %v1815 = vpack.c.bf16 %v1794, %v1793
      %v1816 = vpack.c.bf16 %v1796, %v1795
      %v1817 = vpack.c.bf16 %v1798, %v1797
      %v1818 = vpack.c.bf16 %v1800, %v1799
      %v1819 = vpack.c.bf16 %v1802, %v1801
      %v1820 = vpack.c.bf16 %v1804, %v1803
      %v1821 = vpack.c.bf16 %v1721, %v1720
      %v1822 = vpack.c.bf16 %v1723, %v1722
      %v1823 = vpack.c.bf16 %v1724, %v1724
      %v1824 = vunpack.c.l.bf16 %v1821
      %v1825 = vunpack.c.h.bf16 %v1821
      %v1826 = vunpack.c.l.bf16 %v1822
      %v1827 = vunpack.c.h.bf16 %v1822
      %v1828 = vunpack.c.l.bf16 %v1823
      %v1829 = vsub.f32 %v1720, %v1824
      %v1830 = vsub.f32 %v1721, %v1825
      %v1831 = vsub.f32 %v1722, %v1826
      %v1832 = vsub.f32 %v1723, %v1827
      %v1833 = vsub.f32 %v1724, %v1828
      %v1834 = vpack.c.bf16 %v1830, %v1829
      %v1835 = vpack.c.bf16 %v1832, %v1831
      %v1836 = vpack.c.bf16 %v1833, %v1833
      %vm1837 = vcmask 293888
      %v1839 = vsel %vm1837, %v1805, 0
      %v1842 = vsel %vm1837, %v1806, 0
      %v1845 = vsel %vm1837, %v1807, 0
      %v1848 = vsel %vm1837, %v1808, 0
      %v1851 = vsel %vm1837, %v1809, 0
      %v1854 = vsel %vm1837, %v1810, 0
      %v1857 = vsel %vm1837, %v1811, 0
      %v1860 = vsel %vm1837, %v1812, 0
      %v1863 = vsel %vm1837, %v1813, 0
      %v1866 = vsel %vm1837, %v1814, 0
      %v1869 = vsel %vm1837, %v1815, 0
      %v1872 = vsel %vm1837, %v1816, 0
      %v1875 = vsel %vm1837, %v1817, 0
      %v1878 = vsel %vm1837, %v1818, 0
      %v1881 = vsel %vm1837, %v1819, 0
      %v1884 = vsel %vm1837, %v1820, 0
      %vm1886 = vcmask 1041408
      %v1888 = vsel %vm1886, %v1823, 0
      %1890 = vmatprep.subr.bf16.mxu0 0
      %1891 = vmatpush1.bf16.msra.mxu0 0
      %1892 = vmatprep.subr.bf16.mxu0 0
      %1893 = vmatpush1.bf16.msra.mxu0 0
      %1894 = vmatprep.subr.bf16.mxu0 0
      %1895 = vmatpush1.bf16.msra.mxu0 0
      %1896 = vmatprep.subr.bf16.mxu0 0
      %1897 = vmatpush1.bf16.msra.mxu0 0
      %1898 = vmatprep.subr.bf16.mxu0 0
      %1899 = vmatpush1.bf16.msra.mxu0 0
      %1900 = vmatprep.subr.bf16.mxu0 0
      %1901 = vmatpush1.bf16.msra.mxu0 %v1888
      %1902 = vmatprep.subr.bf16.mxu0 0
      %1903 = vmatpush1.bf16.msra.mxu0 %v1822
      %1904 = vmatprep.subr.bf16.mxu0 0
      %1905 = vmatpush1.bf16.msra.mxu0 %v1821
      %1906 = vmatprep.subr.bf16.mxu0 0
      %1907 = vmatpush2.bf16.msra.mxu0 0
      %1908 = vmatprep.subr.bf16.mxu0 0
      %1909 = vmatpush2.bf16.msra.mxu0 0
      %1910 = vmatprep.subr.bf16.mxu0 0
      %1911 = vmatpush2.bf16.msra.mxu0 0
      %1912 = vmatprep.subr.bf16.mxu0 0
      %1913 = vmatpush2.bf16.msra.mxu0 0
      %1914 = vmatprep.subr.bf16.mxu0 0
      %1915 = vmatpush2.bf16.msra.mxu0 0
      %1916 = vmatprep.subr.bf16.mxu0 0
      %1917 = vmatpush2.bf16.msra.mxu0 0
      %1918 = vmatprep.subr.bf16.mxu0 0
      %1919 = vmatpush2.bf16.msra.mxu0 0
      %1920 = vmatprep.subr.bf16.mxu0 0
      %1921 = vmatpush2.bf16.msra.mxu0 0
      %1922 = vmatprep.mubr.bf16.mxu0 0
      %1923 = vmatmul.mubr.bf16.gmra.mxu0 %v1839
      %v1924 = vpop.f32.mrf.mxu0
      %v1925 = vadd.f32 0.0, %v1924
      %v1926 = vpop.f32.mrf.mxu0
      %v1927 = vpop.f32.mrf.mxu0
      %v1928 = vadd.f32 0.0, %v1927
      %v1929 = vpop.f32.mrf.mxu0
      %1930 = vmatprep.mubr.bf16.mxu0 0
      %1931 = vmatmul.mubr.bf16.gmra.mxu0 %v1842
      %v1932 = vpop.f32.mrf.mxu0
      %v1933 = vadd.f32 0.0, %v1932
      %v1934 = vpop.f32.mrf.mxu0
      %v1935 = vpop.f32.mrf.mxu0
      %v1936 = vadd.f32 0.0, %v1935
      %v1937 = vpop.f32.mrf.mxu0
      %1938 = vmatprep.mubr.bf16.mxu0 0
      %1939 = vmatmul.mubr.bf16.gmra.mxu0 %v1845
      %v1940 = vpop.f32.mrf.mxu0
      %v1941 = vadd.f32 0.0, %v1940
      %v1942 = vpop.f32.mrf.mxu0
      %v1943 = vpop.f32.mrf.mxu0
      %v1944 = vadd.f32 0.0, %v1943
      %v1945 = vpop.f32.mrf.mxu0
      %1946 = vmatprep.mubr.bf16.mxu0 0
      %1947 = vmatmul.mubr.bf16.gmra.mxu0 %v1848
      %v1948 = vpop.f32.mrf.mxu0
      %v1949 = vadd.f32 0.0, %v1948
      %v1950 = vpop.f32.mrf.mxu0
      %v1951 = vpop.f32.mrf.mxu0
      %v1952 = vadd.f32 0.0, %v1951
      %v1953 = vpop.f32.mrf.mxu0
      %1954 = vmatprep.mubr.bf16.mxu0 0
      %1955 = vmatmul.mubr.bf16.gmra.mxu0 %v1851
      %v1956 = vpop.f32.mrf.mxu0
      %v1957 = vadd.f32 0.0, %v1956
      %v1958 = vpop.f32.mrf.mxu0
      %v1959 = vpop.f32.mrf.mxu0
      %v1960 = vadd.f32 0.0, %v1959
      %v1961 = vpop.f32.mrf.mxu0
      %1962 = vmatprep.mubr.bf16.mxu0 0
      %1963 = vmatmul.mubr.bf16.gmra.mxu0 %v1854
      %v1964 = vpop.f32.mrf.mxu0
      %v1965 = vadd.f32 0.0, %v1964
      %v1966 = vpop.f32.mrf.mxu0
      %v1967 = vpop.f32.mrf.mxu0
      %v1968 = vadd.f32 0.0, %v1967
      %v1969 = vpop.f32.mrf.mxu0
      %1970 = vmatprep.mubr.bf16.mxu0 0
      %1971 = vmatmul.mubr.bf16.gmra.mxu0 %v1857
      %v1972 = vpop.f32.mrf.mxu0
      %v1973 = vadd.f32 0.0, %v1972
      %v1974 = vpop.f32.mrf.mxu0
      %v1975 = vpop.f32.mrf.mxu0
      %v1976 = vadd.f32 0.0, %v1975
      %v1977 = vpop.f32.mrf.mxu0
      %1978 = vmatprep.mubr.bf16.mxu0 0
      %1979 = vmatmul.mubr.bf16.gmra.mxu0 %v1860
      %v1980 = vpop.f32.mrf.mxu0
      %v1981 = vadd.f32 0.0, %v1980
      %v1982 = vpop.f32.mrf.mxu0
      %v1983 = vpop.f32.mrf.mxu0
      %v1984 = vadd.f32 0.0, %v1983
      %v1985 = vpop.f32.mrf.mxu0
      %1986 = vmatprep.mubr.bf16.mxu0 0
      %1987 = vmatmul.mubr.bf16.gmra.mxu0 %v1863
      %v1988 = vpop.f32.mrf.mxu0
      %v1989 = vadd.f32 0.0, %v1988
      %v1990 = vpop.f32.mrf.mxu0
      %v1991 = vpop.f32.mrf.mxu0
      %v1992 = vadd.f32 0.0, %v1991
      %v1993 = vpop.f32.mrf.mxu0
      %1994 = vmatprep.mubr.bf16.mxu0 0
      %1995 = vmatmul.mubr.bf16.gmra.mxu0 %v1866
      %v1996 = vpop.f32.mrf.mxu0
      %v1997 = vadd.f32 0.0, %v1996
      %v1998 = vpop.f32.mrf.mxu0
      %v1999 = vpop.f32.mrf.mxu0
      %v2000 = vadd.f32 0.0, %v1999
      %v2001 = vpop.f32.mrf.mxu0
      %2002 = vmatprep.mubr.bf16.mxu0 0
      %2003 = vmatmul.mubr.bf16.gmra.mxu0 %v1869
      %v2004 = vpop.f32.mrf.mxu0
      %v2005 = vadd.f32 0.0, %v2004
      %v2006 = vpop.f32.mrf.mxu0
      %v2007 = vpop.f32.mrf.mxu0
      %v2008 = vadd.f32 0.0, %v2007
      %v2009 = vpop.f32.mrf.mxu0
      %2010 = vmatprep.mubr.bf16.mxu0 0
      %2011 = vmatmul.mubr.bf16.gmra.mxu0 %v1872
      %v2012 = vpop.f32.mrf.mxu0
      %v2013 = vadd.f32 0.0, %v2012
      %v2014 = vpop.f32.mrf.mxu0
      %v2015 = vpop.f32.mrf.mxu0
      %v2016 = vadd.f32 0.0, %v2015
      %v2017 = vpop.f32.mrf.mxu0
      %2018 = vmatprep.mubr.bf16.mxu0 0
      %2019 = vmatmul.mubr.bf16.gmra.mxu0 %v1875
      %v2020 = vpop.f32.mrf.mxu0
      %v2021 = vadd.f32 0.0, %v2020
      %v2022 = vpop.f32.mrf.mxu0
      %v2023 = vpop.f32.mrf.mxu0
      %v2024 = vadd.f32 0.0, %v2023
      %v2025 = vpop.f32.mrf.mxu0
      %2026 = vmatprep.mubr.bf16.mxu0 0
      %2027 = vmatmul.mubr.bf16.gmra.mxu0 %v1878
      %v2028 = vpop.f32.mrf.mxu0
      %v2029 = vadd.f32 0.0, %v2028
      %v2030 = vpop.f32.mrf.mxu0
      %v2031 = vpop.f32.mrf.mxu0
      %v2032 = vadd.f32 0.0, %v2031
      %v2033 = vpop.f32.mrf.mxu0
      %2034 = vmatprep.mubr.bf16.mxu0 0
      %2035 = vmatmul.mubr.bf16.gmra.mxu0 %v1881
      %v2036 = vpop.f32.mrf.mxu0
      %v2037 = vadd.f32 0.0, %v2036
      %v2038 = vpop.f32.mrf.mxu0
      %v2039 = vpop.f32.mrf.mxu0
      %v2040 = vadd.f32 0.0, %v2039
      %v2041 = vpop.f32.mrf.mxu0
      %2042 = vmatprep.mubr.bf16.mxu0 0
      %2043 = vmatmul.mubr.bf16.gmra.mxu0 %v1884
      %v2044 = vpop.f32.mrf.mxu0
      %v2045 = vadd.f32 0.0, %v2044
      %v2046 = vpop.f32.mrf.mxu0
      %v2047 = vpop.f32.mrf.mxu0
      %v2048 = vadd.f32 0.0, %v2047
      %v2049 = vpop.f32.mrf.mxu0
      %2050 = vdwg.mxu0
      %v2052 = vsel %vm1837, %v1725, 0
      %v2055 = vsel %vm1837, %v1726, 0
      %v2058 = vsel %vm1837, %v1727, 0
      %v2061 = vsel %vm1837, %v1728, 0
      %v2064 = vsel %vm1837, %v1729, 0
      %v2067 = vsel %vm1837, %v1730, 0
      %v2070 = vsel %vm1837, %v1731, 0
      %v2073 = vsel %vm1837, %v1732, 0
      %v2076 = vsel %vm1837, %v1733, 0
      %v2079 = vsel %vm1837, %v1734, 0
      %v2082 = vsel %vm1837, %v1735, 0
      %v2085 = vsel %vm1837, %v1736, 0
      %v2088 = vsel %vm1837, %v1737, 0
      %v2091 = vsel %vm1837, %v1738, 0
      %v2094 = vsel %vm1837, %v1739, 0
      %v2097 = vsel %vm1837, %v1740, 0
      %2099 = vmatprep.subr.bf16.mxu0 0
      %2100 = vmatpush1.bf16.msra.mxu0 0
      %2101 = vmatprep.subr.bf16.mxu0 0
      %2102 = vmatpush1.bf16.msra.mxu0 0
      %2103 = vmatprep.subr.bf16.mxu0 0
      %2104 = vmatpush1.bf16.msra.mxu0 0
      %2105 = vmatprep.subr.bf16.mxu0 0
      %2106 = vmatpush1.bf16.msra.mxu0 0
      %2107 = vmatprep.subr.bf16.mxu0 0
      %2108 = vmatpush1.bf16.msra.mxu0 0
      %2109 = vmatprep.subr.bf16.mxu0 0
      %2110 = vmatpush1.bf16.msra.mxu0 %v1888
      %2111 = vmatprep.subr.bf16.mxu0 0
      %2112 = vmatpush1.bf16.msra.mxu0 %v1822
      %2113 = vmatprep.subr.bf16.mxu0 0
      %2114 = vmatpush1.bf16.msra.mxu0 %v1821
      %2115 = vmatprep.subr.bf16.mxu0 0
      %2116 = vmatpush2.bf16.msra.mxu0 0
      %2117 = vmatprep.subr.bf16.mxu0 0
      %2118 = vmatpush2.bf16.msra.mxu0 0
      %2119 = vmatprep.subr.bf16.mxu0 0
      %2120 = vmatpush2.bf16.msra.mxu0 0
      %2121 = vmatprep.subr.bf16.mxu0 0
      %2122 = vmatpush2.bf16.msra.mxu0 0
      %2123 = vmatprep.subr.bf16.mxu0 0
      %2124 = vmatpush2.bf16.msra.mxu0 0
      %2125 = vmatprep.subr.bf16.mxu0 0
      %2126 = vmatpush2.bf16.msra.mxu0 0
      %2127 = vmatprep.subr.bf16.mxu0 0
      %2128 = vmatpush2.bf16.msra.mxu0 0
      %2129 = vmatprep.subr.bf16.mxu0 0
      %2130 = vmatpush2.bf16.msra.mxu0 0
      %2131 = vmatprep.mubr.bf16.mxu0 0
      %2132 = vmatmul.mubr.bf16.gmra.mxu0 %v2052
      %v2133 = vpop.f32.mrf.mxu0
      %v2134 = vadd.f32 %v1925, %v2133
      %v2135 = vpop.f32.mrf.mxu0
      %v2136 = vpop.f32.mrf.mxu0
      %v2137 = vadd.f32 %v1928, %v2136
      %v2138 = vpop.f32.mrf.mxu0
      %2139 = vmatprep.mubr.bf16.mxu0 0
      %2140 = vmatmul.mubr.bf16.gmra.mxu0 %v2055
      %v2141 = vpop.f32.mrf.mxu0
      %v2142 = vadd.f32 %v1933, %v2141
      %v2143 = vpop.f32.mrf.mxu0
      %v2144 = vpop.f32.mrf.mxu0
      %v2145 = vadd.f32 %v1936, %v2144
      %v2146 = vpop.f32.mrf.mxu0
      %2147 = vmatprep.mubr.bf16.mxu0 0
      %2148 = vmatmul.mubr.bf16.gmra.mxu0 %v2058
      %v2149 = vpop.f32.mrf.mxu0
      %v2150 = vadd.f32 %v1941, %v2149
      %v2151 = vpop.f32.mrf.mxu0
      %v2152 = vpop.f32.mrf.mxu0
      %v2153 = vadd.f32 %v1944, %v2152
      %v2154 = vpop.f32.mrf.mxu0
      %2155 = vmatprep.mubr.bf16.mxu0 0
      %2156 = vmatmul.mubr.bf16.gmra.mxu0 %v2061
      %v2157 = vpop.f32.mrf.mxu0
      %v2158 = vadd.f32 %v1949, %v2157
      %v2159 = vpop.f32.mrf.mxu0
      %v2160 = vpop.f32.mrf.mxu0
      %v2161 = vadd.f32 %v1952, %v2160
      %v2162 = vpop.f32.mrf.mxu0
      %2163 = vmatprep.mubr.bf16.mxu0 0
      %2164 = vmatmul.mubr.bf16.gmra.mxu0 %v2064
      %v2165 = vpop.f32.mrf.mxu0
      %v2166 = vadd.f32 %v1957, %v2165
      %v2167 = vpop.f32.mrf.mxu0
      %v2168 = vpop.f32.mrf.mxu0
      %v2169 = vadd.f32 %v1960, %v2168
      %v2170 = vpop.f32.mrf.mxu0
      %2171 = vmatprep.mubr.bf16.mxu0 0
      %2172 = vmatmul.mubr.bf16.gmra.mxu0 %v2067
      %v2173 = vpop.f32.mrf.mxu0
      %v2174 = vadd.f32 %v1965, %v2173
      %v2175 = vpop.f32.mrf.mxu0
      %v2176 = vpop.f32.mrf.mxu0
      %v2177 = vadd.f32 %v1968, %v2176
      %v2178 = vpop.f32.mrf.mxu0
      %2179 = vmatprep.mubr.bf16.mxu0 0
      %2180 = vmatmul.mubr.bf16.gmra.mxu0 %v2070
      %v2181 = vpop.f32.mrf.mxu0
      %v2182 = vadd.f32 %v1973, %v2181
      %v2183 = vpop.f32.mrf.mxu0
      %v2184 = vpop.f32.mrf.mxu0
      %v2185 = vadd.f32 %v1976, %v2184
      %v2186 = vpop.f32.mrf.mxu0
      %2187 = vmatprep.mubr.bf16.mxu0 0
      %2188 = vmatmul.mubr.bf16.gmra.mxu0 %v2073
      %v2189 = vpop.f32.mrf.mxu0
      %v2190 = vadd.f32 %v1981, %v2189
      %v2191 = vpop.f32.mrf.mxu0
      %v2192 = vpop.f32.mrf.mxu0
      %v2193 = vadd.f32 %v1984, %v2192
      %v2194 = vpop.f32.mrf.mxu0
      %2195 = vmatprep.mubr.bf16.mxu0 0
      %2196 = vmatmul.mubr.bf16.gmra.mxu0 %v2076
      %v2197 = vpop.f32.mrf.mxu0
      %v2198 = vadd.f32 %v1989, %v2197
      %v2199 = vpop.f32.mrf.mxu0
      %v2200 = vpop.f32.mrf.mxu0
      %v2201 = vadd.f32 %v1992, %v2200
      %v2202 = vpop.f32.mrf.mxu0
      %2203 = vmatprep.mubr.bf16.mxu0 0
      %2204 = vmatmul.mubr.bf16.gmra.mxu0 %v2079
      %v2205 = vpop.f32.mrf.mxu0
      %v2206 = vadd.f32 %v1997, %v2205
      %v2207 = vpop.f32.mrf.mxu0
      %v2208 = vpop.f32.mrf.mxu0
      %v2209 = vadd.f32 %v2000, %v2208
      %v2210 = vpop.f32.mrf.mxu0
      %2211 = vmatprep.mubr.bf16.mxu0 0
      %2212 = vmatmul.mubr.bf16.gmra.mxu0 %v2082
      %v2213 = vpop.f32.mrf.mxu0
      %v2214 = vadd.f32 %v2005, %v2213
      %v2215 = vpop.f32.mrf.mxu0
      %v2216 = vpop.f32.mrf.mxu0
      %v2217 = vadd.f32 %v2008, %v2216
      %v2218 = vpop.f32.mrf.mxu0
      %2219 = vmatprep.mubr.bf16.mxu0 0
      %2220 = vmatmul.mubr.bf16.gmra.mxu0 %v2085
      %v2221 = vpop.f32.mrf.mxu0
      %v2222 = vadd.f32 %v2013, %v2221
      %v2223 = vpop.f32.mrf.mxu0
      %v2224 = vpop.f32.mrf.mxu0
      %v2225 = vadd.f32 %v2016, %v2224
      %v2226 = vpop.f32.mrf.mxu0
      %2227 = vmatprep.mubr.bf16.mxu0 0
      %2228 = vmatmul.mubr.bf16.gmra.mxu0 %v2088
      %v2229 = vpop.f32.mrf.mxu0
      %v2230 = vadd.f32 %v2021, %v2229
      %v2231 = vpop.f32.mrf.mxu0
      %v2232 = vpop.f32.mrf.mxu0
      %v2233 = vadd.f32 %v2024, %v2232
      %v2234 = vpop.f32.mrf.mxu0
      %2235 = vmatprep.mubr.bf16.mxu0 0
      %2236 = vmatmul.mubr.bf16.gmra.mxu0 %v2091
      %v2237 = vpop.f32.mrf.mxu0
      %v2238 = vadd.f32 %v2029, %v2237
      %v2239 = vpop.f32.mrf.mxu0
      %v2240 = vpop.f32.mrf.mxu0
      %v2241 = vadd.f32 %v2032, %v2240
      %v2242 = vpop.f32.mrf.mxu0
      %2243 = vmatprep.mubr.bf16.mxu0 0
      %2244 = vmatmul.mubr.bf16.gmra.mxu0 %v2094
      %v2245 = vpop.f32.mrf.mxu0
      %v2246 = vadd.f32 %v2037, %v2245
      %v2247 = vpop.f32.mrf.mxu0
      %v2248 = vpop.f32.mrf.mxu0
      %v2249 = vadd.f32 %v2040, %v2248
      %v2250 = vpop.f32.mrf.mxu0
      %2251 = vmatprep.mubr.bf16.mxu0 0
      %2252 = vmatmul.mubr.bf16.gmra.mxu0 %v2097
      %v2253 = vpop.f32.mrf.mxu0
      %v2254 = vadd.f32 %v2045, %v2253
      %v2255 = vpop.f32.mrf.mxu0
      %v2256 = vpop.f32.mrf.mxu0
      %v2257 = vadd.f32 %v2048, %v2256
      %v2258 = vpop.f32.mrf.mxu0
      %2259 = vdwg.mxu0
      %v2261 = vsel %vm1886, %v1836, 0
      %2263 = vmatprep.subr.bf16.mxu0 0
      %2264 = vmatpush1.bf16.msra.mxu0 0
      %2265 = vmatprep.subr.bf16.mxu0 0
      %2266 = vmatpush1.bf16.msra.mxu0 0
      %2267 = vmatprep.subr.bf16.mxu0 0
      %2268 = vmatpush1.bf16.msra.mxu0 0
      %2269 = vmatprep.subr.bf16.mxu0 0
      %2270 = vmatpush1.bf16.msra.mxu0 0
      %2271 = vmatprep.subr.bf16.mxu0 0
      %2272 = vmatpush1.bf16.msra.mxu0 0
      %2273 = vmatprep.subr.bf16.mxu0 0
      %2274 = vmatpush1.bf16.msra.mxu0 %v2261
      %2275 = vmatprep.subr.bf16.mxu0 0
      %2276 = vmatpush1.bf16.msra.mxu0 %v1835
      %2277 = vmatprep.subr.bf16.mxu0 0
      %2278 = vmatpush1.bf16.msra.mxu0 %v1834
      %2279 = vmatprep.subr.bf16.mxu0 0
      %2280 = vmatpush2.bf16.msra.mxu0 0
      %2281 = vmatprep.subr.bf16.mxu0 0
      %2282 = vmatpush2.bf16.msra.mxu0 0
      %2283 = vmatprep.subr.bf16.mxu0 0
      %2284 = vmatpush2.bf16.msra.mxu0 0
      %2285 = vmatprep.subr.bf16.mxu0 0
      %2286 = vmatpush2.bf16.msra.mxu0 0
      %2287 = vmatprep.subr.bf16.mxu0 0
      %2288 = vmatpush2.bf16.msra.mxu0 0
      %2289 = vmatprep.subr.bf16.mxu0 0
      %2290 = vmatpush2.bf16.msra.mxu0 0
      %2291 = vmatprep.subr.bf16.mxu0 0
      %2292 = vmatpush2.bf16.msra.mxu0 0
      %2293 = vmatprep.subr.bf16.mxu0 0
      %2294 = vmatpush2.bf16.msra.mxu0 0
      %2295 = vmatprep.mubr.bf16.mxu0 0
      %2296 = vmatmul.mubr.bf16.gmra.mxu0 %v2052
      %v2297 = vpop.f32.mrf.mxu0
      %v2298 = vadd.f32 0.0, %v2297
      %v2299 = vpop.f32.mrf.mxu0
      %v2300 = vpop.f32.mrf.mxu0
      %v2301 = vadd.f32 0.0, %v2300
      %v2302 = vpop.f32.mrf.mxu0
      %2303 = vmatprep.mubr.bf16.mxu0 0
      %2304 = vmatmul.mubr.bf16.gmra.mxu0 %v2055
      %v2305 = vpop.f32.mrf.mxu0
      %v2306 = vadd.f32 0.0, %v2305
      %v2307 = vpop.f32.mrf.mxu0
      %v2308 = vpop.f32.mrf.mxu0
      %v2309 = vadd.f32 0.0, %v2308
      %v2310 = vpop.f32.mrf.mxu0
      %2311 = vmatprep.mubr.bf16.mxu0 0
      %2312 = vmatmul.mubr.bf16.gmra.mxu0 %v2058
      %v2313 = vpop.f32.mrf.mxu0
      %v2314 = vadd.f32 0.0, %v2313
      %v2315 = vpop.f32.mrf.mxu0
      %v2316 = vpop.f32.mrf.mxu0
      %v2317 = vadd.f32 0.0, %v2316
      %v2318 = vpop.f32.mrf.mxu0
      %2319 = vmatprep.mubr.bf16.mxu0 0
      %2320 = vmatmul.mubr.bf16.gmra.mxu0 %v2061
      %v2321 = vpop.f32.mrf.mxu0
      %v2322 = vadd.f32 0.0, %v2321
      %v2323 = vpop.f32.mrf.mxu0
      %v2324 = vpop.f32.mrf.mxu0
      %v2325 = vadd.f32 0.0, %v2324
      %v2326 = vpop.f32.mrf.mxu0
      %2327 = vmatprep.mubr.bf16.mxu0 0
      %2328 = vmatmul.mubr.bf16.gmra.mxu0 %v2064
      %v2329 = vpop.f32.mrf.mxu0
      %v2330 = vadd.f32 0.0, %v2329
      %v2331 = vpop.f32.mrf.mxu0
      %v2332 = vpop.f32.mrf.mxu0
      %v2333 = vadd.f32 0.0, %v2332
      %v2334 = vpop.f32.mrf.mxu0
      %2335 = vmatprep.mubr.bf16.mxu0 0
      %2336 = vmatmul.mubr.bf16.gmra.mxu0 %v2067
      %v2337 = vpop.f32.mrf.mxu0
      %v2338 = vadd.f32 0.0, %v2337
      %v2339 = vpop.f32.mrf.mxu0
      %v2340 = vpop.f32.mrf.mxu0
      %v2341 = vadd.f32 0.0, %v2340
      %v2342 = vpop.f32.mrf.mxu0
      %2343 = vmatprep.mubr.bf16.mxu0 0
      %2344 = vmatmul.mubr.bf16.gmra.mxu0 %v2070
      %v2345 = vpop.f32.mrf.mxu0
      %v2346 = vadd.f32 0.0, %v2345
      %v2347 = vpop.f32.mrf.mxu0
      %v2348 = vpop.f32.mrf.mxu0
      %v2349 = vadd.f32 0.0, %v2348
      %v2350 = vpop.f32.mrf.mxu0
      %2351 = vmatprep.mubr.bf16.mxu0 0
      %2352 = vmatmul.mubr.bf16.gmra.mxu0 %v2073
      %v2353 = vpop.f32.mrf.mxu0
      %v2354 = vadd.f32 0.0, %v2353
      %v2355 = vpop.f32.mrf.mxu0
      %v2356 = vpop.f32.mrf.mxu0
      %v2357 = vadd.f32 0.0, %v2356
      %v2358 = vpop.f32.mrf.mxu0
      %2359 = vmatprep.mubr.bf16.mxu0 0
      %2360 = vmatmul.mubr.bf16.gmra.mxu0 %v2076
      %v2361 = vpop.f32.mrf.mxu0
      %v2362 = vadd.f32 0.0, %v2361
      %v2363 = vpop.f32.mrf.mxu0
      %v2364 = vpop.f32.mrf.mxu0
      %v2365 = vadd.f32 0.0, %v2364
      %v2366 = vpop.f32.mrf.mxu0
      %2367 = vmatprep.mubr.bf16.mxu0 0
      %2368 = vmatmul.mubr.bf16.gmra.mxu0 %v2079
      %v2369 = vpop.f32.mrf.mxu0
      %v2370 = vadd.f32 0.0, %v2369
      %v2371 = vpop.f32.mrf.mxu0
      %v2372 = vpop.f32.mrf.mxu0
      %v2373 = vadd.f32 0.0, %v2372
      %v2374 = vpop.f32.mrf.mxu0
      %2375 = vmatprep.mubr.bf16.mxu0 0
      %2376 = vmatmul.mubr.bf16.gmra.mxu0 %v2082
      %v2377 = vpop.f32.mrf.mxu0
      %v2378 = vadd.f32 0.0, %v2377
      %v2379 = vpop.f32.mrf.mxu0
      %v2380 = vpop.f32.mrf.mxu0
      %v2381 = vadd.f32 0.0, %v2380
      %v2382 = vpop.f32.mrf.mxu0
      %2383 = vmatprep.mubr.bf16.mxu0 0
      %2384 = vmatmul.mubr.bf16.gmra.mxu0 %v2085
      %v2385 = vpop.f32.mrf.mxu0
      %v2386 = vadd.f32 0.0, %v2385
      %v2387 = vpop.f32.mrf.mxu0
      %v2388 = vpop.f32.mrf.mxu0
      %v2389 = vadd.f32 0.0, %v2388
      %v2390 = vpop.f32.mrf.mxu0
      %2391 = vmatprep.mubr.bf16.mxu0 0
      %2392 = vmatmul.mubr.bf16.gmra.mxu0 %v2088
      %v2393 = vpop.f32.mrf.mxu0
      %v2394 = vadd.f32 0.0, %v2393
      %v2395 = vpop.f32.mrf.mxu0
      %v2396 = vpop.f32.mrf.mxu0
      %v2397 = vadd.f32 0.0, %v2396
      %v2398 = vpop.f32.mrf.mxu0
      %2399 = vmatprep.mubr.bf16.mxu0 0
      %2400 = vmatmul.mubr.bf16.gmra.mxu0 %v2091
      %v2401 = vpop.f32.mrf.mxu0
      %v2402 = vadd.f32 0.0, %v2401
      %v2403 = vpop.f32.mrf.mxu0
      %v2404 = vpop.f32.mrf.mxu0
      %v2405 = vadd.f32 0.0, %v2404
      %v2406 = vpop.f32.mrf.mxu0
      %2407 = vmatprep.mubr.bf16.mxu0 0
      %2408 = vmatmul.mubr.bf16.gmra.mxu0 %v2094
      %v2409 = vpop.f32.mrf.mxu0
      %v2410 = vadd.f32 0.0, %v2409
      %v2411 = vpop.f32.mrf.mxu0
      %v2412 = vpop.f32.mrf.mxu0
      %v2413 = vadd.f32 0.0, %v2412
      %v2414 = vpop.f32.mrf.mxu0
      %2415 = vmatprep.mubr.bf16.mxu0 0
      %2416 = vmatmul.mubr.bf16.gmra.mxu0 %v2097
      %v2417 = vpop.f32.mrf.mxu0
      %v2418 = vadd.f32 0.0, %v2417
      %v2419 = vpop.f32.mrf.mxu0
      %v2420 = vpop.f32.mrf.mxu0
      %v2421 = vadd.f32 0.0, %v2420
      %v2422 = vpop.f32.mrf.mxu0
      %2423 = vdwg.mxu0
      %v2424 = vadd.f32 %v2134, %v2298
      %v2425 = vadd.f32 %v2137, %v2301
      %v2426 = vadd.f32 %v2142, %v2306
      %v2427 = vadd.f32 %v2145, %v2309
      %v2428 = vadd.f32 %v2150, %v2314
      %v2429 = vadd.f32 %v2153, %v2317
      %v2430 = vadd.f32 %v2158, %v2322
      %v2431 = vadd.f32 %v2161, %v2325
      %v2432 = vadd.f32 %v2166, %v2330
      %v2433 = vadd.f32 %v2169, %v2333
      %v2434 = vadd.f32 %v2174, %v2338
      %v2435 = vadd.f32 %v2177, %v2341
      %v2436 = vadd.f32 %v2182, %v2346
      %v2437 = vadd.f32 %v2185, %v2349
      %v2438 = vadd.f32 %v2190, %v2354
      %v2439 = vadd.f32 %v2193, %v2357
      %v2440 = vadd.f32 %v2198, %v2362
      %v2441 = vadd.f32 %v2201, %v2365
      %v2442 = vadd.f32 %v2206, %v2370
      %v2443 = vadd.f32 %v2209, %v2373
      %v2444 = vadd.f32 %v2214, %v2378
      %v2445 = vadd.f32 %v2217, %v2381
      %v2446 = vadd.f32 %v2222, %v2386
      %v2447 = vadd.f32 %v2225, %v2389
      %v2448 = vadd.f32 %v2230, %v2394
      %v2449 = vadd.f32 %v2233, %v2397
      %v2450 = vadd.f32 %v2238, %v2402
      %v2451 = vadd.f32 %v2241, %v2405
      %v2452 = vadd.f32 %v2246, %v2410
      %v2453 = vadd.f32 %v2249, %v2413
      %v2454 = vadd.f32 %v2254, %v2418
      %v2455 = vadd.f32 %v2257, %v2421
      %vm2456 = vcmask 64512
      %2457 = vst.msk [vmem:[%s318] sm:$0xff] %vm2456, %v2424
      %2458 = vst.msk [vmem:[%s318 + $0x8] sm:$0xff] %vm2456, %v2425
      %2459 = vst.msk [vmem:[%s318 + $0x10] sm:$0xff] %vm2456, %v2426
      %2460 = vst.msk [vmem:[%s318 + $0x18] sm:$0xff] %vm2456, %v2427
      %2461 = vst.msk [vmem:[%s318 + $0x20] sm:$0xff] %vm2456, %v2428
      %2462 = vst.msk [vmem:[%s318 + $0x28] sm:$0xff] %vm2456, %v2429
      %2463 = vst.msk [vmem:[%s318 + $0x30] sm:$0xff] %vm2456, %v2430
      %2464 = vst.msk [vmem:[%s318 + $0x38] sm:$0xff] %vm2456, %v2431
      %2465 = vst.msk [vmem:[%s318 + $0x40] sm:$0xff] %vm2456, %v2432
      %2466 = vst.msk [vmem:[%s318 + $0x48] sm:$0xff] %vm2456, %v2433
      %2467 = vst.msk [vmem:[%s318 + $0x50] sm:$0xff] %vm2456, %v2434
      %2468 = vst.msk [vmem:[%s318 + $0x58] sm:$0xff] %vm2456, %v2435
      %2469 = vst.msk [vmem:[%s318 + $0x60] sm:$0xff] %vm2456, %v2436
      %2470 = vst.msk [vmem:[%s318 + $0x68] sm:$0xff] %vm2456, %v2437
      %2471 = vst.msk [vmem:[%s318 + $0x70] sm:$0xff] %vm2456, %v2438
      %2472 = vst.msk [vmem:[%s318 + $0x78] sm:$0xff] %vm2456, %v2439
      %2473 = vst.msk [vmem:[%s318 + $0x80] sm:$0xff] %vm2456, %v2440
      %2474 = vst.msk [vmem:[%s318 + $0x88] sm:$0xff] %vm2456, %v2441
      %2475 = vst.msk [vmem:[%s318 + $0x90] sm:$0xff] %vm2456, %v2442
      %2476 = vst.msk [vmem:[%s318 + $0x98] sm:$0xff] %vm2456, %v2443
      %2477 = vst.msk [vmem:[%s318 + $0xa0] sm:$0xff] %vm2456, %v2444
      %2478 = vst.msk [vmem:[%s318 + $0xa8] sm:$0xff] %vm2456, %v2445
      %2479 = vst.msk [vmem:[%s318 + $0xb0] sm:$0xff] %vm2456, %v2446
      %2480 = vst.msk [vmem:[%s318 + $0xb8] sm:$0xff] %vm2456, %v2447
      %2481 = vst.msk [vmem:[%s318 + $0xc0] sm:$0xff] %vm2456, %v2448
      %2482 = vst.msk [vmem:[%s318 + $0xc8] sm:$0xff] %vm2456, %v2449
      %2483 = vst.msk [vmem:[%s318 + $0xd0] sm:$0xff] %vm2456, %v2450
      %2484 = vst.msk [vmem:[%s318 + $0xd8] sm:$0xff] %vm2456, %v2451
      %2485 = vst.msk [vmem:[%s318 + $0xe0] sm:$0xff] %vm2456, %v2452
      %2486 = vst.msk [vmem:[%s318 + $0xe8] sm:$0xff] %vm2456, %v2453
      %2487 = vst.msk [vmem:[%s318 + $0xf0] sm:$0xff] %vm2456, %v2454
      %2488 = vst.msk [vmem:[%s318 + $0xf8] sm:$0xff] %vm2456, %v2455
      %v2489 = vsel %vm2456, %v2424, 0.0
      %v2490 = vsel %vm2456, %v2425, 0.0
      %v2491 = vadd.f32 %v2489, %v2490
      %v2492 = vsel %vm2456, %v2426, 0.0
      %v2493 = vadd.f32 %v2491, %v2492
      %v2494 = vsel %vm2456, %v2427, 0.0
      %v2495 = vadd.f32 %v2493, %v2494
      %v2496 = vsel %vm2456, %v2428, 0.0
      %v2497 = vadd.f32 %v2495, %v2496
      %v2498 = vsel %vm2456, %v2429, 0.0
      %v2499 = vadd.f32 %v2497, %v2498
      %v2500 = vsel %vm2456, %v2430, 0.0
      %v2501 = vadd.f32 %v2499, %v2500
      %v2502 = vsel %vm2456, %v2431, 0.0
      %v2503 = vadd.f32 %v2501, %v2502
      %v2504 = vsel %vm2456, %v2432, 0.0
      %v2505 = vadd.f32 %v2503, %v2504
      %v2506 = vsel %vm2456, %v2433, 0.0
      %v2507 = vadd.f32 %v2505, %v2506
      %v2508 = vsel %vm2456, %v2434, 0.0
      %v2509 = vadd.f32 %v2507, %v2508
      %v2510 = vsel %vm2456, %v2435, 0.0
      %v2511 = vadd.f32 %v2509, %v2510
      %v2512 = vsel %vm2456, %v2436, 0.0
      %v2513 = vadd.f32 %v2511, %v2512
      %v2514 = vsel %vm2456, %v2437, 0.0
      %v2515 = vadd.f32 %v2513, %v2514
      %v2516 = vsel %vm2456, %v2438, 0.0
      %v2517 = vadd.f32 %v2515, %v2516
      %v2518 = vsel %vm2456, %v2439, 0.0
      %v2519 = vadd.f32 %v2517, %v2518
      %v2520 = vsel %vm2456, %v2440, 0.0
      %v2521 = vadd.f32 %v2519, %v2520
      %v2522 = vsel %vm2456, %v2441, 0.0
      %v2523 = vadd.f32 %v2521, %v2522
      %v2524 = vsel %vm2456, %v2442, 0.0
      %v2525 = vadd.f32 %v2523, %v2524
      %v2526 = vsel %vm2456, %v2443, 0.0
      %v2527 = vadd.f32 %v2525, %v2526
      %v2528 = vsel %vm2456, %v2444, 0.0
      %v2529 = vadd.f32 %v2527, %v2528
      %v2530 = vsel %vm2456, %v2445, 0.0
      %v2531 = vadd.f32 %v2529, %v2530
      %v2532 = vsel %vm2456, %v2446, 0.0
      %v2533 = vadd.f32 %v2531, %v2532
      %v2534 = vsel %vm2456, %v2447, 0.0
      %v2535 = vadd.f32 %v2533, %v2534
      %v2536 = vsel %vm2456, %v2448, 0.0
      %v2537 = vadd.f32 %v2535, %v2536
      %v2538 = vsel %vm2456, %v2449, 0.0
      %v2539 = vadd.f32 %v2537, %v2538
      %v2540 = vsel %vm2456, %v2450, 0.0
      %v2541 = vadd.f32 %v2539, %v2540
      %v2542 = vsel %vm2456, %v2451, 0.0
      %v2543 = vadd.f32 %v2541, %v2542
      %v2544 = vsel %vm2456, %v2452, 0.0
      %v2545 = vadd.f32 %v2543, %v2544
      %v2546 = vsel %vm2456, %v2453, 0.0
      %v2547 = vadd.f32 %v2545, %v2546
      %v2548 = vsel %vm2456, %v2454, 0.0
      %v2549 = vadd.f32 %v2547, %v2548
      %v2550 = vsel %vm2456, %v2455, 0.0
      %v2551 = vadd.f32 %v2549, %v2550
      %v2552 = vrot.slane %v2551, 4
      %v2553 = vadd.f32 %v2551, %v2552
      %v2554 = vrot.slane %v2553, 2
      %v2555 = vadd.f32 %v2553, %v2554
      %v2556 = vrot.slane %v2555, 1
      %v2557 = vadd.f32 %v2555, %v2556
      %vm2558 = vcmask 57344
      %2559 = vst.msk [vmem:[%s322] sm:$0x1] %vm2558, %v2557
      %v2560 = vmul.f32 %v2424, %v2424
      %v2561 = vmul.f32 %v2425, %v2425
      %v2562 = vmul.f32 %v2426, %v2426
      %v2563 = vmul.f32 %v2427, %v2427
      %v2564 = vmul.f32 %v2428, %v2428
      %v2565 = vmul.f32 %v2429, %v2429
      %v2566 = vmul.f32 %v2430, %v2430
      %v2567 = vmul.f32 %v2431, %v2431
      %v2568 = vmul.f32 %v2432, %v2432
      %v2569 = vmul.f32 %v2433, %v2433
      %v2570 = vmul.f32 %v2434, %v2434
      %v2571 = vmul.f32 %v2435, %v2435
      %v2572 = vmul.f32 %v2436, %v2436
      %v2573 = vmul.f32 %v2437, %v2437
      %v2574 = vmul.f32 %v2438, %v2438
      %v2575 = vmul.f32 %v2439, %v2439
      %v2576 = vmul.f32 %v2440, %v2440
      %v2577 = vmul.f32 %v2441, %v2441
      %v2578 = vmul.f32 %v2442, %v2442
      %v2579 = vmul.f32 %v2443, %v2443
      %v2580 = vmul.f32 %v2444, %v2444
      %v2581 = vmul.f32 %v2445, %v2445
      %v2582 = vmul.f32 %v2446, %v2446
      %v2583 = vmul.f32 %v2447, %v2447
      %v2584 = vmul.f32 %v2448, %v2448
      %v2585 = vmul.f32 %v2449, %v2449
      %v2586 = vmul.f32 %v2450, %v2450
      %v2587 = vmul.f32 %v2451, %v2451
      %v2588 = vmul.f32 %v2452, %v2452
      %v2589 = vmul.f32 %v2453, %v2453
      %v2590 = vmul.f32 %v2454, %v2454
      %v2591 = vmul.f32 %v2455, %v2455
      %v2592 = vsel %vm2456, %v2560, 0.0
      %v2593 = vsel %vm2456, %v2561, 0.0
      %v2594 = vadd.f32 %v2592, %v2593
      %v2595 = vsel %vm2456, %v2562, 0.0
      %v2596 = vadd.f32 %v2594, %v2595
      %v2597 = vsel %vm2456, %v2563, 0.0
      %v2598 = vadd.f32 %v2596, %v2597
      %v2599 = vsel %vm2456, %v2564, 0.0
      %v2600 = vadd.f32 %v2598, %v2599
      %v2601 = vsel %vm2456, %v2565, 0.0
      %v2602 = vadd.f32 %v2600, %v2601
      %v2603 = vsel %vm2456, %v2566, 0.0
      %v2604 = vadd.f32 %v2602, %v2603
      %v2605 = vsel %vm2456, %v2567, 0.0
      %v2606 = vadd.f32 %v2604, %v2605
      %v2607 = vsel %vm2456, %v2568, 0.0
      %v2608 = vadd.f32 %v2606, %v2607
      %v2609 = vsel %vm2456, %v2569, 0.0
      %v2610 = vadd.f32 %v2608, %v2609
      %v2611 = vsel %vm2456, %v2570, 0.0
      %v2612 = vadd.f32 %v2610, %v2611
      %v2613 = vsel %vm2456, %v2571, 0.0
      %v2614 = vadd.f32 %v2612, %v2613
      %v2615 = vsel %vm2456, %v2572, 0.0
      %v2616 = vadd.f32 %v2614, %v2615
      %v2617 = vsel %vm2456, %v2573, 0.0
      %v2618 = vadd.f32 %v2616, %v2617
      %v2619 = vsel %vm2456, %v2574, 0.0
      %v2620 = vadd.f32 %v2618, %v2619
      %v2621 = vsel %vm2456, %v2575, 0.0
      %v2622 = vadd.f32 %v2620, %v2621
      %v2623 = vsel %vm2456, %v2576, 0.0
      %v2624 = vadd.f32 %v2622, %v2623
      %v2625 = vsel %vm2456, %v2577, 0.0
      %v2626 = vadd.f32 %v2624, %v2625
      %v2627 = vsel %vm2456, %v2578, 0.0
      %v2628 = vadd.f32 %v2626, %v2627
      %v2629 = vsel %vm2456, %v2579, 0.0
      %v2630 = vadd.f32 %v2628, %v2629
      %v2631 = vsel %vm2456, %v2580, 0.0
      %v2632 = vadd.f32 %v2630, %v2631
      %v2633 = vsel %vm2456, %v2581, 0.0
      %v2634 = vadd.f32 %v2632, %v2633
      %v2635 = vsel %vm2456, %v2582, 0.0
      %v2636 = vadd.f32 %v2634, %v2635
      %v2637 = vsel %vm2456, %v2583, 0.0
      %v2638 = vadd.f32 %v2636, %v2637
      %v2639 = vsel %vm2456, %v2584, 0.0
      %v2640 = vadd.f32 %v2638, %v2639
      %v2641 = vsel %vm2456, %v2585, 0.0
      %v2642 = vadd.f32 %v2640, %v2641
      %v2643 = vsel %vm2456, %v2586, 0.0
      %v2644 = vadd.f32 %v2642, %v2643
      %v2645 = vsel %vm2456, %v2587, 0.0
      %v2646 = vadd.f32 %v2644, %v2645
      %v2647 = vsel %vm2456, %v2588, 0.0
      %v2648 = vadd.f32 %v2646, %v2647
      %v2649 = vsel %vm2456, %v2589, 0.0
      %v2650 = vadd.f32 %v2648, %v2649
      %v2651 = vsel %vm2456, %v2590, 0.0
      %v2652 = vadd.f32 %v2650, %v2651
      %v2653 = vsel %vm2456, %v2591, 0.0
      %v2654 = vadd.f32 %v2652, %v2653
      %v2655 = vrot.slane %v2654, 4
      %v2656 = vadd.f32 %v2654, %v2655
      %v2657 = vrot.slane %v2656, 2
      %v2658 = vadd.f32 %v2656, %v2657
      %v2659 = vrot.slane %v2658, 1
      %v2660 = vadd.f32 %v2658, %v2659
      %2661 = vst.msk [vmem:[%s322 + $0x1] sm:$0x1] %vm2558, %v2660
      %v2662 = vld [vmem:[%s313] sm:$0xff]
      %v2663 = vld [vmem:[%s313 + $0x8] sm:$0xff]
      %v2664 = vld [vmem:[%s313 + $0x10] sm:$0xff]
      %v2665 = vld [vmem:[%s313 + $0x18] sm:$0xff]
      %v2666 = vld [vmem:[%s313 + $0x20] sm:$0xff]
      %v2667 = vld [vmem:[%s313 + $0x28] sm:$0xff]
      %v2668 = vld [vmem:[%s313 + $0x30] sm:$0xff]
      %v2669 = vld [vmem:[%s313 + $0x38] sm:$0xff]
      %v2670 = vld [vmem:[%s313 + $0x40] sm:$0xff]
      %v2671 = vld [vmem:[%s313 + $0x48] sm:$0xff]
      %v2672 = vld [vmem:[%s313 + $0x50] sm:$0xff]
      %v2673 = vld [vmem:[%s313 + $0x58] sm:$0xff]
      %v2674 = vld [vmem:[%s313 + $0x60] sm:$0xff]
      %v2675 = vld [vmem:[%s313 + $0x68] sm:$0xff]
      %v2676 = vld [vmem:[%s313 + $0x70] sm:$0xff]
      %v2677 = vld [vmem:[%s313 + $0x78] sm:$0xff]
      %v2678 = vld [vmem:[%s313 + $0x80] sm:$0xff]
      %v2679 = vld [vmem:[%s313 + $0x88] sm:$0xff]
      %v2680 = vld [vmem:[%s313 + $0x90] sm:$0xff]
      %v2681 = vld [vmem:[%s313 + $0x98] sm:$0xff]
      %v2682 = vld [vmem:[%s313 + $0xa0] sm:$0xff]
      %v2683 = vld [vmem:[%s313 + $0xa8] sm:$0xff]
      %v2684 = vld [vmem:[%s313 + $0xb0] sm:$0xff]
      %v2685 = vld [vmem:[%s313 + $0xb8] sm:$0xff]
      %v2686 = vld [vmem:[%s313 + $0xc0] sm:$0xff]
      %v2687 = vld [vmem:[%s313 + $0xc8] sm:$0xff]
      %v2688 = vld [vmem:[%s313 + $0xd0] sm:$0xff]
      %v2689 = vld [vmem:[%s313 + $0xd8] sm:$0xff]
      %v2690 = vld [vmem:[%s313 + $0xe0] sm:$0xff]
      %v2691 = vld [vmem:[%s313 + $0xe8] sm:$0xff]
      %v2692 = vld [vmem:[%s313 + $0xf0] sm:$0xff]
      %v2693 = vld [vmem:[%s313 + $0xf8] sm:$0xff]
      %v2694 = vld [vmem:[%s3] sm:$0xf]
      %v2695 = vpack.c.bf16 %v2663, %v2662
      %v2696 = vpack.c.bf16 %v2665, %v2664
      %v2697 = vpack.c.bf16 %v2667, %v2666
      %v2698 = vpack.c.bf16 %v2669, %v2668
      %v2699 = vpack.c.bf16 %v2671, %v2670
      %v2700 = vpack.c.bf16 %v2673, %v2672
      %v2701 = vpack.c.bf16 %v2675, %v2674
      %v2702 = vpack.c.bf16 %v2677, %v2676
      %v2703 = vpack.c.bf16 %v2679, %v2678
      %v2704 = vpack.c.bf16 %v2681, %v2680
      %v2705 = vpack.c.bf16 %v2683, %v2682
      %v2706 = vpack.c.bf16 %v2685, %v2684
      %v2707 = vpack.c.bf16 %v2687, %v2686
      %v2708 = vpack.c.bf16 %v2689, %v2688
      %v2709 = vpack.c.bf16 %v2691, %v2690
      %v2710 = vpack.c.bf16 %v2693, %v2692
      %v2711 = vunpack.c.l.bf16 %v2695
      %v2712 = vunpack.c.h.bf16 %v2695
      %v2713 = vunpack.c.l.bf16 %v2696
      %v2714 = vunpack.c.h.bf16 %v2696
      %v2715 = vunpack.c.l.bf16 %v2697
      %v2716 = vunpack.c.h.bf16 %v2697
      %v2717 = vunpack.c.l.bf16 %v2698
      %v2718 = vunpack.c.h.bf16 %v2698
      %v2719 = vunpack.c.l.bf16 %v2699
      %v2720 = vunpack.c.h.bf16 %v2699
      %v2721 = vunpack.c.l.bf16 %v2700
      %v2722 = vunpack.c.h.bf16 %v2700
      %v2723 = vunpack.c.l.bf16 %v2701
      %v2724 = vunpack.c.h.bf16 %v2701
      %v2725 = vunpack.c.l.bf16 %v2702
      %v2726 = vunpack.c.h.bf16 %v2702
      %v2727 = vunpack.c.l.bf16 %v2703
      %v2728 = vunpack.c.h.bf16 %v2703
      %v2729 = vunpack.c.l.bf16 %v2704
      %v2730 = vunpack.c.h.bf16 %v2704
      %v2731 = vunpack.c.l.bf16 %v2705
      %v2732 = vunpack.c.h.bf16 %v2705
      %v2733 = vunpack.c.l.bf16 %v2706
      %v2734 = vunpack.c.h.bf16 %v2706
      %v2735 = vunpack.c.l.bf16 %v2707
      %v2736 = vunpack.c.h.bf16 %v2707
      %v2737 = vunpack.c.l.bf16 %v2708
      %v2738 = vunpack.c.h.bf16 %v2708
      %v2739 = vunpack.c.l.bf16 %v2709
      %v2740 = vunpack.c.h.bf16 %v2709
      %v2741 = vunpack.c.l.bf16 %v2710
      %v2742 = vunpack.c.h.bf16 %v2710
      %v2743 = vsub.f32 %v2662, %v2711
      %v2744 = vsub.f32 %v2663, %v2712
      %v2745 = vsub.f32 %v2664, %v2713
      %v2746 = vsub.f32 %v2665, %v2714
      %v2747 = vsub.f32 %v2666, %v2715
      %v2748 = vsub.f32 %v2667, %v2716
      %v2749 = vsub.f32 %v2668, %v2717
      %v2750 = vsub.f32 %v2669, %v2718
      %v2751 = vsub.f32 %v2670, %v2719
      %v2752 = vsub.f32 %v2671, %v2720
      %v2753 = vsub.f32 %v2672, %v2721
      %v2754 = vsub.f32 %v2673, %v2722
      %v2755 = vsub.f32 %v2674, %v2723
      %v2756 = vsub.f32 %v2675, %v2724
      %v2757 = vsub.f32 %v2676, %v2725
      %v2758 = vsub.f32 %v2677, %v2726
      %v2759 = vsub.f32 %v2678, %v2727
      %v2760 = vsub.f32 %v2679, %v2728
      %v2761 = vsub.f32 %v2680, %v2729
      %v2762 = vsub.f32 %v2681, %v2730
      %v2763 = vsub.f32 %v2682, %v2731
      %v2764 = vsub.f32 %v2683, %v2732
      %v2765 = vsub.f32 %v2684, %v2733
      %v2766 = vsub.f32 %v2685, %v2734
      %v2767 = vsub.f32 %v2686, %v2735
      %v2768 = vsub.f32 %v2687, %v2736
      %v2769 = vsub.f32 %v2688, %v2737
      %v2770 = vsub.f32 %v2689, %v2738
      %v2771 = vsub.f32 %v2690, %v2739
      %v2772 = vsub.f32 %v2691, %v2740
      %v2773 = vsub.f32 %v2692, %v2741
      %v2774 = vsub.f32 %v2693, %v2742
      %v2775 = vpack.c.bf16 %v2744, %v2743
      %v2776 = vpack.c.bf16 %v2746, %v2745
      %v2777 = vpack.c.bf16 %v2748, %v2747
      %v2778 = vpack.c.bf16 %v2750, %v2749
      %v2779 = vpack.c.bf16 %v2752, %v2751
      %v2780 = vpack.c.bf16 %v2754, %v2753
      %v2781 = vpack.c.bf16 %v2756, %v2755
      %v2782 = vpack.c.bf16 %v2758, %v2757
      %v2783 = vpack.c.bf16 %v2760, %v2759
      %v2784 = vpack.c.bf16 %v2762, %v2761
      %v2785 = vpack.c.bf16 %v2764, %v2763
      %v2786 = vpack.c.bf16 %v2766, %v2765
      %v2787 = vpack.c.bf16 %v2768, %v2767
      %v2788 = vpack.c.bf16 %v2770, %v2769
      %v2789 = vpack.c.bf16 %v2772, %v2771
      %v2790 = vpack.c.bf16 %v2774, %v2773
      %v2791 = vpack.c.bf16 %v2694, %v2694
      %v2792 = vunpack.c.l.bf16 %v2791
      %v2793 = vsub.f32 %v2694, %v2792
      %v2794 = vpack.c.bf16 %v2793, %v2793
      %v2796 = vsel %vm387, %v2775, 0
      %v2799 = vsel %vm387, %v2776, 0
      %v2802 = vsel %vm387, %v2777, 0
      %v2805 = vsel %vm387, %v2778, 0
      %v2808 = vsel %vm387, %v2779, 0
      %v2811 = vsel %vm387, %v2780, 0
      %v2814 = vsel %vm387, %v2781, 0
      %v2817 = vsel %vm387, %v2782, 0
      %v2820 = vsel %vm387, %v2783, 0
      %v2823 = vsel %vm387, %v2784, 0
      %v2826 = vsel %vm387, %v2785, 0
      %v2829 = vsel %vm387, %v2786, 0
      %v2832 = vsel %vm387, %v2787, 0
      %v2835 = vsel %vm387, %v2788, 0
      %v2838 = vsel %vm387, %v2789, 0
      %v2841 = vsel %vm387, %v2790, 0
      %v2844 = vsel %vm1886, %v2791, 0
      %2846 = vmatprep.subr.bf16.mxu0 0
      %2847 = vmatpush1.bf16.msra.mxu0 0
      %2848 = vmatprep.subr.bf16.mxu0 0
      %2849 = vmatpush1.bf16.msra.mxu0 0
      %2850 = vmatprep.subr.bf16.mxu0 0
      %2851 = vmatpush1.bf16.msra.mxu0 0
      %2852 = vmatprep.subr.bf16.mxu0 0
      %2853 = vmatpush1.bf16.msra.mxu0 0
      %2854 = vmatprep.subr.bf16.mxu0 0
      %2855 = vmatpush1.bf16.msra.mxu0 0
      %2856 = vmatprep.subr.bf16.mxu0 0
      %2857 = vmatpush1.bf16.msra.mxu0 0
      %2858 = vmatprep.subr.bf16.mxu0 0
      %2859 = vmatpush1.bf16.msra.mxu0 0
      %2860 = vmatprep.subr.bf16.mxu0 0
      %2861 = vmatpush1.bf16.msra.mxu0 %v2844
      %2862 = vmatprep.subr.bf16.mxu0 0
      %2863 = vmatpush2.bf16.msra.mxu0 0
      %2864 = vmatprep.subr.bf16.mxu0 0
      %2865 = vmatpush2.bf16.msra.mxu0 0
      %2866 = vmatprep.subr.bf16.mxu0 0
      %2867 = vmatpush2.bf16.msra.mxu0 0
      %2868 = vmatprep.subr.bf16.mxu0 0
      %2869 = vmatpush2.bf16.msra.mxu0 0
      %2870 = vmatprep.subr.bf16.mxu0 0
      %2871 = vmatpush2.bf16.msra.mxu0 0
      %2872 = vmatprep.subr.bf16.mxu0 0
      %2873 = vmatpush2.bf16.msra.mxu0 0
      %2874 = vmatprep.subr.bf16.mxu0 0
      %2875 = vmatpush2.bf16.msra.mxu0 0
      %2876 = vmatprep.subr.bf16.mxu0 0
      %2877 = vmatpush2.bf16.msra.mxu0 0
      %2878 = vmatprep.mubr.bf16.mxu0 0
      %2879 = vmatmul.mubr.bf16.gmra.mxu0 %v2796
      %v2880 = vpop.f32.mrf.mxu0
      %v2881 = vadd.f32 0.0, %v2880
      %v2882 = vpop.f32.mrf.mxu0
      %v2883 = vpop.f32.mrf.mxu0
      %v2884 = vadd.f32 0.0, %v2883
      %v2885 = vpop.f32.mrf.mxu0
      %2886 = vmatprep.mubr.bf16.mxu0 0
      %2887 = vmatmul.mubr.bf16.gmra.mxu0 %v2799
      %v2888 = vpop.f32.mrf.mxu0
      %v2889 = vadd.f32 0.0, %v2888
      %v2890 = vpop.f32.mrf.mxu0
      %v2891 = vpop.f32.mrf.mxu0
      %v2892 = vadd.f32 0.0, %v2891
      %v2893 = vpop.f32.mrf.mxu0
      %2894 = vmatprep.mubr.bf16.mxu0 0
      %2895 = vmatmul.mubr.bf16.gmra.mxu0 %v2802
      %v2896 = vpop.f32.mrf.mxu0
      %v2897 = vadd.f32 0.0, %v2896
      %v2898 = vpop.f32.mrf.mxu0
      %v2899 = vpop.f32.mrf.mxu0
      %v2900 = vadd.f32 0.0, %v2899
      %v2901 = vpop.f32.mrf.mxu0
      %2902 = vmatprep.mubr.bf16.mxu0 0
      %2903 = vmatmul.mubr.bf16.gmra.mxu0 %v2805
      %v2904 = vpop.f32.mrf.mxu0
      %v2905 = vadd.f32 0.0, %v2904
      %v2906 = vpop.f32.mrf.mxu0
      %v2907 = vpop.f32.mrf.mxu0
      %v2908 = vadd.f32 0.0, %v2907
      %v2909 = vpop.f32.mrf.mxu0
      %2910 = vmatprep.mubr.bf16.mxu0 0
      %2911 = vmatmul.mubr.bf16.gmra.mxu0 %v2808
      %v2912 = vpop.f32.mrf.mxu0
      %v2913 = vadd.f32 0.0, %v2912
      %v2914 = vpop.f32.mrf.mxu0
      %v2915 = vpop.f32.mrf.mxu0
      %v2916 = vadd.f32 0.0, %v2915
      %v2917 = vpop.f32.mrf.mxu0
      %2918 = vmatprep.mubr.bf16.mxu0 0
      %2919 = vmatmul.mubr.bf16.gmra.mxu0 %v2811
      %v2920 = vpop.f32.mrf.mxu0
      %v2921 = vadd.f32 0.0, %v2920
      %v2922 = vpop.f32.mrf.mxu0
      %v2923 = vpop.f32.mrf.mxu0
      %v2924 = vadd.f32 0.0, %v2923
      %v2925 = vpop.f32.mrf.mxu0
      %2926 = vmatprep.mubr.bf16.mxu0 0
      %2927 = vmatmul.mubr.bf16.gmra.mxu0 %v2814
      %v2928 = vpop.f32.mrf.mxu0
      %v2929 = vadd.f32 0.0, %v2928
      %v2930 = vpop.f32.mrf.mxu0
      %v2931 = vpop.f32.mrf.mxu0
      %v2932 = vadd.f32 0.0, %v2931
      %v2933 = vpop.f32.mrf.mxu0
      %2934 = vmatprep.mubr.bf16.mxu0 0
      %2935 = vmatmul.mubr.bf16.gmra.mxu0 %v2817
      %v2936 = vpop.f32.mrf.mxu0
      %v2937 = vadd.f32 0.0, %v2936
      %v2938 = vpop.f32.mrf.mxu0
      %v2939 = vpop.f32.mrf.mxu0
      %v2940 = vadd.f32 0.0, %v2939
      %v2941 = vpop.f32.mrf.mxu0
      %2942 = vmatprep.mubr.bf16.mxu0 0
      %2943 = vmatmul.mubr.bf16.gmra.mxu0 %v2820
      %v2944 = vpop.f32.mrf.mxu0
      %v2945 = vadd.f32 0.0, %v2944
      %v2946 = vpop.f32.mrf.mxu0
      %v2947 = vpop.f32.mrf.mxu0
      %v2948 = vadd.f32 0.0, %v2947
      %v2949 = vpop.f32.mrf.mxu0
      %2950 = vmatprep.mubr.bf16.mxu0 0
      %2951 = vmatmul.mubr.bf16.gmra.mxu0 %v2823
      %v2952 = vpop.f32.mrf.mxu0
      %v2953 = vadd.f32 0.0, %v2952
      %v2954 = vpop.f32.mrf.mxu0
      %v2955 = vpop.f32.mrf.mxu0
      %v2956 = vadd.f32 0.0, %v2955
      %v2957 = vpop.f32.mrf.mxu0
      %2958 = vmatprep.mubr.bf16.mxu0 0
      %2959 = vmatmul.mubr.bf16.gmra.mxu0 %v2826
      %v2960 = vpop.f32.mrf.mxu0
      %v2961 = vadd.f32 0.0, %v2960
      %v2962 = vpop.f32.mrf.mxu0
      %v2963 = vpop.f32.mrf.mxu0
      %v2964 = vadd.f32 0.0, %v2963
      %v2965 = vpop.f32.mrf.mxu0
      %2966 = vmatprep.mubr.bf16.mxu0 0
      %2967 = vmatmul.mubr.bf16.gmra.mxu0 %v2829
      %v2968 = vpop.f32.mrf.mxu0
      %v2969 = vadd.f32 0.0, %v2968
      %v2970 = vpop.f32.mrf.mxu0
      %v2971 = vpop.f32.mrf.mxu0
      %v2972 = vadd.f32 0.0, %v2971
      %v2973 = vpop.f32.mrf.mxu0
      %2974 = vmatprep.mubr.bf16.mxu0 0
      %2975 = vmatmul.mubr.bf16.gmra.mxu0 %v2832
      %v2976 = vpop.f32.mrf.mxu0
      %v2977 = vadd.f32 0.0, %v2976
      %v2978 = vpop.f32.mrf.mxu0
      %v2979 = vpop.f32.mrf.mxu0
      %v2980 = vadd.f32 0.0, %v2979
      %v2981 = vpop.f32.mrf.mxu0
      %2982 = vmatprep.mubr.bf16.mxu0 0
      %2983 = vmatmul.mubr.bf16.gmra.mxu0 %v2835
      %v2984 = vpop.f32.mrf.mxu0
      %v2985 = vadd.f32 0.0, %v2984
      %v2986 = vpop.f32.mrf.mxu0
      %v2987 = vpop.f32.mrf.mxu0
      %v2988 = vadd.f32 0.0, %v2987
      %v2989 = vpop.f32.mrf.mxu0
      %2990 = vmatprep.mubr.bf16.mxu0 0
      %2991 = vmatmul.mubr.bf16.gmra.mxu0 %v2838
      %v2992 = vpop.f32.mrf.mxu0
      %v2993 = vadd.f32 0.0, %v2992
      %v2994 = vpop.f32.mrf.mxu0
      %v2995 = vpop.f32.mrf.mxu0
      %v2996 = vadd.f32 0.0, %v2995
      %v2997 = vpop.f32.mrf.mxu0
      %2998 = vmatprep.mubr.bf16.mxu0 0
      %2999 = vmatmul.mubr.bf16.gmra.mxu0 %v2841
      %v3000 = vpop.f32.mrf.mxu0
      %v3001 = vadd.f32 0.0, %v3000
      %v3002 = vpop.f32.mrf.mxu0
      %v3003 = vpop.f32.mrf.mxu0
      %v3004 = vadd.f32 0.0, %v3003
      %v3005 = vpop.f32.mrf.mxu0
      %3006 = vdwg.mxu0
      %v3008 = vsel %vm387, %v2695, 0
      %v3011 = vsel %vm387, %v2696, 0
      %v3014 = vsel %vm387, %v2697, 0
      %v3017 = vsel %vm387, %v2698, 0
      %v3020 = vsel %vm387, %v2699, 0
      %v3023 = vsel %vm387, %v2700, 0
      %v3026 = vsel %vm387, %v2701, 0
      %v3029 = vsel %vm387, %v2702, 0
      %v3032 = vsel %vm387, %v2703, 0
      %v3035 = vsel %vm387, %v2704, 0
      %v3038 = vsel %vm387, %v2705, 0
      %v3041 = vsel %vm387, %v2706, 0
      %v3044 = vsel %vm387, %v2707, 0
      %v3047 = vsel %vm387, %v2708, 0
      %v3050 = vsel %vm387, %v2709, 0
      %v3053 = vsel %vm387, %v2710, 0
      %3055 = vmatprep.subr.bf16.mxu0 0
      %3056 = vmatpush1.bf16.msra.mxu0 0
      %3057 = vmatprep.subr.bf16.mxu0 0
      %3058 = vmatpush1.bf16.msra.mxu0 0
      %3059 = vmatprep.subr.bf16.mxu0 0
      %3060 = vmatpush1.bf16.msra.mxu0 0
      %3061 = vmatprep.subr.bf16.mxu0 0
      %3062 = vmatpush1.bf16.msra.mxu0 0
      %3063 = vmatprep.subr.bf16.mxu0 0
      %3064 = vmatpush1.bf16.msra.mxu0 0
      %3065 = vmatprep.subr.bf16.mxu0 0
      %3066 = vmatpush1.bf16.msra.mxu0 0
      %3067 = vmatprep.subr.bf16.mxu0 0
      %3068 = vmatpush1.bf16.msra.mxu0 0
      %3069 = vmatprep.subr.bf16.mxu0 0
      %3070 = vmatpush1.bf16.msra.mxu0 %v2844
      %3071 = vmatprep.subr.bf16.mxu0 0
      %3072 = vmatpush2.bf16.msra.mxu0 0
      %3073 = vmatprep.subr.bf16.mxu0 0
      %3074 = vmatpush2.bf16.msra.mxu0 0
      %3075 = vmatprep.subr.bf16.mxu0 0
      %3076 = vmatpush2.bf16.msra.mxu0 0
      %3077 = vmatprep.subr.bf16.mxu0 0
      %3078 = vmatpush2.bf16.msra.mxu0 0
      %3079 = vmatprep.subr.bf16.mxu0 0
      %3080 = vmatpush2.bf16.msra.mxu0 0
      %3081 = vmatprep.subr.bf16.mxu0 0
      %3082 = vmatpush2.bf16.msra.mxu0 0
      %3083 = vmatprep.subr.bf16.mxu0 0
      %3084 = vmatpush2.bf16.msra.mxu0 0
      %3085 = vmatprep.subr.bf16.mxu0 0
      %3086 = vmatpush2.bf16.msra.mxu0 0
      %3087 = vmatprep.mubr.bf16.mxu0 0
      %3088 = vmatmul.mubr.bf16.gmra.mxu0 %v3008
      %v3089 = vpop.f32.mrf.mxu0
      %v3090 = vadd.f32 %v2881, %v3089
      %v3091 = vpop.f32.mrf.mxu0
      %v3092 = vpop.f32.mrf.mxu0
      %v3093 = vadd.f32 %v2884, %v3092
      %v3094 = vpop.f32.mrf.mxu0
      %3095 = vmatprep.mubr.bf16.mxu0 0
      %3096 = vmatmul.mubr.bf16.gmra.mxu0 %v3011
      %v3097 = vpop.f32.mrf.mxu0
      %v3098 = vadd.f32 %v2889, %v3097
      %v3099 = vpop.f32.mrf.mxu0
      %v3100 = vpop.f32.mrf.mxu0
      %v3101 = vadd.f32 %v2892, %v3100
      %v3102 = vpop.f32.mrf.mxu0
      %3103 = vmatprep.mubr.bf16.mxu0 0
      %3104 = vmatmul.mubr.bf16.gmra.mxu0 %v3014
      %v3105 = vpop.f32.mrf.mxu0
      %v3106 = vadd.f32 %v2897, %v3105
      %v3107 = vpop.f32.mrf.mxu0
      %v3108 = vpop.f32.mrf.mxu0
      %v3109 = vadd.f32 %v2900, %v3108
      %v3110 = vpop.f32.mrf.mxu0
      %3111 = vmatprep.mubr.bf16.mxu0 0
      %3112 = vmatmul.mubr.bf16.gmra.mxu0 %v3017
      %v3113 = vpop.f32.mrf.mxu0
      %v3114 = vadd.f32 %v2905, %v3113
      %v3115 = vpop.f32.mrf.mxu0
      %v3116 = vpop.f32.mrf.mxu0
      %v3117 = vadd.f32 %v2908, %v3116
      %v3118 = vpop.f32.mrf.mxu0
      %3119 = vmatprep.mubr.bf16.mxu0 0
      %3120 = vmatmul.mubr.bf16.gmra.mxu0 %v3020
      %v3121 = vpop.f32.mrf.mxu0
      %v3122 = vadd.f32 %v2913, %v3121
      %v3123 = vpop.f32.mrf.mxu0
      %v3124 = vpop.f32.mrf.mxu0
      %v3125 = vadd.f32 %v2916, %v3124
      %v3126 = vpop.f32.mrf.mxu0
      %3127 = vmatprep.mubr.bf16.mxu0 0
      %3128 = vmatmul.mubr.bf16.gmra.mxu0 %v3023
      %v3129 = vpop.f32.mrf.mxu0
      %v3130 = vadd.f32 %v2921, %v3129
      %v3131 = vpop.f32.mrf.mxu0
      %v3132 = vpop.f32.mrf.mxu0
      %v3133 = vadd.f32 %v2924, %v3132
      %v3134 = vpop.f32.mrf.mxu0
      %3135 = vmatprep.mubr.bf16.mxu0 0
      %3136 = vmatmul.mubr.bf16.gmra.mxu0 %v3026
      %v3137 = vpop.f32.mrf.mxu0
      %v3138 = vadd.f32 %v2929, %v3137
      %v3139 = vpop.f32.mrf.mxu0
      %v3140 = vpop.f32.mrf.mxu0
      %v3141 = vadd.f32 %v2932, %v3140
      %v3142 = vpop.f32.mrf.mxu0
      %3143 = vmatprep.mubr.bf16.mxu0 0
      %3144 = vmatmul.mubr.bf16.gmra.mxu0 %v3029
      %v3145 = vpop.f32.mrf.mxu0
      %v3146 = vadd.f32 %v2937, %v3145
      %v3147 = vpop.f32.mrf.mxu0
      %v3148 = vpop.f32.mrf.mxu0
      %v3149 = vadd.f32 %v2940, %v3148
      %v3150 = vpop.f32.mrf.mxu0
      %3151 = vmatprep.mubr.bf16.mxu0 0
      %3152 = vmatmul.mubr.bf16.gmra.mxu0 %v3032
      %v3153 = vpop.f32.mrf.mxu0
      %v3154 = vadd.f32 %v2945, %v3153
      %v3155 = vpop.f32.mrf.mxu0
      %v3156 = vpop.f32.mrf.mxu0
      %v3157 = vadd.f32 %v2948, %v3156
      %v3158 = vpop.f32.mrf.mxu0
      %3159 = vmatprep.mubr.bf16.mxu0 0
      %3160 = vmatmul.mubr.bf16.gmra.mxu0 %v3035
      %v3161 = vpop.f32.mrf.mxu0
      %v3162 = vadd.f32 %v2953, %v3161
      %v3163 = vpop.f32.mrf.mxu0
      %v3164 = vpop.f32.mrf.mxu0
      %v3165 = vadd.f32 %v2956, %v3164
      %v3166 = vpop.f32.mrf.mxu0
      %3167 = vmatprep.mubr.bf16.mxu0 0
      %3168 = vmatmul.mubr.bf16.gmra.mxu0 %v3038
      %v3169 = vpop.f32.mrf.mxu0
      %v3170 = vadd.f32 %v2961, %v3169
      %v3171 = vpop.f32.mrf.mxu0
      %v3172 = vpop.f32.mrf.mxu0
      %v3173 = vadd.f32 %v2964, %v3172
      %v3174 = vpop.f32.mrf.mxu0
      %3175 = vmatprep.mubr.bf16.mxu0 0
      %3176 = vmatmul.mubr.bf16.gmra.mxu0 %v3041
      %v3177 = vpop.f32.mrf.mxu0
      %v3178 = vadd.f32 %v2969, %v3177
      %v3179 = vpop.f32.mrf.mxu0
      %v3180 = vpop.f32.mrf.mxu0
      %v3181 = vadd.f32 %v2972, %v3180
      %v3182 = vpop.f32.mrf.mxu0
      %3183 = vmatprep.mubr.bf16.mxu0 0
      %3184 = vmatmul.mubr.bf16.gmra.mxu0 %v3044
      %v3185 = vpop.f32.mrf.mxu0
      %v3186 = vadd.f32 %v2977, %v3185
      %v3187 = vpop.f32.mrf.mxu0
      %v3188 = vpop.f32.mrf.mxu0
      %v3189 = vadd.f32 %v2980, %v3188
      %v3190 = vpop.f32.mrf.mxu0
      %3191 = vmatprep.mubr.bf16.mxu0 0
      %3192 = vmatmul.mubr.bf16.gmra.mxu0 %v3047
      %v3193 = vpop.f32.mrf.mxu0
      %v3194 = vadd.f32 %v2985, %v3193
      %v3195 = vpop.f32.mrf.mxu0
      %v3196 = vpop.f32.mrf.mxu0
      %v3197 = vadd.f32 %v2988, %v3196
      %v3198 = vpop.f32.mrf.mxu0
      %3199 = vmatprep.mubr.bf16.mxu0 0
      %3200 = vmatmul.mubr.bf16.gmra.mxu0 %v3050
      %v3201 = vpop.f32.mrf.mxu0
      %v3202 = vadd.f32 %v2993, %v3201
      %v3203 = vpop.f32.mrf.mxu0
      %v3204 = vpop.f32.mrf.mxu0
      %v3205 = vadd.f32 %v2996, %v3204
      %v3206 = vpop.f32.mrf.mxu0
      %3207 = vmatprep.mubr.bf16.mxu0 0
      %3208 = vmatmul.mubr.bf16.gmra.mxu0 %v3053
      %v3209 = vpop.f32.mrf.mxu0
      %v3210 = vadd.f32 %v3001, %v3209
      %v3211 = vpop.f32.mrf.mxu0
      %v3212 = vpop.f32.mrf.mxu0
      %v3213 = vadd.f32 %v3004, %v3212
      %v3214 = vpop.f32.mrf.mxu0
      %3215 = vdwg.mxu0
      %v3217 = vsel %vm1886, %v2794, 0
      %3219 = vmatprep.subr.bf16.mxu0 0
      %3220 = vmatpush1.bf16.msra.mxu0 0
      %3221 = vmatprep.subr.bf16.mxu0 0
      %3222 = vmatpush1.bf16.msra.mxu0 0
      %3223 = vmatprep.subr.bf16.mxu0 0
      %3224 = vmatpush1.bf16.msra.mxu0 0
      %3225 = vmatprep.subr.bf16.mxu0 0
      %3226 = vmatpush1.bf16.msra.mxu0 0
      %3227 = vmatprep.subr.bf16.mxu0 0
      %3228 = vmatpush1.bf16.msra.mxu0 0
      %3229 = vmatprep.subr.bf16.mxu0 0
      %3230 = vmatpush1.bf16.msra.mxu0 0
      %3231 = vmatprep.subr.bf16.mxu0 0
      %3232 = vmatpush1.bf16.msra.mxu0 0
      %3233 = vmatprep.subr.bf16.mxu0 0
      %3234 = vmatpush1.bf16.msra.mxu0 %v3217
      %3235 = vmatprep.subr.bf16.mxu0 0
      %3236 = vmatpush2.bf16.msra.mxu0 0
      %3237 = vmatprep.subr.bf16.mxu0 0
      %3238 = vmatpush2.bf16.msra.mxu0 0
      %3239 = vmatprep.subr.bf16.mxu0 0
      %3240 = vmatpush2.bf16.msra.mxu0 0
      %3241 = vmatprep.subr.bf16.mxu0 0
      %3242 = vmatpush2.bf16.msra.mxu0 0
      %3243 = vmatprep.subr.bf16.mxu0 0
      %3244 = vmatpush2.bf16.msra.mxu0 0
      %3245 = vmatprep.subr.bf16.mxu0 0
      %3246 = vmatpush2.bf16.msra.mxu0 0
      %3247 = vmatprep.subr.bf16.mxu0 0
      %3248 = vmatpush2.bf16.msra.mxu0 0
      %3249 = vmatprep.subr.bf16.mxu0 0
      %3250 = vmatpush2.bf16.msra.mxu0 0
      %3251 = vmatprep.mubr.bf16.mxu0 0
      %3252 = vmatmul.mubr.bf16.gmra.mxu0 %v3008
      %v3253 = vpop.f32.mrf.mxu0
      %v3254 = vadd.f32 0.0, %v3253
      %v3255 = vpop.f32.mrf.mxu0
      %v3256 = vpop.f32.mrf.mxu0
      %v3257 = vadd.f32 0.0, %v3256
      %v3258 = vpop.f32.mrf.mxu0
      %3259 = vmatprep.mubr.bf16.mxu0 0
      %3260 = vmatmul.mubr.bf16.gmra.mxu0 %v3011
      %v3261 = vpop.f32.mrf.mxu0
      %v3262 = vadd.f32 0.0, %v3261
      %v3263 = vpop.f32.mrf.mxu0
      %v3264 = vpop.f32.mrf.mxu0
      %v3265 = vadd.f32 0.0, %v3264
      %v3266 = vpop.f32.mrf.mxu0
      %3267 = vmatprep.mubr.bf16.mxu0 0
      %3268 = vmatmul.mubr.bf16.gmra.mxu0 %v3014
      %v3269 = vpop.f32.mrf.mxu0
      %v3270 = vadd.f32 0.0, %v3269
      %v3271 = vpop.f32.mrf.mxu0
      %v3272 = vpop.f32.mrf.mxu0
      %v3273 = vadd.f32 0.0, %v3272
      %v3274 = vpop.f32.mrf.mxu0
      %3275 = vmatprep.mubr.bf16.mxu0 0
      %3276 = vmatmul.mubr.bf16.gmra.mxu0 %v3017
      %v3277 = vpop.f32.mrf.mxu0
      %v3278 = vadd.f32 0.0, %v3277
      %v3279 = vpop.f32.mrf.mxu0
      %v3280 = vpop.f32.mrf.mxu0
      %v3281 = vadd.f32 0.0, %v3280
      %v3282 = vpop.f32.mrf.mxu0
      %3283 = vmatprep.mubr.bf16.mxu0 0
      %3284 = vmatmul.mubr.bf16.gmra.mxu0 %v3020
      %v3285 = vpop.f32.mrf.mxu0
      %v3286 = vadd.f32 0.0, %v3285
      %v3287 = vpop.f32.mrf.mxu0
      %v3288 = vpop.f32.mrf.mxu0
      %v3289 = vadd.f32 0.0, %v3288
      %v3290 = vpop.f32.mrf.mxu0
      %3291 = vmatprep.mubr.bf16.mxu0 0
      %3292 = vmatmul.mubr.bf16.gmra.mxu0 %v3023
      %v3293 = vpop.f32.mrf.mxu0
      %v3294 = vadd.f32 0.0, %v3293
      %v3295 = vpop.f32.mrf.mxu0
      %v3296 = vpop.f32.mrf.mxu0
      %v3297 = vadd.f32 0.0, %v3296
      %v3298 = vpop.f32.mrf.mxu0
      %3299 = vmatprep.mubr.bf16.mxu0 0
      %3300 = vmatmul.mubr.bf16.gmra.mxu0 %v3026
      %v3301 = vpop.f32.mrf.mxu0
      %v3302 = vadd.f32 0.0, %v3301
      %v3303 = vpop.f32.mrf.mxu0
      %v3304 = vpop.f32.mrf.mxu0
      %v3305 = vadd.f32 0.0, %v3304
      %v3306 = vpop.f32.mrf.mxu0
      %3307 = vmatprep.mubr.bf16.mxu0 0
      %3308 = vmatmul.mubr.bf16.gmra.mxu0 %v3029
      %v3309 = vpop.f32.mrf.mxu0
      %v3310 = vadd.f32 0.0, %v3309
      %v3311 = vpop.f32.mrf.mxu0
      %v3312 = vpop.f32.mrf.mxu0
      %v3313 = vadd.f32 0.0, %v3312
      %v3314 = vpop.f32.mrf.mxu0
      %3315 = vmatprep.mubr.bf16.mxu0 0
      %3316 = vmatmul.mubr.bf16.gmra.mxu0 %v3032
      %v3317 = vpop.f32.mrf.mxu0
      %v3318 = vadd.f32 0.0, %v3317
      %v3319 = vpop.f32.mrf.mxu0
      %v3320 = vpop.f32.mrf.mxu0
      %v3321 = vadd.f32 0.0, %v3320
      %v3322 = vpop.f32.mrf.mxu0
      %3323 = vmatprep.mubr.bf16.mxu0 0
      %3324 = vmatmul.mubr.bf16.gmra.mxu0 %v3035
      %v3325 = vpop.f32.mrf.mxu0
      %v3326 = vadd.f32 0.0, %v3325
      %v3327 = vpop.f32.mrf.mxu0
      %v3328 = vpop.f32.mrf.mxu0
      %v3329 = vadd.f32 0.0, %v3328
      %v3330 = vpop.f32.mrf.mxu0
      %3331 = vmatprep.mubr.bf16.mxu0 0
      %3332 = vmatmul.mubr.bf16.gmra.mxu0 %v3038
      %v3333 = vpop.f32.mrf.mxu0
      %v3334 = vadd.f32 0.0, %v3333
      %v3335 = vpop.f32.mrf.mxu0
      %v3336 = vpop.f32.mrf.mxu0
      %v3337 = vadd.f32 0.0, %v3336
      %v3338 = vpop.f32.mrf.mxu0
      %3339 = vmatprep.mubr.bf16.mxu0 0
      %3340 = vmatmul.mubr.bf16.gmra.mxu0 %v3041
      %v3341 = vpop.f32.mrf.mxu0
      %v3342 = vadd.f32 0.0, %v3341
      %v3343 = vpop.f32.mrf.mxu0
      %v3344 = vpop.f32.mrf.mxu0
      %v3345 = vadd.f32 0.0, %v3344
      %v3346 = vpop.f32.mrf.mxu0
      %3347 = vmatprep.mubr.bf16.mxu0 0
      %3348 = vmatmul.mubr.bf16.gmra.mxu0 %v3044
      %v3349 = vpop.f32.mrf.mxu0
      %v3350 = vadd.f32 0.0, %v3349
      %v3351 = vpop.f32.mrf.mxu0
      %v3352 = vpop.f32.mrf.mxu0
      %v3353 = vadd.f32 0.0, %v3352
      %v3354 = vpop.f32.mrf.mxu0
      %3355 = vmatprep.mubr.bf16.mxu0 0
      %3356 = vmatmul.mubr.bf16.gmra.mxu0 %v3047
      %v3357 = vpop.f32.mrf.mxu0
      %v3358 = vadd.f32 0.0, %v3357
      %v3359 = vpop.f32.mrf.mxu0
      %v3360 = vpop.f32.mrf.mxu0
      %v3361 = vadd.f32 0.0, %v3360
      %v3362 = vpop.f32.mrf.mxu0
      %3363 = vmatprep.mubr.bf16.mxu0 0
      %3364 = vmatmul.mubr.bf16.gmra.mxu0 %v3050
      %v3365 = vpop.f32.mrf.mxu0
      %v3366 = vadd.f32 0.0, %v3365
      %v3367 = vpop.f32.mrf.mxu0
      %v3368 = vpop.f32.mrf.mxu0
      %v3369 = vadd.f32 0.0, %v3368
      %v3370 = vpop.f32.mrf.mxu0
      %3371 = vmatprep.mubr.bf16.mxu0 0
      %3372 = vmatmul.mubr.bf16.gmra.mxu0 %v3053
      %v3373 = vpop.f32.mrf.mxu0
      %v3374 = vadd.f32 0.0, %v3373
      %v3375 = vpop.f32.mrf.mxu0
      %v3376 = vpop.f32.mrf.mxu0
      %v3377 = vadd.f32 0.0, %v3376
      %v3378 = vpop.f32.mrf.mxu0
      %3379 = vdwg.mxu0
      %v3380 = vadd.f32 %v3090, %v3254
      %v3381 = vadd.f32 %v3093, %v3257
      %v3382 = vadd.f32 %v3098, %v3262
      %v3383 = vadd.f32 %v3101, %v3265
      %v3384 = vadd.f32 %v3106, %v3270
      %v3385 = vadd.f32 %v3109, %v3273
      %v3386 = vadd.f32 %v3114, %v3278
      %v3387 = vadd.f32 %v3117, %v3281
      %v3388 = vadd.f32 %v3122, %v3286
      %v3389 = vadd.f32 %v3125, %v3289
      %v3390 = vadd.f32 %v3130, %v3294
      %v3391 = vadd.f32 %v3133, %v3297
      %v3392 = vadd.f32 %v3138, %v3302
      %v3393 = vadd.f32 %v3141, %v3305
      %v3394 = vadd.f32 %v3146, %v3310
      %v3395 = vadd.f32 %v3149, %v3313
      %v3396 = vadd.f32 %v3154, %v3318
      %v3397 = vadd.f32 %v3157, %v3321
      %v3398 = vadd.f32 %v3162, %v3326
      %v3399 = vadd.f32 %v3165, %v3329
      %v3400 = vadd.f32 %v3170, %v3334
      %v3401 = vadd.f32 %v3173, %v3337
      %v3402 = vadd.f32 %v3178, %v3342
      %v3403 = vadd.f32 %v3181, %v3345
      %v3404 = vadd.f32 %v3186, %v3350
      %v3405 = vadd.f32 %v3189, %v3353
      %v3406 = vadd.f32 %v3194, %v3358
      %v3407 = vadd.f32 %v3197, %v3361
      %v3408 = vadd.f32 %v3202, %v3366
      %v3409 = vadd.f32 %v3205, %v3369
      %v3410 = vadd.f32 %v3210, %v3374
      %v3411 = vadd.f32 %v3213, %v3377
      %3412 = vst.msk [vmem:[%s327] sm:$0xff] %vm2456, %v3380
      %3413 = vst.msk [vmem:[%s327 + $0x8] sm:$0xff] %vm2456, %v3381
      %3414 = vst.msk [vmem:[%s327 + $0x10] sm:$0xff] %vm2456, %v3382
      %3415 = vst.msk [vmem:[%s327 + $0x18] sm:$0xff] %vm2456, %v3383
      %3416 = vst.msk [vmem:[%s327 + $0x20] sm:$0xff] %vm2456, %v3384
      %3417 = vst.msk [vmem:[%s327 + $0x28] sm:$0xff] %vm2456, %v3385
      %3418 = vst.msk [vmem:[%s327 + $0x30] sm:$0xff] %vm2456, %v3386
      %3419 = vst.msk [vmem:[%s327 + $0x38] sm:$0xff] %vm2456, %v3387
      %3420 = vst.msk [vmem:[%s327 + $0x40] sm:$0xff] %vm2456, %v3388
      %3421 = vst.msk [vmem:[%s327 + $0x48] sm:$0xff] %vm2456, %v3389
      %3422 = vst.msk [vmem:[%s327 + $0x50] sm:$0xff] %vm2456, %v3390
      %3423 = vst.msk [vmem:[%s327 + $0x58] sm:$0xff] %vm2456, %v3391
      %3424 = vst.msk [vmem:[%s327 + $0x60] sm:$0xff] %vm2456, %v3392
      %3425 = vst.msk [vmem:[%s327 + $0x68] sm:$0xff] %vm2456, %v3393
      %3426 = vst.msk [vmem:[%s327 + $0x70] sm:$0xff] %vm2456, %v3394
      %3427 = vst.msk [vmem:[%s327 + $0x78] sm:$0xff] %vm2456, %v3395
      %3428 = vst.msk [vmem:[%s327 + $0x80] sm:$0xff] %vm2456, %v3396
      %3429 = vst.msk [vmem:[%s327 + $0x88] sm:$0xff] %vm2456, %v3397
      %3430 = vst.msk [vmem:[%s327 + $0x90] sm:$0xff] %vm2456, %v3398
      %3431 = vst.msk [vmem:[%s327 + $0x98] sm:$0xff] %vm2456, %v3399
      %3432 = vst.msk [vmem:[%s327 + $0xa0] sm:$0xff] %vm2456, %v3400
      %3433 = vst.msk [vmem:[%s327 + $0xa8] sm:$0xff] %vm2456, %v3401
      %3434 = vst.msk [vmem:[%s327 + $0xb0] sm:$0xff] %vm2456, %v3402
      %3435 = vst.msk [vmem:[%s327 + $0xb8] sm:$0xff] %vm2456, %v3403
      %3436 = vst.msk [vmem:[%s327 + $0xc0] sm:$0xff] %vm2456, %v3404
      %3437 = vst.msk [vmem:[%s327 + $0xc8] sm:$0xff] %vm2456, %v3405
      %3438 = vst.msk [vmem:[%s327 + $0xd0] sm:$0xff] %vm2456, %v3406
      %3439 = vst.msk [vmem:[%s327 + $0xd8] sm:$0xff] %vm2456, %v3407
      %3440 = vst.msk [vmem:[%s327 + $0xe0] sm:$0xff] %vm2456, %v3408
      %3441 = vst.msk [vmem:[%s327 + $0xe8] sm:$0xff] %vm2456, %v3409
      %3442 = vst.msk [vmem:[%s327 + $0xf0] sm:$0xff] %vm2456, %v3410
      %3443 = vst.msk [vmem:[%s327 + $0xf8] sm:$0xff] %vm2456, %v3411
      %v3444 = vsel %vm2456, %v3380, 0.0
      %v3445 = vsel %vm2456, %v3381, 0.0
      %v3446 = vadd.f32 %v3444, %v3445
      %v3447 = vsel %vm2456, %v3382, 0.0
      %v3448 = vadd.f32 %v3446, %v3447
      %v3449 = vsel %vm2456, %v3383, 0.0
      %v3450 = vadd.f32 %v3448, %v3449
      %v3451 = vsel %vm2456, %v3384, 0.0
      %v3452 = vadd.f32 %v3450, %v3451
      %v3453 = vsel %vm2456, %v3385, 0.0
      %v3454 = vadd.f32 %v3452, %v3453
      %v3455 = vsel %vm2456, %v3386, 0.0
      %v3456 = vadd.f32 %v3454, %v3455
      %v3457 = vsel %vm2456, %v3387, 0.0
      %v3458 = vadd.f32 %v3456, %v3457
      %v3459 = vsel %vm2456, %v3388, 0.0
      %v3460 = vadd.f32 %v3458, %v3459
      %v3461 = vsel %vm2456, %v3389, 0.0
      %v3462 = vadd.f32 %v3460, %v3461
      %v3463 = vsel %vm2456, %v3390, 0.0
      %v3464 = vadd.f32 %v3462, %v3463
      %v3465 = vsel %vm2456, %v3391, 0.0
      %v3466 = vadd.f32 %v3464, %v3465
      %v3467 = vsel %vm2456, %v3392, 0.0
      %v3468 = vadd.f32 %v3466, %v3467
      %v3469 = vsel %vm2456, %v3393, 0.0
      %v3470 = vadd.f32 %v3468, %v3469
      %v3471 = vsel %vm2456, %v3394, 0.0
      %v3472 = vadd.f32 %v3470, %v3471
      %v3473 = vsel %vm2456, %v3395, 0.0
      %v3474 = vadd.f32 %v3472, %v3473
      %v3475 = vsel %vm2456, %v3396, 0.0
      %v3476 = vadd.f32 %v3474, %v3475
      %v3477 = vsel %vm2456, %v3397, 0.0
      %v3478 = vadd.f32 %v3476, %v3477
      %v3479 = vsel %vm2456, %v3398, 0.0
      %v3480 = vadd.f32 %v3478, %v3479
      %v3481 = vsel %vm2456, %v3399, 0.0
      %v3482 = vadd.f32 %v3480, %v3481
      %v3483 = vsel %vm2456, %v3400, 0.0
      %v3484 = vadd.f32 %v3482, %v3483
      %v3485 = vsel %vm2456, %v3401, 0.0
      %v3486 = vadd.f32 %v3484, %v3485
      %v3487 = vsel %vm2456, %v3402, 0.0
      %v3488 = vadd.f32 %v3486, %v3487
      %v3489 = vsel %vm2456, %v3403, 0.0
      %v3490 = vadd.f32 %v3488, %v3489
      %v3491 = vsel %vm2456, %v3404, 0.0
      %v3492 = vadd.f32 %v3490, %v3491
      %v3493 = vsel %vm2456, %v3405, 0.0
      %v3494 = vadd.f32 %v3492, %v3493
      %v3495 = vsel %vm2456, %v3406, 0.0
      %v3496 = vadd.f32 %v3494, %v3495
      %v3497 = vsel %vm2456, %v3407, 0.0
      %v3498 = vadd.f32 %v3496, %v3497
      %v3499 = vsel %vm2456, %v3408, 0.0
      %v3500 = vadd.f32 %v3498, %v3499
      %v3501 = vsel %vm2456, %v3409, 0.0
      %v3502 = vadd.f32 %v3500, %v3501
      %v3503 = vsel %vm2456, %v3410, 0.0
      %v3504 = vadd.f32 %v3502, %v3503
      %v3505 = vsel %vm2456, %v3411, 0.0
      %v3506 = vadd.f32 %v3504, %v3505
      %v3507 = vrot.slane %v3506, 4
      %v3508 = vadd.f32 %v3506, %v3507
      %v3509 = vrot.slane %v3508, 2
      %v3510 = vadd.f32 %v3508, %v3509
      %v3511 = vrot.slane %v3510, 1
      %v3512 = vadd.f32 %v3510, %v3511
      %3513 = vst.msk [vmem:[%s331] sm:$0x1] %vm2558, %v3512
      %v3514 = vmul.f32 %v3380, %v3380
      %v3515 = vmul.f32 %v3381, %v3381
      %v3516 = vmul.f32 %v3382, %v3382
      %v3517 = vmul.f32 %v3383, %v3383
      %v3518 = vmul.f32 %v3384, %v3384
      %v3519 = vmul.f32 %v3385, %v3385
      %v3520 = vmul.f32 %v3386, %v3386
      %v3521 = vmul.f32 %v3387, %v3387
      %v3522 = vmul.f32 %v3388, %v3388
      %v3523 = vmul.f32 %v3389, %v3389
      %v3524 = vmul.f32 %v3390, %v3390
      %v3525 = vmul.f32 %v3391, %v3391
      %v3526 = vmul.f32 %v3392, %v3392
      %v3527 = vmul.f32 %v3393, %v3393
      %v3528 = vmul.f32 %v3394, %v3394
      %v3529 = vmul.f32 %v3395, %v3395
      %v3530 = vmul.f32 %v3396, %v3396
      %v3531 = vmul.f32 %v3397, %v3397
      %v3532 = vmul.f32 %v3398, %v3398
      %v3533 = vmul.f32 %v3399, %v3399
      %v3534 = vmul.f32 %v3400, %v3400
      %v3535 = vmul.f32 %v3401, %v3401
      %v3536 = vmul.f32 %v3402, %v3402
      %v3537 = vmul.f32 %v3403, %v3403
      %v3538 = vmul.f32 %v3404, %v3404
      %v3539 = vmul.f32 %v3405, %v3405
      %v3540 = vmul.f32 %v3406, %v3406
      %v3541 = vmul.f32 %v3407, %v3407
      %v3542 = vmul.f32 %v3408, %v3408
      %v3543 = vmul.f32 %v3409, %v3409
      %v3544 = vmul.f32 %v3410, %v3410
      %v3545 = vmul.f32 %v3411, %v3411
      %v3546 = vsel %vm2456, %v3514, 0.0
      %v3547 = vsel %vm2456, %v3515, 0.0
      %v3548 = vadd.f32 %v3546, %v3547
      %v3549 = vsel %vm2456, %v3516, 0.0
      %v3550 = vadd.f32 %v3548, %v3549
      %v3551 = vsel %vm2456, %v3517, 0.0
      %v3552 = vadd.f32 %v3550, %v3551
      %v3553 = vsel %vm2456, %v3518, 0.0
      %v3554 = vadd.f32 %v3552, %v3553
      %v3555 = vsel %vm2456, %v3519, 0.0
      %v3556 = vadd.f32 %v3554, %v3555
      %v3557 = vsel %vm2456, %v3520, 0.0
      %v3558 = vadd.f32 %v3556, %v3557
      %v3559 = vsel %vm2456, %v3521, 0.0
      %v3560 = vadd.f32 %v3558, %v3559
      %v3561 = vsel %vm2456, %v3522, 0.0
      %v3562 = vadd.f32 %v3560, %v3561
      %v3563 = vsel %vm2456, %v3523, 0.0
      %v3564 = vadd.f32 %v3562, %v3563
      %v3565 = vsel %vm2456, %v3524, 0.0
      %v3566 = vadd.f32 %v3564, %v3565
      %v3567 = vsel %vm2456, %v3525, 0.0
      %v3568 = vadd.f32 %v3566, %v3567
      %v3569 = vsel %vm2456, %v3526, 0.0
      %v3570 = vadd.f32 %v3568, %v3569
      %v3571 = vsel %vm2456, %v3527, 0.0
      %v3572 = vadd.f32 %v3570, %v3571
      %v3573 = vsel %vm2456, %v3528, 0.0
      %v3574 = vadd.f32 %v3572, %v3573
      %v3575 = vsel %vm2456, %v3529, 0.0
      %v3576 = vadd.f32 %v3574, %v3575
      %v3577 = vsel %vm2456, %v3530, 0.0
      %v3578 = vadd.f32 %v3576, %v3577
      %v3579 = vsel %vm2456, %v3531, 0.0
      %v3580 = vadd.f32 %v3578, %v3579
      %v3581 = vsel %vm2456, %v3532, 0.0
      %v3582 = vadd.f32 %v3580, %v3581
      %v3583 = vsel %vm2456, %v3533, 0.0
      %v3584 = vadd.f32 %v3582, %v3583
      %v3585 = vsel %vm2456, %v3534, 0.0
      %v3586 = vadd.f32 %v3584, %v3585
      %v3587 = vsel %vm2456, %v3535, 0.0
      %v3588 = vadd.f32 %v3586, %v3587
      %v3589 = vsel %vm2456, %v3536, 0.0
      %v3590 = vadd.f32 %v3588, %v3589
      %v3591 = vsel %vm2456, %v3537, 0.0
      %v3592 = vadd.f32 %v3590, %v3591
      %v3593 = vsel %vm2456, %v3538, 0.0
      %v3594 = vadd.f32 %v3592, %v3593
      %v3595 = vsel %vm2456, %v3539, 0.0
      %v3596 = vadd.f32 %v3594, %v3595
      %v3597 = vsel %vm2456, %v3540, 0.0
      %v3598 = vadd.f32 %v3596, %v3597
      %v3599 = vsel %vm2456, %v3541, 0.0
      %v3600 = vadd.f32 %v3598, %v3599
      %v3601 = vsel %vm2456, %v3542, 0.0
      %v3602 = vadd.f32 %v3600, %v3601
      %v3603 = vsel %vm2456, %v3543, 0.0
      %v3604 = vadd.f32 %v3602, %v3603
      %v3605 = vsel %vm2456, %v3544, 0.0
      %v3606 = vadd.f32 %v3604, %v3605
      %v3607 = vsel %vm2456, %v3545, 0.0
      %v3608 = vadd.f32 %v3606, %v3607
      %v3609 = vrot.slane %v3608, 4
      %v3610 = vadd.f32 %v3608, %v3609
      %v3611 = vrot.slane %v3610, 2
      %v3612 = vadd.f32 %v3610, %v3611
      %v3613 = vrot.slane %v3612, 1
      %v3614 = vadd.f32 %v3612, %v3613
      %3615 = vst.msk [vmem:[%s331 + $0x1] sm:$0x1] %vm2558, %v3614
      %p3616 = scmp.lt.s32.totalorder %s19, 1
      %s3617 = scalar_select %p3616, %s19, 1
      %s3618 = smul.addr %s3617, 32
      %s3619 = smul.addr %s3618, 8
      %s3620 = scalar_lea.vmem %s4, %s3619
      %p3621 = scmp.lt.s32.totalorder %s19, 1
      %s3622 = scalar_select %p3621, %s19, 1
      %s3623 = smul.addr %s3622, 2
      %s3624 = scalar_lea.vmem %s5, %s3623
      %p3625 = scmp.lt.s32.totalorder %s19, 1
      %s3626 = scalar_select %p3625, %s19, 1
      %s3627 = smul.addr %s3626, 32
      %s3628 = smul.addr %s3627, 8
      %s3629 = scalar_lea.vmem %s6, %s3628
      %p3630 = scmp.lt.s32.totalorder %s19, 1
      %s3631 = scalar_select %p3630, %s19, 1
      %s3632 = smul.addr %s3631, 2
      %s3633 = scalar_lea.vmem %s7, %s3632
      // Predicated region
      $region37: #{resblock_forward.3} parent=35 // pred_check
        %p3634 = pneg %p131
      $region38: #{resblock_forward.3} parent=35 // pred_check_branch
        %3636 = sbr.rel (%p3634) target = $region40
      $region39: #{resblock_forward.3} parent=35 // pred_region
        _
      $region40: #{resblock_forward.3} parent=35 // pred_fallthru
        _
      // Predicated region
      $region41: #{resblock_forward.3} parent=35 // pred_check
        %p3637 = pneg %p157
      $region42: #{resblock_forward.3} parent=35 // pred_check_branch
        %3639 = sbr.rel (%p3637) target = $region44
      $region43: #{resblock_forward.3} parent=35 // pred_region
        _
      $region44: #{resblock_forward.3} parent=35 // pred_fallthru
        _
      // Predicated region
      $region45: #{resblock_forward.3} parent=35 // pred_check
        %p3640 = pneg %p183
      $region46: #{resblock_forward.3} parent=35 // pred_check_branch
        %3642 = sbr.rel (%p3640) target = $region48
      $region47: #{resblock_forward.3} parent=35 // pred_region
        _
      $region48: #{resblock_forward.3} parent=35 // pred_fallthru
        _
      // Predicated region
      $region49: #{resblock_forward.3} parent=35 // pred_check
        %p3643 = pneg %p209
      $region50: #{resblock_forward.3} parent=35 // pred_check_branch
        %3645 = sbr.rel (%p3643) target = $region52
      $region51: #{resblock_forward.3} parent=35 // pred_region
        _
      $region52: #{resblock_forward.3} parent=35 // pred_fallthru
        _
    $region36: #{resblock_forward.3} parent=5 // pred_fallthru
      _
    %p3646 = scmp.le.s32.totalorder 2, %s14
    // Predicated region
    $region53: #{resblock_forward.3} parent=5 // pred_check
      %p3647 = pneg %p3646
    $region54: #{resblock_forward.3} parent=5 // pred_check_branch
      %3649 = sbr.rel (%p3647) target = $region56
    $region55: #{resblock_forward.3} parent=5 // pred_region
      %s3650 = ssub.s32 %s14, 2
      // Predicated region
      $region57: #{resblock_forward.3} parent=55 // pred_check
        %p3651 = pneg %p137
      $region58: #{resblock_forward.3} parent=55 // pred_check_branch
        %3653 = sbr.rel (%p3651) target = $region60
      $region59: #{resblock_forward.3} parent=55 // pred_region
        %p3654 = scmp.lt.s32.totalorder %s20, 1
        %s3655 = scalar_select %p3654, %s20, 1
        %s3656 = smul.addr %s3655, 32
        %s3657 = smul.addr %s3656, 8
        %s3658 = scalar_lea.vmem %s4, %s3657
      $region60: #{resblock_forward.3} parent=55 // pred_fallthru
        _
      // Predicated region
      $region61: #{resblock_forward.3} parent=55 // pred_check
        %p3659 = pneg %p163
      $region62: #{resblock_forward.3} parent=55 // pred_check_branch
        %3661 = sbr.rel (%p3659) target = $region64
      $region63: #{resblock_forward.3} parent=55 // pred_region
        %p3662 = scmp.lt.s32.totalorder %s20, 1
        %s3663 = scalar_select %p3662, %s20, 1
        %s3664 = smul.addr %s3663, 2
        %s3665 = scalar_lea.vmem %s5, %s3664
      $region64: #{resblock_forward.3} parent=55 // pred_fallthru
        _
      // Predicated region
      $region65: #{resblock_forward.3} parent=55 // pred_check
        %p3666 = pneg %p189
      $region66: #{resblock_forward.3} parent=55 // pred_check_branch
        %3668 = sbr.rel (%p3666) target = $region68
      $region67: #{resblock_forward.3} parent=55 // pred_region
        %p3669 = scmp.lt.s32.totalorder %s20, 1
        %s3670 = scalar_select %p3669, %s20, 1
        %s3671 = smul.addr %s3670, 32
        %s3672 = smul.addr %s3671, 8
        %s3673 = scalar_lea.vmem %s6, %s3672
      $region68: #{resblock_forward.3} parent=55 // pred_fallthru
        _
      // Predicated region
      $region69: #{resblock_forward.3} parent=55 // pred_check
        %p3674 = pneg %p215
      $region70: #{resblock_forward.3} parent=55 // pred_check_branch
        %3676 = sbr.rel (%p3674) target = $region72
      $region71: #{resblock_forward.3} parent=55 // pred_region
        %p3677 = scmp.lt.s32.totalorder %s20, 1
        %s3678 = scalar_select %p3677, %s20, 1
        %s3679 = smul.addr %s3678, 2
        %s3680 = scalar_lea.vmem %s7, %s3679
      $region72: #{resblock_forward.3} parent=55 // pred_fallthru
        _
    $region56: #{resblock_forward.3} parent=5 // pred_fallthru
      _
  $region6: #{resblock_forward.3} parent=0 // loop_footer
    %s18 = sadd.s32 1, %s14
  $region7: #{resblock_forward.3} parent=0 // loop_footer_branch
    %13 = sbr.rel target = $region3
  $region8: #{resblock_forward.3} parent=0 // loop_exit
    _

// kernel: resblock_forward.4
$region0: #{resblock_forward.4}
  #allocation0 [shape = 'u32[]', space=smem, size = 0x4, offset = 0x4, fixed_abs, tag = 'smem constant byte address 0x4 - core index']
  #allocation1 [shape = 'u32[144,128]{1,0:T(1,128)}', space=vmem, size = 0x12000, scoped, tag = 'internal scratch']
  #allocation2 [shape = 'f32[1,18,18,8]{3,2,1,0:T(8,128)}', space=vmem, size = 0x36000, scoped, tag = 'scratch operand']
  #allocation3 [shape = 'f32[256,72]{1,0:T(8,128)}', space=vmem, size = 0x20000, scoped, tag = 'scratch operand']
  %s0 = inlined_call_operand.vmem [shape: f32[2,16,16,8], index: 0, kind: input, shape index: {}]
  %s1 = inlined_call_operand.vmem [shape: f32[1,8], index: 1, kind: input, shape index: {}]
  %s2 = inlined_call_operand.vmem [shape: f32[1,8], index: 2, kind: input, shape index: {}]
  %s3 = inlined_call_operand.vmem [shape: f32[72,8], index: 3, kind: input, shape index: {}]
  %s4 = inlined_call_operand.vmem [shape: f32[2,16,16,8], index: 4, kind: output, shape index: {0}]
  %s5 = inlined_call_operand.vmem [shape: f32[2,2,8], index: 5, kind: output, shape index: {1}]
  %6 = xla_tuple %s4, %s5
  %s7 = sld [smem:[#allocation0]]
  $region57: #{resblock_forward.4} parent=0
    _
  %s9 = ssub.s32 1, %s7
  %s10 = scalar_select 0, %s9, %s7
  loop: start=0, step=1, limit=4
  $region2: #{resblock_forward.4} parent=0 // loop_pre_header
    _
  $region3: #{resblock_forward.4} parent=0 // loop_header
    %s12 = sphi 0, %s16
    %p13 = scmp.ge.s32.totalorder %s12, 4
    %s22 = sphi 0, %s24
    %s25 = sphi 0, %s22
    %s26 = sphi 0, %s25
    %s42 = sphi 0, %s26
    %s46 = sphi 0, %s46
    %s48 = sphi 0, %s46
    %s49 = sphi 0, %s48
    %s63 = sphi 0, %s49
    %s67 = sphi 0, %s67
    %s69 = sphi 0, %s67
    %s70 = sphi 0, %s69
    %s84 = sphi 0, %s70
    %s88 = sphi 0, %s88
    %s90 = sphi 0, %s88
    %s91 = sphi 0, %s90
    %s105 = sphi 0, %s91
    %s111 = sphi 0, %s113
    %s114 = sphi 0, %s111
    %s115 = sphi 0, %s114
    %s131 = sphi 0, %s115
    %s137 = sphi 0, %s139
    %s140 = sphi 0, %s137
    %s141 = sphi 0, %s140
    %s157 = sphi 0, %s141
  $region4: #{resblock_forward.4} parent=0 // loop_header_branch
    %15 = sbr.rel (%p13) target = $region8
  $region5: #{resblock_forward.4} parent=0 // loop_body
    %s17 = ssub.s32 %s12, 1
    %s18 = ssub.s32 %s12, 2
    %s19 = sadd.s32 %s12, 1
    %s20 = ssub.s32 %s12, %s19
    %p21 = scmp.eq.s32.totalorder %s20, 0
    %s23 = sadd.s32 %s22, 1
    %s24 = scalar_select %p21, %s22, %s23
    %p27 = pneg %p21
    %p28 = scmp.eq.s32.totalorder %s12, 1
    %p29 = por %p27, %p28
    %p30 = scmp.ne.s32.totalorder %s22, %s25
    %p31 = scmp.eq.s32.totalorder %s12, 0
    %p32 = por %p30, %p31
    %p33 = scmp.ne.s32.totalorder %s22, %s25
    %p34 = scmp.eq.s32.totalorder %s17, 1
    %p35 = por %p33, %p34
    %p36 = scmp.ne.s32.totalorder %s25, %s26
    %p37 = scmp.eq.s32.totalorder %s17, 0
    %p38 = por %p36, %p37
    %p39 = scmp.ne.s32.totalorder %s25, %s26
    %p40 = scmp.eq.s32.totalorder %s18, 1
    %p41 = por %p39, %p40
    %p43 = scmp.ne.s32.totalorder %s26, %s42
    %p44 = scmp.eq.s32.totalorder %s18, 0
    %p45 = por %p43, %p44
    %s47 = sadd.s32 %s46, 1
    %p50 = scmp.eq.s32.totalorder %s12, 1
    %p51 = scmp.ne.s32.totalorder %s46, %s48
    %p52 = scmp.eq.s32.totalorder %s12, 0
    %p53 = por %p51, %p52
    %p54 = scmp.ne.s32.totalorder %s46, %s48
    %p55 = scmp.eq.s32.totalorder %s17, 1
    %p56 = por %p54, %p55
    %p57 = scmp.ne.s32.totalorder %s48, %s49
    %p58 = scmp.eq.s32.totalorder %s17, 0
    %p59 = por %p57, %p58
    %p60 = scmp.ne.s32.totalorder %s48, %s49
    %p61 = scmp.eq.s32.totalorder %s18, 1
    %p62 = por %p60, %p61
    %p64 = scmp.ne.s32.totalorder %s49, %s63
    %p65 = scmp.eq.s32.totalorder %s18, 0
    %p66 = por %p64, %p65
    %s68 = sadd.s32 %s67, 1
    %p71 = scmp.eq.s32.totalorder %s12, 1
    %p72 = scmp.ne.s32.totalorder %s67, %s69
    %p73 = scmp.eq.s32.totalorder %s12, 0
    %p74 = por %p72, %p73
    %p75 = scmp.ne.s32.totalorder %s67, %s69
    %p76 = scmp.eq.s32.totalorder %s17, 1
    %p77 = por %p75, %p76
    %p78 = scmp.ne.s32.totalorder %s69, %s70
    %p79 = scmp.eq.s32.totalorder %s17, 0
    %p80 = por %p78, %p79
    %p81 = scmp.ne.s32.totalorder %s69, %s70
    %p82 = scmp.eq.s32.totalorder %s18, 1
    %p83 = por %p81, %p82
    %p85 = scmp.ne.s32.totalorder %s70, %s84
    %p86 = scmp.eq.s32.totalorder %s18, 0
    %p87 = por %p85, %p86
    %s89 = sadd.s32 %s88, 1
    %p92 = scmp.eq.s32.totalorder %s12, 1
    %p93 = scmp.ne.s32.totalorder %s88, %s90
    %p94 = scmp.eq.s32.totalorder %s12, 0
    %p95 = por %p93, %p94
    %p96 = scmp.ne.s32.totalorder %s88, %s90
    %p97 = scmp.eq.s32.totalorder %s17, 1
    %p98 = por %p96, %p97
    %p99 = scmp.ne.s32.totalorder %s90, %s91
    %p100 = scmp.eq.s32.totalorder %s17, 0
    %p101 = por %p99, %p100
    %p102 = scmp.ne.s32.totalorder %s90, %s91
    %p103 = scmp.eq.s32.totalorder %s18, 1
    %p104 = por %p102, %p103
    %p106 = scmp.ne.s32.totalorder %s91, %s105
    %p107 = scmp.eq.s32.totalorder %s18, 0
    %p108 = por %p106, %p107
    %s109 = ssub.s32 %s12, %s19
    %p110 = scmp.eq.s32.totalorder %s109, 0
    %s112 = sadd.s32 %s111, 1
    %s113 = scalar_select %p110, %s111, %s112
    %p116 = pneg %p110
    %p117 = scmp.eq.s32.totalorder %s12, 1
    %p118 = por %p116, %p117
    %p119 = scmp.ne.s32.totalorder %s111, %s114
    %p120 = scmp.eq.s32.totalorder %s12, 0
    %p121 = por %p119, %p120
    %p122 = scmp.ne.s32.totalorder %s111, %s114
    %p123 = scmp.eq.s32.totalorder %s17, 1
    %p124 = por %p122, %p123
    %p125 = scmp.ne.s32.totalorder %s114, %s115
    %p126 = scmp.eq.s32.totalorder %s17, 0
    %p127 = por %p125, %p126
    %p128 = scmp.ne.s32.totalorder %s114, %s115
    %p129 = scmp.eq.s32.totalorder %s18, 1
    %p130 = por %p128, %p129
    %p132 = scmp.ne.s32.totalorder %s115, %s131
    %p133 = scmp.eq.s32.totalorder %s18, 0
    %p134 = por %p132, %p133
    %s135 = ssub.s32 %s12, %s19
    %p136 = scmp.eq.s32.totalorder %s135, 0
    %s138 = sadd.s32 %s137, 1
    %s139 = scalar_select %p136, %s137, %s138
    %p142 = pneg %p136
    %p143 = scmp.eq.s32.totalorder %s12, 1
    %p144 = por %p142, %p143
    %p145 = scmp.ne.s32.totalorder %s137, %s140
    %p146 = scmp.eq.s32.totalorder %s12, 0
    %p147 = por %p145, %p146
    %p148 = scmp.ne.s32.totalorder %s137, %s140
    %p149 = scmp.eq.s32.totalorder %s17, 1
    %p150 = por %p148, %p149
    %p151 = scmp.ne.s32.totalorder %s140, %s141
    %p152 = scmp.eq.s32.totalorder %s17, 0
    %p153 = por %p151, %p152
    %p154 = scmp.ne.s32.totalorder %s140, %s141
    %p155 = scmp.eq.s32.totalorder %s18, 1
    %p156 = por %p154, %p155
    %p158 = scmp.ne.s32.totalorder %s141, %s157
    %p159 = scmp.eq.s32.totalorder %s18, 0
    %p160 = por %p158, %p159
    %p161 = scmp.le.s32.totalorder 1, %s12
    %p162 = scmp.lt.s32.totalorder %s12, 3
    %p163 = pnand %p161, %p162
    %p164 = pneg %p163
    // Predicated region
    $region9: #{resblock_forward.4} parent=5 // pred_check
      _
    $region10: #{resblock_forward.4} parent=5 // pred_check_branch
      %166 = sbr.rel (%p163) target = $region12
    $region11: #{resblock_forward.4} parent=5 // pred_region
      %s167 = ssub.s32 %s12, 1
      // Predicated region
      $region13: #{resblock_forward.4} parent=11 // pred_check
        %p168 = pneg %p59
      $region14: #{resblock_forward.4} parent=11 // pred_check_branch
        %170 = sbr.rel (%p168) target = $region16
      $region15: #{resblock_forward.4} parent=11 // pred_region
        _
      $region16: #{resblock_forward.4} parent=11 // pred_fallthru
        _
      // Predicated region
      $region17: #{resblock_forward.4} parent=11 // pred_check
        %p171 = pneg %p80
      $region18: #{resblock_forward.4} parent=11 // pred_check_branch
        %173 = sbr.rel (%p171) target = $region20
      $region19: #{resblock_forward.4} parent=11 // pred_region
        _
      $region20: #{resblock_forward.4} parent=11 // pred_fallthru
        _
      // Predicated region
      $region21: #{resblock_forward.4} parent=11 // pred_check
        %p174 = pneg %p101
      $region22: #{resblock_forward.4} parent=11 // pred_check_branch
        %176 = sbr.rel (%p174) target = $region24
      $region23: #{resblock_forward.4} parent=11 // pred_region
        _
      $region24: #{resblock_forward.4} parent=11 // pred_fallthru
        _
    $region12: #{resblock_forward.4} parent=5 // pred_fallthru
      _
    %p177 = scmp.lt.s32.totalorder %s12, 2
    // Predicated region
    $region25: #{resblock_forward.4} parent=5 // pred_check
      %p178 = pneg %p177
    $region26: #{resblock_forward.4} parent=5 // pred_check_branch
      %180 = sbr.rel (%p178) target = $region28
    $region27: #{resblock_forward.4} parent=5 // pred_region
      // Predicated region
      $region29: #{resblock_forward.4} parent=27 // pred_check
        %p181 = pneg %p32
      $region30: #{resblock_forward.4} parent=27 // pred_check_branch
        %183 = sbr.rel (%p181) target = $region32
      $region31: #{resblock_forward.4} parent=27 // pred_region
        %p184 = scmp.lt.s32.totalorder %s12, 1
        %s185 = scalar_select %p184, %s12, 1
        %s186 = smul.addr %s185, 32
        %s187 = smul.addr %s186, 8
        %s188 = scalar_lea.vmem %s0, %s187
      $region32: #{resblock_forward.4} parent=27 // pred_fallthru
        _
    $region28: #{resblock_forward.4} parent=5 // pred_fallthru
      _
    %p189 = scmp.le.s32.totalorder 1, %s12
    %p190 = scmp.lt.s32.totalorder %s12, 3
    %p191 = pnand %p189, %p190
    %p192 = pneg %p191
    // Predicated region
    $region33: #{resblock_forward.4} parent=5 // pred_check
      _
    $region34: #{resblock_forward.4} parent=5 // pred_check_branch
      %194 = sbr.rel (%p191) target = $region36
    $region35: #{resblock_forward.4} parent=5 // pred_region
      %s195 = ssub.s32 %s12, 1
      %p196 = scmp.lt.s32.totalorder %s17, 1
      %s197 = scalar_select %p196, %s17, 1
      %s198 = smul.addr %s197, 32
      %s199 = smul.addr %s198, 8
      %s200 = scalar_lea.vmem %s0, %s199
      %p201 = pneg %p38
      %p202 = pneg %p35
      %p203 = pneg %p59
      %p204 = pneg %p56
      %p205 = pneg %p80
      %p206 = pneg %p77
      %p207 = pneg %p101
      %p208 = pneg %p98
      %p209 = pneg %p127
      %p210 = pneg %p124
      %p211 = scmp.lt.s32.totalorder %s17, 1
      %s212 = scalar_select %p211, %s17, 1
      %s213 = smul.addr %s212, 32
      %s214 = smul.addr %s213, 8
      %s215 = scalar_lea.vmem %s4, %s214
      %p216 = pneg %p153
      %p217 = pneg %p150
      %p218 = scmp.lt.s32.totalorder %s17, 1
      %s219 = scalar_select %p218, %s17, 1
      %s220 = smul.addr %s219, 2
      %s221 = scalar_lea.vmem %s5, %s220
      %p222 = scmp.lt.s32.totalorder %s17, 1
      %s223 = scalar_select %p222, %s17, 1
      %s224 = smul.addr %s223, 32
      %s225 = smul.addr %s224, 8
      %s226 = scalar_lea.vmem %s0, %s225
      %p227 = scmp.lt.s32.totalorder %s17, 1
      %s228 = scalar_select %p227, %s17, 1
      %s229 = smul.addr %s228, 32
      %s230 = smul.addr %s229, 8
      %s231 = scalar_lea.vmem %s4, %s230
      %p232 = scmp.lt.s32.totalorder %s17, 1
      %s233 = scalar_select %p232, %s17, 1
      %s234 = smul.addr %s233, 2
      %s235 = scalar_lea.vmem %s5, %s234
      %v237 = vld [vmem:[%s1] sm:$0x1]
      %v238 = vld [vmem:[%s2] sm:$0x1]
      %v239 = vld [vmem:[%s226] sm:$0xff]
      %v240 = vld [vmem:[%s226 + $0x8] sm:$0xff]
      %v241 = vld [vmem:[%s226 + $0x10] sm:$0xff]
      %v242 = vld [vmem:[%s226 + $0x18] sm:$0xff]
      %v243 = vld [vmem:[%s226 + $0x20] sm:$0xff]
      %v244 = vld [vmem:[%s226 + $0x28] sm:$0xff]
      %v245 = vld [vmem:[%s226 + $0x30] sm:$0xff]
      %v246 = vld [vmem:[%s226 + $0x38] sm:$0xff]
      %v247 = vld [vmem:[%s226 + $0x40] sm:$0xff]
      %v248 = vld [vmem:[%s226 + $0x48] sm:$0xff]
      %v249 = vld [vmem:[%s226 + $0x50] sm:$0xff]
      %v250 = vld [vmem:[%s226 + $0x58] sm:$0xff]
      %v251 = vld [vmem:[%s226 + $0x60] sm:$0xff]
      %v252 = vld [vmem:[%s226 + $0x68] sm:$0xff]
      %v253 = vld [vmem:[%s226 + $0x70] sm:$0xff]
      %v254 = vld [vmem:[%s226 + $0x78] sm:$0xff]
      %v255 = vld [vmem:[%s226 + $0x80] sm:$0xff]
      %v256 = vld [vmem:[%s226 + $0x88] sm:$0xff]
      %v257 = vld [vmem:[%s226 + $0x90] sm:$0xff]
      %v258 = vld [vmem:[%s226 + $0x98] sm:$0xff]
      %v259 = vld [vmem:[%s226 + $0xa0] sm:$0xff]
      %v260 = vld [vmem:[%s226 + $0xa8] sm:$0xff]
      %v261 = vld [vmem:[%s226 + $0xb0] sm:$0xff]
      %v262 = vld [vmem:[%s226 + $0xb8] sm:$0xff]
      %v263 = vld [vmem:[%s226 + $0xc0] sm:$0xff]
      %v264 = vld [vmem:[%s226 + $0xc8] sm:$0xff]
      %v265 = vld [vmem:[%s226 + $0xd0] sm:$0xff]
      %v266 = vld [vmem:[%s226 + $0xd8] sm:$0xff]
      %v267 = vld [vmem:[%s226 + $0xe0] sm:$0xff]
      %v268 = vld [vmem:[%s226 + $0xe8] sm:$0xff]
      %v269 = vld [vmem:[%s226 + $0xf0] sm:$0xff]
      %v270 = vld [vmem:[%s226 + $0xf8] sm:$0xff]
      %v272 = vlaneseq
      %v273 = vshrl.u32 %v272, 7
      %v274 = vsub.s32 0, %v273
      %v275 = vrot.slane %v237, %v274
      %v277 = vmul.f32 %v239, %v275
      %v278 = vmul.f32 %v240, %v275
      %v279 = vmul.f32 %v241, %v275
      %v280 = vmul.f32 %v242, %v275
      %v281 = vmul.f32 %v243, %v275
      %v282 = vmul.f32 %v244, %v275
      %v283 = vmul.f32 %v245, %v275
      %v284 = vmul.f32 %v246, %v275
      %v285 = vmul.f32 %v247, %v275
      %v286 = vmul.f32 %v248, %v275
      %v287 = vmul.f32 %v249, %v275
      %v288 = vmul.f32 %v250, %v275
      %v289 = vmul.f32 %v251, %v275
      %v290 = vmul.f32 %v252, %v275
      %v291 = vmul.f32 %v253, %v275
      %v292 = vmul.f32 %v254, %v275
      %v293 = vmul.f32 %v255, %v275
      %v294 = vmul.f32 %v256, %v275
      %v295 = vmul.f32 %v257, %v275
      %v296 = vmul.f32 %v258, %v275
      %v297 = vmul.f32 %v259, %v275
      %v298 = vmul.f32 %v260, %v275
      %v299 = vmul.f32 %v261, %v275
      %v300 = vmul.f32 %v262, %v275
      %v301 = vmul.f32 %v263, %v275
      %v302 = vmul.f32 %v264, %v275
      %v303 = vmul.f32 %v265, %v275
      %v304 = vmul.f32 %v266, %v275
      %v305 = vmul.f32 %v267, %v275
      %v306 = vmul.f32 %v268, %v275
      %v307 = vmul.f32 %v269, %v275
      %v308 = vmul.f32 %v270, %v275
      %v310 = vlaneseq
      %v311 = vshrl.u32 %v310, 7
      %v312 = vsub.s32 0, %v311
      %v313 = vrot.slane %v238, %v312
      %v315 = vadd.f32 %v277, %v313
      %v316 = vadd.f32 %v278, %v313
      %v317 = vadd.f32 %v279, %v313
      %v318 = vadd.f32 %v280, %v313
      %v319 = vadd.f32 %v281, %v313
      %v320 = vadd.f32 %v282, %v313
      %v321 = vadd.f32 %v283, %v313
      %v322 = vadd.f32 %v284, %v313
      %v323 = vadd.f32 %v285, %v313
      %v324 = vadd.f32 %v286, %v313
      %v325 = vadd.f32 %v287, %v313
      %v326 = vadd.f32 %v288, %v313
      %v327 = vadd.f32 %v289, %v313
      %v328 = vadd.f32 %v290, %v313
      %v329 = vadd.f32 %v291, %v313
      %v330 = vadd.f32 %v292, %v313
      %v331 = vadd.f32 %v293, %v313
      %v332 = vadd.f32 %v294, %v313
      %v333 = vadd.f32 %v295, %v313
      %v334 = vadd.f32 %v296, %v313
      %v335 = vadd.f32 %v297, %v313
      %v336 = vadd.f32 %v298, %v313
      %v337 = vadd.f32 %v299, %v313
      %v338 = vadd.f32 %v300, %v313
      %v339 = vadd.f32 %v301, %v313
      %v340 = vadd.f32 %v302, %v313
      %v341 = vadd.f32 %v303, %v313
      %v342 = vadd.f32 %v304, %v313
      %v343 = vadd.f32 %v305, %v313
      %v344 = vadd.f32 %v306, %v313
      %v345 = vadd.f32 %v307, %v313
      %v346 = vadd.f32 %v308, %v313
      %v347 = vmax.f32 %v315, 0.0
      %v348 = vmax.f32 %v316, 0.0
      %v349 = vmax.f32 %v317, 0.0
      %v350 = vmax.f32 %v318, 0.0
      %v351 = vmax.f32 %v319, 0.0
      %v352 = vmax.f32 %v320, 0.0
      %v353 = vmax.f32 %v321, 0.0
      %v354 = vmax.f32 %v322, 0.0
      %v355 = vmax.f32 %v323, 0.0
      %v356 = vmax.f32 %v324, 0.0
      %v357 = vmax.f32 %v325, 0.0
      %v358 = vmax.f32 %v326, 0.0
      %v359 = vmax.f32 %v327, 0.0
      %v360 = vmax.f32 %v328, 0.0
      %v361 = vmax.f32 %v329, 0.0
      %v362 = vmax.f32 %v330, 0.0
      %v363 = vmax.f32 %v331, 0.0
      %v364 = vmax.f32 %v332, 0.0
      %v365 = vmax.f32 %v333, 0.0
      %v366 = vmax.f32 %v334, 0.0
      %v367 = vmax.f32 %v335, 0.0
      %v368 = vmax.f32 %v336, 0.0
      %v369 = vmax.f32 %v337, 0.0
      %v370 = vmax.f32 %v338, 0.0
      %v371 = vmax.f32 %v339, 0.0
      %v372 = vmax.f32 %v340, 0.0
      %v373 = vmax.f32 %v341, 0.0
      %v374 = vmax.f32 %v342, 0.0
      %v375 = vmax.f32 %v343, 0.0
      %v376 = vmax.f32 %v344, 0.0
      %v377 = vmax.f32 %v345, 0.0
      %v378 = vmax.f32 %v346, 0.0
      %vm379 = vcmask 64512
      %380 = vst.msk [vmem:[#allocation2] sm:$0xff] %vm379, 0.0
      %381 = vst.msk [vmem:[#allocation2 + $0x8] sm:$0xff] %vm379, 0.0
      %vm382 = vcmask 58368
      %383 = vst.msk [vmem:[#allocation2 + $0x10] sm:$0x3] %vm382, 0.0
      %s384 = scalar_lea.vmem [#allocation2], 408
      %385 = vst.msk [vmem:[%s384] sm:$0xff] %vm379, 0.0
      %386 = vst.msk [vmem:[%s384 + $0x8] sm:$0xff] %vm379, 0.0
      %387 = vst.msk [vmem:[%s384 + $0x10] sm:$0x3] %vm382, 0.0
      %vm388 = vcmask 57344
      %389 = vst.msk [vmem:[#allocation2] sm:$0x1] %vm388, 0.0
      %390 = vst.msk [vmem:[#allocation2 + $0x18] sm:$0x1] %vm388, 0.0
      %391 = vst.msk [vmem:[#allocation2 + $0x30] sm:$0x1] %vm388, 0.0
      %392 = vst.msk [vmem:[#allocation2 + $0x48] sm:$0x1] %vm388, 0.0
      %393 = vst.msk [vmem:[#allocation2 + $0x60] sm:$0x1] %vm388, 0.0
      %394 = vst.msk [vmem:[#allocation2 + $0x78] sm:$0x1] %vm388, 0.0
      %395 = vst.msk [vmem:[#allocation2 + $0x90] sm:$0x1] %vm388, 0.0
      %396 = vst.msk [vmem:[#allocation2 + $0xa8] sm:$0x1] %vm388, 0.0
      %397 = vst.msk [vmem:[#allocation2 + $0xc0] sm:$0x1] %vm388, 0.0
      %398 = vst.msk [vmem:[#allocation2 + $0xd8] sm:$0x1] %vm388, 0.0
      %399 = vst.msk [vmem:[#allocation2 + $0xf0] sm:$0x1] %vm388, 0.0
      %400 = vst.msk [vmem:[#allocation2 + $0x108] sm:$0x1] %vm388, 0.0
      %401 = vst.msk [vmem:[#allocation2 + $0x120] sm:$0x1] %vm388, 0.0
      %402 = vst.msk [vmem:[#allocation2 + $0x138] sm:$0x1] %vm388, 0.0
      %403 = vst.msk [vmem:[#allocation2 + $0x150] sm:$0x1] %vm388, 0.0
      %404 = vst.msk [vmem:[#allocation2 + $0x168] sm:$0x1] %vm388, 0.0
      %405 = vst.msk [vmem:[#allocation2 + $0x180] sm:$0x1] %vm388, 0.0
      %406 = vst.msk [vmem:[#allocation2 + $0x198] sm:$0x1] %vm388, 0.0
      %407 = vst.msk [vmem:[#allocation2 + $0x11] sm:$0x1] %vm388, 0.0
      %408 = vst.msk [vmem:[#allocation2 + $0x29] sm:$0x1] %vm388, 0.0
      %409 = vst.msk [vmem:[#allocation2 + $0x41] sm:$0x1] %vm388, 0.0
      %410 = vst.msk [vmem:[#allocation2 + $0x59] sm:$0x1] %vm388, 0.0
      %411 = vst.msk [vmem:[#allocation2 + $0x71] sm:$0x1] %vm388, 0.0
      %412 = vst.msk [vmem:[#allocation2 + $0x89] sm:$0x1] %vm388, 0.0
      %413 = vst.msk [vmem:[#allocation2 + $0xa1] sm:$0x1] %vm388, 0.0
      %414 = vst.msk [vmem:[#allocation2 + $0xb9] sm:$0x1] %vm388, 0.0
      %415 = vst.msk [vmem:[#allocation2 + $0xd1] sm:$0x1] %vm388, 0.0
      %416 = vst.msk [vmem:[#allocation2 + $0xe9] sm:$0x1] %vm388, 0.0
      %417 = vst.msk [vmem:[#allocation2 + $0x101] sm:$0x1] %vm388, 0.0
      %418 = vst.msk [vmem:[#allocation2 + $0x119] sm:$0x1] %vm388, 0.0
      %419 = vst.msk [vmem:[#allocation2 + $0x131] sm:$0x1] %vm388, 0.0
      %420 = vst.msk [vmem:[#allocation2 + $0x149] sm:$0x1] %vm388, 0.0
      %421 = vst.msk [vmem:[#allocation2 + $0x161] sm:$0x1] %vm388, 0.0
      %422 = vst.msk [vmem:[#allocation2 + $0x179] sm:$0x1] %vm388, 0.0
      %423 = vst.msk [vmem:[#allocation2 + $0x191] sm:$0x1] %vm388, 0.0
      %424 = vst.msk [vmem:[#allocation2 + $0x1a9] sm:$0x1] %vm388, 0.0
      %s425 = scalar_lea.vmem [#allocation2], 24
      %426 = vst.msk [vmem:[%s425 + $0x1] sm:$0xff] %vm379, %v347
      %427 = vst.msk [vmem:[%s425 + $0x9] sm:$0xff] %vm379, %v348
      %428 = vst.msk [vmem:[%s425 + $0x19] sm:$0xff] %vm379, %v349
      %429 = vst.msk [vmem:[%s425 + $0x21] sm:$0xff] %vm379, %v350
      %430 = vst.msk [vmem:[%s425 + $0x31] sm:$0xff] %vm379, %v351
      %431 = vst.msk [vmem:[%s425 + $0x39] sm:$0xff] %vm379, %v352
      %432 = vst.msk [vmem:[%s425 + $0x49] sm:$0xff] %vm379, %v353
      %433 = vst.msk [vmem:[%s425 + $0x51] sm:$0xff] %vm379, %v354
      %434 = vst.msk [vmem:[%s425 + $0x61] sm:$0xff] %vm379, %v355
      %435 = vst.msk [vmem:[%s425 + $0x69] sm:$0xff] %vm379, %v356
      %436 = vst.msk [vmem:[%s425 + $0x79] sm:$0xff] %vm379, %v357
      %437 = vst.msk [vmem:[%s425 + $0x81] sm:$0xff] %vm379, %v358
      %438 = vst.msk [vmem:[%s425 + $0x91] sm:$0xff] %vm379, %v359
      %439 = vst.msk [vmem:[%s425 + $0x99] sm:$0xff] %vm379, %v360
      %440 = vst.msk [vmem:[%s425 + $0xa9] sm:$0xff] %vm379, %v361
      %441 = vst.msk [vmem:[%s425 + $0xb1] sm:$0xff] %vm379, %v362
      %442 = vst.msk [vmem:[%s425 + $0xc1] sm:$0xff] %vm379, %v363
      %443 = vst.msk [vmem:[%s425 + $0xc9] sm:$0xff] %vm379, %v364
      %444 = vst.msk [vmem:[%s425 + $0xd9] sm:$0xff] %vm379, %v365
      %445 = vst.msk [vmem:[%s425 + $0xe1] sm:$0xff] %vm379, %v366
      %446 = vst.msk [vmem:[%s425 + $0xf1] sm:$0xff] %vm379, %v367
      %447 = vst.msk [vmem:[%s425 + $0xf9] sm:$0xff] %vm379, %v368
      %448 = vst.msk [vmem:[%s425 + $0x109] sm:$0xff] %vm379, %v369
      %449 = vst.msk [vmem:[%s425 + $0x111] sm:$0xff] %vm379, %v370
      %450 = vst.msk [vmem:[%s425 + $0x121] sm:$0xff] %vm379, %v371
      %451 = vst.msk [vmem:[%s425 + $0x129] sm:$0xff] %vm379, %v372
      %452 = vst.msk [vmem:[%s425 + $0x139] sm:$0xff] %vm379, %v373
      %453 = vst.msk [vmem:[%s425 + $0x141] sm:$0xff] %vm379, %v374
      %454 = vst.msk [vmem:[%s425 + $0x151] sm:$0xff] %vm379, %v375
      %455 = vst.msk [vmem:[%s425 + $0x159] sm:$0xff] %vm379, %v376
      %456 = vst.msk [vmem:[%s425 + $0x169] sm:$0xff] %vm379, %v377
      %457 = vst.msk [vmem:[%s425 + $0x171] sm:$0xff] %vm379, %v378
      %v458 = vld [vmem:[#allocation2] sm:$0xff]
      %v459 = vld [vmem:[#allocation2 + $0x8] sm:$0xff]
      %v460 = vld [vmem:[#allocation2 + $0x10] sm:$0x3]
      %v461 = vld [vmem:[#allocation2 + $0x18] sm:$0xff]
      %v462 = vld [vmem:[#allocation2 + $0x20] sm:$0xff]
      %v463 = vld [vmem:[#allocation2 + $0x28] sm:$0x3]
      %v464 = vld [vmem:[#allocation2 + $0x30] sm:$0xff]
      %v465 = vld [vmem:[#allocation2 + $0x38] sm:$0xff]
      %v466 = vld [vmem:[#allocation2 + $0x40] sm:$0x3]
      %v467 = vld [vmem:[#allocation2 + $0x48] sm:$0xff]
      %v468 = vld [vmem:[#allocation2 + $0x50] sm:$0xff]
      %v469 = vld [vmem:[#allocation2 + $0x58] sm:$0x3]
      %v470 = vld [vmem:[#allocation2 + $0x60] sm:$0xff]
      %v471 = vld [vmem:[#allocation2 + $0x68] sm:$0xff]
      %v472 = vld [vmem:[#allocation2 + $0x70] sm:$0x3]
      %v473 = vld [vmem:[#allocation2 + $0x78] sm:$0xff]
      %v474 = vld [vmem:[#allocation2 + $0x80] sm:$0xff]
      %v475 = vld [vmem:[#allocation2 + $0x88] sm:$0x3]
      %v476 = vld [vmem:[#allocation2 + $0x90] sm:$0xff]
      %v477 = vld [vmem:[#allocation2 + $0x98] sm:$0xff]
      %v478 = vld [vmem:[#allocation2 + $0xa0] sm:$0x3]
      %v479 = vld [vmem:[#allocation2 + $0xa8] sm:$0xff]
      %v480 = vld [vmem:[#allocation2 + $0xb0] sm:$0xff]
      %v481 = vld [vmem:[#allocation2 + $0xb8] sm:$0x3]
      %v482 = vld [vmem:[#allocation2 + $0xc0] sm:$0xff]
      %v483 = vld [vmem:[#allocation2 + $0xc8] sm:$0xff]
      %v484 = vld [vmem:[#allocation2 + $0xd0] sm:$0x3]
      %v485 = vld [vmem:[#allocation2 + $0xd8] sm:$0xff]
      %v486 = vld [vmem:[#allocation2 + $0xe0] sm:$0xff]
      %v487 = vld [vmem:[#allocation2 + $0xe8] sm:$0x3]
      %v488 = vld [vmem:[#allocation2 + $0xf0] sm:$0xff]
      %v489 = vld [vmem:[#allocation2 + $0xf8] sm:$0xff]
      %v490 = vld [vmem:[#allocation2 + $0x100] sm:$0x3]
      %v491 = vld [vmem:[#allocation2 + $0x108] sm:$0xff]
      %v492 = vld [vmem:[#allocation2 + $0x110] sm:$0xff]
      %v493 = vld [vmem:[#allocation2 + $0x118] sm:$0x3]
      %v494 = vld [vmem:[#allocation2 + $0x120] sm:$0xff]
      %v495 = vld [vmem:[#allocation2 + $0x128] sm:$0xff]
      %v496 = vld [vmem:[#allocation2 + $0x130] sm:$0x3]
      %v497 = vld [vmem:[#allocation2 + $0x138] sm:$0xff]
      %v498 = vld [vmem:[#allocation2 + $0x140] sm:$0xff]
      %v499 = vld [vmem:[#allocation2 + $0x148] sm:$0x3]
      %v500 = vld [vmem:[#allocation2 + $0x150] sm:$0xff]
      %v501 = vld [vmem:[#allocation2 + $0x158] sm:$0xff]
      %v502 = vld [vmem:[#allocation2 + $0x160] sm:$0x3]
      %v503 = vld [vmem:[#allocation2 + $0x168] sm:$0xff]
      %v504 = vld [vmem:[#allocation2 + $0x170] sm:$0xff]
      %v505 = vld [vmem:[#allocation2 + $0x178] sm:$0x3]
      %v506 = vld [vmem:[#allocation2 + $0x180] sm:$0xff]
      %v507 = vld [vmem:[#allocation2 + $0x188] sm:$0xff]
      %v508 = vld [vmem:[#allocation2 + $0x190] sm:$0x3]
      %v509 = vld [vmem:[#allocation2 + $0x198] sm:$0xff]
      %v510 = vld [vmem:[#allocation2 + $0x1a0] sm:$0xff]
      %v511 = vld [vmem:[#allocation2 + $0x1a8] sm:$0x3]
      %512 = vst.msk [vmem:[#allocation3] sm:$0xff] %vm379, %v458
      %513 = vst.msk [vmem:[#allocation3 + $0x8] sm:$0xff] %vm379, %v459
      %514 = vst.msk [vmem:[#allocation3 + $0x10] sm:$0xff] %vm379, %v461
      %515 = vst.msk [vmem:[#allocation3 + $0x18] sm:$0xff] %vm379, %v462
      %516 = vst.msk [vmem:[#allocation3 + $0x20] sm:$0xff] %vm379, %v464
      %517 = vst.msk [vmem:[#allocation3 + $0x28] sm:$0xff] %vm379, %v465
      %518 = vst.msk [vmem:[#allocation3 + $0x30] sm:$0xff] %vm379, %v467
      %519 = vst.msk [vmem:[#allocation3 + $0x38] sm:$0xff] %vm379, %v468
      %520 = vst.msk [vmem:[#allocation3 + $0x40] sm:$0xff] %vm379, %v470
      %521 = vst.msk [vmem:[#allocation3 + $0x48] sm:$0xff] %vm379, %v471
      %522 = vst.msk [vmem:[#allocation3 + $0x50] sm:$0xff] %vm379, %v473
      %523 = vst.msk [vmem:[#allocation3 + $0x58] sm:$0xff] %vm379, %v474
      %524 = vst.msk [vmem:[#allocation3 + $0x60] sm:$0xff] %vm379, %v476
      %525 = vst.msk [vmem:[#allocation3 + $0x68] sm:$0xff] %vm379, %v477
      %526 = vst.msk [vmem:[#allocation3 + $0x70] sm:$0xff] %vm379, %v479
      %527 = vst.msk [vmem:[#allocation3 + $0x78] sm:$0xff] %vm379, %v480
      %528 = vst.msk [vmem:[#allocation3 + $0x80] sm:$0xff] %vm379, %v482
      %529 = vst.msk [vmem:[#allocation3 + $0x88] sm:$0xff] %vm379, %v483
      %530 = vst.msk [vmem:[#allocation3 + $0x90] sm:$0xff] %vm379, %v485
      %531 = vst.msk [vmem:[#allocation3 + $0x98] sm:$0xff] %vm379, %v486
      %532 = vst.msk [vmem:[#allocation3 + $0xa0] sm:$0xff] %vm379, %v488
      %533 = vst.msk [vmem:[#allocation3 + $0xa8] sm:$0xff] %vm379, %v489
      %534 = vst.msk [vmem:[#allocation3 + $0xb0] sm:$0xff] %vm379, %v491
      %535 = vst.msk [vmem:[#allocation3 + $0xb8] sm:$0xff] %vm379, %v492
      %536 = vst.msk [vmem:[#allocation3 + $0xc0] sm:$0xff] %vm379, %v494
      %537 = vst.msk [vmem:[#allocation3 + $0xc8] sm:$0xff] %vm379, %v495
      %538 = vst.msk [vmem:[#allocation3 + $0xd0] sm:$0xff] %vm379, %v497
      %539 = vst.msk [vmem:[#allocation3 + $0xd8] sm:$0xff] %vm379, %v498
      %540 = vst.msk [vmem:[#allocation3 + $0xe0] sm:$0xff] %vm379, %v500
      %541 = vst.msk [vmem:[#allocation3 + $0xe8] sm:$0xff] %vm379, %v501
      %542 = vst.msk [vmem:[#allocation3 + $0xf0] sm:$0xff] %vm379, %v503
      %543 = vst.msk [vmem:[#allocation3 + $0xf8] sm:$0xff] %vm379, %v504
      %vm592 = vcmask 1046528
      %v593 = vrot.slane %v458, 1
      %v594 = vrot.slane %v459, 1
      %v595 = vsel %vm592, %v593, %v594
      %v596 = vrot.slane %v460, 1
      %v597 = vsel %vm592, %v594, %v596
      %v598 = vrot.slane %v461, 1
      %v599 = vrot.slane %v462, 1
      %v600 = vsel %vm592, %v598, %v599
      %v601 = vrot.slane %v463, 1
      %v602 = vsel %vm592, %v599, %v601
      %v603 = vrot.slane %v464, 1
      %v604 = vrot.slane %v465, 1
      %v605 = vsel %vm592, %v603, %v604
      %v606 = vrot.slane %v466, 1
      %v607 = vsel %vm592, %v604, %v606
      %v608 = vrot.slane %v467, 1
      %v609 = vrot.slane %v468, 1
      %v610 = vsel %vm592, %v608, %v609
      %v611 = vrot.slane %v469, 1
      %v612 = vsel %vm592, %v609, %v611
      %v613 = vrot.slane %v470, 1
      %v614 = vrot.slane %v471, 1
      %v615 = vsel %vm592, %v613, %v614
      %v616 = vrot.slane %v472, 1
      %v617 = vsel %vm592, %v614, %v616
      %v618 = vrot.slane %v473, 1
      %v619 = vrot.slane %v474, 1
      %v620 = vsel %vm592, %v618, %v619
      %v621 = vrot.slane %v475, 1
      %v622 = vsel %vm592, %v619, %v621
      %v623 = vrot.slane %v476, 1
      %v624 = vrot.slane %v477, 1
      %v625 = vsel %vm592, %v623, %v624
      %v626 = vrot.slane %v478, 1
      %v627 = vsel %vm592, %v624, %v626
      %v628 = vrot.slane %v479, 1
      %v629 = vrot.slane %v480, 1
      %v630 = vsel %vm592, %v628, %v629
      %v631 = vrot.slane %v481, 1
      %v632 = vsel %vm592, %v629, %v631
      %v633 = vrot.slane %v482, 1
      %v634 = vrot.slane %v483, 1
      %v635 = vsel %vm592, %v633, %v634
      %v636 = vrot.slane %v484, 1
      %v637 = vsel %vm592, %v634, %v636
      %v638 = vrot.slane %v485, 1
      %v639 = vrot.slane %v486, 1
      %v640 = vsel %vm592, %v638, %v639
      %v641 = vrot.slane %v487, 1
      %v642 = vsel %vm592, %v639, %v641
      %v643 = vrot.slane %v488, 1
      %v644 = vrot.slane %v489, 1
      %v645 = vsel %vm592, %v643, %v644
      %v646 = vrot.slane %v490, 1
      %v647 = vsel %vm592, %v644, %v646
      %v648 = vrot.slane %v491, 1
      %v649 = vrot.slane %v492, 1
      %v650 = vsel %vm592, %v648, %v649
      %v651 = vrot.slane %v493, 1
      %v652 = vsel %vm592, %v649, %v651
      %v653 = vrot.slane %v494, 1
      %v654 = vrot.slane %v495, 1
      %v655 = vsel %vm592, %v653, %v654
      %v656 = vrot.slane %v496, 1
      %v657 = vsel %vm592, %v654, %v656
      %v658 = vrot.slane %v497, 1
      %v659 = vrot.slane %v498, 1
      %v660 = vsel %vm592, %v658, %v659
      %v661 = vrot.slane %v499, 1
      %v662 = vsel %vm592, %v659, %v661
      %v663 = vrot.slane %v500, 1
      %v664 = vrot.slane %v501, 1
      %v665 = vsel %vm592, %v663, %v664
      %v666 = vrot.slane %v502, 1
      %v667 = vsel %vm592, %v664, %v666
      %v668 = vrot.slane %v503, 1
      %v669 = vrot.slane %v504, 1
      %v670 = vsel %vm592, %v668, %v669
      %v671 = vrot.slane %v505, 1
      %v672 = vsel %vm592, %v669, %v671
      %673 = vrot.lane.b32.xlu0 %v595, 8
      %v674 = vpop.permute.xlu0 %673
      %675 = vrot.lane.b32.xlu0 %v597, 8
      %v676 = vpop.permute.xlu0 %675
      %677 = vrot.lane.b32.xlu0 %v600, 8
      %v678 = vpop.permute.xlu0 %677
      %679 = vrot.lane.b32.xlu0 %v602, 8
      %v680 = vpop.permute.xlu0 %679
      %681 = vrot.lane.b32.xlu0 %v605, 8
      %v682 = vpop.permute.xlu0 %681
      %683 = vrot.lane.b32.xlu0 %v607, 8
      %v684 = vpop.permute.xlu0 %683
      %685 = vrot.lane.b32.xlu0 %v610, 8
      %v686 = vpop.permute.xlu0 %685
      %687 = vrot.lane.b32.xlu0 %v612, 8
      %v688 = vpop.permute.xlu0 %687
      %689 = vrot.lane.b32.xlu0 %v615, 8
      %v690 = vpop.permute.xlu0 %689
      %691 = vrot.lane.b32.xlu0 %v617, 8
      %v692 = vpop.permute.xlu0 %691
      %693 = vrot.lane.b32.xlu0 %v620, 8
      %v694 = vpop.permute.xlu0 %693
      %695 = vrot.lane.b32.xlu0 %v622, 8
      %v696 = vpop.permute.xlu0 %695
      %697 = vrot.lane.b32.xlu0 %v625, 8
      %v698 = vpop.permute.xlu0 %697
      %699 = vrot.lane.b32.xlu0 %v627, 8
      %v700 = vpop.permute.xlu0 %699
      %701 = vrot.lane.b32.xlu0 %v630, 8
      %v702 = vpop.permute.xlu0 %701
      %703 = vrot.lane.b32.xlu0 %v632, 8
      %v704 = vpop.permute.xlu0 %703
      %705 = vrot.lane.b32.xlu0 %v635, 8
      %v706 = vpop.permute.xlu0 %705
      %707 = vrot.lane.b32.xlu0 %v637, 8
      %v708 = vpop.permute.xlu0 %707
      %709 = vrot.lane.b32.xlu0 %v640, 8
      %v710 = vpop.permute.xlu0 %709
      %711 = vrot.lane.b32.xlu0 %v642, 8
      %v712 = vpop.permute.xlu0 %711
      %713 = vrot.lane.b32.xlu0 %v645, 8
      %v714 = vpop.permute.xlu0 %713
      %715 = vrot.lane.b32.xlu0 %v647, 8
      %v716 = vpop.permute.xlu0 %715
      %717 = vrot.lane.b32.xlu0 %v650, 8
      %v718 = vpop.permute.xlu0 %717
      %719 = vrot.lane.b32.xlu0 %v652, 8
      %v720 = vpop.permute.xlu0 %719
      %721 = vrot.lane.b32.xlu0 %v655, 8
      %v722 = vpop.permute.xlu0 %721
      %723 = vrot.lane.b32.xlu0 %v657, 8
      %v724 = vpop.permute.xlu0 %723
      %725 = vrot.lane.b32.xlu0 %v660, 8
      %v726 = vpop.permute.xlu0 %725
      %727 = vrot.lane.b32.xlu0 %v662, 8
      %v728 = vpop.permute.xlu0 %727
      %729 = vrot.lane.b32.xlu0 %v665, 8
      %v730 = vpop.permute.xlu0 %729
      %731 = vrot.lane.b32.xlu0 %v667, 8
      %v732 = vpop.permute.xlu0 %731
      %733 = vrot.lane.b32.xlu0 %v670, 8
      %v734 = vpop.permute.xlu0 %733
      %735 = vrot.lane.b32.xlu0 %v672, 8
      %v736 = vpop.permute.xlu0 %735
      %vm769 = vcmask 130112
      %770 = vst.msk [vmem:[#allocation3] sm:$0xff] %vm769, %v674
      %771 = vst.msk [vmem:[#allocation3 + $0x8] sm:$0xff] %vm769, %v676
      %772 = vst.msk [vmem:[#allocation3 + $0x10] sm:$0xff] %vm769, %v678
      %773 = vst.msk [vmem:[#allocation3 + $0x18] sm:$0xff] %vm769, %v680
      %774 = vst.msk [vmem:[#allocation3 + $0x20] sm:$0xff] %vm769, %v682
      %775 = vst.msk [vmem:[#allocation3 + $0x28] sm:$0xff] %vm769, %v684
      %776 = vst.msk [vmem:[#allocation3 + $0x30] sm:$0xff] %vm769, %v686
      %777 = vst.msk [vmem:[#allocation3 + $0x38] sm:$0xff] %vm769, %v688
      %778 = vst.msk [vmem:[#allocation3 + $0x40] sm:$0xff] %vm769, %v690
      %779 = vst.msk [vmem:[#allocation3 + $0x48] sm:$0xff] %vm769, %v692
      %780 = vst.msk [vmem:[#allocation3 + $0x50] sm:$0xff] %vm769, %v694
      %781 = vst.msk [vmem:[#allocation3 + $0x58] sm:$0xff] %vm769, %v696
      %782 = vst.msk [vmem:[#allocation3 + $0x60] sm:$0xff] %vm769, %v698
      %783 = vst.msk [vmem:[#allocation3 + $0x68] sm:$0xff] %vm769, %v700
      %784 = vst.msk [vmem:[#allocation3 + $0x70] sm:$0xff] %vm769, %v702
      %785 = vst.msk [vmem:[#allocation3 + $0x78] sm:$0xff] %vm769, %v704
      %786 = vst.msk [vmem:[#allocation3 + $0x80] sm:$0xff] %vm769, %v706
      %787 = vst.msk [vmem:[#allocation3 + $0x88] sm:$0xff] %vm769, %v708
      %788 = vst.msk [vmem:[#allocation3 + $0x90] sm:$0xff] %vm769, %v710
      %789 = vst.msk [vmem:[#allocation3 + $0x98] sm:$0xff] %vm769, %v712
      %790 = vst.msk [vmem:[#allocation3 + $0xa0] sm:$0xff] %vm769, %v714
      %791 = vst.msk [vmem:[#allocation3 + $0xa8] sm:$0xff] %vm769, %v716
      %792 = vst.msk [vmem:[#allocation3 + $0xb0] sm:$0xff] %vm769, %v718
      %793 = vst.msk [vmem:[#allocation3 + $0xb8] sm:$0xff] %vm769, %v720
      %794 = vst.msk [vmem:[#allocation3 + $0xc0] sm:$0xff] %vm769, %v722
      %795 = vst.msk [vmem:[#allocation3 + $0xc8] sm:$0xff] %vm769, %v724
      %796 = vst.msk [vmem:[#allocation3 + $0xd0] sm:$0xff] %vm769, %v726
      %797 = vst.msk [vmem:[#allocation3 + $0xd8] sm:$0xff] %vm769, %v728
      %798 = vst.msk [vmem:[#allocation3 + $0xe0] sm:$0xff] %vm769, %v730
      %799 = vst.msk [vmem:[#allocation3 + $0xe8] sm:$0xff] %vm769, %v732
      %800 = vst.msk [vmem:[#allocation3 + $0xf0] sm:$0xff] %vm769, %v734
      %801 = vst.msk [vmem:[#allocation3 + $0xf8] sm:$0xff] %vm769, %v736
      %vm802 = vcmask 1045504
      %v803 = vrot.slane %v458, 2
      %v804 = vrot.slane %v459, 2
      %v805 = vsel %vm802, %v803, %v804
      %v806 = vrot.slane %v460, 2
      %v807 = vsel %vm802, %v804, %v806
      %v808 = vrot.slane %v461, 2
      %v809 = vrot.slane %v462, 2
      %v810 = vsel %vm802, %v808, %v809
      %v811 = vrot.slane %v463, 2
      %v812 = vsel %vm802, %v809, %v811
      %v813 = vrot.slane %v464, 2
      %v814 = vrot.slane %v465, 2
      %v815 = vsel %vm802, %v813, %v814
      %v816 = vrot.slane %v466, 2
      %v817 = vsel %vm802, %v814, %v816
      %v818 = vrot.slane %v467, 2
      %v819 = vrot.slane %v468, 2
      %v820 = vsel %vm802, %v818, %v819
      %v821 = vrot.slane %v469, 2
      %v822 = vsel %vm802, %v819, %v821
      %v823 = vrot.slane %v470, 2
      %v824 = vrot.slane %v471, 2
      %v825 = vsel %vm802, %v823, %v824
      %v826 = vrot.slane %v472, 2
      %v827 = vsel %vm802, %v824, %v826
      %v828 = vrot.slane %v473, 2
      %v829 = vrot.slane %v474, 2
      %v830 = vsel %vm802, %v828, %v829
      %v831 = vrot.slane %v475, 2
      %v832 = vsel %vm802, %v829, %v831
      %v833 = vrot.slane %v476, 2
      %v834 = vrot.slane %v477, 2
      %v835 = vsel %vm802, %v833, %v834
      %v836 = vrot.slane %v478, 2
      %v837 = vsel %vm802, %v834, %v836
      %v838 = vrot.slane %v479, 2
      %v839 = vrot.slane %v480, 2
      %v840 = vsel %vm802, %v838, %v839
      %v841 = vrot.slane %v481, 2
      %v842 = vsel %vm802, %v839, %v841
      %v843 = vrot.slane %v482, 2
      %v844 = vrot.slane %v483, 2
      %v845 = vsel %vm802, %v843, %v844
      %v846 = vrot.slane %v484, 2
      %v847 = vsel %vm802, %v844, %v846
      %v848 = vrot.slane %v485, 2
      %v849 = vrot.slane %v486, 2
      %v850 = vsel %vm802, %v848, %v849
      %v851 = vrot.slane %v487, 2
      %v852 = vsel %vm802, %v849, %v851
      %v853 = vrot.slane %v488, 2
      %v854 = vrot.slane %v489, 2
      %v855 = vsel %vm802, %v853, %v854
      %v856 = vrot.slane %v490, 2
      %v857 = vsel %vm802, %v854, %v856
      %v858 = vrot.slane %v491, 2
      %v859 = vrot.slane %v492, 2
      %v860 = vsel %vm802, %v858, %v859
      %v861 = vrot.slane %v493, 2
      %v862 = vsel %vm802, %v859, %v861
      %v863 = vrot.slane %v494, 2
      %v864 = vrot.slane %v495, 2
      %v865 = vsel %vm802, %v863, %v864
      %v866 = vrot.slane %v496, 2
      %v867 = vsel %vm802, %v864, %v866
      %v868 = vrot.slane %v497, 2
      %v869 = vrot.slane %v498, 2
      %v870 = vsel %vm802, %v868, %v869
      %v871 = vrot.slane %v499, 2
      %v872 = vsel %vm802, %v869, %v871
      %v873 = vrot.slane %v500, 2
      %v874 = vrot.slane %v501, 2
      %v875 = vsel %vm802, %v873, %v874
      %v876 = vrot.slane %v502, 2
      %v877 = vsel %vm802, %v874, %v876
      %v878 = vrot.slane %v503, 2
      %v879 = vrot.slane %v504, 2
      %v880 = vsel %vm802, %v878, %v879
      %v881 = vrot.slane %v505, 2
      %v882 = vsel %vm802, %v879, %v881
      %883 = vrot.lane.b32.xlu0 %v805, 16
      %v884 = vpop.permute.xlu0 %883
      %885 = vrot.lane.b32.xlu0 %v807, 16
      %v886 = vpop.permute.xlu0 %885
      %887 = vrot.lane.b32.xlu0 %v810, 16
      %v888 = vpop.permute.xlu0 %887
      %889 = vrot.lane.b32.xlu0 %v812, 16
      %v890 = vpop.permute.xlu0 %889
      %891 = vrot.lane.b32.xlu0 %v815, 16
      %v892 = vpop.permute.xlu0 %891
      %893 = vrot.lane.b32.xlu0 %v817, 16
      %v894 = vpop.permute.xlu0 %893
      %895 = vrot.lane.b32.xlu0 %v820, 16
      %v896 = vpop.permute.xlu0 %895
      %897 = vrot.lane.b32.xlu0 %v822, 16
      %v898 = vpop.permute.xlu0 %897
      %899 = vrot.lane.b32.xlu0 %v825, 16
      %v900 = vpop.permute.xlu0 %899
      %901 = vrot.lane.b32.xlu0 %v827, 16
      %v902 = vpop.permute.xlu0 %901
      %903 = vrot.lane.b32.xlu0 %v830, 16
      %v904 = vpop.permute.xlu0 %903
      %905 = vrot.lane.b32.xlu0 %v832, 16
      %v906 = vpop.permute.xlu0 %905
      %907 = vrot.lane.b32.xlu0 %v835, 16
      %v908 = vpop.permute.xlu0 %907
      %909 = vrot.lane.b32.xlu0 %v837, 16
      %v910 = vpop.permute.xlu0 %909
      %911 = vrot.lane.b32.xlu0 %v840, 16
      %v912 = vpop.permute.xlu0 %911
      %913 = vrot.lane.b32.xlu0 %v842, 16
      %v914 = vpop.permute.xlu0 %913
      %915 = vrot.lane.b32.xlu0 %v845, 16
      %v916 = vpop.permute.xlu0 %915
      %917 = vrot.lane.b32.xlu0 %v847, 16
      %v918 = vpop.permute.xlu0 %917
      %919 = vrot.lane.b32.xlu0 %v850, 16
      %v920 = vpop.permute.xlu0 %919
      %921 = vrot.lane.b32.xlu0 %v852, 16
      %v922 = vpop.permute.xlu0 %921
      %923 = vrot.lane.b32.xlu0 %v855, 16
      %v924 = vpop.permute.xlu0 %923
      %925 = vrot.lane.b32.xlu0 %v857, 16
      %v926 = vpop.permute.xlu0 %925
      %927 = vrot.lane.b32.xlu0 %v860, 16
      %v928 = vpop.permute.xlu0 %927
      %929 = vrot.lane.b32.xlu0 %v862, 16
      %v930 = vpop.permute.xlu0 %929
      %931 = vrot.lane.b32.xlu0 %v865, 16
      %v932 = vpop.permute.xlu0 %931
      %933 = vrot.lane.b32.xlu0 %v867, 16
      %v934 = vpop.permute.xlu0 %933
      %935 = vrot.lane.b32.xlu0 %v870, 16
      %v936 = vpop.permute.xlu0 %935
      %937 = vrot.lane.b32.xlu0 %v872, 16
      %v938 = vpop.permute.xlu0 %937
      %939 = vrot.lane.b32.xlu0 %v875, 16
      %v940 = vpop.permute.xlu0 %939
      %941 = vrot.lane.b32.xlu0 %v877, 16
      %v942 = vpop.permute.xlu0 %941
      %943 = vrot.lane.b32.xlu0 %v880, 16
      %v944 = vpop.permute.xlu0 %943
      %945 = vrot.lane.b32.xlu0 %v882, 16
      %v946 = vpop.permute.xlu0 %945
      %vm979 = vcmask 195712
      %980 = vst.msk [vmem:[#allocation3] sm:$0xff] %vm979, %v884
      %981 = vst.msk [vmem:[#allocation3 + $0x8] sm:$0xff] %vm979, %v886
      %982 = vst.msk [vmem:[#allocation3 + $0x10] sm:$0xff] %vm979, %v888
      %983 = vst.msk [vmem:[#allocation3 + $0x18] sm:$0xff] %vm979, %v890
      %984 = vst.msk [vmem:[#allocation3 + $0x20] sm:$0xff] %vm979, %v892
      %985 = vst.msk [vmem:[#allocation3 + $0x28] sm:$0xff] %vm979, %v894
      %986 = vst.msk [vmem:[#allocation3 + $0x30] sm:$0xff] %vm979, %v896
      %987 = vst.msk [vmem:[#allocation3 + $0x38] sm:$0xff] %vm979, %v898
      %988 = vst.msk [vmem:[#allocation3 + $0x40] sm:$0xff] %vm979, %v900
      %989 = vst.msk [vmem:[#allocation3 + $0x48] sm:$0xff] %vm979, %v902
      %990 = vst.msk [vmem:[#allocation3 + $0x50] sm:$0xff] %vm979, %v904
      %991 = vst.msk [vmem:[#allocation3 + $0x58] sm:$0xff] %vm979, %v906
      %992 = vst.msk [vmem:[#allocation3 + $0x60] sm:$0xff] %vm979, %v908
      %993 = vst.msk [vmem:[#allocation3 + $0x68] sm:$0xff] %vm979, %v910
      %994 = vst.msk [vmem:[#allocation3 + $0x70] sm:$0xff] %vm979, %v912
      %995 = vst.msk [vmem:[#allocation3 + $0x78] sm:$0xff] %vm979, %v914
      %996 = vst.msk [vmem:[#allocation3 + $0x80] sm:$0xff] %vm979, %v916
      %997 = vst.msk [vmem:[#allocation3 + $0x88] sm:$0xff] %vm979, %v918
      %998 = vst.msk [vmem:[#allocation3 + $0x90] sm:$0xff] %vm979, %v920
      %999 = vst.msk [vmem:[#allocation3 + $0x98] sm:$0xff] %vm979, %v922
      %1000 = vst.msk [vmem:[#allocation3 + $0xa0] sm:$0xff] %vm979, %v924
      %1001 = vst.msk [vmem:[#allocation3 + $0xa8] sm:$0xff] %vm979, %v926
      %1002 = vst.msk [vmem:[#allocation3 + $0xb0] sm:$0xff] %vm979, %v928
      %1003 = vst.msk [vmem:[#allocation3 + $0xb8] sm:$0xff] %vm979, %v930
      %1004 = vst.msk [vmem:[#allocation3 + $0xc0] sm:$0xff] %vm979, %v932
      %1005 = vst.msk [vmem:[#allocation3 + $0xc8] sm:$0xff] %vm979, %v934
      %1006 = vst.msk [vmem:[#allocation3 + $0xd0] sm:$0xff] %vm979, %v936
      %1007 = vst.msk [vmem:[#allocation3 + $0xd8] sm:$0xff] %vm979, %v938
      %1008 = vst.msk [vmem:[#allocation3 + $0xe0] sm:$0xff] %vm979, %v940
      %1009 = vst.msk [vmem:[#allocation3 + $0xe8] sm:$0xff] %vm979, %v942
      %1010 = vst.msk [vmem:[#allocation3 + $0xf0] sm:$0xff] %vm979, %v944
      %1011 = vst.msk [vmem:[#allocation3 + $0xf8] sm:$0xff] %vm979, %v946
      %1014 = vrot.lane.b32.xlu0 %v461, 24
      %v1015 = vpop.permute.xlu0 %1014
      %1016 = vrot.lane.b32.xlu0 %v462, 24
      %v1017 = vpop.permute.xlu0 %1016
      %1018 = vrot.lane.b32.xlu0 %v464, 24
      %v1019 = vpop.permute.xlu0 %1018
      %1020 = vrot.lane.b32.xlu0 %v465, 24
      %v1021 = vpop.permute.xlu0 %1020
      %1022 = vrot.lane.b32.xlu0 %v467, 24
      %v1023 = vpop.permute.xlu0 %1022
      %1024 = vrot.lane.b32.xlu0 %v468, 24
      %v1025 = vpop.permute.xlu0 %1024
      %1026 = vrot.lane.b32.xlu0 %v470, 24
      %v1027 = vpop.permute.xlu0 %1026
      %1028 = vrot.lane.b32.xlu0 %v471, 24
      %v1029 = vpop.permute.xlu0 %1028
      %1030 = vrot.lane.b32.xlu0 %v473, 24
      %v1031 = vpop.permute.xlu0 %1030
      %1032 = vrot.lane.b32.xlu0 %v474, 24
      %v1033 = vpop.permute.xlu0 %1032
      %1034 = vrot.lane.b32.xlu0 %v476, 24
      %v1035 = vpop.permute.xlu0 %1034
      %1036 = vrot.lane.b32.xlu0 %v477, 24
      %v1037 = vpop.permute.xlu0 %1036
      %1038 = vrot.lane.b32.xlu0 %v479, 24
      %v1039 = vpop.permute.xlu0 %1038
      %1040 = vrot.lane.b32.xlu0 %v480, 24
      %v1041 = vpop.permute.xlu0 %1040
      %1042 = vrot.lane.b32.xlu0 %v482, 24
      %v1043 = vpop.permute.xlu0 %1042
      %1044 = vrot.lane.b32.xlu0 %v483, 24
      %v1045 = vpop.permute.xlu0 %1044
      %1046 = vrot.lane.b32.xlu0 %v485, 24
      %v1047 = vpop.permute.xlu0 %1046
      %1048 = vrot.lane.b32.xlu0 %v486, 24
      %v1049 = vpop.permute.xlu0 %1048
      %1050 = vrot.lane.b32.xlu0 %v488, 24
      %v1051 = vpop.permute.xlu0 %1050
      %1052 = vrot.lane.b32.xlu0 %v489, 24
      %v1053 = vpop.permute.xlu0 %1052
      %1054 = vrot.lane.b32.xlu0 %v491, 24
      %v1055 = vpop.permute.xlu0 %1054
      %1056 = vrot.lane.b32.xlu0 %v492, 24
      %v1057 = vpop.permute.xlu0 %1056
      %1058 = vrot.lane.b32.xlu0 %v494, 24
      %v1059 = vpop.permute.xlu0 %1058
      %1060 = vrot.lane.b32.xlu0 %v495, 24
      %v1061 = vpop.permute.xlu0 %1060
      %1062 = vrot.lane.b32.xlu0 %v497, 24
      %v1063 = vpop.permute.xlu0 %1062
      %1064 = vrot.lane.b32.xlu0 %v498, 24
      %v1065 = vpop.permute.xlu0 %1064
      %1066 = vrot.lane.b32.xlu0 %v500, 24
      %v1067 = vpop.permute.xlu0 %1066
      %1068 = vrot.lane.b32.xlu0 %v501, 24
      %v1069 = vpop.permute.xlu0 %1068
      %1070 = vrot.lane.b32.xlu0 %v503, 24
      %v1071 = vpop.permute.xlu0 %1070
      %1072 = vrot.lane.b32.xlu0 %v504, 24
      %v1073 = vpop.permute.xlu0 %1072
      %1074 = vrot.lane.b32.xlu0 %v506, 24
      %v1075 = vpop.permute.xlu0 %1074
      %1076 = vrot.lane.b32.xlu0 %v507, 24
      %v1077 = vpop.permute.xlu0 %1076
      %vm1110 = vcmask 261312
      %1111 = vst.msk [vmem:[#allocation3] sm:$0xff] %vm1110, %v1015
      %1112 = vst.msk [vmem:[#allocation3 + $0x8] sm:$0xff] %vm1110, %v1017
      %1113 = vst.msk [vmem:[#allocation3 + $0x10] sm:$0xff] %vm1110, %v1019
      %1114 = vst.msk [vmem:[#allocation3 + $0x18] sm:$0xff] %vm1110, %v1021
      %1115 = vst.msk [vmem:[#allocation3 + $0x20] sm:$0xff] %vm1110, %v1023
      %1116 = vst.msk [vmem:[#allocation3 + $0x28] sm:$0xff] %vm1110, %v1025
      %1117 = vst.msk [vmem:[#allocation3 + $0x30] sm:$0xff] %vm1110, %v1027
      %1118 = vst.msk [vmem:[#allocation3 + $0x38] sm:$0xff] %vm1110, %v1029
      %1119 = vst.msk [vmem:[#allocation3 + $0x40] sm:$0xff] %vm1110, %v1031
      %1120 = vst.msk [vmem:[#allocation3 + $0x48] sm:$0xff] %vm1110, %v1033
      %1121 = vst.msk [vmem:[#allocation3 + $0x50] sm:$0xff] %vm1110, %v1035
      %1122 = vst.msk [vmem:[#allocation3 + $0x58] sm:$0xff] %vm1110, %v1037
      %1123 = vst.msk [vmem:[#allocation3 + $0x60] sm:$0xff] %vm1110, %v1039
      %1124 = vst.msk [vmem:[#allocation3 + $0x68] sm:$0xff] %vm1110, %v1041
      %1125 = vst.msk [vmem:[#allocation3 + $0x70] sm:$0xff] %vm1110, %v1043
      %1126 = vst.msk [vmem:[#allocation3 + $0x78] sm:$0xff] %vm1110, %v1045
      %1127 = vst.msk [vmem:[#allocation3 + $0x80] sm:$0xff] %vm1110, %v1047
      %1128 = vst.msk [vmem:[#allocation3 + $0x88] sm:$0xff] %vm1110, %v1049
      %1129 = vst.msk [vmem:[#allocation3 + $0x90] sm:$0xff] %vm1110, %v1051
      %1130 = vst.msk [vmem:[#allocation3 + $0x98] sm:$0xff] %vm1110, %v1053
      %1131 = vst.msk [vmem:[#allocation3 + $0xa0] sm:$0xff] %vm1110, %v1055
      %1132 = vst.msk [vmem:[#allocation3 + $0xa8] sm:$0xff] %vm1110, %v1057
      %1133 = vst.msk [vmem:[#allocation3 + $0xb0] sm:$0xff] %vm1110, %v1059
      %1134 = vst.msk [vmem:[#allocation3 + $0xb8] sm:$0xff] %vm1110, %v1061
      %1135 = vst.msk [vmem:[#allocation3 + $0xc0] sm:$0xff] %vm1110, %v1063
      %1136 = vst.msk [vmem:[#allocation3 + $0xc8] sm:$0xff] %vm1110, %v1065
      %1137 = vst.msk [vmem:[#allocation3 + $0xd0] sm:$0xff] %vm1110, %v1067
      %1138 = vst.msk [vmem:[#allocation3 + $0xd8] sm:$0xff] %vm1110, %v1069
      %1139 = vst.msk [vmem:[#allocation3 + $0xe0] sm:$0xff] %vm1110, %v1071
      %1140 = vst.msk [vmem:[#allocation3 + $0xe8] sm:$0xff] %vm1110, %v1073
      %1141 = vst.msk [vmem:[#allocation3 + $0xf0] sm:$0xff] %vm1110, %v1075
      %1142 = vst.msk [vmem:[#allocation3 + $0xf8] sm:$0xff] %vm1110, %v1077
      %v1144 = vrot.slane %v506, 1
      %v1145 = vrot.slane %v507, 1
      %v1146 = vsel %vm592, %v1144, %v1145
      %v1147 = vrot.slane %v508, 1
      %v1148 = vsel %vm592, %v1145, %v1147
      %1149 = vrot.lane.b32.xlu0 %v600, 32
      %v1150 = vpop.permute.xlu0 %1149
      %1151 = vrot.lane.b32.xlu0 %v602, 32
      %v1152 = vpop.permute.xlu0 %1151
      %1153 = vrot.lane.b32.xlu0 %v605, 32
      %v1154 = vpop.permute.xlu0 %1153
      %1155 = vrot.lane.b32.xlu0 %v607, 32
      %v1156 = vpop.permute.xlu0 %1155
      %1157 = vrot.lane.b32.xlu0 %v610, 32
      %v1158 = vpop.permute.xlu0 %1157
      %1159 = vrot.lane.b32.xlu0 %v612, 32
      %v1160 = vpop.permute.xlu0 %1159
      %1161 = vrot.lane.b32.xlu0 %v615, 32
      %v1162 = vpop.permute.xlu0 %1161
      %1163 = vrot.lane.b32.xlu0 %v617, 32
      %v1164 = vpop.permute.xlu0 %1163
      %1165 = vrot.lane.b32.xlu0 %v620, 32
      %v1166 = vpop.permute.xlu0 %1165
      %1167 = vrot.lane.b32.xlu0 %v622, 32
      %v1168 = vpop.permute.xlu0 %1167
      %1169 = vrot.lane.b32.xlu0 %v625, 32
      %v1170 = vpop.permute.xlu0 %1169
      %1171 = vrot.lane.b32.xlu0 %v627, 32
      %v1172 = vpop.permute.xlu0 %1171
      %1173 = vrot.lane.b32.xlu0 %v630, 32
      %v1174 = vpop.permute.xlu0 %1173
      %1175 = vrot.lane.b32.xlu0 %v632, 32
      %v1176 = vpop.permute.xlu0 %1175
      %1177 = vrot.lane.b32.xlu0 %v635, 32
      %v1178 = vpop.permute.xlu0 %1177
      %1179 = vrot.lane.b32.xlu0 %v637, 32
      %v1180 = vpop.permute.xlu0 %1179
      %1181 = vrot.lane.b32.xlu0 %v640, 32
      %v1182 = vpop.permute.xlu0 %1181
      %1183 = vrot.lane.b32.xlu0 %v642, 32
      %v1184 = vpop.permute.xlu0 %1183
      %1185 = vrot.lane.b32.xlu0 %v645, 32
      %v1186 = vpop.permute.xlu0 %1185
      %1187 = vrot.lane.b32.xlu0 %v647, 32
      %v1188 = vpop.permute.xlu0 %1187
      %1189 = vrot.lane.b32.xlu0 %v650, 32
      %v1190 = vpop.permute.xlu0 %1189
      %1191 = vrot.lane.b32.xlu0 %v652, 32
      %v1192 = vpop.permute.xlu0 %1191
      %1193 = vrot.lane.b32.xlu0 %v655, 32
      %v1194 = vpop.permute.xlu0 %1193
      %1195 = vrot.lane.b32.xlu0 %v657, 32
      %v1196 = vpop.permute.xlu0 %1195
      %1197 = vrot.lane.b32.xlu0 %v660, 32
      %v1198 = vpop.permute.xlu0 %1197
      %1199 = vrot.lane.b32.xlu0 %v662, 32
      %v1200 = vpop.permute.xlu0 %1199
      %1201 = vrot.lane.b32.xlu0 %v665, 32
      %v1202 = vpop.permute.xlu0 %1201
      %1203 = vrot.lane.b32.xlu0 %v667, 32
      %v1204 = vpop.permute.xlu0 %1203
      %1205 = vrot.lane.b32.xlu0 %v670, 32
      %v1206 = vpop.permute.xlu0 %1205
      %1207 = vrot.lane.b32.xlu0 %v672, 32
      %v1208 = vpop.permute.xlu0 %1207
      %1209 = vrot.lane.b32.xlu0 %v1146, 32
      %v1210 = vpop.permute.xlu0 %1209
      %1211 = vrot.lane.b32.xlu0 %v1148, 32
      %v1212 = vpop.permute.xlu0 %1211
      %vm1245 = vcmask 326912
      %1246 = vst.msk [vmem:[#allocation3] sm:$0xff] %vm1245, %v1150
      %1247 = vst.msk [vmem:[#allocation3 + $0x8] sm:$0xff] %vm1245, %v1152
      %1248 = vst.msk [vmem:[#allocation3 + $0x10] sm:$0xff] %vm1245, %v1154
      %1249 = vst.msk [vmem:[#allocation3 + $0x18] sm:$0xff] %vm1245, %v1156
      %1250 = vst.msk [vmem:[#allocation3 + $0x20] sm:$0xff] %vm1245, %v1158
      %1251 = vst.msk [vmem:[#allocation3 + $0x28] sm:$0xff] %vm1245, %v1160
      %1252 = vst.msk [vmem:[#allocation3 + $0x30] sm:$0xff] %vm1245, %v1162
      %1253 = vst.msk [vmem:[#allocation3 + $0x38] sm:$0xff] %vm1245, %v1164
      %1254 = vst.msk [vmem:[#allocation3 + $0x40] sm:$0xff] %vm1245, %v1166
      %1255 = vst.msk [vmem:[#allocation3 + $0x48] sm:$0xff] %vm1245, %v1168
      %1256 = vst.msk [vmem:[#allocation3 + $0x50] sm:$0xff] %vm1245, %v1170
      %1257 = vst.msk [vmem:[#allocation3 + $0x58] sm:$0xff] %vm1245, %v1172
      %1258 = vst.msk [vmem:[#allocation3 + $0x60] sm:$0xff] %vm1245, %v1174
      %1259 = vst.msk [vmem:[#allocation3 + $0x68] sm:$0xff] %vm1245, %v1176
      %1260 = vst.msk [vmem:[#allocation3 + $0x70] sm:$0xff] %vm1245, %v1178
      %1261 = vst.msk [vmem:[#allocation3 + $0x78] sm:$0xff] %vm1245, %v1180
      %1262 = vst.msk [vmem:[#allocation3 + $0x80] sm:$0xff] %vm1245, %v1182
      %1263 = vst.msk [vmem:[#allocation3 + $0x88] sm:$0xff] %vm1245, %v1184
      %1264 = vst.msk [vmem:[#allocation3 + $0x90] sm:$0xff] %vm1245, %v1186
      %1265 = vst.msk [vmem:[#allocation3 + $0x98] sm:$0xff] %vm1245, %v1188
      %1266 = vst.msk [vmem:[#allocation3 + $0xa0] sm:$0xff] %vm1245, %v1190
      %1267 = vst.msk [vmem:[#allocation3 + $0xa8] sm:$0xff] %vm1245, %v1192
      %1268 = vst.msk [vmem:[#allocation3 + $0xb0] sm:$0xff] %vm1245, %v1194
      %1269 = vst.msk [vmem:[#allocation3 + $0xb8] sm:$0xff] %vm1245, %v1196
      %1270 = vst.msk [vmem:[#allocation3 + $0xc0] sm:$0xff] %vm1245, %v1198
      %1271 = vst.msk [vmem:[#allocation3 + $0xc8] sm:$0xff] %vm1245, %v1200
      %1272 = vst.msk [vmem:[#allocation3 + $0xd0] sm:$0xff] %vm1245, %v1202
      %1273 = vst.msk [vmem:[#allocation3 + $0xd8] sm:$0xff] %vm1245, %v1204
      %1274 = vst.msk [vmem:[#allocation3 + $0xe0] sm:$0xff] %vm1245, %v1206
      %1275 = vst.msk [vmem:[#allocation3 + $0xe8] sm:$0xff] %vm1245, %v1208
      %1276 = vst.msk [vmem:[#allocation3 + $0xf0] sm:$0xff] %vm1245, %v1210
      %1277 = vst.msk [vmem:[#allocation3 + $0xf8] sm:$0xff] %vm1245, %v1212
      %v1278 = vrot.slane %v506, 2
      %v1279 = vrot.slane %v507, 2
      %v1280 = vsel %vm802, %v1278, %v1279
      %v1281 = vrot.slane %v508, 2
      %v1282 = vsel %vm802, %v1279, %v1281
      %1283 = vrot.lane.b32.xlu0 %v810, 40
      %v1284 = vpop.permute.xlu0 %1283
      %1285 = vrot.lane.b32.xlu0 %v812, 40
      %v1286 = vpop.permute.xlu0 %1285
      %1287 = vrot.lane.b32.xlu0 %v815, 40
      %v1288 = vpop.permute.xlu0 %1287
      %1289 = vrot.lane.b32.xlu0 %v817, 40
      %v1290 = vpop.permute.xlu0 %1289
      %1291 = vrot.lane.b32.xlu0 %v820, 40
      %v1292 = vpop.permute.xlu0 %1291
      %1293 = vrot.lane.b32.xlu0 %v822, 40
      %v1294 = vpop.permute.xlu0 %1293
      %1295 = vrot.lane.b32.xlu0 %v825, 40
      %v1296 = vpop.permute.xlu0 %1295
      %1297 = vrot.lane.b32.xlu0 %v827, 40
      %v1298 = vpop.permute.xlu0 %1297
      %1299 = vrot.lane.b32.xlu0 %v830, 40
      %v1300 = vpop.permute.xlu0 %1299
      %1301 = vrot.lane.b32.xlu0 %v832, 40
      %v1302 = vpop.permute.xlu0 %1301
      %1303 = vrot.lane.b32.xlu0 %v835, 40
      %v1304 = vpop.permute.xlu0 %1303
      %1305 = vrot.lane.b32.xlu0 %v837, 40
      %v1306 = vpop.permute.xlu0 %1305
      %1307 = vrot.lane.b32.xlu0 %v840, 40
      %v1308 = vpop.permute.xlu0 %1307
      %1309 = vrot.lane.b32.xlu0 %v842, 40
      %v1310 = vpop.permute.xlu0 %1309
      %1311 = vrot.lane.b32.xlu0 %v845, 40
      %v1312 = vpop.permute.xlu0 %1311
      %1313 = vrot.lane.b32.xlu0 %v847, 40
      %v1314 = vpop.permute.xlu0 %1313
      %1315 = vrot.lane.b32.xlu0 %v850, 40
      %v1316 = vpop.permute.xlu0 %1315
      %1317 = vrot.lane.b32.xlu0 %v852, 40
      %v1318 = vpop.permute.xlu0 %1317
      %1319 = vrot.lane.b32.xlu0 %v855, 40
      %v1320 = vpop.permute.xlu0 %1319
      %1321 = vrot.lane.b32.xlu0 %v857, 40
      %v1322 = vpop.permute.xlu0 %1321
      %1323 = vrot.lane.b32.xlu0 %v860, 40
      %v1324 = vpop.permute.xlu0 %1323
      %1325 = vrot.lane.b32.xlu0 %v862, 40
      %v1326 = vpop.permute.xlu0 %1325
      %1327 = vrot.lane.b32.xlu0 %v865, 40
      %v1328 = vpop.permute.xlu0 %1327
      %1329 = vrot.lane.b32.xlu0 %v867, 40
      %v1330 = vpop.permute.xlu0 %1329
      %1331 = vrot.lane.b32.xlu0 %v870, 40
      %v1332 = vpop.permute.xlu0 %1331
      %1333 = vrot.lane.b32.xlu0 %v872, 40
      %v1334 = vpop.permute.xlu0 %1333
      %1335 = vrot.lane.b32.xlu0 %v875, 40
      %v1336 = vpop.permute.xlu0 %1335
      %1337 = vrot.lane.b32.xlu0 %v877, 40
      %v1338 = vpop.permute.xlu0 %1337
      %1339 = vrot.lane.b32.xlu0 %v880, 40
      %v1340 = vpop.permute.xlu0 %1339
      %1341 = vrot.lane.b32.xlu0 %v882, 40
      %v1342 = vpop.permute.xlu0 %1341
      %1343 = vrot.lane.b32.xlu0 %v1280, 40
      %v1344 = vpop.permute.xlu0 %1343
      %1345 = vrot.lane.b32.xlu0 %v1282, 40
      %v1346 = vpop.permute.xlu0 %1345
      %vm1379 = vcmask 392512
      %1380 = vst.msk [vmem:[#allocation3] sm:$0xff] %vm1379, %v1284
      %1381 = vst.msk [vmem:[#allocation3 + $0x8] sm:$0xff] %vm1379, %v1286
      %1382 = vst.msk [vmem:[#allocation3 + $0x10] sm:$0xff] %vm1379, %v1288
      %1383 = vst.msk [vmem:[#allocation3 + $0x18] sm:$0xff] %vm1379, %v1290
      %1384 = vst.msk [vmem:[#allocation3 + $0x20] sm:$0xff] %vm1379, %v1292
      %1385 = vst.msk [vmem:[#allocation3 + $0x28] sm:$0xff] %vm1379, %v1294
      %1386 = vst.msk [vmem:[#allocation3 + $0x30] sm:$0xff] %vm1379, %v1296
      %1387 = vst.msk [vmem:[#allocation3 + $0x38] sm:$0xff] %vm1379, %v1298
      %1388 = vst.msk [vmem:[#allocation3 + $0x40] sm:$0xff] %vm1379, %v1300
      %1389 = vst.msk [vmem:[#allocation3 + $0x48] sm:$0xff] %vm1379, %v1302
      %1390 = vst.msk [vmem:[#allocation3 + $0x50] sm:$0xff] %vm1379, %v1304
      %1391 = vst.msk [vmem:[#allocation3 + $0x58] sm:$0xff] %vm1379, %v1306
      %1392 = vst.msk [vmem:[#allocation3 + $0x60] sm:$0xff] %vm1379, %v1308
      %1393 = vst.msk [vmem:[#allocation3 + $0x68] sm:$0xff] %vm1379, %v1310
      %1394 = vst.msk [vmem:[#allocation3 + $0x70] sm:$0xff] %vm1379, %v1312
      %1395 = vst.msk [vmem:[#allocation3 + $0x78] sm:$0xff] %vm1379, %v1314
      %1396 = vst.msk [vmem:[#allocation3 + $0x80] sm:$0xff] %vm1379, %v1316
      %1397 = vst.msk [vmem:[#allocation3 + $0x88] sm:$0xff] %vm1379, %v1318
      %1398 = vst.msk [vmem:[#allocation3 + $0x90] sm:$0xff] %vm1379, %v1320
      %1399 = vst.msk [vmem:[#allocation3 + $0x98] sm:$0xff] %vm1379, %v1322
      %1400 = vst.msk [vmem:[#allocation3 + $0xa0] sm:$0xff] %vm1379, %v1324
      %1401 = vst.msk [vmem:[#allocation3 + $0xa8] sm:$0xff] %vm1379, %v1326
      %1402 = vst.msk [vmem:[#allocation3 + $0xb0] sm:$0xff] %vm1379, %v1328
      %1403 = vst.msk [vmem:[#allocation3 + $0xb8] sm:$0xff] %vm1379, %v1330
      %1404 = vst.msk [vmem:[#allocation3 + $0xc0] sm:$0xff] %vm1379, %v1332
      %1405 = vst.msk [vmem:[#allocation3 + $0xc8] sm:$0xff] %vm1379, %v1334
      %1406 = vst.msk [vmem:[#allocation3 + $0xd0] sm:$0xff] %vm1379, %v1336
      %1407 = vst.msk [vmem:[#allocation3 + $0xd8] sm:$0xff] %vm1379, %v1338
      %1408 = vst.msk [vmem:[#allocation3 + $0xe0] sm:$0xff] %vm1379, %v1340
      %1409 = vst.msk [vmem:[#allocation3 + $0xe8] sm:$0xff] %vm1379, %v1342
      %1410 = vst.msk [vmem:[#allocation3 + $0xf0] sm:$0xff] %vm1379, %v1344
      %1411 = vst.msk [vmem:[#allocation3 + $0xf8] sm:$0xff] %vm1379, %v1346
      %1414 = vrot.lane.b32.xlu0 %v464, 48
      %v1415 = vpop.permute.xlu0 %1414
      %1416 = vrot.lane.b32.xlu0 %v465, 48
      %v1417 = vpop.permute.xlu0 %1416
      %1418 = vrot.lane.b32.xlu0 %v467, 48
      %v1419 = vpop.permute.xlu0 %1418
      %1420 = vrot.lane.b32.xlu0 %v468, 48
      %v1421 = vpop.permute.xlu0 %1420
      %1422 = vrot.lane.b32.xlu0 %v470, 48
      %v1423 = vpop.permute.xlu0 %1422
      %1424 = vrot.lane.b32.xlu0 %v471, 48
      %v1425 = vpop.permute.xlu0 %1424
      %1426 = vrot.lane.b32.xlu0 %v473, 48
      %v1427 = vpop.permute.xlu0 %1426
      %1428 = vrot.lane.b32.xlu0 %v474, 48
      %v1429 = vpop.permute.xlu0 %1428
      %1430 = vrot.lane.b32.xlu0 %v476, 48
      %v1431 = vpop.permute.xlu0 %1430
      %1432 = vrot.lane.b32.xlu0 %v477, 48
      %v1433 = vpop.permute.xlu0 %1432
      %1434 = vrot.lane.b32.xlu0 %v479, 48
      %v1435 = vpop.permute.xlu0 %1434
      %1436 = vrot.lane.b32.xlu0 %v480, 48
      %v1437 = vpop.permute.xlu0 %1436
      %1438 = vrot.lane.b32.xlu0 %v482, 48
      %v1439 = vpop.permute.xlu0 %1438
      %1440 = vrot.lane.b32.xlu0 %v483, 48
      %v1441 = vpop.permute.xlu0 %1440
      %1442 = vrot.lane.b32.xlu0 %v485, 48
      %v1443 = vpop.permute.xlu0 %1442
      %1444 = vrot.lane.b32.xlu0 %v486, 48
      %v1445 = vpop.permute.xlu0 %1444
      %1446 = vrot.lane.b32.xlu0 %v488, 48
      %v1447 = vpop.permute.xlu0 %1446
      %1448 = vrot.lane.b32.xlu0 %v489, 48
      %v1449 = vpop.permute.xlu0 %1448
      %1450 = vrot.lane.b32.xlu0 %v491, 48
      %v1451 = vpop.permute.xlu0 %1450
      %1452 = vrot.lane.b32.xlu0 %v492, 48
      %v1453 = vpop.permute.xlu0 %1452
      %1454 = vrot.lane.b32.xlu0 %v494, 48
      %v1455 = vpop.permute.xlu0 %1454
      %1456 = vrot.lane.b32.xlu0 %v495, 48
      %v1457 = vpop.permute.xlu0 %1456
      %1458 = vrot.lane.b32.xlu0 %v497, 48
      %v1459 = vpop.permute.xlu0 %1458
      %1460 = vrot.lane.b32.xlu0 %v498, 48
      %v1461 = vpop.permute.xlu0 %1460
      %1462 = vrot.lane.b32.xlu0 %v500, 48
      %v1463 = vpop.permute.xlu0 %1462
      %1464 = vrot.lane.b32.xlu0 %v501, 48
      %v1465 = vpop.permute.xlu0 %1464
      %1466 = vrot.lane.b32.xlu0 %v503, 48
      %v1467 = vpop.permute.xlu0 %1466
      %1468 = vrot.lane.b32.xlu0 %v504, 48
      %v1469 = vpop.permute.xlu0 %1468
      %1470 = vrot.lane.b32.xlu0 %v506, 48
      %v1471 = vpop.permute.xlu0 %1470
      %1472 = vrot.lane.b32.xlu0 %v507, 48
      %v1473 = vpop.permute.xlu0 %1472
      %1474 = vrot.lane.b32.xlu0 %v509, 48
      %v1475 = vpop.permute.xlu0 %1474
      %1476 = vrot.lane.b32.xlu0 %v510, 48
      %v1477 = vpop.permute.xlu0 %1476
      %vm1510 = vcmask 458112
      %1511 = vst.msk [vmem:[#allocation3] sm:$0xff] %vm1510, %v1415
      %1512 = vst.msk [vmem:[#allocation3 + $0x8] sm:$0xff] %vm1510, %v1417
      %1513 = vst.msk [vmem:[#allocation3 + $0x10] sm:$0xff] %vm1510, %v1419
      %1514 = vst.msk [vmem:[#allocation3 + $0x18] sm:$0xff] %vm1510, %v1421
      %1515 = vst.msk [vmem:[#allocation3 + $0x20] sm:$0xff] %vm1510, %v1423
      %1516 = vst.msk [vmem:[#allocation3 + $0x28] sm:$0xff] %vm1510, %v1425
      %1517 = vst.msk [vmem:[#allocation3 + $0x30] sm:$0xff] %vm1510, %v1427
      %1518 = vst.msk [vmem:[#allocation3 + $0x38] sm:$0xff] %vm1510, %v1429
      %1519 = vst.msk [vmem:[#allocation3 + $0x40] sm:$0xff] %vm1510, %v1431
      %1520 = vst.msk [vmem:[#allocation3 + $0x48] sm:$0xff] %vm1510, %v1433
      %1521 = vst.msk [vmem:[#allocation3 + $0x50] sm:$0xff] %vm1510, %v1435
      %1522 = vst.msk [vmem:[#allocation3 + $0x58] sm:$0xff] %vm1510, %v1437
      %1523 = vst.msk [vmem:[#allocation3 + $0x60] sm:$0xff] %vm1510, %v1439
      %1524 = vst.msk [vmem:[#allocation3 + $0x68] sm:$0xff] %vm1510, %v1441
      %1525 = vst.msk [vmem:[#allocation3 + $0x70] sm:$0xff] %vm1510, %v1443
      %1526 = vst.msk [vmem:[#allocation3 + $0x78] sm:$0xff] %vm1510, %v1445
      %1527 = vst.msk [vmem:[#allocation3 + $0x80] sm:$0xff] %vm1510, %v1447
      %1528 = vst.msk [vmem:[#allocation3 + $0x88] sm:$0xff] %vm1510, %v1449
      %1529 = vst.msk [vmem:[#allocation3 + $0x90] sm:$0xff] %vm1510, %v1451
      %1530 = vst.msk [vmem:[#allocation3 + $0x98] sm:$0xff] %vm1510, %v1453
      %1531 = vst.msk [vmem:[#allocation3 + $0xa0] sm:$0xff] %vm1510, %v1455
      %1532 = vst.msk [vmem:[#allocation3 + $0xa8] sm:$0xff] %vm1510, %v1457
      %1533 = vst.msk [vmem:[#allocation3 + $0xb0] sm:$0xff] %vm1510, %v1459
      %1534 = vst.msk [vmem:[#allocation3 + $0xb8] sm:$0xff] %vm1510, %v1461
      %1535 = vst.msk [vmem:[#allocation3 + $0xc0] sm:$0xff] %vm1510, %v1463
      %1536 = vst.msk [vmem:[#allocation3 + $0xc8] sm:$0xff] %vm1510, %v1465
      %1537 = vst.msk [vmem:[#allocation3 + $0xd0] sm:$0xff] %vm1510, %v1467
      %1538 = vst.msk [vmem:[#allocation3 + $0xd8] sm:$0xff] %vm1510, %v1469
      %1539 = vst.msk [vmem:[#allocation3 + $0xe0] sm:$0xff] %vm1510, %v1471
      %1540 = vst.msk [vmem:[#allocation3 + $0xe8] sm:$0xff] %vm1510, %v1473
      %1541 = vst.msk [vmem:[#allocation3 + $0xf0] sm:$0xff] %vm1510, %v1475
      %1542 = vst.msk [vmem:[#allocation3 + $0xf8] sm:$0xff] %vm1510, %v1477
      %v1544 = vrot.slane %v509, 1
      %v1545 = vrot.slane %v510, 1
      %v1546 = vsel %vm592, %v1544, %v1545
      %v1547 = vrot.slane %v511, 1
      %v1548 = vsel %vm592, %v1545, %v1547
      %1549 = vrot.lane.b32.xlu0 %v605, 56
      %v1550 = vpop.permute.xlu0 %1549
      %1551 = vrot.lane.b32.xlu0 %v607, 56
      %v1552 = vpop.permute.xlu0 %1551
      %1553 = vrot.lane.b32.xlu0 %v610, 56
      %v1554 = vpop.permute.xlu0 %1553
      %1555 = vrot.lane.b32.xlu0 %v612, 56
      %v1556 = vpop.permute.xlu0 %1555
      %1557 = vrot.lane.b32.xlu0 %v615, 56
      %v1558 = vpop.permute.xlu0 %1557
      %1559 = vrot.lane.b32.xlu0 %v617, 56
      %v1560 = vpop.permute.xlu0 %1559
      %1561 = vrot.lane.b32.xlu0 %v620, 56
      %v1562 = vpop.permute.xlu0 %1561
      %1563 = vrot.lane.b32.xlu0 %v622, 56
      %v1564 = vpop.permute.xlu0 %1563
      %1565 = vrot.lane.b32.xlu0 %v625, 56
      %v1566 = vpop.permute.xlu0 %1565
      %1567 = vrot.lane.b32.xlu0 %v627, 56
      %v1568 = vpop.permute.xlu0 %1567
      %1569 = vrot.lane.b32.xlu0 %v630, 56
      %v1570 = vpop.permute.xlu0 %1569
      %1571 = vrot.lane.b32.xlu0 %v632, 56
      %v1572 = vpop.permute.xlu0 %1571
      %1573 = vrot.lane.b32.xlu0 %v635, 56
      %v1574 = vpop.permute.xlu0 %1573
      %1575 = vrot.lane.b32.xlu0 %v637, 56
      %v1576 = vpop.permute.xlu0 %1575
      %1577 = vrot.lane.b32.xlu0 %v640, 56
      %v1578 = vpop.permute.xlu0 %1577
      %1579 = vrot.lane.b32.xlu0 %v642, 56
      %v1580 = vpop.permute.xlu0 %1579
      %1581 = vrot.lane.b32.xlu0 %v645, 56
      %v1582 = vpop.permute.xlu0 %1581
      %1583 = vrot.lane.b32.xlu0 %v647, 56
      %v1584 = vpop.permute.xlu0 %1583
      %1585 = vrot.lane.b32.xlu0 %v650, 56
      %v1586 = vpop.permute.xlu0 %1585
      %1587 = vrot.lane.b32.xlu0 %v652, 56
      %v1588 = vpop.permute.xlu0 %1587
      %1589 = vrot.lane.b32.xlu0 %v655, 56
      %v1590 = vpop.permute.xlu0 %1589
      %1591 = vrot.lane.b32.xlu0 %v657, 56
      %v1592 = vpop.permute.xlu0 %1591
      %1593 = vrot.lane.b32.xlu0 %v660, 56
      %v1594 = vpop.permute.xlu0 %1593
      %1595 = vrot.lane.b32.xlu0 %v662, 56
      %v1596 = vpop.permute.xlu0 %1595
      %1597 = vrot.lane.b32.xlu0 %v665, 56
      %v1598 = vpop.permute.xlu0 %1597
      %1599 = vrot.lane.b32.xlu0 %v667, 56
      %v1600 = vpop.permute.xlu0 %1599
      %1601 = vrot.lane.b32.xlu0 %v670, 56
      %v1602 = vpop.permute.xlu0 %1601
      %1603 = vrot.lane.b32.xlu0 %v672, 56
      %v1604 = vpop.permute.xlu0 %1603
      %1605 = vrot.lane.b32.xlu0 %v1146, 56
      %v1606 = vpop.permute.xlu0 %1605
      %1607 = vrot.lane.b32.xlu0 %v1148, 56
      %v1608 = vpop.permute.xlu0 %1607
      %1609 = vrot.lane.b32.xlu0 %v1546, 56
      %v1610 = vpop.permute.xlu0 %1609
      %1611 = vrot.lane.b32.xlu0 %v1548, 56
      %v1612 = vpop.permute.xlu0 %1611
      %vm1645 = vcmask 523712
      %1646 = vst.msk [vmem:[#allocation3] sm:$0xff] %vm1645, %v1550
      %1647 = vst.msk [vmem:[#allocation3 + $0x8] sm:$0xff] %vm1645, %v1552
      %1648 = vst.msk [vmem:[#allocation3 + $0x10] sm:$0xff] %vm1645, %v1554
      %1649 = vst.msk [vmem:[#allocation3 + $0x18] sm:$0xff] %vm1645, %v1556
      %1650 = vst.msk [vmem:[#allocation3 + $0x20] sm:$0xff] %vm1645, %v1558
      %1651 = vst.msk [vmem:[#allocation3 + $0x28] sm:$0xff] %vm1645, %v1560
      %1652 = vst.msk [vmem:[#allocation3 + $0x30] sm:$0xff] %vm1645, %v1562
      %1653 = vst.msk [vmem:[#allocation3 + $0x38] sm:$0xff] %vm1645, %v1564
      %1654 = vst.msk [vmem:[#allocation3 + $0x40] sm:$0xff] %vm1645, %v1566
      %1655 = vst.msk [vmem:[#allocation3 + $0x48] sm:$0xff] %vm1645, %v1568
      %1656 = vst.msk [vmem:[#allocation3 + $0x50] sm:$0xff] %vm1645, %v1570
      %1657 = vst.msk [vmem:[#allocation3 + $0x58] sm:$0xff] %vm1645, %v1572
      %1658 = vst.msk [vmem:[#allocation3 + $0x60] sm:$0xff] %vm1645, %v1574
      %1659 = vst.msk [vmem:[#allocation3 + $0x68] sm:$0xff] %vm1645, %v1576
      %1660 = vst.msk [vmem:[#allocation3 + $0x70] sm:$0xff] %vm1645, %v1578
      %1661 = vst.msk [vmem:[#allocation3 + $0x78] sm:$0xff] %vm1645, %v1580
      %1662 = vst.msk [vmem:[#allocation3 + $0x80] sm:$0xff] %vm1645, %v1582
      %1663 = vst.msk [vmem:[#allocation3 + $0x88] sm:$0xff] %vm1645, %v1584
      %1664 = vst.msk [vmem:[#allocation3 + $0x90] sm:$0xff] %vm1645, %v1586
      %1665 = vst.msk [vmem:[#allocation3 + $0x98] sm:$0xff] %vm1645, %v1588
      %1666 = vst.msk [vmem:[#allocation3 + $0xa0] sm:$0xff] %vm1645, %v1590
      %1667 = vst.msk [vmem:[#allocation3 + $0xa8] sm:$0xff] %vm1645, %v1592
      %1668 = vst.msk [vmem:[#allocation3 + $0xb0] sm:$0xff] %vm1645, %v1594
      %1669 = vst.msk [vmem:[#allocation3 + $0xb8] sm:$0xff] %vm1645, %v1596
      %1670 = vst.msk [vmem:[#allocation3 + $0xc0] sm:$0xff] %vm1645, %v1598
      %1671 = vst.msk [vmem:[#allocation3 + $0xc8] sm:$0xff] %vm1645, %v1600
      %1672 = vst.msk [vmem:[#allocation3 + $0xd0] sm:$0xff] %vm1645, %v1602
      %1673 = vst.msk [vmem:[#allocation3 + $0xd8] sm:$0xff] %vm1645, %v1604
      %1674 = vst.msk [vmem:[#allocation3 + $0xe0] sm:$0xff] %vm1645, %v1606
      %1675 = vst.msk [vmem:[#allocation3 + $0xe8] sm:$0xff] %vm1645, %v1608
      %1676 = vst.msk [vmem:[#allocation3 + $0xf0] sm:$0xff] %vm1645, %v1610
      %1677 = vst.msk [vmem:[#allocation3 + $0xf8] sm:$0xff] %vm1645, %v1612
      %v1678 = vrot.slane %v509, 2
      %v1679 = vrot.slane %v510, 2
      %v1680 = vsel %vm802, %v1678, %v1679
      %v1681 = vrot.slane %v511, 2
      %v1682 = vsel %vm802, %v1679, %v1681
      %1683 = vrot.lane.b32.xlu0 %v815, 64
      %v1684 = vpop.permute.xlu0 %1683
      %1685 = vrot.lane.b32.xlu0 %v817, 64
      %v1686 = vpop.permute.xlu0 %1685
      %1687 = vrot.lane.b32.xlu0 %v820, 64
      %v1688 = vpop.permute.xlu0 %1687
      %1689 = vrot.lane.b32.xlu0 %v822, 64
      %v1690 = vpop.permute.xlu0 %1689
      %1691 = vrot.lane.b32.xlu0 %v825, 64
      %v1692 = vpop.permute.xlu0 %1691
      %1693 = vrot.lane.b32.xlu0 %v827, 64
      %v1694 = vpop.permute.xlu0 %1693
      %1695 = vrot.lane.b32.xlu0 %v830, 64
      %v1696 = vpop.permute.xlu0 %1695
      %1697 = vrot.lane.b32.xlu0 %v832, 64
      %v1698 = vpop.permute.xlu0 %1697
      %1699 = vrot.lane.b32.xlu0 %v835, 64
      %v1700 = vpop.permute.xlu0 %1699
      %1701 = vrot.lane.b32.xlu0 %v837, 64
      %v1702 = vpop.permute.xlu0 %1701
      %1703 = vrot.lane.b32.xlu0 %v840, 64
      %v1704 = vpop.permute.xlu0 %1703
      %1705 = vrot.lane.b32.xlu0 %v842, 64
      %v1706 = vpop.permute.xlu0 %1705
      %1707 = vrot.lane.b32.xlu0 %v845, 64
      %v1708 = vpop.permute.xlu0 %1707
      %1709 = vrot.lane.b32.xlu0 %v847, 64
      %v1710 = vpop.permute.xlu0 %1709
      %1711 = vrot.lane.b32.xlu0 %v850, 64
      %v1712 = vpop.permute.xlu0 %1711
      %1713 = vrot.lane.b32.xlu0 %v852, 64
      %v1714 = vpop.permute.xlu0 %1713
      %1715 = vrot.lane.b32.xlu0 %v855, 64
      %v1716 = vpop.permute.xlu0 %1715
      %1717 = vrot.lane.b32.xlu0 %v857, 64
      %v1718 = vpop.permute.xlu0 %1717
      %1719 = vrot.lane.b32.xlu0 %v860, 64
      %v1720 = vpop.permute.xlu0 %1719
      %1721 = vrot.lane.b32.xlu0 %v862, 64
      %v1722 = vpop.permute.xlu0 %1721
      %1723 = vrot.lane.b32.xlu0 %v865, 64
      %v1724 = vpop.permute.xlu0 %1723
      %1725 = vrot.lane.b32.xlu0 %v867, 64
      %v1726 = vpop.permute.xlu0 %1725
      %1727 = vrot.lane.b32.xlu0 %v870, 64
      %v1728 = vpop.permute.xlu0 %1727
      %1729 = vrot.lane.b32.xlu0 %v872, 64
      %v1730 = vpop.permute.xlu0 %1729
      %1731 = vrot.lane.b32.xlu0 %v875, 64
      %v1732 = vpop.permute.xlu0 %1731
      %1733 = vrot.lane.b32.xlu0 %v877, 64
      %v1734 = vpop.permute.xlu0 %1733
      %1735 = vrot.lane.b32.xlu0 %v880, 64
      %v1736 = vpop.permute.xlu0 %1735
      %1737 = vrot.lane.b32.xlu0 %v882, 64
      %v1738 = vpop.permute.xlu0 %1737
      %1739 = vrot.lane.b32.xlu0 %v1280, 64
      %v1740 = vpop.permute.xlu0 %1739
      %1741 = vrot.lane.b32.xlu0 %v1282, 64
      %v1742 = vpop.permute.xlu0 %1741
      %1743 = vrot.lane.b32.xlu0 %v1680, 64
      %v1744 = vpop.permute.xlu0 %1743
      %1745 = vrot.lane.b32.xlu0 %v1682, 64
      %v1746 = vpop.permute.xlu0 %1745
      %vm1779 = vcmask 589312
      %1780 = vst.msk [vmem:[#allocation3] sm:$0xff] %vm1779, %v1684
      %1781 = vst.msk [vmem:[#allocation3 + $0x8] sm:$0xff] %vm1779, %v1686
      %1782 = vst.msk [vmem:[#allocation3 + $0x10] sm:$0xff] %vm1779, %v1688
      %1783 = vst.msk [vmem:[#allocation3 + $0x18] sm:$0xff] %vm1779, %v1690
      %1784 = vst.msk [vmem:[#allocation3 + $0x20] sm:$0xff] %vm1779, %v1692
      %1785 = vst.msk [vmem:[#allocation3 + $0x28] sm:$0xff] %vm1779, %v1694
      %1786 = vst.msk [vmem:[#allocation3 + $0x30] sm:$0xff] %vm1779, %v1696
      %1787 = vst.msk [vmem:[#allocation3 + $0x38] sm:$0xff] %vm1779, %v1698
      %1788 = vst.msk [vmem:[#allocation3 + $0x40] sm:$0xff] %vm1779, %v1700
      %1789 = vst.msk [vmem:[#allocation3 + $0x48] sm:$0xff] %vm1779, %v1702
      %1790 = vst.msk [vmem:[#allocation3 + $0x50] sm:$0xff] %vm1779, %v1704
      %1791 = vst.msk [vmem:[#allocation3 + $0x58] sm:$0xff] %vm1779, %v1706
      %1792 = vst.msk [vmem:[#allocation3 + $0x60] sm:$0xff] %vm1779, %v1708
      %1793 = vst.msk [vmem:[#allocation3 + $0x68] sm:$0xff] %vm1779, %v1710
      %1794 = vst.msk [vmem:[#allocation3 + $0x70] sm:$0xff] %vm1779, %v1712
      %1795 = vst.msk [vmem:[#allocation3 + $0x78] sm:$0xff] %vm1779, %v1714
      %1796 = vst.msk [vmem:[#allocation3 + $0x80] sm:$0xff] %vm1779, %v1716
      %1797 = vst.msk [vmem:[#allocation3 + $0x88] sm:$0xff] %vm1779, %v1718
      %1798 = vst.msk [vmem:[#allocation3 + $0x90] sm:$0xff] %vm1779, %v1720
      %1799 = vst.msk [vmem:[#allocation3 + $0x98] sm:$0xff] %vm1779, %v1722
      %1800 = vst.msk [vmem:[#allocation3 + $0xa0] sm:$0xff] %vm1779, %v1724
      %1801 = vst.msk [vmem:[#allocation3 + $0xa8] sm:$0xff] %vm1779, %v1726
      %1802 = vst.msk [vmem:[#allocation3 + $0xb0] sm:$0xff] %vm1779, %v1728
      %1803 = vst.msk [vmem:[#allocation3 + $0xb8] sm:$0xff] %vm1779, %v1730
      %1804 = vst.msk [vmem:[#allocation3 + $0xc0] sm:$0xff] %vm1779, %v1732
      %1805 = vst.msk [vmem:[#allocation3 + $0xc8] sm:$0xff] %vm1779, %v1734
      %1806 = vst.msk [vmem:[#allocation3 + $0xd0] sm:$0xff] %vm1779, %v1736
      %1807 = vst.msk [vmem:[#allocation3 + $0xd8] sm:$0xff] %vm1779, %v1738
      %1808 = vst.msk [vmem:[#allocation3 + $0xe0] sm:$0xff] %vm1779, %v1740
      %1809 = vst.msk [vmem:[#allocation3 + $0xe8] sm:$0xff] %vm1779, %v1742
      %1810 = vst.msk [vmem:[#allocation3 + $0xf0] sm:$0xff] %vm1779, %v1744
      %1811 = vst.msk [vmem:[#allocation3 + $0xf8] sm:$0xff] %vm1779, %v1746
      %v1812 = vld [vmem:[#allocation3] sm:$0xff]
      %v1813 = vld [vmem:[#allocation3 + $0x8] sm:$0xff]
      %v1814 = vld [vmem:[#allocation3 + $0x10] sm:$0xff]
      %v1815 = vld [vmem:[#allocation3 + $0x18] sm:$0xff]
      %v1816 = vld [vmem:[#allocation3 + $0x20] sm:$0xff]
      %v1817 = vld [vmem:[#allocation3 + $0x28] sm:$0xff]
      %v1818 = vld [vmem:[#allocation3 + $0x30] sm:$0xff]
      %v1819 = vld [vmem:[#allocation3 + $0x38] sm:$0xff]
      %v1820 = vld [vmem:[#allocation3 + $0x40] sm:$0xff]
      %v1821 = vld [vmem:[#allocation3 + $0x48] sm:$0xff]
      %v1822 = vld [vmem:[#allocation3 + $0x50] sm:$0xff]
      %v1823 = vld [vmem:[#allocation3 + $0x58] sm:$0xff]
      %v1824 = vld [vmem:[#allocation3 + $0x60] sm:$0xff]
      %v1825 = vld [vmem:[#allocation3 + $0x68] sm:$0xff]
      %v1826 = vld [vmem:[#allocation3 + $0x70] sm:$0xff]
      %v1827 = vld [vmem:[#allocation3 + $0x78] sm:$0xff]
      %v1828 = vld [vmem:[#allocation3 + $0x80] sm:$0xff]
      %v1829 = vld [vmem:[#allocation3 + $0x88] sm:$0xff]
      %v1830 = vld [vmem:[#allocation3 + $0x90] sm:$0xff]
      %v1831 = vld [vmem:[#allocation3 + $0x98] sm:$0xff]
      %v1832 = vld [vmem:[#allocation3 + $0xa0] sm:$0xff]
      %v1833 = vld [vmem:[#allocation3 + $0xa8] sm:$0xff]
      %v1834 = vld [vmem:[#allocation3 + $0xb0] sm:$0xff]
      %v1835 = vld [vmem:[#allocation3 + $0xb8] sm:$0xff]
      %v1836 = vld [vmem:[#allocation3 + $0xc0] sm:$0xff]
      %v1837 = vld [vmem:[#allocation3 + $0xc8] sm:$0xff]
      %v1838 = vld [vmem:[#allocation3 + $0xd0] sm:$0xff]
      %v1839 = vld [vmem:[#allocation3 + $0xd8] sm:$0xff]
      %v1840 = vld [vmem:[#allocation3 + $0xe0] sm:$0xff]
      %v1841 = vld [vmem:[#allocation3 + $0xe8] sm:$0xff]
      %v1842 = vld [vmem:[#allocation3 + $0xf0] sm:$0xff]
      %v1843 = vld [vmem:[#allocation3 + $0xf8] sm:$0xff]
      %v1844 = vld [vmem:[%s3] sm:$0xff]
      %v1845 = vld [vmem:[%s3 + $0x8] sm:$0xff]
      %v1846 = vld [vmem:[%s3 + $0x10] sm:$0xff]
      %v1847 = vld [vmem:[%s3 + $0x18] sm:$0xff]
      %v1848 = vld [vmem:[%s3 + $0x20] sm:$0xff]
      %v1849 = vld [vmem:[%s3 + $0x28] sm:$0xff]
      %v1850 = vld [vmem:[%s3 + $0x30] sm:$0xff]
      %v1851 = vld [vmem:[%s3 + $0x38] sm:$0xff]
      %v1852 = vld [vmem:[%s3 + $0x40] sm:$0xff]
      %v1853 = vpack.c.bf16 %v1813, %v1812
      %v1854 = vpack.c.bf16 %v1815, %v1814
      %v1855 = vpack.c.bf16 %v1817, %v1816
      %v1856 = vpack.c.bf16 %v1819, %v1818
      %v1857 = vpack.c.bf16 %v1821, %v1820
      %v1858 = vpack.c.bf16 %v1823, %v1822
      %v1859 = vpack.c.bf16 %v1825, %v1824
      %v1860 = vpack.c.bf16 %v1827, %v1826
      %v1861 = vpack.c.bf16 %v1829, %v1828
      %v1862 = vpack.c.bf16 %v1831, %v1830
      %v1863 = vpack.c.bf16 %v1833, %v1832
      %v1864 = vpack.c.bf16 %v1835, %v1834
      %v1865 = vpack.c.bf16 %v1837, %v1836
      %v1866 = vpack.c.bf16 %v1839, %v1838
      %v1867 = vpack.c.bf16 %v1841, %v1840
      %v1868 = vpack.c.bf16 %v1843, %v1842
      %v1869 = vunpack.c.l.bf16 %v1853
      %v1870 = vunpack.c.h.bf16 %v1853
      %v1871 = vunpack.c.l.bf16 %v1854
      %v1872 = vunpack.c.h.bf16 %v1854
      %v1873 = vunpack.c.l.bf16 %v1855
      %v1874 = vunpack.c.h.bf16 %v1855
      %v1875 = vunpack.c.l.bf16 %v1856
      %v1876 = vunpack.c.h.bf16 %v1856
      %v1877 = vunpack.c.l.bf16 %v1857
      %v1878 = vunpack.c.h.bf16 %v1857
      %v1879 = vunpack.c.l.bf16 %v1858
      %v1880 = vunpack.c.h.bf16 %v1858
      %v1881 = vunpack.c.l.bf16 %v1859
      %v1882 = vunpack.c.h.bf16 %v1859
      %v1883 = vunpack.c.l.bf16 %v1860
      %v1884 = vunpack.c.h.bf16 %v1860
      %v1885 = vunpack.c.l.bf16 %v1861
      %v1886 = vunpack.c.h.bf16 %v1861
      %v1887 = vunpack.c.l.bf16 %v1862
      %v1888 = vunpack.c.h.bf16 %v1862
      %v1889 = vunpack.c.l.bf16 %v1863
      %v1890 = vunpack.c.h.bf16 %v1863
      %v1891 = vunpack.c.l.bf16 %v1864
      %v1892 = vunpack.c.h.bf16 %v1864
      %v1893 = vunpack.c.l.bf16 %v1865
      %v1894 = vunpack.c.h.bf16 %v1865
      %v1895 = vunpack.c.l.bf16 %v1866
      %v1896 = vunpack.c.h.bf16 %v1866
      %v1897 = vunpack.c.l.bf16 %v1867
      %v1898 = vunpack.c.h.bf16 %v1867
      %v1899 = vunpack.c.l.bf16 %v1868
      %v1900 = vunpack.c.h.bf16 %v1868
      %v1901 = vsub.f32 %v1812, %v1869
      %v1902 = vsub.f32 %v1813, %v1870
      %v1903 = vsub.f32 %v1814, %v1871
      %v1904 = vsub.f32 %v1815, %v1872
      %v1905 = vsub.f32 %v1816, %v1873
      %v1906 = vsub.f32 %v1817, %v1874
      %v1907 = vsub.f32 %v1818, %v1875
      %v1908 = vsub.f32 %v1819, %v1876
      %v1909 = vsub.f32 %v1820, %v1877
      %v1910 = vsub.f32 %v1821, %v1878
      %v1911 = vsub.f32 %v1822, %v1879
      %v1912 = vsub.f32 %v1823, %v1880
      %v1913 = vsub.f32 %v1824, %v1881
      %v1914 = vsub.f32 %v1825, %v1882
      %v1915 = vsub.f32 %v1826, %v1883
      %v1916 = vsub.f32 %v1827, %v1884
      %v1917 = vsub.f32 %v1828, %v1885
      %v1918 = vsub.f32 %v1829, %v1886
      %v1919 = vsub.f32 %v1830, %v1887
      %v1920 = vsub.f32 %v1831, %v1888
      %v1921 = vsub.f32 %v1832, %v1889
      %v1922 = vsub.f32 %v1833, %v1890
      %v1923 = vsub.f32 %v1834, %v1891
      %v1924 = vsub.f32 %v1835, %v1892
      %v1925 = vsub.f32 %v1836, %v1893
      %v1926 = vsub.f32 %v1837, %v1894
      %v1927 = vsub.f32 %v1838, %v1895
      %v1928 = vsub.f32 %v1839, %v1896
      %v1929 = vsub.f32 %v1840, %v1897
      %v1930 = vsub.f32 %v1841, %v1898
      %v1931 = vsub.f32 %v1842, %v1899
      %v1932 = vsub.f32 %v1843, %v1900
      %v1933 = vpack.c.bf16 %v1902, %v1901
      %v1934 = vpack.c.bf16 %v1904, %v1903
      %v1935 = vpack.c.bf16 %v1906, %v1905
      %v1936 = vpack.c.bf16 %v1908, %v1907
      %v1937 = vpack.c.bf16 %v1910, %v1909
      %v1938 = vpack.c.bf16 %v1912, %v1911
      %v1939 = vpack.c.bf16 %v1914, %v1913
      %v1940 = vpack.c.bf16 %v1916, %v1915
      %v1941 = vpack.c.bf16 %v1918, %v1917
      %v1942 = vpack.c.bf16 %v1920, %v1919
      %v1943 = vpack.c.bf16 %v1922, %v1921
      %v1944 = vpack.c.bf16 %v1924, %v1923
      %v1945 = vpack.c.bf16 %v1926, %v1925
      %v1946 = vpack.c.bf16 %v1928, %v1927
      %v1947 = vpack.c.bf16 %v1930, %v1929
      %v1948 = vpack.c.bf16 %v1932, %v1931
      %v1949 = vpack.c.bf16 %v1845, %v1844
      %v1950 = vpack.c.bf16 %v1847, %v1846
      %v1951 = vpack.c.bf16 %v1849, %v1848
      %v1952 = vpack.c.bf16 %v1851, %v1850
      %v1953 = vpack.c.bf16 %v1852, %v1852
      %v1954 = vunpack.c.l.bf16 %v1949
      %v1955 = vunpack.c.h.bf16 %v1949
      %v1956 = vunpack.c.l.bf16 %v1950
      %v1957 = vunpack.c.h.bf16 %v1950
      %v1958 = vunpack.c.l.bf16 %v1951
      %v1959 = vunpack.c.h.bf16 %v1951
      %v1960 = vunpack.c.l.bf16 %v1952
      %v1961 = vunpack.c.h.bf16 %v1952
      %v1962 = vunpack.c.l.bf16 %v1953
      %v1963 = vsub.f32 %v1844, %v1954
      %v1964 = vsub.f32 %v1845, %v1955
      %v1965 = vsub.f32 %v1846, %v1956
      %v1966 = vsub.f32 %v1847, %v1957
      %v1967 = vsub.f32 %v1848, %v1958
      %v1968 = vsub.f32 %v1849, %v1959
      %v1969 = vsub.f32 %v1850, %v1960
      %v1970 = vsub.f32 %v1851, %v1961
      %v1971 = vsub.f32 %v1852, %v1962
      %v1972 = vpack.c.bf16 %v1964, %v1963
      %v1973 = vpack.c.bf16 %v1966, %v1965
      %v1974 = vpack.c.bf16 %v1968, %v1967
      %v1975 = vpack.c.bf16 %v1970, %v1969
      %v1976 = vpack.c.bf16 %v1971, %v1971
      %vm1977 = vcmask 588800
      %v1979 = vsel %vm1977, %v1933, 0
      %v1982 = vsel %vm1977, %v1934, 0
      %v1985 = vsel %vm1977, %v1935, 0
      %v1988 = vsel %vm1977, %v1936, 0
      %v1991 = vsel %vm1977, %v1937, 0
      %v1994 = vsel %vm1977, %v1938, 0
      %v1997 = vsel %vm1977, %v1939, 0
      %v2000 = vsel %vm1977, %v1940, 0
      %v2003 = vsel %vm1977, %v1941, 0
      %v2006 = vsel %vm1977, %v1942, 0
      %v2009 = vsel %vm1977, %v1943, 0
      %v2012 = vsel %vm1977, %v1944, 0
      %v2015 = vsel %vm1977, %v1945, 0
      %v2018 = vsel %vm1977, %v1946, 0
      %v2021 = vsel %vm1977, %v1947, 0
      %v2024 = vsel %vm1977, %v1948, 0
      %vm2026 = vcmask 1043456
      %v2028 = vsel %vm2026, %v1953, 0
      %2030 = vmatprep.subr.bf16.mxu0 0
      %2031 = vmatpush1.bf16.msra.mxu0 0
      %2032 = vmatprep.subr.bf16.mxu0 0
      %2033 = vmatpush1.bf16.msra.mxu0 0
      %2034 = vmatprep.subr.bf16.mxu0 0
      %2035 = vmatpush1.bf16.msra.mxu0 0
      %2036 = vmatprep.subr.bf16.mxu0 0
      %2037 = vmatpush1.bf16.msra.mxu0 %v2028
      %2038 = vmatprep.subr.bf16.mxu0 0
      %2039 = vmatpush1.bf16.msra.mxu0 %v1952
      %2040 = vmatprep.subr.bf16.mxu0 0
      %2041 = vmatpush1.bf16.msra.mxu0 %v1951
      %2042 = vmatprep.subr.bf16.mxu0 0
      %2043 = vmatpush1.bf16.msra.mxu0 %v1950
      %2044 = vmatprep.subr.bf16.mxu0 0
      %2045 = vmatpush1.bf16.msra.mxu0 %v1949
      %2046 = vmatprep.subr.bf16.mxu0 0
      %2047 = vmatpush2.bf16.msra.mxu0 0
      %2048 = vmatprep.subr.bf16.mxu0 0
      %2049 = vmatpush2.bf16.msra.mxu0 0
      %2050 = vmatprep.subr.bf16.mxu0 0
      %2051 = vmatpush2.bf16.msra.mxu0 0
      %2052 = vmatprep.subr.bf16.mxu0 0
      %2053 = vmatpush2.bf16.msra.mxu0 0
      %2054 = vmatprep.subr.bf16.mxu0 0
      %2055 = vmatpush2.bf16.msra.mxu0 0
      %2056 = vmatprep.subr.bf16.mxu0 0
      %2057 = vmatpush2.bf16.msra.mxu0 0
      %2058 = vmatprep.subr.bf16.mxu0 0
      %2059 = vmatpush2.bf16.msra.mxu0 0
      %2060 = vmatprep.subr.bf16.mxu0 0
      %2061 = vmatpush2.bf16.msra.mxu0 0
      %2062 = vmatprep.mubr.bf16.mxu0 0
      %2063 = vmatmul.mubr.bf16.gmra.mxu0 %v1979
      %v2064 = vpop.f32.mrf.mxu0
      %v2065 = vadd.f32 0.0, %v2064
      %v2066 = vpop.f32.mrf.mxu0
      %v2067 = vpop.f32.mrf.mxu0
      %v2068 = vadd.f32 0.0, %v2067
      %v2069 = vpop.f32.mrf.mxu0
      %2070 = vmatprep.mubr.bf16.mxu0 0
      %2071 = vmatmul.mubr.bf16.gmra.mxu0 %v1982
      %v2072 = vpop.f32.mrf.mxu0
      %v2073 = vadd.f32 0.0, %v2072
      %v2074 = vpop.f32.mrf.mxu0
      %v2075 = vpop.f32.mrf.mxu0
      %v2076 = vadd.f32 0.0, %v2075
      %v2077 = vpop.f32.mrf.mxu0
      %2078 = vmatprep.mubr.bf16.mxu0 0
      %2079 = vmatmul.mubr.bf16.gmra.mxu0 %v1985
      %v2080 = vpop.f32.mrf.mxu0
      %v2081 = vadd.f32 0.0, %v2080
      %v2082 = vpop.f32.mrf.mxu0
      %v2083 = vpop.f32.mrf.mxu0
      %v2084 = vadd.f32 0.0, %v2083
      %v2085 = vpop.f32.mrf.mxu0
      %2086 = vmatprep.mubr.bf16.mxu0 0
      %2087 = vmatmul.mubr.bf16.gmra.mxu0 %v1988
      %v2088 = vpop.f32.mrf.mxu0
      %v2089 = vadd.f32 0.0, %v2088
      %v2090 = vpop.f32.mrf.mxu0
      %v2091 = vpop.f32.mrf.mxu0
      %v2092 = vadd.f32 0.0, %v2091
      %v2093 = vpop.f32.mrf.mxu0
      %2094 = vmatprep.mubr.bf16.mxu0 0
      %2095 = vmatmul.mubr.bf16.gmra.mxu0 %v1991
      %v2096 = vpop.f32.mrf.mxu0
      %v2097 = vadd.f32 0.0, %v2096
      %v2098 = vpop.f32.mrf.mxu0
      %v2099 = vpop.f32.mrf.mxu0
      %v2100 = vadd.f32 0.0, %v2099
      %v2101 = vpop.f32.mrf.mxu0
      %2102 = vmatprep.mubr.bf16.mxu0 0
      %2103 = vmatmul.mubr.bf16.gmra.mxu0 %v1994
      %v2104 = vpop.f32.mrf.mxu0
      %v2105 = vadd.f32 0.0, %v2104
      %v2106 = vpop.f32.mrf.mxu0
      %v2107 = vpop.f32.mrf.mxu0
      %v2108 = vadd.f32 0.0, %v2107
      %v2109 = vpop.f32.mrf.mxu0
      %2110 = vmatprep.mubr.bf16.mxu0 0
      %2111 = vmatmul.mubr.bf16.gmra.mxu0 %v1997
      %v2112 = vpop.f32.mrf.mxu0
      %v2113 = vadd.f32 0.0, %v2112
      %v2114 = vpop.f32.mrf.mxu0
      %v2115 = vpop.f32.mrf.mxu0
      %v2116 = vadd.f32 0.0, %v2115
      %v2117 = vpop.f32.mrf.mxu0
      %2118 = vmatprep.mubr.bf16.mxu0 0
      %2119 = vmatmul.mubr.bf16.gmra.mxu0 %v2000
      %v2120 = vpop.f32.mrf.mxu0
      %v2121 = vadd.f32 0.0, %v2120
      %v2122 = vpop.f32.mrf.mxu0
      %v2123 = vpop.f32.mrf.mxu0
      %v2124 = vadd.f32 0.0, %v2123
      %v2125 = vpop.f32.mrf.mxu0
      %2126 = vmatprep.mubr.bf16.mxu0 0
      %2127 = vmatmul.mubr.bf16.gmra.mxu0 %v2003
      %v2128 = vpop.f32.mrf.mxu0
      %v2129 = vadd.f32 0.0, %v2128
      %v2130 = vpop.f32.mrf.mxu0
      %v2131 = vpop.f32.mrf.mxu0
      %v2132 = vadd.f32 0.0, %v2131
      %v2133 = vpop.f32.mrf.mxu0
      %2134 = vmatprep.mubr.bf16.mxu0 0
      %2135 = vmatmul.mubr.bf16.gmra.mxu0 %v2006
      %v2136 = vpop.f32.mrf.mxu0
      %v2137 = vadd.f32 0.0, %v2136
      %v2138 = vpop.f32.mrf.mxu0
      %v2139 = vpop.f32.mrf.mxu0
      %v2140 = vadd.f32 0.0, %v2139
      %v2141 = vpop.f32.mrf.mxu0
      %2142 = vmatprep.mubr.bf16.mxu0 0
      %2143 = vmatmul.mubr.bf16.gmra.mxu0 %v2009
      %v2144 = vpop.f32.mrf.mxu0
      %v2145 = vadd.f32 0.0, %v2144
      %v2146 = vpop.f32.mrf.mxu0
      %v2147 = vpop.f32.mrf.mxu0
      %v2148 = vadd.f32 0.0, %v2147
      %v2149 = vpop.f32.mrf.mxu0
      %2150 = vmatprep.mubr.bf16.mxu0 0
      %2151 = vmatmul.mubr.bf16.gmra.mxu0 %v2012
      %v2152 = vpop.f32.mrf.mxu0
      %v2153 = vadd.f32 0.0, %v2152
      %v2154 = vpop.f32.mrf.mxu0
      %v2155 = vpop.f32.mrf.mxu0
      %v2156 = vadd.f32 0.0, %v2155
      %v2157 = vpop.f32.mrf.mxu0
      %2158 = vmatprep.mubr.bf16.mxu0 0
      %2159 = vmatmul.mubr.bf16.gmra.mxu0 %v2015
      %v2160 = vpop.f32.mrf.mxu0
      %v2161 = vadd.f32 0.0, %v2160
      %v2162 = vpop.f32.mrf.mxu0
      %v2163 = vpop.f32.mrf.mxu0
      %v2164 = vadd.f32 0.0, %v2163
      %v2165 = vpop.f32.mrf.mxu0
      %2166 = vmatprep.mubr.bf16.mxu0 0
      %2167 = vmatmul.mubr.bf16.gmra.mxu0 %v2018
      %v2168 = vpop.f32.mrf.mxu0
      %v2169 = vadd.f32 0.0, %v2168
      %v2170 = vpop.f32.mrf.mxu0
      %v2171 = vpop.f32.mrf.mxu0
      %v2172 = vadd.f32 0.0, %v2171
      %v2173 = vpop.f32.mrf.mxu0
      %2174 = vmatprep.mubr.bf16.mxu0 0
      %2175 = vmatmul.mubr.bf16.gmra.mxu0 %v2021
      %v2176 = vpop.f32.mrf.mxu0
      %v2177 = vadd.f32 0.0, %v2176
      %v2178 = vpop.f32.mrf.mxu0
      %v2179 = vpop.f32.mrf.mxu0
      %v2180 = vadd.f32 0.0, %v2179
      %v2181 = vpop.f32.mrf.mxu0
      %2182 = vmatprep.mubr.bf16.mxu0 0
      %2183 = vmatmul.mubr.bf16.gmra.mxu0 %v2024
      %v2184 = vpop.f32.mrf.mxu0
      %v2185 = vadd.f32 0.0, %v2184
      %v2186 = vpop.f32.mrf.mxu0
      %v2187 = vpop.f32.mrf.mxu0
      %v2188 = vadd.f32 0.0, %v2187
      %v2189 = vpop.f32.mrf.mxu0
      %2190 = vdwg.mxu0
      %v2192 = vsel %vm1977, %v1853, 0
      %v2195 = vsel %vm1977, %v1854, 0
      %v2198 = vsel %vm1977, %v1855, 0
      %v2201 = vsel %vm1977, %v1856, 0
      %v2204 = vsel %vm1977, %v1857, 0
      %v2207 = vsel %vm1977, %v1858, 0
      %v2210 = vsel %vm1977, %v1859, 0
      %v2213 = vsel %vm1977, %v1860, 0
      %v2216 = vsel %vm1977, %v1861, 0
      %v2219 = vsel %vm1977, %v1862, 0
      %v2222 = vsel %vm1977, %v1863, 0
      %v2225 = vsel %vm1977, %v1864, 0
      %v2228 = vsel %vm1977, %v1865, 0
      %v2231 = vsel %vm1977, %v1866, 0
      %v2234 = vsel %vm1977, %v1867, 0
      %v2237 = vsel %vm1977, %v1868, 0
      %2239 = vmatprep.subr.bf16.mxu0 0
      %2240 = vmatpush1.bf16.msra.mxu0 0
      %2241 = vmatprep.subr.bf16.mxu0 0
      %2242 = vmatpush1.bf16.msra.mxu0 0
      %2243 = vmatprep.subr.bf16.mxu0 0
      %2244 = vmatpush1.bf16.msra.mxu0 0
      %2245 = vmatprep.subr.bf16.mxu0 0
      %2246 = vmatpush1.bf16.msra.mxu0 %v2028
      %2247 = vmatprep.subr.bf16.mxu0 0
      %2248 = vmatpush1.bf16.msra.mxu0 %v1952
      %2249 = vmatprep.subr.bf16.mxu0 0
      %2250 = vmatpush1.bf16.msra.mxu0 %v1951
      %2251 = vmatprep.subr.bf16.mxu0 0
      %2252 = vmatpush1.bf16.msra.mxu0 %v1950
      %2253 = vmatprep.subr.bf16.mxu0 0
      %2254 = vmatpush1.bf16.msra.mxu0 %v1949
      %2255 = vmatprep.subr.bf16.mxu0 0
      %2256 = vmatpush2.bf16.msra.mxu0 0
      %2257 = vmatprep.subr.bf16.mxu0 0
      %2258 = vmatpush2.bf16.msra.mxu0 0
      %2259 = vmatprep.subr.bf16.mxu0 0
      %2260 = vmatpush2.bf16.msra.mxu0 0
      %2261 = vmatprep.subr.bf16.mxu0 0
      %2262 = vmatpush2.bf16.msra.mxu0 0
      %2263 = vmatprep.subr.bf16.mxu0 0
      %2264 = vmatpush2.bf16.msra.mxu0 0
      %2265 = vmatprep.subr.bf16.mxu0 0
      %2266 = vmatpush2.bf16.msra.mxu0 0
      %2267 = vmatprep.subr.bf16.mxu0 0
      %2268 = vmatpush2.bf16.msra.mxu0 0
      %2269 = vmatprep.subr.bf16.mxu0 0
      %2270 = vmatpush2.bf16.msra.mxu0 0
      %2271 = vmatprep.mubr.bf16.mxu0 0
      %2272 = vmatmul.mubr.bf16.gmra.mxu0 %v2192
      %v2273 = vpop.f32.mrf.mxu0
      %v2274 = vadd.f32 %v2065, %v2273
      %v2275 = vpop.f32.mrf.mxu0
      %v2276 = vpop.f32.mrf.mxu0
      %v2277 = vadd.f32 %v2068, %v2276
      %v2278 = vpop.f32.mrf.mxu0
      %2279 = vmatprep.mubr.bf16.mxu0 0
      %2280 = vmatmul.mubr.bf16.gmra.mxu0 %v2195
      %v2281 = vpop.f32.mrf.mxu0
      %v2282 = vadd.f32 %v2073, %v2281
      %v2283 = vpop.f32.mrf.mxu0
      %v2284 = vpop.f32.mrf.mxu0
      %v2285 = vadd.f32 %v2076, %v2284
      %v2286 = vpop.f32.mrf.mxu0
      %2287 = vmatprep.mubr.bf16.mxu0 0
      %2288 = vmatmul.mubr.bf16.gmra.mxu0 %v2198
      %v2289 = vpop.f32.mrf.mxu0
      %v2290 = vadd.f32 %v2081, %v2289
      %v2291 = vpop.f32.mrf.mxu0
      %v2292 = vpop.f32.mrf.mxu0
      %v2293 = vadd.f32 %v2084, %v2292
      %v2294 = vpop.f32.mrf.mxu0
      %2295 = vmatprep.mubr.bf16.mxu0 0
      %2296 = vmatmul.mubr.bf16.gmra.mxu0 %v2201
      %v2297 = vpop.f32.mrf.mxu0
      %v2298 = vadd.f32 %v2089, %v2297
      %v2299 = vpop.f32.mrf.mxu0
      %v2300 = vpop.f32.mrf.mxu0
      %v2301 = vadd.f32 %v2092, %v2300
      %v2302 = vpop.f32.mrf.mxu0
      %2303 = vmatprep.mubr.bf16.mxu0 0
      %2304 = vmatmul.mubr.bf16.gmra.mxu0 %v2204
      %v2305 = vpop.f32.mrf.mxu0
      %v2306 = vadd.f32 %v2097, %v2305
      %v2307 = vpop.f32.mrf.mxu0
      %v2308 = vpop.f32.mrf.mxu0
      %v2309 = vadd.f32 %v2100, %v2308
      %v2310 = vpop.f32.mrf.mxu0
      %2311 = vmatprep.mubr.bf16.mxu0 0
      %2312 = vmatmul.mubr.bf16.gmra.mxu0 %v2207
      %v2313 = vpop.f32.mrf.mxu0
      %v2314 = vadd.f32 %v2105, %v2313
      %v2315 = vpop.f32.mrf.mxu0
      %v2316 = vpop.f32.mrf.mxu0
      %v2317 = vadd.f32 %v2108, %v2316
      %v2318 = vpop.f32.mrf.mxu0
      %2319 = vmatprep.mubr.bf16.mxu0 0
      %2320 = vmatmul.mubr.bf16.gmra.mxu0 %v2210
      %v2321 = vpop.f32.mrf.mxu0
      %v2322 = vadd.f32 %v2113, %v2321
      %v2323 = vpop.f32.mrf.mxu0
      %v2324 = vpop.f32.mrf.mxu0
      %v2325 = vadd.f32 %v2116, %v2324
      %v2326 = vpop.f32.mrf.mxu0
      %2327 = vmatprep.mubr.bf16.mxu0 0
      %2328 = vmatmul.mubr.bf16.gmra.mxu0 %v2213
      %v2329 = vpop.f32.mrf.mxu0
      %v2330 = vadd.f32 %v2121, %v2329
      %v2331 = vpop.f32.mrf.mxu0
      %v2332 = vpop.f32.mrf.mxu0
      %v2333 = vadd.f32 %v2124, %v2332
      %v2334 = vpop.f32.mrf.mxu0
      %2335 = vmatprep.mubr.bf16.mxu0 0
      %2336 = vmatmul.mubr.bf16.gmra.mxu0 %v2216
      %v2337 = vpop.f32.mrf.mxu0
      %v2338 = vadd.f32 %v2129, %v2337
      %v2339 = vpop.f32.mrf.mxu0
      %v2340 = vpop.f32.mrf.mxu0
      %v2341 = vadd.f32 %v2132, %v2340
      %v2342 = vpop.f32.mrf.mxu0
      %2343 = vmatprep.mubr.bf16.mxu0 0
      %2344 = vmatmul.mubr.bf16.gmra.mxu0 %v2219
      %v2345 = vpop.f32.mrf.mxu0
      %v2346 = vadd.f32 %v2137, %v2345
      %v2347 = vpop.f32.mrf.mxu0
      %v2348 = vpop.f32.mrf.mxu0
      %v2349 = vadd.f32 %v2140, %v2348
      %v2350 = vpop.f32.mrf.mxu0
      %2351 = vmatprep.mubr.bf16.mxu0 0
      %2352 = vmatmul.mubr.bf16.gmra.mxu0 %v2222
      %v2353 = vpop.f32.mrf.mxu0
      %v2354 = vadd.f32 %v2145, %v2353
      %v2355 = vpop.f32.mrf.mxu0
      %v2356 = vpop.f32.mrf.mxu0
      %v2357 = vadd.f32 %v2148, %v2356
      %v2358 = vpop.f32.mrf.mxu0
      %2359 = vmatprep.mubr.bf16.mxu0 0
      %2360 = vmatmul.mubr.bf16.gmra.mxu0 %v2225
      %v2361 = vpop.f32.mrf.mxu0
      %v2362 = vadd.f32 %v2153, %v2361
      %v2363 = vpop.f32.mrf.mxu0
      %v2364 = vpop.f32.mrf.mxu0
      %v2365 = vadd.f32 %v2156, %v2364
      %v2366 = vpop.f32.mrf.mxu0
      %2367 = vmatprep.mubr.bf16.mxu0 0
      %2368 = vmatmul.mubr.bf16.gmra.mxu0 %v2228
      %v2369 = vpop.f32.mrf.mxu0
      %v2370 = vadd.f32 %v2161, %v2369
      %v2371 = vpop.f32.mrf.mxu0
      %v2372 = vpop.f32.mrf.mxu0
      %v2373 = vadd.f32 %v2164, %v2372
      %v2374 = vpop.f32.mrf.mxu0
      %2375 = vmatprep.mubr.bf16.mxu0 0
      %2376 = vmatmul.mubr.bf16.gmra.mxu0 %v2231
      %v2377 = vpop.f32.mrf.mxu0
      %v2378 = vadd.f32 %v2169, %v2377
      %v2379 = vpop.f32.mrf.mxu0
      %v2380 = vpop.f32.mrf.mxu0
      %v2381 = vadd.f32 %v2172, %v2380
      %v2382 = vpop.f32.mrf.mxu0
      %2383 = vmatprep.mubr.bf16.mxu0 0
      %2384 = vmatmul.mubr.bf16.gmra.mxu0 %v2234
      %v2385 = vpop.f32.mrf.mxu0
      %v2386 = vadd.f32 %v2177, %v2385
      %v2387 = vpop.f32.mrf.mxu0
      %v2388 = vpop.f32.mrf.mxu0
      %v2389 = vadd.f32 %v2180, %v2388
      %v2390 = vpop.f32.mrf.mxu0
      %2391 = vmatprep.mubr.bf16.mxu0 0
      %2392 = vmatmul.mubr.bf16.gmra.mxu0 %v2237
      %v2393 = vpop.f32.mrf.mxu0
      %v2394 = vadd.f32 %v2185, %v2393
      %v2395 = vpop.f32.mrf.mxu0
      %v2396 = vpop.f32.mrf.mxu0
      %v2397 = vadd.f32 %v2188, %v2396
      %v2398 = vpop.f32.mrf.mxu0
      %2399 = vdwg.mxu0
      %v2401 = vsel %vm2026, %v1976, 0
      %2403 = vmatprep.subr.bf16.mxu0 0
      %2404 = vmatpush1.bf16.msra.mxu0 0
      %2405 = vmatprep.subr.bf16.mxu0 0
      %2406 = vmatpush1.bf16.msra.mxu0 0
      %2407 = vmatprep.subr.bf16.mxu0 0
      %2408 = vmatpush1.bf16.msra.mxu0 0
      %2409 = vmatprep.subr.bf16.mxu0 0
      %2410 = vmatpush1.bf16.msra.mxu0 %v2401
      %2411 = vmatprep.subr.bf16.mxu0 0
      %2412 = vmatpush1.bf16.msra.mxu0 %v1975
      %2413 = vmatprep.subr.bf16.mxu0 0
      %2414 = vmatpush1.bf16.msra.mxu0 %v1974
      %2415 = vmatprep.subr.bf16.mxu0 0
      %2416 = vmatpush1.bf16.msra.mxu0 %v1973
      %2417 = vmatprep.subr.bf16.mxu0 0
      %2418 = vmatpush1.bf16.msra.mxu0 %v1972
      %2419 = vmatprep.subr.bf16.mxu0 0
      %2420 = vmatpush2.bf16.msra.mxu0 0
      %2421 = vmatprep.subr.bf16.mxu0 0
      %2422 = vmatpush2.bf16.msra.mxu0 0
      %2423 = vmatprep.subr.bf16.mxu0 0
      %2424 = vmatpush2.bf16.msra.mxu0 0
      %2425 = vmatprep.subr.bf16.mxu0 0
      %2426 = vmatpush2.bf16.msra.mxu0 0
      %2427 = vmatprep.subr.bf16.mxu0 0
      %2428 = vmatpush2.bf16.msra.mxu0 0
      %2429 = vmatprep.subr.bf16.mxu0 0
      %2430 = vmatpush2.bf16.msra.mxu0 0
      %2431 = vmatprep.subr.bf16.mxu0 0
      %2432 = vmatpush2.bf16.msra.mxu0 0
      %2433 = vmatprep.subr.bf16.mxu0 0
      %2434 = vmatpush2.bf16.msra.mxu0 0
      %2435 = vmatprep.mubr.bf16.mxu0 0
      %2436 = vmatmul.mubr.bf16.gmra.mxu0 %v2192
      %v2437 = vpop.f32.mrf.mxu0
      %v2438 = vadd.f32 0.0, %v2437
      %v2439 = vpop.f32.mrf.mxu0
      %v2440 = vpop.f32.mrf.mxu0
      %v2441 = vadd.f32 0.0, %v2440
      %v2442 = vpop.f32.mrf.mxu0
      %2443 = vmatprep.mubr.bf16.mxu0 0
      %2444 = vmatmul.mubr.bf16.gmra.mxu0 %v2195
      %v2445 = vpop.f32.mrf.mxu0
      %v2446 = vadd.f32 0.0, %v2445
      %v2447 = vpop.f32.mrf.mxu0
      %v2448 = vpop.f32.mrf.mxu0
      %v2449 = vadd.f32 0.0, %v2448
      %v2450 = vpop.f32.mrf.mxu0
      %2451 = vmatprep.mubr.bf16.mxu0 0
      %2452 = vmatmul.mubr.bf16.gmra.mxu0 %v2198
      %v2453 = vpop.f32.mrf.mxu0
      %v2454 = vadd.f32 0.0, %v2453
      %v2455 = vpop.f32.mrf.mxu0
      %v2456 = vpop.f32.mrf.mxu0
      %v2457 = vadd.f32 0.0, %v2456
      %v2458 = vpop.f32.mrf.mxu0
      %2459 = vmatprep.mubr.bf16.mxu0 0
      %2460 = vmatmul.mubr.bf16.gmra.mxu0 %v2201
      %v2461 = vpop.f32.mrf.mxu0
      %v2462 = vadd.f32 0.0, %v2461
      %v2463 = vpop.f32.mrf.mxu0
      %v2464 = vpop.f32.mrf.mxu0
      %v2465 = vadd.f32 0.0, %v2464
      %v2466 = vpop.f32.mrf.mxu0
      %2467 = vmatprep.mubr.bf16.mxu0 0
      %2468 = vmatmul.mubr.bf16.gmra.mxu0 %v2204
      %v2469 = vpop.f32.mrf.mxu0
      %v2470 = vadd.f32 0.0, %v2469
      %v2471 = vpop.f32.mrf.mxu0
      %v2472 = vpop.f32.mrf.mxu0
      %v2473 = vadd.f32 0.0, %v2472
      %v2474 = vpop.f32.mrf.mxu0
      %2475 = vmatprep.mubr.bf16.mxu0 0
      %2476 = vmatmul.mubr.bf16.gmra.mxu0 %v2207
      %v2477 = vpop.f32.mrf.mxu0
      %v2478 = vadd.f32 0.0, %v2477
      %v2479 = vpop.f32.mrf.mxu0
      %v2480 = vpop.f32.mrf.mxu0
      %v2481 = vadd.f32 0.0, %v2480
      %v2482 = vpop.f32.mrf.mxu0
      %2483 = vmatprep.mubr.bf16.mxu0 0
      %2484 = vmatmul.mubr.bf16.gmra.mxu0 %v2210
      %v2485 = vpop.f32.mrf.mxu0
      %v2486 = vadd.f32 0.0, %v2485
      %v2487 = vpop.f32.mrf.mxu0
      %v2488 = vpop.f32.mrf.mxu0
      %v2489 = vadd.f32 0.0, %v2488
      %v2490 = vpop.f32.mrf.mxu0
      %2491 = vmatprep.mubr.bf16.mxu0 0
      %2492 = vmatmul.mubr.bf16.gmra.mxu0 %v2213
      %v2493 = vpop.f32.mrf.mxu0
      %v2494 = vadd.f32 0.0, %v2493
      %v2495 = vpop.f32.mrf.mxu0
      %v2496 = vpop.f32.mrf.mxu0
      %v2497 = vadd.f32 0.0, %v2496
      %v2498 = vpop.f32.mrf.mxu0
      %2499 = vmatprep.mubr.bf16.mxu0 0
      %2500 = vmatmul.mubr.bf16.gmra.mxu0 %v2216
      %v2501 = vpop.f32.mrf.mxu0
      %v2502 = vadd.f32 0.0, %v2501
      %v2503 = vpop.f32.mrf.mxu0
      %v2504 = vpop.f32.mrf.mxu0
      %v2505 = vadd.f32 0.0, %v2504
      %v2506 = vpop.f32.mrf.mxu0
      %2507 = vmatprep.mubr.bf16.mxu0 0
      %2508 = vmatmul.mubr.bf16.gmra.mxu0 %v2219
      %v2509 = vpop.f32.mrf.mxu0
      %v2510 = vadd.f32 0.0, %v2509
      %v2511 = vpop.f32.mrf.mxu0
      %v2512 = vpop.f32.mrf.mxu0
      %v2513 = vadd.f32 0.0, %v2512
      %v2514 = vpop.f32.mrf.mxu0
      %2515 = vmatprep.mubr.bf16.mxu0 0
      %2516 = vmatmul.mubr.bf16.gmra.mxu0 %v2222
      %v2517 = vpop.f32.mrf.mxu0
      %v2518 = vadd.f32 0.0, %v2517
      %v2519 = vpop.f32.mrf.mxu0
      %v2520 = vpop.f32.mrf.mxu0
      %v2521 = vadd.f32 0.0, %v2520
      %v2522 = vpop.f32.mrf.mxu0
      %2523 = vmatprep.mubr.bf16.mxu0 0
      %2524 = vmatmul.mubr.bf16.gmra.mxu0 %v2225
      %v2525 = vpop.f32.mrf.mxu0
      %v2526 = vadd.f32 0.0, %v2525
      %v2527 = vpop.f32.mrf.mxu0
      %v2528 = vpop.f32.mrf.mxu0
      %v2529 = vadd.f32 0.0, %v2528
      %v2530 = vpop.f32.mrf.mxu0
      %2531 = vmatprep.mubr.bf16.mxu0 0
      %2532 = vmatmul.mubr.bf16.gmra.mxu0 %v2228
      %v2533 = vpop.f32.mrf.mxu0
      %v2534 = vadd.f32 0.0, %v2533
      %v2535 = vpop.f32.mrf.mxu0
      %v2536 = vpop.f32.mrf.mxu0
      %v2537 = vadd.f32 0.0, %v2536
      %v2538 = vpop.f32.mrf.mxu0
      %2539 = vmatprep.mubr.bf16.mxu0 0
      %2540 = vmatmul.mubr.bf16.gmra.mxu0 %v2231
      %v2541 = vpop.f32.mrf.mxu0
      %v2542 = vadd.f32 0.0, %v2541
      %v2543 = vpop.f32.mrf.mxu0
      %v2544 = vpop.f32.mrf.mxu0
      %v2545 = vadd.f32 0.0, %v2544
      %v2546 = vpop.f32.mrf.mxu0
      %2547 = vmatprep.mubr.bf16.mxu0 0
      %2548 = vmatmul.mubr.bf16.gmra.mxu0 %v2234
      %v2549 = vpop.f32.mrf.mxu0
      %v2550 = vadd.f32 0.0, %v2549
      %v2551 = vpop.f32.mrf.mxu0
      %v2552 = vpop.f32.mrf.mxu0
      %v2553 = vadd.f32 0.0, %v2552
      %v2554 = vpop.f32.mrf.mxu0
      %2555 = vmatprep.mubr.bf16.mxu0 0
      %2556 = vmatmul.mubr.bf16.gmra.mxu0 %v2237
      %v2557 = vpop.f32.mrf.mxu0
      %v2558 = vadd.f32 0.0, %v2557
      %v2559 = vpop.f32.mrf.mxu0
      %v2560 = vpop.f32.mrf.mxu0
      %v2561 = vadd.f32 0.0, %v2560
      %v2562 = vpop.f32.mrf.mxu0
      %2563 = vdwg.mxu0
      %v2564 = vadd.f32 %v2274, %v2438
      %v2565 = vadd.f32 %v2277, %v2441
      %v2566 = vadd.f32 %v2282, %v2446
      %v2567 = vadd.f32 %v2285, %v2449
      %v2568 = vadd.f32 %v2290, %v2454
      %v2569 = vadd.f32 %v2293, %v2457
      %v2570 = vadd.f32 %v2298, %v2462
      %v2571 = vadd.f32 %v2301, %v2465
      %v2572 = vadd.f32 %v2306, %v2470
      %v2573 = vadd.f32 %v2309, %v2473
      %v2574 = vadd.f32 %v2314, %v2478
      %v2575 = vadd.f32 %v2317, %v2481
      %v2576 = vadd.f32 %v2322, %v2486
      %v2577 = vadd.f32 %v2325, %v2489
      %v2578 = vadd.f32 %v2330, %v2494
      %v2579 = vadd.f32 %v2333, %v2497
      %v2580 = vadd.f32 %v2338, %v2502
      %v2581 = vadd.f32 %v2341, %v2505
      %v2582 = vadd.f32 %v2346, %v2510
      %v2583 = vadd.f32 %v2349, %v2513
      %v2584 = vadd.f32 %v2354, %v2518
      %v2585 = vadd.f32 %v2357, %v2521
      %v2586 = vadd.f32 %v2362, %v2526
      %v2587 = vadd.f32 %v2365, %v2529
      %v2588 = vadd.f32 %v2370, %v2534
      %v2589 = vadd.f32 %v2373, %v2537
      %v2590 = vadd.f32 %v2378, %v2542
      %v2591 = vadd.f32 %v2381, %v2545
      %v2592 = vadd.f32 %v2386, %v2550
      %v2593 = vadd.f32 %v2389, %v2553
      %v2594 = vadd.f32 %v2394, %v2558
      %v2595 = vadd.f32 %v2397, %v2561
      %2596 = vst.msk [vmem:[%s231] sm:$0xff] %vm379, %v2564
      %2597 = vst.msk [vmem:[%s231 + $0x8] sm:$0xff] %vm379, %v2565
      %2598 = vst.msk [vmem:[%s231 + $0x10] sm:$0xff] %vm379, %v2566
      %2599 = vst.msk [vmem:[%s231 + $0x18] sm:$0xff] %vm379, %v2567
      %2600 = vst.msk [vmem:[%s231 + $0x20] sm:$0xff] %vm379, %v2568
      %2601 = vst.msk [vmem:[%s231 + $0x28] sm:$0xff] %vm379, %v2569
      %2602 = vst.msk [vmem:[%s231 + $0x30] sm:$0xff] %vm379, %v2570
      %2603 = vst.msk [vmem:[%s231 + $0x38] sm:$0xff] %vm379, %v2571
      %2604 = vst.msk [vmem:[%s231 + $0x40] sm:$0xff] %vm379, %v2572
      %2605 = vst.msk [vmem:[%s231 + $0x48] sm:$0xff] %vm379, %v2573
      %2606 = vst.msk [vmem:[%s231 + $0x50] sm:$0xff] %vm379, %v2574
      %2607 = vst.msk [vmem:[%s231 + $0x58] sm:$0xff] %vm379, %v2575
      %2608 = vst.msk [vmem:[%s231 + $0x60] sm:$0xff] %vm379, %v2576
      %2609 = vst.msk [vmem:[%s231 + $0x68] sm:$0xff] %vm379, %v2577
      %2610 = vst.msk [vmem:[%s231 + $0x70] sm:$0xff] %vm379, %v2578
      %2611 = vst.msk [vmem:[%s231 + $0x78] sm:$0xff] %vm379, %v2579
      %2612 = vst.msk [vmem:[%s231 + $0x80] sm:$0xff] %vm379, %v2580
      %2613 = vst.msk [vmem:[%s231 + $0x88] sm:$0xff] %vm379, %v2581
      %2614 = vst.msk [vmem:[%s231 + $0x90] sm:$0xff] %vm379, %v2582
      %2615 = vst.msk [vmem:[%s231 + $0x98] sm:$0xff] %vm379, %v2583
      %2616 = vst.msk [vmem:[%s231 + $0xa0] sm:$0xff] %vm379, %v2584
      %2617 = vst.msk [vmem:[%s231 + $0xa8] sm:$0xff] %vm379, %v2585
      %2618 = vst.msk [vmem:[%s231 + $0xb0] sm:$0xff] %vm379, %v2586
      %2619 = vst.msk [vmem:[%s231 + $0xb8] sm:$0xff] %vm379, %v2587
      %2620 = vst.msk [vmem:[%s231 + $0xc0] sm:$0xff] %vm379, %v2588
      %2621 = vst.msk [vmem:[%s231 + $0xc8] sm:$0xff] %vm379, %v2589
      %2622 = vst.msk [vmem:[%s231 + $0xd0] sm:$0xff] %vm379, %v2590
      %2623 = vst.msk [vmem:[%s231 + $0xd8] sm:$0xff] %vm379, %v2591
      %2624 = vst.msk [vmem:[%s231 + $0xe0] sm:$0xff] %vm379, %v2592
      %2625 = vst.msk [vmem:[%s231 + $0xe8] sm:$0xff] %vm379, %v2593
      %2626 = vst.msk [vmem:[%s231 + $0xf0] sm:$0xff] %vm379, %v2594
      %2627 = vst.msk [vmem:[%s231 + $0xf8] sm:$0xff] %vm379, %v2595
      %v2628 = vsel %vm379, %v2564, 0.0
      %v2629 = vsel %vm379, %v2565, 0.0
      %v2630 = vadd.f32 %v2628, %v2629
      %v2631 = vsel %vm379, %v2566, 0.0
      %v2632 = vadd.f32 %v2630, %v2631
      %v2633 = vsel %vm379, %v2567, 0.0
      %v2634 = vadd.f32 %v2632, %v2633
      %v2635 = vsel %vm379, %v2568, 0.0
      %v2636 = vadd.f32 %v2634, %v2635
      %v2637 = vsel %vm379, %v2569, 0.0
      %v2638 = vadd.f32 %v2636, %v2637
      %v2639 = vsel %vm379, %v2570, 0.0
      %v2640 = vadd.f32 %v2638, %v2639
      %v2641 = vsel %vm379, %v2571, 0.0
      %v2642 = vadd.f32 %v2640, %v2641
      %v2643 = vsel %vm379, %v2572, 0.0
      %v2644 = vadd.f32 %v2642, %v2643
      %v2645 = vsel %vm379, %v2573, 0.0
      %v2646 = vadd.f32 %v2644, %v2645
      %v2647 = vsel %vm379, %v2574, 0.0
      %v2648 = vadd.f32 %v2646, %v2647
      %v2649 = vsel %vm379, %v2575, 0.0
      %v2650 = vadd.f32 %v2648, %v2649
      %v2651 = vsel %vm379, %v2576, 0.0
      %v2652 = vadd.f32 %v2650, %v2651
      %v2653 = vsel %vm379, %v2577, 0.0
      %v2654 = vadd.f32 %v2652, %v2653
      %v2655 = vsel %vm379, %v2578, 0.0
      %v2656 = vadd.f32 %v2654, %v2655
      %v2657 = vsel %vm379, %v2579, 0.0
      %v2658 = vadd.f32 %v2656, %v2657
      %v2659 = vsel %vm379, %v2580, 0.0
      %v2660 = vadd.f32 %v2658, %v2659
      %v2661 = vsel %vm379, %v2581, 0.0
      %v2662 = vadd.f32 %v2660, %v2661
      %v2663 = vsel %vm379, %v2582, 0.0
      %v2664 = vadd.f32 %v2662, %v2663
      %v2665 = vsel %vm379, %v2583, 0.0
      %v2666 = vadd.f32 %v2664, %v2665
      %v2667 = vsel %vm379, %v2584, 0.0
      %v2668 = vadd.f32 %v2666, %v2667
      %v2669 = vsel %vm379, %v2585, 0.0
      %v2670 = vadd.f32 %v2668, %v2669
      %v2671 = vsel %vm379, %v2586, 0.0
      %v2672 = vadd.f32 %v2670, %v2671
      %v2673 = vsel %vm379, %v2587, 0.0
      %v2674 = vadd.f32 %v2672, %v2673
      %v2675 = vsel %vm379, %v2588, 0.0
      %v2676 = vadd.f32 %v2674, %v2675
      %v2677 = vsel %vm379, %v2589, 0.0
      %v2678 = vadd.f32 %v2676, %v2677
      %v2679 = vsel %vm379, %v2590, 0.0
      %v2680 = vadd.f32 %v2678, %v2679
      %v2681 = vsel %vm379, %v2591, 0.0
      %v2682 = vadd.f32 %v2680, %v2681
      %v2683 = vsel %vm379, %v2592, 0.0
      %v2684 = vadd.f32 %v2682, %v2683
      %v2685 = vsel %vm379, %v2593, 0.0
      %v2686 = vadd.f32 %v2684, %v2685
      %v2687 = vsel %vm379, %v2594, 0.0
      %v2688 = vadd.f32 %v2686, %v2687
      %v2689 = vsel %vm379, %v2595, 0.0
      %v2690 = vadd.f32 %v2688, %v2689
      %v2691 = vrot.slane %v2690, 4
      %v2692 = vadd.f32 %v2690, %v2691
      %v2693 = vrot.slane %v2692, 2
      %v2694 = vadd.f32 %v2692, %v2693
      %v2695 = vrot.slane %v2694, 1
      %v2696 = vadd.f32 %v2694, %v2695
      %2697 = vst.msk [vmem:[%s235] sm:$0x1] %vm388, %v2696
      %v2698 = vmul.f32 %v2564, %v2564
      %v2699 = vmul.f32 %v2565, %v2565
      %v2700 = vmul.f32 %v2566, %v2566
      %v2701 = vmul.f32 %v2567, %v2567
      %v2702 = vmul.f32 %v2568, %v2568
      %v2703 = vmul.f32 %v2569, %v2569
      %v2704 = vmul.f32 %v2570, %v2570
      %v2705 = vmul.f32 %v2571, %v2571
      %v2706 = vmul.f32 %v2572, %v2572
      %v2707 = vmul.f32 %v2573, %v2573
      %v2708 = vmul.f32 %v2574, %v2574
      %v2709 = vmul.f32 %v2575, %v2575
      %v2710 = vmul.f32 %v2576, %v2576
      %v2711 = vmul.f32 %v2577, %v2577
      %v2712 = vmul.f32 %v2578, %v2578
      %v2713 = vmul.f32 %v2579, %v2579
      %v2714 = vmul.f32 %v2580, %v2580
      %v2715 = vmul.f32 %v2581, %v2581
      %v2716 = vmul.f32 %v2582, %v2582
      %v2717 = vmul.f32 %v2583, %v2583
      %v2718 = vmul.f32 %v2584, %v2584
      %v2719 = vmul.f32 %v2585, %v2585
      %v2720 = vmul.f32 %v2586, %v2586
      %v2721 = vmul.f32 %v2587, %v2587
      %v2722 = vmul.f32 %v2588, %v2588
      %v2723 = vmul.f32 %v2589, %v2589
      %v2724 = vmul.f32 %v2590, %v2590
      %v2725 = vmul.f32 %v2591, %v2591
      %v2726 = vmul.f32 %v2592, %v2592
      %v2727 = vmul.f32 %v2593, %v2593
      %v2728 = vmul.f32 %v2594, %v2594
      %v2729 = vmul.f32 %v2595, %v2595
      %v2730 = vsel %vm379, %v2698, 0.0
      %v2731 = vsel %vm379, %v2699, 0.0
      %v2732 = vadd.f32 %v2730, %v2731
      %v2733 = vsel %vm379, %v2700, 0.0
      %v2734 = vadd.f32 %v2732, %v2733
      %v2735 = vsel %vm379, %v2701, 0.0
      %v2736 = vadd.f32 %v2734, %v2735
      %v2737 = vsel %vm379, %v2702, 0.0
      %v2738 = vadd.f32 %v2736, %v2737
      %v2739 = vsel %vm379, %v2703, 0.0
      %v2740 = vadd.f32 %v2738, %v2739
      %v2741 = vsel %vm379, %v2704, 0.0
      %v2742 = vadd.f32 %v2740, %v2741
      %v2743 = vsel %vm379, %v2705, 0.0
      %v2744 = vadd.f32 %v2742, %v2743
      %v2745 = vsel %vm379, %v2706, 0.0
      %v2746 = vadd.f32 %v2744, %v2745
      %v2747 = vsel %vm379, %v2707, 0.0
      %v2748 = vadd.f32 %v2746, %v2747
      %v2749 = vsel %vm379, %v2708, 0.0
      %v2750 = vadd.f32 %v2748, %v2749
      %v2751 = vsel %vm379, %v2709, 0.0
      %v2752 = vadd.f32 %v2750, %v2751
      %v2753 = vsel %vm379, %v2710, 0.0
      %v2754 = vadd.f32 %v2752, %v2753
      %v2755 = vsel %vm379, %v2711, 0.0
      %v2756 = vadd.f32 %v2754, %v2755
      %v2757 = vsel %vm379, %v2712, 0.0
      %v2758 = vadd.f32 %v2756, %v2757
      %v2759 = vsel %vm379, %v2713, 0.0
      %v2760 = vadd.f32 %v2758, %v2759
      %v2761 = vsel %vm379, %v2714, 0.0
      %v2762 = vadd.f32 %v2760, %v2761
      %v2763 = vsel %vm379, %v2715, 0.0
      %v2764 = vadd.f32 %v2762, %v2763
      %v2765 = vsel %vm379, %v2716, 0.0
      %v2766 = vadd.f32 %v2764, %v2765
      %v2767 = vsel %vm379, %v2717, 0.0
      %v2768 = vadd.f32 %v2766, %v2767
      %v2769 = vsel %vm379, %v2718, 0.0
      %v2770 = vadd.f32 %v2768, %v2769
      %v2771 = vsel %vm379, %v2719, 0.0
      %v2772 = vadd.f32 %v2770, %v2771
      %v2773 = vsel %vm379, %v2720, 0.0
      %v2774 = vadd.f32 %v2772, %v2773
      %v2775 = vsel %vm379, %v2721, 0.0
      %v2776 = vadd.f32 %v2774, %v2775
      %v2777 = vsel %vm379, %v2722, 0.0
      %v2778 = vadd.f32 %v2776, %v2777
      %v2779 = vsel %vm379, %v2723, 0.0
      %v2780 = vadd.f32 %v2778, %v2779
      %v2781 = vsel %vm379, %v2724, 0.0
      %v2782 = vadd.f32 %v2780, %v2781
      %v2783 = vsel %vm379, %v2725, 0.0
      %v2784 = vadd.f32 %v2782, %v2783
      %v2785 = vsel %vm379, %v2726, 0.0
      %v2786 = vadd.f32 %v2784, %v2785
      %v2787 = vsel %vm379, %v2727, 0.0
      %v2788 = vadd.f32 %v2786, %v2787
      %v2789 = vsel %vm379, %v2728, 0.0
      %v2790 = vadd.f32 %v2788, %v2789
      %v2791 = vsel %vm379, %v2729, 0.0
      %v2792 = vadd.f32 %v2790, %v2791
      %v2793 = vrot.slane %v2792, 4
      %v2794 = vadd.f32 %v2792, %v2793
      %v2795 = vrot.slane %v2794, 2
      %v2796 = vadd.f32 %v2794, %v2795
      %v2797 = vrot.slane %v2796, 1
      %v2798 = vadd.f32 %v2796, %v2797
      %2799 = vst.msk [vmem:[%s235 + $0x1] sm:$0x1] %vm388, %v2798
      %p2800 = scmp.lt.s32.totalorder %s17, 1
      %s2801 = scalar_select %p2800, %s17, 1
      %s2802 = smul.addr %s2801, 32
      %s2803 = smul.addr %s2802, 8
      %s2804 = scalar_lea.vmem %s4, %s2803
      %p2805 = scmp.lt.s32.totalorder %s17, 1
      %s2806 = scalar_select %p2805, %s17, 1
      %s2807 = smul.addr %s2806, 2
      %s2808 = scalar_lea.vmem %s5, %s2807
      // Predicated region
      $region37: #{resblock_forward.4} parent=35 // pred_check
        %p2809 = pneg %p124
      $region38: #{resblock_forward.4} parent=35 // pred_check_branch
        %2811 = sbr.rel (%p2809) target = $region40
      $region39: #{resblock_forward.4} parent=35 // pred_region
        _
      $region40: #{resblock_forward.4} parent=35 // pred_fallthru
        _
      // Predicated region
      $region41: #{resblock_forward.4} parent=35 // pred_check
        %p2812 = pneg %p150
      $region42: #{resblock_forward.4} parent=35 // pred_check_branch
        %2814 = sbr.rel (%p2812) target = $region44
      $region43: #{resblock_forward.4} parent=35 // pred_region
        _
      $region44: #{resblock_forward.4} parent=35 // pred_fallthru
        _
    $region36: #{resblock_forward.4} parent=5 // pred_fallthru
      _
    %p2815 = scmp.le.s32.totalorder 2, %s12
    // Predicated region
    $region45: #{resblock_forward.4} parent=5 // pred_check
      %p2816 = pneg %p2815
    $region46: #{resblock_forward.4} parent=5 // pred_check_branch
      %2818 = sbr.rel (%p2816) target = $region48
    $region47: #{resblock_forward.4} parent=5 // pred_region
      %s2819 = ssub.s32 %s12, 2
      // Predicated region
      $region49: #{resblock_forward.4} parent=47 // pred_check
        %p2820 = pneg %p130
      $region50: #{resblock_forward.4} parent=47 // pred_check_branch
        %2822 = sbr.rel (%p2820) target = $region52
      $region51: #{resblock_forward.4} parent=47 // pred_region
        %p2823 = scmp.lt.s32.totalorder %s18, 1
        %s2824 = scalar_select %p2823, %s18, 1
        %s2825 = smul.addr %s2824, 32
        %s2826 = smul.addr %s2825, 8
        %s2827 = scalar_lea.vmem %s4, %s2826
      $region52: #{resblock_forward.4} parent=47 // pred_fallthru
        _
      // Predicated region
      $region53: #{resblock_forward.4} parent=47 // pred_check
        %p2828 = pneg %p156
      $region54: #{resblock_forward.4} parent=47 // pred_check_branch
        %2830 = sbr.rel (%p2828) target = $region56
      $region55: #{resblock_forward.4} parent=47 // pred_region
        %p2831 = scmp.lt.s32.totalorder %s18, 1
        %s2832 = scalar_select %p2831, %s18, 1
        %s2833 = smul.addr %s2832, 2
        %s2834 = scalar_lea.vmem %s5, %s2833
      $region56: #{resblock_forward.4} parent=47 // pred_fallthru
        _
    $region48: #{resblock_forward.4} parent=5 // pred_fallthru
      _
  $region6: #{resblock_forward.4} parent=0 // loop_footer
    %s16 = sadd.s32 1, %s12
  $region7: #{resblock_forward.4} parent=0 // loop_footer_branch
    %11 = sbr.rel target = $region3
  $region8: #{resblock_forward.4} parent=0 // loop_exit
    _

</llo_original>
